<compile_context>
chip_gen: v7x
topology: tpu7x:2x2x1
jax: 0.10.0
libtpu: 0.0.40
codegen_flags: <defaults>
</compile_context>

<pallas_src>
import math
from functools import partial

import jax
import jax.numpy as jnp
from jax.experimental import pallas as pl
from jax.experimental.pallas import tpu as pltpu


# ----------------------------------------------------------------------------
# Generation-aware VMEM budgeting
# ----------------------------------------------------------------------------
def _vmem_capacity_bytes():
    try:
        info = pltpu.get_tpu_info()
        cap = getattr(info, "vmem_capacity_bytes", None)
        if cap:
            return int(cap)
    except Exception:
        pass
    return 64 * 1024 * 1024          # conservative default (v7x physical VMEM)


_VMEM_CAP = _vmem_capacity_bytes()
_VMEM_LIMIT = min(int(_VMEM_CAP * 0.70), 100 * 1024 * 1024)   # scoped limit handed to Mosaic
_TILE_BUDGET = int(_VMEM_LIMIT * 0.80)                        # what our own blocks may use


def _ceil_to(a, b):
    return -(-a // b) * b


def _apply_act(y, act):
    if act == "leaky_relu":
        return jnp.where(y >= 0, y, 0.01 * y)
    if act == "relu":
        return jnp.maximum(y, 0.0)
    return y


# ----------------------------------------------------------------------------
# Pallas kernel 1: direct 3x3 conv (contiguous flat-row taps, VMEM f32 acc),
# fused bias / eval-BN / LeakyReLU epilogue.
# ----------------------------------------------------------------------------
def _conv3x3_kernel(x_ref, w_ref, s_ref, b_ref, o_ref, acc_ref, *, Wp, th, act):
    # x_ref : (1, (th+3)*Wp, Cip)   flattened padded rows of this row tile
    # w_ref : (9, Cip, tco)         one (Cip, tco) slab per tap
    # s_ref / b_ref : (1, tco)      folded BN scale / shift (f32)
    # o_ref : (1, th*Wp, tco)       acc_ref : (th*Wp, tco) f32 VMEM scratch
    M = th * Wp
    for kh in range(3):
        for kw in range(3):
            off = kh * Wp + kw                       # contiguous slab offset
            xs = x_ref[0, off:off + M, :]
            p = jnp.dot(xs, w_ref[kh * 3 + kw],
                        preferred_element_type=jnp.float32)
            if kh == 0 and kw == 0:
                acc_ref[...] = p
            else:
                acc_ref[...] += p
    y = acc_ref[...] * s_ref[...] + b_ref[...]
    o_ref[0] = _apply_act(y, act).astype(o_ref.dtype)


def _conv3x3_direct(x, w, scale, shift, act, out_dtype):
    """3x3 / stride 1 / padding 1 convolution, NHWC, fused BN/act epilogue."""
    N, H, W, Ci = x.shape
    KH, KW, _, Co = w.shape
    assert (KH, KW) == (3, 3)
    Hp = H + 2
    Wp = _ceil_to(W + 2, 8)                 # lane/sublane friendly padded width
    Cip = _ceil_to(Ci, 128)
    Cop = _ceil_to(Co, 128)
    out_bytes = jnp.dtype(out_dtype).itemsize

    # --- output-channel tile (prefer 256 when the weight slab fits comfortably) ---
    tco = 128
    if Cop % 256 == 0 and 2 * 9 * Cip * 256 * 2 <= _TILE_BUDGET // 3:
        tco = 256
    n_co = Cop // tco

    # --- batch stacked along H into one giant padded image ---
    R = N * Hp                              # giant-image row count

    def tile_bytes(th):
        th_in = th + 3
        return (2 * th_in * Wp * Cip * 2          # input tile  (bf16, double buffered)
                + 2 * 9 * Cip * tco * 2           # weight tile (bf16, double buffered)
                + 2 * th * Wp * tco * out_bytes   # output tile (double buffered)
                + th * Wp * tco * 4)              # f32 accumulator scratch

    th = max(1, min(R, max(8, 2048 // Wp)))       # target dot M = th*Wp ~ 2048
    while th > 1 and tile_bytes(th) > _TILE_BUDGET:
        th = max(1, th // 2)
    n_t = -(-R // th)
    th = -(-R // n_t)                             # balance tiles (minimize waste rows)
    n_t = -(-R // th)
    th_in = th + 3                                # 2-row halo + 1 spare row for flat taps

    xg = jnp.pad(x.astype(jnp.bfloat16),
                 ((0, 0), (1, 1), (1, Wp - W - 1), (0, Cip - Ci)))
    xg = xg.reshape(N * Hp, Wp, Cip)
    R_in = n_t * th + 3
    xg = jnp.pad(xg, ((0, R_in - R), (0, 0), (0, 0)))

    # Overlapping row tiles (halo duplicated once in HBM, ~(th+3)/th overhead).
    rows = (jnp.arange(n_t, dtype=jnp.int32)[:, None] * th
            + jnp.arange(th_in, dtype=jnp.int32)[None, :])
    xt = xg[rows].reshape(n_t, th_in * Wp, Cip)

    wt = jnp.pad(w.astype(jnp.bfloat16),
                 ((0, 0), (0, 0), (0, Cip - Ci), (0, Cop - Co))).reshape(9, Cip, Cop)
    sp = jnp.pad(scale.astype(jnp.float32), (0, Cop - Co)).reshape(1, Cop)
    bp = jnp.pad(shift.astype(jnp.float32), (0, Cop - Co)).reshape(1, Cop)

    out = pl.pallas_call(
        partial(_conv3x3_kernel, Wp=Wp, th=th, act=act),
        out_shape=jax.ShapeDtypeStruct((n_t, th * Wp, Cop), out_dtype),
        grid_spec=pltpu.PrefetchScalarGridSpec(
            num_scalar_prefetch=0,
            grid=(n_co, n_t),                      # co outermost -> weight stays resident
            in_specs=[
                pl.BlockSpec((1, th_in * Wp, Cip), lambda co, t: (t, 0, 0)),
                pl.BlockSpec((9, Cip, tco), lambda co, t: (0, 0, co)),
                pl.BlockSpec((1, tco), lambda co, t: (0, co)),
                pl.BlockSpec((1, tco), lambda co, t: (0, co)),
            ],
            out_specs=pl.BlockSpec((1, th * Wp, tco), lambda co, t: (t, 0, co)),
            scratch_shapes=[pltpu.VMEM((th * Wp, tco), jnp.float32)],
        ),
        compiler_params=pltpu.CompilerParams(
            dimension_semantics=("parallel", "parallel"),
            vmem_limit_bytes=_VMEM_LIMIT),
    )(xt, wt, sp, bp)

    out = out.reshape(n_t * th, Wp, Cop)[:R]               # drop padded tile rows
    out = out.reshape(N, Hp, Wp, Cop)[:, :H, :W, :Co]      # drop halo / pad cols / pad ch
    return out


# ----------------------------------------------------------------------------
# Pallas kernel 2: tiled GEMM with fused scale/shift/activation epilogue
# ----------------------------------------------------------------------------
def _matmul_kernel_single(x_ref, w_ref, s_ref, b_ref, o_ref, *, act):
    y = jnp.dot(x_ref[...], w_ref[...], preferred_element_type=jnp.float32)
    y = y * s_ref[...] + b_ref[...]
    o_ref[...] = _apply_act(y, act).astype(o_ref.dtype)


def _matmul_kernel_acc(x_ref, w_ref, s_ref, b_ref, o_ref, acc_ref, *, nk, act):
    k = pl.program_id(2)

    @pl.when(k == 0)
    def _():
        acc_ref[...] = jnp.zeros_like(acc_ref)

    acc_ref[...] += jnp.dot(x_ref[...], w_ref[...],
                            preferred_element_type=jnp.float32)

    @pl.when(k == nk - 1)
    def _():
        y = acc_ref[...] * s_ref[...] + b_ref[...]
        o_ref[...] = _apply_act(y, act).astype(o_ref.dtype)


def pallas_matmul(x, w, scale=None, shift=None, act=None, out_dtype=jnp.bfloat16):
    """y = act((x @ w) * scale + shift); bf16 operands, f32 accumulation."""
    M, K = x.shape
    K2, Nc = w.shape
    assert K == K2
    x = x.astype(jnp.bfloat16)
    w = w.astype(jnp.bfloat16)
    if scale is None:
        scale = jnp.ones((Nc,), jnp.float32)
    if shift is None:
        shift = jnp.zeros((Nc,), jnp.float32)

    Mp = _ceil_to(M, 128)
    Np = _ceil_to(Nc, 128)
    Kp = _ceil_to(K, 128)
    out_bytes = jnp.dtype(out_dtype).itemsize
    tm = 512 if Mp % 512 == 0 else (256 if Mp % 256 == 0 else 128)
    tn = 256 if Np % 256 == 0 else 128

    def fits(tk):
        return (2 * (tm * tk + tk * tn) * 2 + 2 * tm * tn * out_bytes
                + tm * tn * 4) <= _TILE_BUDGET

    tk = 128
    for cand in range(min(4096, Kp), 0, -128):     # largest tk dividing Kp that fits
        if Kp % cand == 0 and fits(cand):
            tk = cand
            break
    nk = Kp // tk

    xp = jnp.pad(x, ((0, Mp - M), (0, Kp - K)))
    wp = jnp.pad(w, ((0, Kp - K), (0, Np - Nc)))
    sp = jnp.pad(scale.astype(jnp.float32), (0, Np - Nc)).reshape(1, Np)
    bp = jnp.pad(shift.astype(jnp.float32), (0, Np - Nc)).reshape(1, Np)

    if nk == 1:
        out = pl.pallas_call(
            partial(_matmul_kernel_single, act=act),
            out_shape=jax.ShapeDtypeStruct((Mp, Np), out_dtype),
            grid_spec=pltpu.PrefetchScalarGridSpec(
                num_scalar_prefetch=0,
                grid=(Mp // tm, Np // tn),
                in_specs=[
                    pl.BlockSpec((tm, Kp), lambda i, j: (i, 0)),
                    pl.BlockSpec((Kp, tn), lambda i, j: (0, j)),
                    pl.BlockSpec((1, tn), lambda i, j: (0, j)),
                    pl.BlockSpec((1, tn), lambda i, j: (0, j)),
                ],
                out_specs=pl.BlockSpec((tm, tn), lambda i, j: (i, j)),
            ),
            compiler_params=pltpu.CompilerParams(
                dimension_semantics=("parallel", "parallel"),
                vmem_limit_bytes=_VMEM_LIMIT),
        )(xp, wp, sp, bp)
    else:
        out = pl.pallas_call(
            partial(_matmul_kernel_acc, nk=nk, act=act),
            out_shape=jax.ShapeDtypeStruct((Mp, Np), out_dtype),
            grid_spec=pltpu.PrefetchScalarGridSpec(
                num_scalar_prefetch=0,
                grid=(Mp // tm, Np // tn, nk),
                in_specs=[
                    pl.BlockSpec((tm, tk), lambda i, j, k: (i, k)),
                    pl.BlockSpec((tk, tn), lambda i, j, k: (k, j)),
                    pl.BlockSpec((1, tn), lambda i, j, k: (0, j)),
                    pl.BlockSpec((1, tn), lambda i, j, k: (0, j)),
                ],
                out_specs=pl.BlockSpec((tm, tn), lambda i, j, k: (i, j)),
                scratch_shapes=[pltpu.VMEM((tm, tn), jnp.float32)],
            ),
            compiler_params=pltpu.CompilerParams(
                dimension_semantics=("parallel", "parallel", "arbitrary"),
                vmem_limit_bytes=_VMEM_LIMIT),
        )(xp, wp, sp, bp)
    return out[:M, :Nc]


# ----------------------------------------------------------------------------
# Conv2d wrapper: direct kernel for 3x3/pad1, GEMM for 1x1 (and fallback)
# ----------------------------------------------------------------------------
def _fold_bn(bias, bn):
    bias = bias.astype(jnp.float32)
    if bn is None:
        return jnp.ones_like(bias), bias
    s = bn["gamma"] / jnp.sqrt(bn["var"] + bn["eps"])
    return s, bn["beta"] + (bias - bn["mean"]) * s


def _conv_gemm(x, w, scale, shift, pad, act, out_dtype):
    N, H, W, Ci = x.shape
    KH, KW, _, Co = w.shape
    xp = jnp.pad(x.astype(jnp.bfloat16), ((0, 0), (pad, pad), (pad, pad), (0, 0)))
    Ho = H + 2 * pad - KH + 1
    Wo = W + 2 * pad - KW + 1
    if KH == 1 and KW == 1:
        patches = xp.reshape(N * Ho * Wo, Ci)      # batch folded into M
    else:
        cols = [xp[:, i:i + Ho, j:j + Wo, :] for i in range(KH) for j in range(KW)]
        patches = jnp.concatenate(cols, axis=-1).reshape(N * Ho * Wo, KH * KW * Ci)
    y = pallas_matmul(patches, w.reshape(KH * KW * Ci, Co), scale, shift, act, out_dtype)
    return y.reshape(N, Ho, Wo, Co)


def conv2d(x, conv, pad=1, bn=None, act=None, out_dtype=jnp.bfloat16):
    """x: [N,H,W,Cin].  conv: {'w': [KH,KW,Cin,Cout] (HWIO), 'b': [Cout]}."""
    w, bias = conv["w"], conv["b"]
    KH, KW, Ci, Co = w.shape
    scale, shift = _fold_bn(bias, bn)
    if KH == 3 and KW == 3 and pad == 1:
        return _conv3x3_direct(x, w, scale, shift, act, out_dtype)
    return _conv_gemm(x, w, scale, shift, pad, act, out_dtype)


# ----------------------------------------------------------------------------
# Glue: separable align_corners bilinear resize, UpSampleBN, DecoderBN
# ----------------------------------------------------------------------------
def _interp_matrix(osz, isz):
    """(osz, isz) align_corners=True bilinear interpolation matrix."""
    if osz == 1 or isz == 1:
        return jnp.zeros((osz, isz), jnp.float32).at[:, 0].set(1.0)
    src = jnp.arange(osz, dtype=jnp.float32) * ((isz - 1) / (osz - 1))
    i0 = jnp.clip(jnp.floor(src), 0, isz - 1).astype(jnp.int32)
    i1 = jnp.minimum(i0 + 1, isz - 1)
    wgt = src - i0.astype(jnp.float32)
    return (jax.nn.one_hot(i0, isz, dtype=jnp.float32) * (1.0 - wgt)[:, None]
            + jax.nn.one_hot(i1, isz, dtype=jnp.float32) * wgt[:, None])


def resize_bilinear_align_corners(x, oh, ow):
    """Separable bilinear resize as two bf16 MXU contractions (f32 accumulation)."""
    n, h, w, c = x.shape
    x = x.astype(jnp.bfloat16)
    if h == oh and w == ow:
        return x
    my = _interp_matrix(oh, h).astype(jnp.bfloat16)
    mx = _interp_matrix(ow, w).astype(jnp.bfloat16)
    y = jnp.einsum("oh,nhwc->nowc", my, x,
                   preferred_element_type=jnp.float32).astype(jnp.bfloat16)
    y = jnp.einsum("pw,nowc->nopc", mx, y,
                   preferred_element_type=jnp.float32).astype(jnp.bfloat16)
    return y


def upsample_bn(x, skip, p):
    up = resize_bilinear_align_corners(x, skip.shape[1], skip.shape[2])
    f = jnp.concatenate([up, skip.astype(jnp.bfloat16)], axis=-1)
    h = conv2d(f, p["conv1"], pad=1, bn=p["bn1"], act="leaky_relu")
    return conv2d(h, p["conv2"], pad=1, bn=p["bn2"], act="leaky_relu")


def decoder_forward(params, features):
    """DecoderBN.forward.  `features` is the PyTorch-style NCHW feature list."""
    nhwc = lambda t: jnp.transpose(t, (0, 2, 3, 1))
    x_block0 = nhwc(features[4])
    x_block1 = nhwc(features[5])
    x_block2 = nhwc(features[6])
    x_block3 = nhwc(features[8])
    x_block4 = nhwc(features[11])

    x_d0 = conv2d(x_block4, params["conv2"], pad=1)          # 1x1 conv, padding=1 (per spec)
    x_d1 = upsample_bn(x_d0, x_block3, params["up1"])
    x_d2 = upsample_bn(x_d1, x_block2, params["up2"])
    x_d3 = upsample_bn(x_d2, x_block1, params["up3"])
    x_d4 = upsample_bn(x_d3, x_block0, params["up4"])
    # conv3 Co=1 is padded to 128 lanes in-kernel; emit bf16 and slice/cast once.
    out = conv2d(x_d4, params["conv3"], pad=1, act=None, out_dtype=jnp.bfloat16)
    return jnp.transpose(out.astype(jnp.float32), (0, 3, 1, 2))  # back to NCHW


decoder_apply = jax.jit(decoder_forward)


# ----------------------------------------------------------------------------
# Deterministic parameter init (PyTorch-default-like uniform bounds)
# ----------------------------------------------------------------------------
def _uniform(key, shape, bound):
    return jax.random.uniform(key, shape, jnp.float32, -bound, bound)


def init_conv(key, kh, kw, cin, cout):
    k1, k2 = jax.random.split(key)
    b = 1.0 / math.sqrt(cin * kh * kw)
    return {"w": _uniform(k1, (kh, kw, cin, cout), b).astype(jnp.bfloat16),
            "b": _uniform(k2, (cout,), b)}


def init_bn(key, c):
    k1, k2, k3, k4 = jax.random.split(key, 4)
    return {"gamma": jax.random.uniform(k1, (c,), jnp.float32, 0.5, 1.5),
            "beta": jax.random.uniform(k2, (c,), jnp.float32, -0.1, 0.1),
            "mean": jax.random.uniform(k3, (c,), jnp.float32, -0.2, 0.2),
            "var": jax.random.uniform(k4, (c,), jnp.float32, 0.5, 1.5),
            "eps": 1e-5}


def init_params(key, num_features=2048, num_classes=1, bottleneck_features=2048):
    f = int(num_features)
    keys = iter(jax.random.split(key, 20))
    p = {"conv2": init_conv(next(keys), 1, 1, bottleneck_features, f)}

    def make_up(cin, cout):
        return {"conv1": init_conv(next(keys), 3, 3, cin, cout),
                "bn1": init_bn(next(keys), cout),
                "conv2": init_conv(next(keys), 3, 3, cout, cout),
                "bn2": init_bn(next(keys), cout)}

    p["up1"] = make_up(f // 1 + 112 + 64, f // 2)
    p["up2"] = make_up(f // 2 + 40 + 24, f // 4)
    p["up3"] = make_up(f // 4 + 24 + 16, f // 8)
    p["up4"] = make_up(f // 8 + 16 + 8, f // 16)
    p["conv3"] = init_conv(next(keys), 3, 3, f // 16, num_classes)
    return p


def make_features(key, n=2, h4=4, w4=4):
    """Synthetic NCHW feature pyramid with the channels DecoderBN indexes."""
    specs = {4: (24, h4 * 16, w4 * 16),
             5: (40, h4 * 8, w4 * 8),
             6: (64, h4 * 4, w4 * 4),
             8: (176, h4 * 2, w4 * 2),
             11: (2048, h4, w4)}
    feats = [None] * 12
    for (idx, (c, h, w)), k in zip(sorted(specs.items()),
                                   jax.random.split(key, len(specs))):
        feats[idx] = jax.random.normal(k, (n, c, h, w), jnp.float32)
    return feats


# ----------------------------------------------------------------------------
if __name__ == "__main__":
    key = jax.random.PRNGKey(0)
    k_param, k_feat, k_chk = jax.random.split(key, 3)

    # --- quick correctness probe of the direct-conv kernel vs lax.conv ---
    kc1, kc2, kc3 = jax.random.split(k_chk, 3)
    xc = jax.random.normal(kc1, (1, 16, 16, 24), jnp.float32)
    conv_c = init_conv(kc2, 3, 3, 24, 40)
    bn_c = init_bn(kc3, 40)
    got = conv2d(xc, conv_c, pad=1, bn=bn_c, act="leaky_relu", out_dtype=jnp.float32)
    s_c, sh_c = _fold_bn(conv_c["b"], bn_c)
    ref = jax.lax.conv_general_dilated(
        xc.astype(jnp.bfloat16).astype(jnp.float32),
        conv_c["w"].astype(jnp.float32),
        window_strides=(1, 1), padding=[(1, 1), (1, 1)],
        dimension_numbers=("NHWC", "HWIO", "NHWC"),
        precision=jax.lax.Precision.HIGHEST)
    ref = ref * s_c + sh_c
    ref = jnp.where(ref >= 0, ref, 0.01 * ref)
    err = float(jnp.max(jnp.abs(got - ref)))
    assert err < 5e-2, f"direct conv kernel mismatch: {err}"

    # --- full DecoderBN forward ---
    params = init_params(k_param)
    features = make_features(k_feat, n=2, h4=4, w4=4)   # implied input 128x128
    out = decoder_apply(params, features)
    jax.block_until_ready(out)

    assert out.shape == (2, 1, 64, 64), out.shape
    assert bool(jnp.isfinite(out).all())
    print("KERNEL_OK")
</pallas_src>

<mosaic_0001>
module attributes {stable_mosaic.version = 11 : i64} {
  func.func @_conv3x3_kernel(%arg0: i32, %arg1: i32, %arg2: memref<1x504x128xbf16, #tpu.memory_space<vmem>>, %arg3: memref<9x128x128xbf16, #tpu.memory_space<vmem>>, %arg4: memref<1x128xf32, #tpu.memory_space<vmem>>, %arg5: memref<1x128xf32, #tpu.memory_space<vmem>>, %arg6: memref<1x432x128xf32, #tpu.memory_space<vmem>>, %arg7: memref<432x128xf32, #tpu.memory_space<vmem>>) attributes {dimension_semantics = [#tpu.dimension_semantics<parallel>, #tpu.dimension_semantics<parallel>], iteration_bounds = array<i64: 1, 1>, scalar_prefetch = 0 : i64, scratch_operands = 1 : i64, tpu.core_type = #tpu.core_type<tc>, window_params = [{transform_indices = @transform_0, window_bounds = array<i64: 1, 504, 128>}, {transform_indices = @transform_1, window_bounds = array<i64: 9, 128, 128>}, {transform_indices = @transform_2, window_bounds = array<i64: 1, 128>}, {transform_indices = @transform_3, window_bounds = array<i64: 1, 128>}, {transform_indices = @transform_4, window_bounds = array<i64: 1, 432, 128>}]} {
    %c0 = arith.constant 0 : index
    %c0_0 = arith.constant 0 : index
    %c0_1 = arith.constant 0 : index
    %0 = vector.load %arg2[%c0, %c0_0, %c0_1] : memref<1x504x128xbf16, #tpu.memory_space<vmem>>, vector<1x432x128xbf16>
    %1 = vector.shape_cast %0 : vector<1x432x128xbf16> to vector<432x128xbf16>
    %c0_2 = arith.constant 0 : index
    %c0_3 = arith.constant 0 : index
    %c0_4 = arith.constant 0 : index
    %2 = vector.load %arg3[%c0_2, %c0_3, %c0_4] : memref<9x128x128xbf16, #tpu.memory_space<vmem>>, vector<1x128x128xbf16>
    %3 = vector.shape_cast %2 : vector<1x128x128xbf16> to vector<128x128xbf16>
    %cst = arith.constant dense<0.000000e+00> : vector<432x128xf32>
    %4 = tpu.matmul %1, %3, %cst {dimension_numbers = #tpu.dot_dimension_numbers<[1], [0], [0], [1], [0, 0, 1, 1], [], []>} : vector<432x128xbf16>, vector<128x128xbf16>, vector<432x128xf32> -> vector<432x128xf32>
    %c0_5 = arith.constant 0 : index
    %c0_6 = arith.constant 0 : index
    %5 = vector.load %arg7[%c0_5, %c0_6] : memref<432x128xf32, #tpu.memory_space<vmem>>, vector<432x128xf32>
    tpu.vector_store %arg7[%c0_5, %c0_6], %4 {strides = array<i32>} : memref<432x128xf32, #tpu.memory_space<vmem>>, vector<432x128xf32>,
    %c0_7 = arith.constant 0 : index
    %c1 = arith.constant 1 : index
    %c0_8 = arith.constant 0 : index
    %6 = vector.load %arg2[%c0_7, %c1, %c0_8] : memref<1x504x128xbf16, #tpu.memory_space<vmem>>, vector<1x432x128xbf16>
    %7 = vector.shape_cast %6 : vector<1x432x128xbf16> to vector<432x128xbf16>
    %c1_9 = arith.constant 1 : index
    %c0_10 = arith.constant 0 : index
    %c0_11 = arith.constant 0 : index
    %8 = vector.load %arg3[%c1_9, %c0_10, %c0_11] : memref<9x128x128xbf16, #tpu.memory_space<vmem>>, vector<1x128x128xbf16>
    %9 = vector.shape_cast %8 : vector<1x128x128xbf16> to vector<128x128xbf16>
    %cst_12 = arith.constant dense<0.000000e+00> : vector<432x128xf32>
    %10 = tpu.matmul %7, %9, %cst_12 {dimension_numbers = #tpu.dot_dimension_numbers<[1], [0], [0], [1], [0, 0, 1, 1], [], []>} : vector<432x128xbf16>, vector<128x128xbf16>, vector<432x128xf32> -> vector<432x128xf32>
    %c0_13 = arith.constant 0 : index
    %c0_14 = arith.constant 0 : index
    %11 = vector.load %arg7[%c0_13, %c0_14] : memref<432x128xf32, #tpu.memory_space<vmem>>, vector<432x128xf32>
    %12 = arith.addf %11, %10 : vector<432x128xf32>
    %c0_15 = arith.constant 0 : index
    %c0_16 = arith.constant 0 : index
    %13 = vector.load %arg7[%c0_15, %c0_16] : memref<432x128xf32, #tpu.memory_space<vmem>>, vector<432x128xf32>
    tpu.vector_store %arg7[%c0_15, %c0_16], %12 {strides = array<i32>} : memref<432x128xf32, #tpu.memory_space<vmem>>, vector<432x128xf32>,
    %c0_17 = arith.constant 0 : index
    %c2 = arith.constant 2 : index
    %c0_18 = arith.constant 0 : index
    %14 = vector.load %arg2[%c0_17, %c2, %c0_18] : memref<1x504x128xbf16, #tpu.memory_space<vmem>>, vector<1x432x128xbf16>
    %15 = vector.shape_cast %14 : vector<1x432x128xbf16> to vector<432x128xbf16>
    %c2_19 = arith.constant 2 : index
    %c0_20 = arith.constant 0 : index
    %c0_21 = arith.constant 0 : index
    %16 = vector.load %arg3[%c2_19, %c0_20, %c0_21] : memref<9x128x128xbf16, #tpu.memory_space<vmem>>, vector<1x128x128xbf16>
    %17 = vector.shape_cast %16 : vector<1x128x128xbf16> to vector<128x128xbf16>
    %cst_22 = arith.constant dense<0.000000e+00> : vector<432x128xf32>
    %18 = tpu.matmul %15, %17, %cst_22 {dimension_numbers = #tpu.dot_dimension_numbers<[1], [0], [0], [1], [0, 0, 1, 1], [], []>} : vector<432x128xbf16>, vector<128x128xbf16>, vector<432x128xf32> -> vector<432x128xf32>
    %c0_23 = arith.constant 0 : index
    %c0_24 = arith.constant 0 : index
    %19 = vector.load %arg7[%c0_23, %c0_24] : memref<432x128xf32, #tpu.memory_space<vmem>>, vector<432x128xf32>
    %20 = arith.addf %19, %18 : vector<432x128xf32>
    %c0_25 = arith.constant 0 : index
    %c0_26 = arith.constant 0 : index
    %21 = vector.load %arg7[%c0_25, %c0_26] : memref<432x128xf32, #tpu.memory_space<vmem>>, vector<432x128xf32>
    tpu.vector_store %arg7[%c0_25, %c0_26], %20 {strides = array<i32>} : memref<432x128xf32, #tpu.memory_space<vmem>>, vector<432x128xf32>,
    %c0_27 = arith.constant 0 : index
    %c24 = arith.constant 24 : index
    %c0_28 = arith.constant 0 : index
    %22 = vector.load %arg2[%c0_27, %c24, %c0_28] : memref<1x504x128xbf16, #tpu.memory_space<vmem>>, vector<1x432x128xbf16>
    %23 = vector.shape_cast %22 : vector<1x432x128xbf16> to vector<432x128xbf16>
    %c3 = arith.constant 3 : index
    %c0_29 = arith.constant 0 : index
    %c0_30 = arith.constant 0 : index
    %24 = vector.load %arg3[%c3, %c0_29, %c0_30] : memref<9x128x128xbf16, #tpu.memory_space<vmem>>, vector<1x128x128xbf16>
    %25 = vector.shape_cast %24 : vector<1x128x128xbf16> to vector<128x128xbf16>
    %cst_31 = arith.constant dense<0.000000e+00> : vector<432x128xf32>
    %26 = tpu.matmul %23, %25, %cst_31 {dimension_numbers = #tpu.dot_dimension_numbers<[1], [0], [0], [1], [0, 0, 1, 1], [], []>} : vector<432x128xbf16>, vector<128x128xbf16>, vector<432x128xf32> -> vector<432x128xf32>
    %c0_32 = arith.constant 0 : index
    %c0_33 = arith.constant 0 : index
    %27 = vector.load %arg7[%c0_32, %c0_33] : memref<432x128xf32, #tpu.memory_space<vmem>>, vector<432x128xf32>
    %28 = arith.addf %27, %26 : vector<432x128xf32>
    %c0_34 = arith.constant 0 : index
    %c0_35 = arith.constant 0 : index
    %29 = vector.load %arg7[%c0_34, %c0_35] : memref<432x128xf32, #tpu.memory_space<vmem>>, vector<432x128xf32>
    tpu.vector_store %arg7[%c0_34, %c0_35], %28 {strides = array<i32>} : memref<432x128xf32, #tpu.memory_space<vmem>>, vector<432x128xf32>,
    %c0_36 = arith.constant 0 : index
    %c25 = arith.constant 25 : index
    %c0_37 = arith.constant 0 : index
    %30 = vector.load %arg2[%c0_36, %c25, %c0_37] : memref<1x504x128xbf16, #tpu.memory_space<vmem>>, vector<1x432x128xbf16>
    %31 = vector.shape_cast %30 : vector<1x432x128xbf16> to vector<432x128xbf16>
    %c4 = arith.constant 4 : index
    %c0_38 = arith.constant 0 : index
    %c0_39 = arith.constant 0 : index
    %32 = vector.load %arg3[%c4, %c0_38, %c0_39] : memref<9x128x128xbf16, #tpu.memory_space<vmem>>, vector<1x128x128xbf16>
    %33 = vector.shape_cast %32 : vector<1x128x128xbf16> to vector<128x128xbf16>
    %cst_40 = arith.constant dense<0.000000e+00> : vector<432x128xf32>
    %34 = tpu.matmul %31, %33, %cst_40 {dimension_numbers = #tpu.dot_dimension_numbers<[1], [0], [0], [1], [0, 0, 1, 1], [], []>} : vector<432x128xbf16>, vector<128x128xbf16>, vector<432x128xf32> -> vector<432x128xf32>
    %c0_41 = arith.constant 0 : index
    %c0_42 = arith.constant 0 : index
    %35 = vector.load %arg7[%c0_41, %c0_42] : memref<432x128xf32, #tpu.memory_space<vmem>>, vector<432x128xf32>
    %36 = arith.addf %35, %34 : vector<432x128xf32>
    %c0_43 = arith.constant 0 : index
    %c0_44 = arith.constant 0 : index
    %37 = vector.load %arg7[%c0_43, %c0_44] : memref<432x128xf32, #tpu.memory_space<vmem>>, vector<432x128xf32>
    tpu.vector_store %arg7[%c0_43, %c0_44], %36 {strides = array<i32>} : memref<432x128xf32, #tpu.memory_space<vmem>>, vector<432x128xf32>,
    %c0_45 = arith.constant 0 : index
    %c26 = arith.constant 26 : index
    %c0_46 = arith.constant 0 : index
    %38 = vector.load %arg2[%c0_45, %c26, %c0_46] : memref<1x504x128xbf16, #tpu.memory_space<vmem>>, vector<1x432x128xbf16>
    %39 = vector.shape_cast %38 : vector<1x432x128xbf16> to vector<432x128xbf16>
    %c5 = arith.constant 5 : index
    %c0_47 = arith.constant 0 : index
    %c0_48 = arith.constant 0 : index
    %40 = vector.load %arg3[%c5, %c0_47, %c0_48] : memref<9x128x128xbf16, #tpu.memory_space<vmem>>, vector<1x128x128xbf16>
    %41 = vector.shape_cast %40 : vector<1x128x128xbf16> to vector<128x128xbf16>
    %cst_49 = arith.constant dense<0.000000e+00> : vector<432x128xf32>
    %42 = tpu.matmul %39, %41, %cst_49 {dimension_numbers = #tpu.dot_dimension_numbers<[1], [0], [0], [1], [0, 0, 1, 1], [], []>} : vector<432x128xbf16>, vector<128x128xbf16>, vector<432x128xf32> -> vector<432x128xf32>
    %c0_50 = arith.constant 0 : index
    %c0_51 = arith.constant 0 : index
    %43 = vector.load %arg7[%c0_50, %c0_51] : memref<432x128xf32, #tpu.memory_space<vmem>>, vector<432x128xf32>
    %44 = arith.addf %43, %42 : vector<432x128xf32>
    %c0_52 = arith.constant 0 : index
    %c0_53 = arith.constant 0 : index
    %45 = vector.load %arg7[%c0_52, %c0_53] : memref<432x128xf32, #tpu.memory_space<vmem>>, vector<432x128xf32>
    tpu.vector_store %arg7[%c0_52, %c0_53], %44 {strides = array<i32>} : memref<432x128xf32, #tpu.memory_space<vmem>>, vector<432x128xf32>,
    %c0_54 = arith.constant 0 : index
    %c48 = arith.constant 48 : index
    %c0_55 = arith.constant 0 : index
    %46 = vector.load %arg2[%c0_54, %c48, %c0_55] : memref<1x504x128xbf16, #tpu.memory_space<vmem>>, vector<1x432x128xbf16>
    %47 = vector.shape_cast %46 : vector<1x432x128xbf16> to vector<432x128xbf16>
    %c6 = arith.constant 6 : index
    %c0_56 = arith.constant 0 : index
    %c0_57 = arith.constant 0 : index
    %48 = vector.load %arg3[%c6, %c0_56, %c0_57] : memref<9x128x128xbf16, #tpu.memory_space<vmem>>, vector<1x128x128xbf16>
    %49 = vector.shape_cast %48 : vector<1x128x128xbf16> to vector<128x128xbf16>
    %cst_58 = arith.constant dense<0.000000e+00> : vector<432x128xf32>
    %50 = tpu.matmul %47, %49, %cst_58 {dimension_numbers = #tpu.dot_dimension_numbers<[1], [0], [0], [1], [0, 0, 1, 1], [], []>} : vector<432x128xbf16>, vector<128x128xbf16>, vector<432x128xf32> -> vector<432x128xf32>
    %c0_59 = arith.constant 0 : index
    %c0_60 = arith.constant 0 : index
    %51 = vector.load %arg7[%c0_59, %c0_60] : memref<432x128xf32, #tpu.memory_space<vmem>>, vector<432x128xf32>
    %52 = arith.addf %51, %50 : vector<432x128xf32>
    %c0_61 = arith.constant 0 : index
    %c0_62 = arith.constant 0 : index
    %53 = vector.load %arg7[%c0_61, %c0_62] : memref<432x128xf32, #tpu.memory_space<vmem>>, vector<432x128xf32>
    tpu.vector_store %arg7[%c0_61, %c0_62], %52 {strides = array<i32>} : memref<432x128xf32, #tpu.memory_space<vmem>>, vector<432x128xf32>,
    %c0_63 = arith.constant 0 : index
    %c49 = arith.constant 49 : index
    %c0_64 = arith.constant 0 : index
    %54 = vector.load %arg2[%c0_63, %c49, %c0_64] : memref<1x504x128xbf16, #tpu.memory_space<vmem>>, vector<1x432x128xbf16>
    %55 = vector.shape_cast %54 : vector<1x432x128xbf16> to vector<432x128xbf16>
    %c7 = arith.constant 7 : index
    %c0_65 = arith.constant 0 : index
    %c0_66 = arith.constant 0 : index
    %56 = vector.load %arg3[%c7, %c0_65, %c0_66] : memref<9x128x128xbf16, #tpu.memory_space<vmem>>, vector<1x128x128xbf16>
    %57 = vector.shape_cast %56 : vector<1x128x128xbf16> to vector<128x128xbf16>
    %cst_67 = arith.constant dense<0.000000e+00> : vector<432x128xf32>
    %58 = tpu.matmul %55, %57, %cst_67 {dimension_numbers = #tpu.dot_dimension_numbers<[1], [0], [0], [1], [0, 0, 1, 1], [], []>} : vector<432x128xbf16>, vector<128x128xbf16>, vector<432x128xf32> -> vector<432x128xf32>
    %c0_68 = arith.constant 0 : index
    %c0_69 = arith.constant 0 : index
    %59 = vector.load %arg7[%c0_68, %c0_69] : memref<432x128xf32, #tpu.memory_space<vmem>>, vector<432x128xf32>
    %60 = arith.addf %59, %58 : vector<432x128xf32>
    %c0_70 = arith.constant 0 : index
    %c0_71 = arith.constant 0 : index
    %61 = vector.load %arg7[%c0_70, %c0_71] : memref<432x128xf32, #tpu.memory_space<vmem>>, vector<432x128xf32>
    tpu.vector_store %arg7[%c0_70, %c0_71], %60 {strides = array<i32>} : memref<432x128xf32, #tpu.memory_space<vmem>>, vector<432x128xf32>,
    %c0_72 = arith.constant 0 : index
    %c50 = arith.constant 50 : index
    %c0_73 = arith.constant 0 : index
    %62 = vector.load %arg2[%c0_72, %c50, %c0_73] : memref<1x504x128xbf16, #tpu.memory_space<vmem>>, vector<1x432x128xbf16>
    %63 = vector.shape_cast %62 : vector<1x432x128xbf16> to vector<432x128xbf16>
    %c8 = arith.constant 8 : index
    %c0_74 = arith.constant 0 : index
    %c0_75 = arith.constant 0 : index
    %64 = vector.load %arg3[%c8, %c0_74, %c0_75] : memref<9x128x128xbf16, #tpu.memory_space<vmem>>, vector<1x128x128xbf16>
    %65 = vector.shape_cast %64 : vector<1x128x128xbf16> to vector<128x128xbf16>
    %cst_76 = arith.constant dense<0.000000e+00> : vector<432x128xf32>
    %66 = tpu.matmul %63, %65, %cst_76 {dimension_numbers = #tpu.dot_dimension_numbers<[1], [0], [0], [1], [0, 0, 1, 1], [], []>} : vector<432x128xbf16>, vector<128x128xbf16>, vector<432x128xf32> -> vector<432x128xf32>
    %c0_77 = arith.constant 0 : index
    %c0_78 = arith.constant 0 : index
    %67 = vector.load %arg7[%c0_77, %c0_78] : memref<432x128xf32, #tpu.memory_space<vmem>>, vector<432x128xf32>
    %68 = arith.addf %67, %66 : vector<432x128xf32>
    %c0_79 = arith.constant 0 : index
    %c0_80 = arith.constant 0 : index
    %69 = vector.load %arg7[%c0_79, %c0_80] : memref<432x128xf32, #tpu.memory_space<vmem>>, vector<432x128xf32>
    tpu.vector_store %arg7[%c0_79, %c0_80], %68 {strides = array<i32>} : memref<432x128xf32, #tpu.memory_space<vmem>>, vector<432x128xf32>,
    %c0_81 = arith.constant 0 : index
    %c0_82 = arith.constant 0 : index
    %70 = vector.load %arg7[%c0_81, %c0_82] : memref<432x128xf32, #tpu.memory_space<vmem>>, vector<432x128xf32>
    %c0_83 = arith.constant 0 : index
    %c0_84 = arith.constant 0 : index
    %71 = vector.load %arg4[%c0_83, %c0_84] : memref<1x128xf32, #tpu.memory_space<vmem>>, vector<1x128xf32>
    %72 = vector.broadcast %71 : vector<1x128xf32> to vector<432x128xf32>
    %73 = arith.mulf %70, %72 : vector<432x128xf32>
    %c0_85 = arith.constant 0 : index
    %c0_86 = arith.constant 0 : index
    %74 = vector.load %arg5[%c0_85, %c0_86] : memref<1x128xf32, #tpu.memory_space<vmem>>, vector<1x128xf32>
    %75 = vector.broadcast %74 : vector<1x128xf32> to vector<432x128xf32>
    %76 = arith.addf %73, %75 : vector<432x128xf32>
    %cst_87 = arith.constant 0.000000e+00 : f32
    %77 = vector.broadcast %cst_87 : f32 to vector<432x128xf32>
    %78 = arith.cmpf oge, %76, %77 : vector<432x128xf32>
    %cst_88 = arith.constant 0.00999999977 : f32
    %79 = vector.broadcast %cst_88 : f32 to vector<432x128xf32>
    %80 = arith.mulf %79, %76 : vector<432x128xf32>
    %81 = arith.select %78, %76, %80 : vector<432x128xi1>, vector<432x128xf32>
    %c0_89 = arith.constant 0 : index
    %c0_90 = arith.constant 0 : index
    %c0_91 = arith.constant 0 : index
    %82 = vector.load %arg6[%c0_89, %c0_90, %c0_91] : memref<1x432x128xf32, #tpu.memory_space<vmem>>, vector<1x432x128xf32>
    %83 = vector.shape_cast %82 : vector<1x432x128xf32> to vector<432x128xf32>
    %84 = vector.shape_cast %81 : vector<432x128xf32> to vector<1x432x128xf32>
    tpu.vector_store %arg6[%c0_89, %c0_90, %c0_91], %84 {strides = array<i32>} : memref<1x432x128xf32, #tpu.memory_space<vmem>>, vector<1x432x128xf32>,
    return
  }
  func.func @transform_0(%arg0: i32, %arg1: i32) -> (i32, i32, i32) {
    %c0_i32 = arith.constant 0 : i32
    %c0_i32_0 = arith.constant 0 : i32
    %c0_i32_1 = arith.constant 0 : i32
    return %arg1, %c0_i32, %c0_i32_0 : i32, i32, i32
  }
  func.func @transform_1(%arg0: i32, %arg1: i32) -> (i32, i32, i32) {
    %c0_i32 = arith.constant 0 : i32
    %c0_i32_0 = arith.constant 0 : i32
    %c0_i32_1 = arith.constant 0 : i32
    return %c0_i32, %c0_i32_0, %arg0 : i32, i32, i32
  }
  func.func @transform_2(%arg0: i32, %arg1: i32) -> (i32, i32) {
    %c0_i32 = arith.constant 0 : i32
    %c0_i32_0 = arith.constant 0 : i32
    return %c0_i32, %arg0 : i32, i32
  }
  func.func @transform_3(%arg0: i32, %arg1: i32) -> (i32, i32) {
    %c0_i32 = arith.constant 0 : i32
    %c0_i32_0 = arith.constant 0 : i32
    return %c0_i32, %arg0 : i32, i32
  }
  func.func @transform_4(%arg0: i32, %arg1: i32) -> (i32, i32, i32) {
    %c0_i32 = arith.constant 0 : i32
    %c0_i32_0 = arith.constant 0 : i32
    return %arg1, %c0_i32, %arg0 : i32, i32, i32
  }
}

</mosaic_0001>

<llo_original>
// kernel: tpu_custom_call.1
$region0: #{tpu_custom_call.1}
  #allocation0 [shape = 'u32[]', space=smem, size = 0x4, offset = 0x4, fixed_abs, tag = 'smem constant byte address 0x4 - core index']
  #allocation1 [shape = 'u32[144,128]{1,0:T(1,128)}', space=vmem, size = 0x12000, scoped, tag = 'internal scratch']
  #allocation2 [shape = 'f32[432,128]{1,0:T(8,128)}', space=vmem, size = 0x36000, scoped, tag = 'scratch operand']
  %s0 = inlined_call_operand.hbm [shape: bf16[1,504,128], index: 0, kind: input, shape index: {}]
  %s1 = inlined_call_operand.hbm [shape: bf16[9,128,128], index: 1, kind: input, shape index: {}]
  %s2 = inlined_call_operand.vmem [shape: f32[1,128], index: 2, kind: input, shape index: {}]
  %s3 = inlined_call_operand.vmem [shape: f32[1,128], index: 3, kind: input, shape index: {}]
  %s4 = inlined_call_operand.hbm [shape: f32[1,432,128], index: 4, kind: output, shape index: {}]
  %s5 = sld [smem:[#allocation0]]
  $region34: #{tpu_custom_call.1} parent=0
    _
  %s7 = ssub.s32 1, %s5
  %s8 = scalar_select 0, %s7, %s5
  $region1: #{tpu_custom_call.1} parent=0
    #allocation3 [shape = 'u8[129024]{0}', space=vmem, size = 0x1f800, scoped, tag = 'input window, operand 0, single buffered']
    #allocation4 [shape = 's32[1]{0}', space=sflag, size = 0x4, scoped, tag = 'scoped memory for tpu_custom_call.1']
    #allocation5 [shape = 's32[1]{0}', space=sflag, size = 0x4, scoped, tag = 'scoped memory for tpu_custom_call.1']
    #allocation6 [shape = 'u8[294912]{0}', space=vmem, size = 0x48000, scoped, tag = 'input window, operand 1, single buffered']
    #allocation7 [shape = 's32[1]{0}', space=sflag, size = 0x4, scoped, tag = 'scoped memory for tpu_custom_call.1']
    #allocation8 [shape = 'u8[221184]{0}', space=vmem, size = 0x36000, scoped, tag = 'output window, operand 0, single buffered']
    %9 = vsyncpa [#allocation4], 0
    %10 = vsyncpa [#allocation7], 0
    %11 = vsyncpa [#allocation5], 0
    // Predicated region
    $region2: #{tpu_custom_call.1} parent=1 // pred_check
      _
    $region3: #{tpu_custom_call.1} parent=1 // pred_check_branch
      %13 = sbr.rel (0) target = $region5
    $region4: #{tpu_custom_call.1} parent=1 // pred_region
      %s15 = ssub.s32 4032, 4032
      %16 = vsyncadd [#allocation4], %s15
      %s17 = sshll.u32 [#allocation3], 4
      %s18 = int_to_ptr.vmem [resolvable:$true] %s17
      %23 = dma.hbm_to_vmem [thread:$0]  %s0, 4032, %s18, [#allocation4], 64, 64, 4
    $region5: #{tpu_custom_call.1} parent=1 // pred_fallthru
      _
    // Predicated region
    $region6: #{tpu_custom_call.1} parent=1 // pred_check
      _
    $region7: #{tpu_custom_call.1} parent=1 // pred_check_branch
      %25 = sbr.rel (0) target = $region9
    $region8: #{tpu_custom_call.1} parent=1 // pred_region
      %s27 = ssub.s32 9216, 9216
      %28 = vsyncadd [#allocation7], %s27
      %s29 = sshll.u32 [#allocation6], 4
      %s30 = int_to_ptr.vmem [resolvable:$true] %s29
      %35 = dma.hbm_to_vmem [thread:$0]  %s1, 9216, %s30, [#allocation7], 64, 64, 4
    $region9: #{tpu_custom_call.1} parent=1 // pred_fallthru
      _
    // Predicated region
    $region10: #{tpu_custom_call.1} parent=1 // pred_check
      _
    $region11: #{tpu_custom_call.1} parent=1 // pred_check_branch
      %37 = sbr.rel (0) target = $region13
    $region12: #{tpu_custom_call.1} parent=1 // pred_region
      _
    $region13: #{tpu_custom_call.1} parent=1 // pred_fallthru
      _
    // Predicated region
    $region14: #{tpu_custom_call.1} parent=1 // pred_check
      _
    $region15: #{tpu_custom_call.1} parent=1 // pred_check_branch
      %39 = sbr.rel (0) target = $region17
    $region16: #{tpu_custom_call.1} parent=1 // pred_region
      _
    $region17: #{tpu_custom_call.1} parent=1 // pred_fallthru
      _
    // Predicated region
    $region18: #{tpu_custom_call.1} parent=1 // pred_check
      _
    $region19: #{tpu_custom_call.1} parent=1 // pred_check_branch
      %41 = sbr.rel (0) target = $region21
    $region20: #{tpu_custom_call.1} parent=1 // pred_region
      %42 = dma.done [#allocation4], 4032
    $region21: #{tpu_custom_call.1} parent=1 // pred_fallthru
      _
    // Predicated region
    $region22: #{tpu_custom_call.1} parent=1 // pred_check
      _
    $region23: #{tpu_custom_call.1} parent=1 // pred_check_branch
      %44 = sbr.rel (0) target = $region25
    $region24: #{tpu_custom_call.1} parent=1 // pred_region
      %45 = dma.done [#allocation7], 9216
    $region25: #{tpu_custom_call.1} parent=1 // pred_fallthru
      _
    %v47 = vld [vmem:[#allocation3] sm:$0xf]
    %v48 = vld [vmem:[#allocation3 + $0x4] sm:$0xf]
    %v49 = vld [vmem:[#allocation3 + $0x8] sm:$0xf]
    %v50 = vld [vmem:[#allocation3 + $0xc] sm:$0xf]
    %v51 = vld [vmem:[#allocation3 + $0x10] sm:$0xf]
    %v52 = vld [vmem:[#allocation3 + $0x14] sm:$0xf]
    %v53 = vld [vmem:[#allocation3 + $0x18] sm:$0xf]
    %v54 = vld [vmem:[#allocation3 + $0x1c] sm:$0xf]
    %v55 = vld [vmem:[#allocation3 + $0x20] sm:$0xf]
    %v56 = vld [vmem:[#allocation3 + $0x24] sm:$0xf]
    %v57 = vld [vmem:[#allocation3 + $0x28] sm:$0xf]
    %v58 = vld [vmem:[#allocation3 + $0x2c] sm:$0xf]
    %v59 = vld [vmem:[#allocation3 + $0x30] sm:$0xf]
    %v60 = vld [vmem:[#allocation3 + $0x34] sm:$0xf]
    %v61 = vld [vmem:[#allocation3 + $0x38] sm:$0xf]
    %v62 = vld [vmem:[#allocation3 + $0x3c] sm:$0xf]
    %v63 = vld [vmem:[#allocation3 + $0x40] sm:$0xf]
    %v64 = vld [vmem:[#allocation3 + $0x44] sm:$0xf]
    %v65 = vld [vmem:[#allocation3 + $0x48] sm:$0xf]
    %v66 = vld [vmem:[#allocation3 + $0x4c] sm:$0xf]
    %v67 = vld [vmem:[#allocation3 + $0x50] sm:$0xf]
    %v68 = vld [vmem:[#allocation3 + $0x54] sm:$0xf]
    %v69 = vld [vmem:[#allocation3 + $0x58] sm:$0xf]
    %v70 = vld [vmem:[#allocation3 + $0x5c] sm:$0xf]
    %v71 = vld [vmem:[#allocation3 + $0x60] sm:$0xf]
    %v72 = vld [vmem:[#allocation3 + $0x64] sm:$0xf]
    %v73 = vld [vmem:[#allocation3 + $0x68] sm:$0xf]
    %v74 = vld [vmem:[#allocation3 + $0x6c] sm:$0xf]
    %v75 = vld [vmem:[#allocation3 + $0x70] sm:$0xf]
    %v76 = vld [vmem:[#allocation3 + $0x74] sm:$0xf]
    %v77 = vld [vmem:[#allocation3 + $0x78] sm:$0xf]
    %v78 = vld [vmem:[#allocation3 + $0x7c] sm:$0xf]
    %v79 = vld [vmem:[#allocation3 + $0x80] sm:$0xf]
    %v80 = vld [vmem:[#allocation3 + $0x84] sm:$0xf]
    %v81 = vld [vmem:[#allocation3 + $0x88] sm:$0xf]
    %v82 = vld [vmem:[#allocation3 + $0x8c] sm:$0xf]
    %v83 = vld [vmem:[#allocation3 + $0x90] sm:$0xf]
    %v84 = vld [vmem:[#allocation3 + $0x94] sm:$0xf]
    %v85 = vld [vmem:[#allocation3 + $0x98] sm:$0xf]
    %v86 = vld [vmem:[#allocation3 + $0x9c] sm:$0xf]
    %v87 = vld [vmem:[#allocation3 + $0xa0] sm:$0xf]
    %v88 = vld [vmem:[#allocation3 + $0xa4] sm:$0xf]
    %v89 = vld [vmem:[#allocation3 + $0xa8] sm:$0xf]
    %v90 = vld [vmem:[#allocation3 + $0xac] sm:$0xf]
    %v91 = vld [vmem:[#allocation3 + $0xb0] sm:$0xf]
    %v92 = vld [vmem:[#allocation3 + $0xb4] sm:$0xf]
    %v93 = vld [vmem:[#allocation3 + $0xb8] sm:$0xf]
    %v94 = vld [vmem:[#allocation3 + $0xbc] sm:$0xf]
    %v95 = vld [vmem:[#allocation3 + $0xc0] sm:$0xf]
    %v96 = vld [vmem:[#allocation3 + $0xc4] sm:$0xf]
    %v97 = vld [vmem:[#allocation3 + $0xc8] sm:$0xf]
    %v98 = vld [vmem:[#allocation3 + $0xcc] sm:$0xf]
    %v99 = vld [vmem:[#allocation3 + $0xd0] sm:$0xf]
    %v100 = vld [vmem:[#allocation3 + $0xd4] sm:$0xf]
    %v101 = vld [vmem:[#allocation6] sm:$0xf]
    %v102 = vld [vmem:[#allocation6 + $0x4] sm:$0xf]
    %v103 = vld [vmem:[#allocation6 + $0x8] sm:$0xf]
    %v104 = vld [vmem:[#allocation6 + $0xc] sm:$0xf]
    %v105 = vld [vmem:[#allocation6 + $0x10] sm:$0xf]
    %v106 = vld [vmem:[#allocation6 + $0x14] sm:$0xf]
    %v107 = vld [vmem:[#allocation6 + $0x18] sm:$0xf]
    %v108 = vld [vmem:[#allocation6 + $0x1c] sm:$0xf]
    %v109 = vld [vmem:[#allocation6 + $0x20] sm:$0xf]
    %v110 = vld [vmem:[#allocation6 + $0x24] sm:$0xf]
    %v111 = vld [vmem:[#allocation6 + $0x28] sm:$0xf]
    %v112 = vld [vmem:[#allocation6 + $0x2c] sm:$0xf]
    %v113 = vld [vmem:[#allocation6 + $0x30] sm:$0xf]
    %v114 = vld [vmem:[#allocation6 + $0x34] sm:$0xf]
    %v115 = vld [vmem:[#allocation6 + $0x38] sm:$0xf]
    %v116 = vld [vmem:[#allocation6 + $0x3c] sm:$0xf]
    %v171 = vunpack.c.l.b16 %v47
    %v172 = vunpack.c.l.b16 %v48
    %v173 = vunpack.c.l.b16 %v49
    %v174 = vunpack.c.l.b16 %v50
    %v175 = vunpack.c.l.b16 %v51
    %v176 = vunpack.c.l.b16 %v52
    %v177 = vunpack.c.l.b16 %v53
    %v178 = vunpack.c.l.b16 %v54
    %v179 = vunpack.c.l.b16 %v55
    %v180 = vunpack.c.l.b16 %v56
    %v181 = vunpack.c.l.b16 %v57
    %v182 = vunpack.c.l.b16 %v58
    %v183 = vunpack.c.l.b16 %v59
    %v184 = vunpack.c.l.b16 %v60
    %v185 = vunpack.c.l.b16 %v61
    %v186 = vunpack.c.l.b16 %v62
    %v187 = vunpack.c.l.b16 %v63
    %v188 = vunpack.c.l.b16 %v64
    %v189 = vunpack.c.l.b16 %v65
    %v190 = vunpack.c.l.b16 %v66
    %v191 = vunpack.c.l.b16 %v67
    %v192 = vunpack.c.l.b16 %v68
    %v193 = vunpack.c.l.b16 %v69
    %v194 = vunpack.c.l.b16 %v70
    %v195 = vunpack.c.l.b16 %v71
    %v196 = vunpack.c.l.b16 %v72
    %v197 = vunpack.c.l.b16 %v73
    %v198 = vunpack.c.l.b16 %v74
    %v199 = vunpack.c.l.b16 %v75
    %v200 = vunpack.c.l.b16 %v76
    %v201 = vunpack.c.l.b16 %v77
    %v202 = vunpack.c.l.b16 %v78
    %v203 = vunpack.c.l.b16 %v79
    %v204 = vunpack.c.l.b16 %v80
    %v205 = vunpack.c.l.b16 %v81
    %v206 = vunpack.c.l.b16 %v82
    %v207 = vunpack.c.l.b16 %v83
    %v208 = vunpack.c.l.b16 %v84
    %v209 = vunpack.c.l.b16 %v85
    %v210 = vunpack.c.l.b16 %v86
    %v211 = vunpack.c.l.b16 %v87
    %v212 = vunpack.c.l.b16 %v88
    %v213 = vunpack.c.l.b16 %v89
    %v214 = vunpack.c.l.b16 %v90
    %v215 = vunpack.c.l.b16 %v91
    %v216 = vunpack.c.l.b16 %v92
    %v217 = vunpack.c.l.b16 %v93
    %v218 = vunpack.c.l.b16 %v94
    %v219 = vunpack.c.l.b16 %v95
    %v220 = vunpack.c.l.b16 %v96
    %v221 = vunpack.c.l.b16 %v97
    %v222 = vunpack.c.l.b16 %v98
    %v223 = vunpack.c.l.b16 %v99
    %v224 = vunpack.c.l.b16 %v100
    %v225 = vpack.c.b16 %v172, %v171
    %v226 = vpack.c.b16 %v174, %v173
    %v227 = vpack.c.b16 %v176, %v175
    %v228 = vpack.c.b16 %v178, %v177
    %v229 = vpack.c.b16 %v180, %v179
    %v230 = vpack.c.b16 %v182, %v181
    %v231 = vpack.c.b16 %v184, %v183
    %v232 = vpack.c.b16 %v186, %v185
    %v233 = vpack.c.b16 %v188, %v187
    %v234 = vpack.c.b16 %v190, %v189
    %v235 = vpack.c.b16 %v192, %v191
    %v236 = vpack.c.b16 %v194, %v193
    %v237 = vpack.c.b16 %v196, %v195
    %v238 = vpack.c.b16 %v198, %v197
    %v239 = vpack.c.b16 %v200, %v199
    %v240 = vpack.c.b16 %v202, %v201
    %v241 = vpack.c.b16 %v204, %v203
    %v242 = vpack.c.b16 %v206, %v205
    %v243 = vpack.c.b16 %v208, %v207
    %v244 = vpack.c.b16 %v210, %v209
    %v245 = vpack.c.b16 %v212, %v211
    %v246 = vpack.c.b16 %v214, %v213
    %v247 = vpack.c.b16 %v216, %v215
    %v248 = vpack.c.b16 %v218, %v217
    %v249 = vpack.c.b16 %v220, %v219
    %v250 = vpack.c.b16 %v222, %v221
    %v251 = vpack.c.b16 %v224, %v223
    %v295 = vunpack.c.l.b16 %v101
    %v296 = vunpack.c.l.b16 %v102
    %v297 = vunpack.c.l.b16 %v103
    %v298 = vunpack.c.l.b16 %v104
    %v299 = vunpack.c.l.b16 %v105
    %v300 = vunpack.c.l.b16 %v106
    %v301 = vunpack.c.l.b16 %v107
    %v302 = vunpack.c.l.b16 %v108
    %v303 = vunpack.c.l.b16 %v109
    %v304 = vunpack.c.l.b16 %v110
    %v305 = vunpack.c.l.b16 %v111
    %v306 = vunpack.c.l.b16 %v112
    %v307 = vunpack.c.l.b16 %v113
    %v308 = vunpack.c.l.b16 %v114
    %v309 = vunpack.c.l.b16 %v115
    %v310 = vunpack.c.l.b16 %v116
    %v311 = vpack.c.b16 %v296, %v295
    %v312 = vpack.c.b16 %v298, %v297
    %v313 = vpack.c.b16 %v300, %v299
    %v314 = vpack.c.b16 %v302, %v301
    %v315 = vpack.c.b16 %v304, %v303
    %v316 = vpack.c.b16 %v306, %v305
    %v317 = vpack.c.b16 %v308, %v307
    %v318 = vpack.c.b16 %v310, %v309
    %327 = vmatprep.subr.bf16.mxu0 0
    %328 = vmatpush1.bf16.msra.mxu0 %v311
    %329 = vmatprep.subr.bf16.mxu0 0
    %330 = vmatpush1.bf16.msra.mxu0 %v312
    %331 = vmatprep.subr.bf16.mxu0 0
    %332 = vmatpush1.bf16.msra.mxu0 %v313
    %333 = vmatprep.subr.bf16.mxu0 0
    %334 = vmatpush1.bf16.msra.mxu0 %v314
    %335 = vmatprep.subr.bf16.mxu0 0
    %336 = vmatpush1.bf16.msra.mxu0 %v315
    %337 = vmatprep.subr.bf16.mxu0 0
    %338 = vmatpush1.bf16.msra.mxu0 %v316
    %339 = vmatprep.subr.bf16.mxu0 0
    %340 = vmatpush1.bf16.msra.mxu0 %v317
    %341 = vmatprep.subr.bf16.mxu0 0
    %342 = vmatpush1.bf16.msra.mxu0 %v318
    %343 = vmatprep.subr.bf16.mxu0 0
    %344 = vmatpush1.bf16.msra.mxu0 0
    %345 = vmatprep.subr.bf16.mxu0 0
    %346 = vmatpush1.bf16.msra.mxu0 0
    %347 = vmatprep.subr.bf16.mxu0 0
    %348 = vmatpush1.bf16.msra.mxu0 0
    %349 = vmatprep.subr.bf16.mxu0 0
    %350 = vmatpush1.bf16.msra.mxu0 0
    %351 = vmatprep.subr.bf16.mxu0 0
    %352 = vmatpush1.bf16.msra.mxu0 0
    %353 = vmatprep.subr.bf16.mxu0 0
    %354 = vmatpush1.bf16.msra.mxu0 0
    %355 = vmatprep.subr.bf16.mxu0 0
    %356 = vmatpush1.bf16.msra.mxu0 0
    %357 = vmatprep.subr.bf16.mxu0 0
    %358 = vmatpush1.bf16.msra.mxu0 0
    %359 = vmatprep.mubr.bf16.mxu0 0
    %360 = vmatmul.mubr.bf16.gmra.mrb[0].mxu0 %v225
    %v361 = vpop.f32.mrb[0].mxu0
    %v362 = vadd.f32 0.0, %v361
    %v363 = vpop.f32.mrb[0].mxu0
    %v364 = vpop.f32.mrb[0].mxu0
    %v365 = vadd.f32 0.0, %v364
    %v366 = vpop.f32.mrb[0].mxu0
    %367 = vmatprep.mubr.bf16.mxu0 0
    %368 = vmatmul.mubr.bf16.gmra.mrb[0].mxu0 %v226
    %v369 = vpop.f32.mrb[0].mxu0
    %v370 = vadd.f32 0.0, %v369
    %v371 = vpop.f32.mrb[0].mxu0
    %v372 = vpop.f32.mrb[0].mxu0
    %v373 = vadd.f32 0.0, %v372
    %v374 = vpop.f32.mrb[0].mxu0
    %375 = vmatprep.mubr.bf16.mxu0 0
    %376 = vmatmul.mubr.bf16.gmra.mrb[0].mxu0 %v227
    %v377 = vpop.f32.mrb[0].mxu0
    %v378 = vadd.f32 0.0, %v377
    %v379 = vpop.f32.mrb[0].mxu0
    %v380 = vpop.f32.mrb[0].mxu0
    %v381 = vadd.f32 0.0, %v380
    %v382 = vpop.f32.mrb[0].mxu0
    %383 = vmatprep.mubr.bf16.mxu0 0
    %384 = vmatmul.mubr.bf16.gmra.mrb[0].mxu0 %v228
    %v385 = vpop.f32.mrb[0].mxu0
    %v386 = vadd.f32 0.0, %v385
    %v387 = vpop.f32.mrb[0].mxu0
    %v388 = vpop.f32.mrb[0].mxu0
    %v389 = vadd.f32 0.0, %v388
    %v390 = vpop.f32.mrb[0].mxu0
    %391 = vmatprep.mubr.bf16.mxu0 0
    %392 = vmatmul.mubr.bf16.gmra.mrb[0].mxu0 %v229
    %v393 = vpop.f32.mrb[0].mxu0
    %v394 = vadd.f32 0.0, %v393
    %v395 = vpop.f32.mrb[0].mxu0
    %v396 = vpop.f32.mrb[0].mxu0
    %v397 = vadd.f32 0.0, %v396
    %v398 = vpop.f32.mrb[0].mxu0
    %399 = vmatprep.mubr.bf16.mxu0 0
    %400 = vmatmul.mubr.bf16.gmra.mrb[0].mxu0 %v230
    %v401 = vpop.f32.mrb[0].mxu0
    %v402 = vadd.f32 0.0, %v401
    %v403 = vpop.f32.mrb[0].mxu0
    %v404 = vpop.f32.mrb[0].mxu0
    %v405 = vadd.f32 0.0, %v404
    %v406 = vpop.f32.mrb[0].mxu0
    %407 = vmatprep.mubr.bf16.mxu0 0
    %408 = vmatmul.mubr.bf16.gmra.mrb[0].mxu0 %v231
    %v409 = vpop.f32.mrb[0].mxu0
    %v410 = vadd.f32 0.0, %v409
    %v411 = vpop.f32.mrb[0].mxu0
    %v412 = vpop.f32.mrb[0].mxu0
    %v413 = vadd.f32 0.0, %v412
    %v414 = vpop.f32.mrb[0].mxu0
    %415 = vmatprep.mubr.bf16.mxu0 0
    %416 = vmatmul.mubr.bf16.gmra.mrb[0].mxu0 %v232
    %v417 = vpop.f32.mrb[0].mxu0
    %v418 = vadd.f32 0.0, %v417
    %v419 = vpop.f32.mrb[0].mxu0
    %v420 = vpop.f32.mrb[0].mxu0
    %v421 = vadd.f32 0.0, %v420
    %v422 = vpop.f32.mrb[0].mxu0
    %423 = vmatprep.mubr.bf16.mxu0 0
    %424 = vmatmul.mubr.bf16.gmra.mrb[0].mxu0 %v233
    %v425 = vpop.f32.mrb[0].mxu0
    %v426 = vadd.f32 0.0, %v425
    %v427 = vpop.f32.mrb[0].mxu0
    %v428 = vpop.f32.mrb[0].mxu0
    %v429 = vadd.f32 0.0, %v428
    %v430 = vpop.f32.mrb[0].mxu0
    %431 = vmatprep.mubr.bf16.mxu0 0
    %432 = vmatmul.mubr.bf16.gmra.mrb[0].mxu0 %v234
    %v433 = vpop.f32.mrb[0].mxu0
    %v434 = vadd.f32 0.0, %v433
    %v435 = vpop.f32.mrb[0].mxu0
    %v436 = vpop.f32.mrb[0].mxu0
    %v437 = vadd.f32 0.0, %v436
    %v438 = vpop.f32.mrb[0].mxu0
    %439 = vmatprep.mubr.bf16.mxu0 0
    %440 = vmatmul.mubr.bf16.gmra.mrb[0].mxu0 %v235
    %v441 = vpop.f32.mrb[0].mxu0
    %v442 = vadd.f32 0.0, %v441
    %v443 = vpop.f32.mrb[0].mxu0
    %v444 = vpop.f32.mrb[0].mxu0
    %v445 = vadd.f32 0.0, %v444
    %v446 = vpop.f32.mrb[0].mxu0
    %447 = vmatprep.mubr.bf16.mxu0 0
    %448 = vmatmul.mubr.bf16.gmra.mrb[0].mxu0 %v236
    %v449 = vpop.f32.mrb[0].mxu0
    %v450 = vadd.f32 0.0, %v449
    %v451 = vpop.f32.mrb[0].mxu0
    %v452 = vpop.f32.mrb[0].mxu0
    %v453 = vadd.f32 0.0, %v452
    %v454 = vpop.f32.mrb[0].mxu0
    %455 = vmatprep.mubr.bf16.mxu0 0
    %456 = vmatmul.mubr.bf16.gmra.mrb[0].mxu0 %v237
    %v457 = vpop.f32.mrb[0].mxu0
    %v458 = vadd.f32 0.0, %v457
    %v459 = vpop.f32.mrb[0].mxu0
    %v460 = vpop.f32.mrb[0].mxu0
    %v461 = vadd.f32 0.0, %v460
    %v462 = vpop.f32.mrb[0].mxu0
    %463 = vmatprep.mubr.bf16.mxu0 0
    %464 = vmatmul.mubr.bf16.gmra.mrb[0].mxu0 %v238
    %v465 = vpop.f32.mrb[0].mxu0
    %v466 = vadd.f32 0.0, %v465
    %v467 = vpop.f32.mrb[0].mxu0
    %v468 = vpop.f32.mrb[0].mxu0
    %v469 = vadd.f32 0.0, %v468
    %v470 = vpop.f32.mrb[0].mxu0
    %471 = vmatprep.mubr.bf16.mxu0 0
    %472 = vmatmul.mubr.bf16.gmra.mrb[0].mxu0 %v239
    %v473 = vpop.f32.mrb[0].mxu0
    %v474 = vadd.f32 0.0, %v473
    %v475 = vpop.f32.mrb[0].mxu0
    %v476 = vpop.f32.mrb[0].mxu0
    %v477 = vadd.f32 0.0, %v476
    %v478 = vpop.f32.mrb[0].mxu0
    %479 = vmatprep.mubr.bf16.mxu0 0
    %480 = vmatmul.mubr.bf16.gmra.mrb[0].mxu0 %v240
    %v481 = vpop.f32.mrb[0].mxu0
    %v482 = vadd.f32 0.0, %v481
    %v483 = vpop.f32.mrb[0].mxu0
    %v484 = vpop.f32.mrb[0].mxu0
    %v485 = vadd.f32 0.0, %v484
    %v486 = vpop.f32.mrb[0].mxu0
    %487 = vmatprep.mubr.bf16.mxu0 0
    %488 = vmatmul.mubr.bf16.gmra.mrb[0].mxu0 %v241
    %v489 = vpop.f32.mrb[0].mxu0
    %v490 = vadd.f32 0.0, %v489
    %v491 = vpop.f32.mrb[0].mxu0
    %v492 = vpop.f32.mrb[0].mxu0
    %v493 = vadd.f32 0.0, %v492
    %v494 = vpop.f32.mrb[0].mxu0
    %495 = vmatprep.mubr.bf16.mxu0 0
    %496 = vmatmul.mubr.bf16.gmra.mrb[0].mxu0 %v242
    %v497 = vpop.f32.mrb[0].mxu0
    %v498 = vadd.f32 0.0, %v497
    %v499 = vpop.f32.mrb[0].mxu0
    %v500 = vpop.f32.mrb[0].mxu0
    %v501 = vadd.f32 0.0, %v500
    %v502 = vpop.f32.mrb[0].mxu0
    %503 = vmatprep.mubr.bf16.mxu0 0
    %504 = vmatmul.mubr.bf16.gmra.mrb[0].mxu0 %v243
    %v505 = vpop.f32.mrb[0].mxu0
    %v506 = vadd.f32 0.0, %v505
    %v507 = vpop.f32.mrb[0].mxu0
    %v508 = vpop.f32.mrb[0].mxu0
    %v509 = vadd.f32 0.0, %v508
    %v510 = vpop.f32.mrb[0].mxu0
    %511 = vmatprep.mubr.bf16.mxu0 0
    %512 = vmatmul.mubr.bf16.gmra.mrb[0].mxu0 %v244
    %v513 = vpop.f32.mrb[0].mxu0
    %v514 = vadd.f32 0.0, %v513
    %v515 = vpop.f32.mrb[0].mxu0
    %v516 = vpop.f32.mrb[0].mxu0
    %v517 = vadd.f32 0.0, %v516
    %v518 = vpop.f32.mrb[0].mxu0
    %519 = vmatprep.mubr.bf16.mxu0 0
    %520 = vmatmul.mubr.bf16.gmra.mrb[0].mxu0 %v245
    %v521 = vpop.f32.mrb[0].mxu0
    %v522 = vadd.f32 0.0, %v521
    %v523 = vpop.f32.mrb[0].mxu0
    %v524 = vpop.f32.mrb[0].mxu0
    %v525 = vadd.f32 0.0, %v524
    %v526 = vpop.f32.mrb[0].mxu0
    %527 = vmatprep.mubr.bf16.mxu0 0
    %528 = vmatmul.mubr.bf16.gmra.mrb[0].mxu0 %v246
    %v529 = vpop.f32.mrb[0].mxu0
    %v530 = vadd.f32 0.0, %v529
    %v531 = vpop.f32.mrb[0].mxu0
    %v532 = vpop.f32.mrb[0].mxu0
    %v533 = vadd.f32 0.0, %v532
    %v534 = vpop.f32.mrb[0].mxu0
    %535 = vmatprep.mubr.bf16.mxu0 0
    %536 = vmatmul.mubr.bf16.gmra.mrb[0].mxu0 %v247
    %v537 = vpop.f32.mrb[0].mxu0
    %v538 = vadd.f32 0.0, %v537
    %v539 = vpop.f32.mrb[0].mxu0
    %v540 = vpop.f32.mrb[0].mxu0
    %v541 = vadd.f32 0.0, %v540
    %v542 = vpop.f32.mrb[0].mxu0
    %543 = vmatprep.mubr.bf16.mxu0 0
    %544 = vmatmul.mubr.bf16.gmra.mrb[0].mxu0 %v248
    %v545 = vpop.f32.mrb[0].mxu0
    %v546 = vadd.f32 0.0, %v545
    %v547 = vpop.f32.mrb[0].mxu0
    %v548 = vpop.f32.mrb[0].mxu0
    %v549 = vadd.f32 0.0, %v548
    %v550 = vpop.f32.mrb[0].mxu0
    %551 = vmatprep.mubr.bf16.mxu0 0
    %552 = vmatmul.mubr.bf16.gmra.mrb[0].mxu0 %v249
    %v553 = vpop.f32.mrb[0].mxu0
    %v554 = vadd.f32 0.0, %v553
    %v555 = vpop.f32.mrb[0].mxu0
    %v556 = vpop.f32.mrb[0].mxu0
    %v557 = vadd.f32 0.0, %v556
    %v558 = vpop.f32.mrb[0].mxu0
    %559 = vmatprep.mubr.bf16.mxu0 0
    %560 = vmatmul.mubr.bf16.gmra.mrb[0].mxu0 %v250
    %v561 = vpop.f32.mrb[0].mxu0
    %v562 = vadd.f32 0.0, %v561
    %v563 = vpop.f32.mrb[0].mxu0
    %v564 = vpop.f32.mrb[0].mxu0
    %v565 = vadd.f32 0.0, %v564
    %v566 = vpop.f32.mrb[0].mxu0
    %567 = vmatprep.mubr.bf16.mxu0 0
    %568 = vmatmul.mubr.bf16.gmra.mrb[0].mxu0 %v251
    %v569 = vpop.f32.mrb[0].mxu0
    %v570 = vadd.f32 0.0, %v569
    %v571 = vpop.f32.mrb[0].mxu0
    %v572 = vpop.f32.mrb[0].mxu0
    %v573 = vadd.f32 0.0, %v572
    %v574 = vpop.f32.mrb[0].mxu0
    %575 = vdwg.mxu0
    %576 = vst [vmem:[#allocation2] sm:$0xff] %v362
    %577 = vst [vmem:[#allocation2 + $0x8] sm:$0xff] %v365
    %578 = vst [vmem:[#allocation2 + $0x10] sm:$0xff] %v370
    %579 = vst [vmem:[#allocation2 + $0x18] sm:$0xff] %v373
    %580 = vst [vmem:[#allocation2 + $0x20] sm:$0xff] %v378
    %581 = vst [vmem:[#allocation2 + $0x28] sm:$0xff] %v381
    %582 = vst [vmem:[#allocation2 + $0x30] sm:$0xff] %v386
    %583 = vst [vmem:[#allocation2 + $0x38] sm:$0xff] %v389
    %584 = vst [vmem:[#allocation2 + $0x40] sm:$0xff] %v394
    %585 = vst [vmem:[#allocation2 + $0x48] sm:$0xff] %v397
    %586 = vst [vmem:[#allocation2 + $0x50] sm:$0xff] %v402
    %587 = vst [vmem:[#allocation2 + $0x58] sm:$0xff] %v405
    %588 = vst [vmem:[#allocation2 + $0x60] sm:$0xff] %v410
    %589 = vst [vmem:[#allocation2 + $0x68] sm:$0xff] %v413
    %590 = vst [vmem:[#allocation2 + $0x70] sm:$0xff] %v418
    %591 = vst [vmem:[#allocation2 + $0x78] sm:$0xff] %v421
    %592 = vst [vmem:[#allocation2 + $0x80] sm:$0xff] %v426
    %593 = vst [vmem:[#allocation2 + $0x88] sm:$0xff] %v429
    %594 = vst [vmem:[#allocation2 + $0x90] sm:$0xff] %v434
    %595 = vst [vmem:[#allocation2 + $0x98] sm:$0xff] %v437
    %596 = vst [vmem:[#allocation2 + $0xa0] sm:$0xff] %v442
    %597 = vst [vmem:[#allocation2 + $0xa8] sm:$0xff] %v445
    %598 = vst [vmem:[#allocation2 + $0xb0] sm:$0xff] %v450
    %599 = vst [vmem:[#allocation2 + $0xb8] sm:$0xff] %v453
    %600 = vst [vmem:[#allocation2 + $0xc0] sm:$0xff] %v458
    %601 = vst [vmem:[#allocation2 + $0xc8] sm:$0xff] %v461
    %602 = vst [vmem:[#allocation2 + $0xd0] sm:$0xff] %v466
    %603 = vst [vmem:[#allocation2 + $0xd8] sm:$0xff] %v469
    %604 = vst [vmem:[#allocation2 + $0xe0] sm:$0xff] %v474
    %605 = vst [vmem:[#allocation2 + $0xe8] sm:$0xff] %v477
    %606 = vst [vmem:[#allocation2 + $0xf0] sm:$0xff] %v482
    %607 = vst [vmem:[#allocation2 + $0xf8] sm:$0xff] %v485
    %608 = vst [vmem:[#allocation2 + $0x100] sm:$0xff] %v490
    %609 = vst [vmem:[#allocation2 + $0x108] sm:$0xff] %v493
    %610 = vst [vmem:[#allocation2 + $0x110] sm:$0xff] %v498
    %611 = vst [vmem:[#allocation2 + $0x118] sm:$0xff] %v501
    %612 = vst [vmem:[#allocation2 + $0x120] sm:$0xff] %v506
    %613 = vst [vmem:[#allocation2 + $0x128] sm:$0xff] %v509
    %614 = vst [vmem:[#allocation2 + $0x130] sm:$0xff] %v514
    %615 = vst [vmem:[#allocation2 + $0x138] sm:$0xff] %v517
    %616 = vst [vmem:[#allocation2 + $0x140] sm:$0xff] %v522
    %617 = vst [vmem:[#allocation2 + $0x148] sm:$0xff] %v525
    %618 = vst [vmem:[#allocation2 + $0x150] sm:$0xff] %v530
    %619 = vst [vmem:[#allocation2 + $0x158] sm:$0xff] %v533
    %620 = vst [vmem:[#allocation2 + $0x160] sm:$0xff] %v538
    %621 = vst [vmem:[#allocation2 + $0x168] sm:$0xff] %v541
    %622 = vst [vmem:[#allocation2 + $0x170] sm:$0xff] %v546
    %623 = vst [vmem:[#allocation2 + $0x178] sm:$0xff] %v549
    %624 = vst [vmem:[#allocation2 + $0x180] sm:$0xff] %v554
    %625 = vst [vmem:[#allocation2 + $0x188] sm:$0xff] %v557
    %626 = vst [vmem:[#allocation2 + $0x190] sm:$0xff] %v562
    %627 = vst [vmem:[#allocation2 + $0x198] sm:$0xff] %v565
    %628 = vst [vmem:[#allocation2 + $0x1a0] sm:$0xff] %v570
    %629 = vst [vmem:[#allocation2 + $0x1a8] sm:$0xff] %v573
    %v630 = vld [vmem:[#allocation3] sm:$0xf]
    %v631 = vld [vmem:[#allocation3 + $0x4] sm:$0xf]
    %v632 = vld [vmem:[#allocation3 + $0x8] sm:$0xf]
    %v633 = vld [vmem:[#allocation3 + $0xc] sm:$0xf]
    %v634 = vld [vmem:[#allocation3 + $0x10] sm:$0xf]
    %v635 = vld [vmem:[#allocation3 + $0x14] sm:$0xf]
    %v636 = vld [vmem:[#allocation3 + $0x18] sm:$0xf]
    %v637 = vld [vmem:[#allocation3 + $0x1c] sm:$0xf]
    %v638 = vld [vmem:[#allocation3 + $0x20] sm:$0xf]
    %v639 = vld [vmem:[#allocation3 + $0x24] sm:$0xf]
    %v640 = vld [vmem:[#allocation3 + $0x28] sm:$0xf]
    %v641 = vld [vmem:[#allocation3 + $0x2c] sm:$0xf]
    %v642 = vld [vmem:[#allocation3 + $0x30] sm:$0xf]
    %v643 = vld [vmem:[#allocation3 + $0x34] sm:$0xf]
    %v644 = vld [vmem:[#allocation3 + $0x38] sm:$0xf]
    %v645 = vld [vmem:[#allocation3 + $0x3c] sm:$0xf]
    %v646 = vld [vmem:[#allocation3 + $0x40] sm:$0xf]
    %v647 = vld [vmem:[#allocation3 + $0x44] sm:$0xf]
    %v648 = vld [vmem:[#allocation3 + $0x48] sm:$0xf]
    %v649 = vld [vmem:[#allocation3 + $0x4c] sm:$0xf]
    %v650 = vld [vmem:[#allocation3 + $0x50] sm:$0xf]
    %v651 = vld [vmem:[#allocation3 + $0x54] sm:$0xf]
    %v652 = vld [vmem:[#allocation3 + $0x58] sm:$0xf]
    %v653 = vld [vmem:[#allocation3 + $0x5c] sm:$0xf]
    %v654 = vld [vmem:[#allocation3 + $0x60] sm:$0xf]
    %v655 = vld [vmem:[#allocation3 + $0x64] sm:$0xf]
    %v656 = vld [vmem:[#allocation3 + $0x68] sm:$0xf]
    %v657 = vld [vmem:[#allocation3 + $0x6c] sm:$0xf]
    %v658 = vld [vmem:[#allocation3 + $0x70] sm:$0xf]
    %v659 = vld [vmem:[#allocation3 + $0x74] sm:$0xf]
    %v660 = vld [vmem:[#allocation3 + $0x78] sm:$0xf]
    %v661 = vld [vmem:[#allocation3 + $0x7c] sm:$0xf]
    %v662 = vld [vmem:[#allocation3 + $0x80] sm:$0xf]
    %v663 = vld [vmem:[#allocation3 + $0x84] sm:$0xf]
    %v664 = vld [vmem:[#allocation3 + $0x88] sm:$0xf]
    %v665 = vld [vmem:[#allocation3 + $0x8c] sm:$0xf]
    %v666 = vld [vmem:[#allocation3 + $0x90] sm:$0xf]
    %v667 = vld [vmem:[#allocation3 + $0x94] sm:$0xf]
    %v668 = vld [vmem:[#allocation3 + $0x98] sm:$0xf]
    %v669 = vld [vmem:[#allocation3 + $0x9c] sm:$0xf]
    %v670 = vld [vmem:[#allocation3 + $0xa0] sm:$0xf]
    %v671 = vld [vmem:[#allocation3 + $0xa4] sm:$0xf]
    %v672 = vld [vmem:[#allocation3 + $0xa8] sm:$0xf]
    %v673 = vld [vmem:[#allocation3 + $0xac] sm:$0xf]
    %v674 = vld [vmem:[#allocation3 + $0xb0] sm:$0xf]
    %v675 = vld [vmem:[#allocation3 + $0xb4] sm:$0xf]
    %v676 = vld [vmem:[#allocation3 + $0xb8] sm:$0xf]
    %v677 = vld [vmem:[#allocation3 + $0xbc] sm:$0xf]
    %v678 = vld [vmem:[#allocation3 + $0xc0] sm:$0xf]
    %v679 = vld [vmem:[#allocation3 + $0xc4] sm:$0xf]
    %v680 = vld [vmem:[#allocation3 + $0xc8] sm:$0xf]
    %v681 = vld [vmem:[#allocation3 + $0xcc] sm:$0xf]
    %v682 = vld [vmem:[#allocation3 + $0xd0] sm:$0xf]
    %v683 = vld [vmem:[#allocation3 + $0xd4] sm:$0xf]
    %v684 = vld [vmem:[#allocation3 + $0xd8] sm:$0x1]
    %s685 = scalar_lea.vmem [#allocation6], 64
    %v686 = vld [vmem:[%s685] sm:$0xf]
    %v687 = vld [vmem:[%s685 + $0x4] sm:$0xf]
    %v688 = vld [vmem:[%s685 + $0x8] sm:$0xf]
    %v689 = vld [vmem:[%s685 + $0xc] sm:$0xf]
    %v690 = vld [vmem:[%s685 + $0x10] sm:$0xf]
    %v691 = vld [vmem:[%s685 + $0x14] sm:$0xf]
    %v692 = vld [vmem:[%s685 + $0x18] sm:$0xf]
    %v693 = vld [vmem:[%s685 + $0x1c] sm:$0xf]
    %v694 = vld [vmem:[%s685 + $0x20] sm:$0xf]
    %v695 = vld [vmem:[%s685 + $0x24] sm:$0xf]
    %v696 = vld [vmem:[%s685 + $0x28] sm:$0xf]
    %v697 = vld [vmem:[%s685 + $0x2c] sm:$0xf]
    %v698 = vld [vmem:[%s685 + $0x30] sm:$0xf]
    %v699 = vld [vmem:[%s685 + $0x34] sm:$0xf]
    %v700 = vld [vmem:[%s685 + $0x38] sm:$0xf]
    %v701 = vld [vmem:[%s685 + $0x3c] sm:$0xf]
    %v757 = vunpack.c.l.b16 %v630
    %v758 = vunpack.c.l.b16 %v631
    %v759 = vunpack.c.l.b16 %v632
    %v760 = vunpack.c.l.b16 %v633
    %v761 = vunpack.c.l.b16 %v634
    %v762 = vunpack.c.l.b16 %v635
    %v763 = vunpack.c.l.b16 %v636
    %v764 = vunpack.c.l.b16 %v637
    %v765 = vunpack.c.l.b16 %v638
    %v766 = vunpack.c.l.b16 %v639
    %v767 = vunpack.c.l.b16 %v640
    %v768 = vunpack.c.l.b16 %v641
    %v769 = vunpack.c.l.b16 %v642
    %v770 = vunpack.c.l.b16 %v643
    %v771 = vunpack.c.l.b16 %v644
    %v772 = vunpack.c.l.b16 %v645
    %v773 = vunpack.c.l.b16 %v646
    %v774 = vunpack.c.l.b16 %v647
    %v775 = vunpack.c.l.b16 %v648
    %v776 = vunpack.c.l.b16 %v649
    %v777 = vunpack.c.l.b16 %v650
    %v778 = vunpack.c.l.b16 %v651
    %v779 = vunpack.c.l.b16 %v652
    %v780 = vunpack.c.l.b16 %v653
    %v781 = vunpack.c.l.b16 %v654
    %v782 = vunpack.c.l.b16 %v655
    %v783 = vunpack.c.l.b16 %v656
    %v784 = vunpack.c.l.b16 %v657
    %v785 = vunpack.c.l.b16 %v658
    %v786 = vunpack.c.l.b16 %v659
    %v787 = vunpack.c.l.b16 %v660
    %v788 = vunpack.c.l.b16 %v661
    %v789 = vunpack.c.l.b16 %v662
    %v790 = vunpack.c.l.b16 %v663
    %v791 = vunpack.c.l.b16 %v664
    %v792 = vunpack.c.l.b16 %v665
    %v793 = vunpack.c.l.b16 %v666
    %v794 = vunpack.c.l.b16 %v667
    %v795 = vunpack.c.l.b16 %v668
    %v796 = vunpack.c.l.b16 %v669
    %v797 = vunpack.c.l.b16 %v670
    %v798 = vunpack.c.l.b16 %v671
    %v799 = vunpack.c.l.b16 %v672
    %v800 = vunpack.c.l.b16 %v673
    %v801 = vunpack.c.l.b16 %v674
    %v802 = vunpack.c.l.b16 %v675
    %v803 = vunpack.c.l.b16 %v676
    %v804 = vunpack.c.l.b16 %v677
    %v805 = vunpack.c.l.b16 %v678
    %v806 = vunpack.c.l.b16 %v679
    %v807 = vunpack.c.l.b16 %v680
    %v808 = vunpack.c.l.b16 %v681
    %v809 = vunpack.c.l.b16 %v682
    %v810 = vunpack.c.l.b16 %v683
    %v811 = vunpack.c.l.b16 %v684
    %v812 = vpack.c.b16 %v758, %v757
    %v813 = vpack.c.b16 %v760, %v759
    %v814 = vpack.c.b16 %v762, %v761
    %v815 = vpack.c.b16 %v764, %v763
    %v816 = vpack.c.b16 %v766, %v765
    %v817 = vpack.c.b16 %v768, %v767
    %v818 = vpack.c.b16 %v770, %v769
    %v819 = vpack.c.b16 %v772, %v771
    %v820 = vpack.c.b16 %v774, %v773
    %v821 = vpack.c.b16 %v776, %v775
    %v822 = vpack.c.b16 %v778, %v777
    %v823 = vpack.c.b16 %v780, %v779
    %v824 = vpack.c.b16 %v782, %v781
    %v825 = vpack.c.b16 %v784, %v783
    %v826 = vpack.c.b16 %v786, %v785
    %v827 = vpack.c.b16 %v788, %v787
    %v828 = vpack.c.b16 %v790, %v789
    %v829 = vpack.c.b16 %v792, %v791
    %v830 = vpack.c.b16 %v794, %v793
    %v831 = vpack.c.b16 %v796, %v795
    %v832 = vpack.c.b16 %v798, %v797
    %v833 = vpack.c.b16 %v800, %v799
    %v834 = vpack.c.b16 %v802, %v801
    %v835 = vpack.c.b16 %v804, %v803
    %v836 = vpack.c.b16 %v806, %v805
    %v837 = vpack.c.b16 %v808, %v807
    %v838 = vpack.c.b16 %v810, %v809
    %v839 = vpack.c.b16 %v811, %v811
    %vm840 = vsmask.f32 7424
    %v842 = vshrl.u32 %v812, 16
    %v844 = vshll.u32 %v812, 16
    %v846 = vrot.slane %v844, 1
    %v847 = vor.u32 %v842, %v846
    %v849 = vshll.u32 %v813, 16
    %v851 = vrot.slane %v849, 1
    %v852 = vsel %vm840, %v847, %v851
    %v853 = vshrl.u32 %v813, 16
    %v855 = vor.u32 %v853, %v851
    %v857 = vshll.u32 %v814, 16
    %v859 = vrot.slane %v857, 1
    %v860 = vsel %vm840, %v855, %v859
    %v861 = vshrl.u32 %v814, 16
    %v863 = vor.u32 %v861, %v859
    %v865 = vshll.u32 %v815, 16
    %v867 = vrot.slane %v865, 1
    %v868 = vsel %vm840, %v863, %v867
    %v869 = vshrl.u32 %v815, 16
    %v871 = vor.u32 %v869, %v867
    %v873 = vshll.u32 %v816, 16
    %v875 = vrot.slane %v873, 1
    %v876 = vsel %vm840, %v871, %v875
    %v877 = vshrl.u32 %v816, 16
    %v879 = vor.u32 %v877, %v875
    %v881 = vshll.u32 %v817, 16
    %v883 = vrot.slane %v881, 1
    %v884 = vsel %vm840, %v879, %v883
    %v885 = vshrl.u32 %v817, 16
    %v887 = vor.u32 %v885, %v883
    %v889 = vshll.u32 %v818, 16
    %v891 = vrot.slane %v889, 1
    %v892 = vsel %vm840, %v887, %v891
    %v893 = vshrl.u32 %v818, 16
    %v895 = vor.u32 %v893, %v891
    %v897 = vshll.u32 %v819, 16
    %v899 = vrot.slane %v897, 1
    %v900 = vsel %vm840, %v895, %v899
    %v901 = vshrl.u32 %v819, 16
    %v903 = vor.u32 %v901, %v899
    %v905 = vshll.u32 %v820, 16
    %v907 = vrot.slane %v905, 1
    %v908 = vsel %vm840, %v903, %v907
    %v909 = vshrl.u32 %v820, 16
    %v911 = vor.u32 %v909, %v907
    %v913 = vshll.u32 %v821, 16
    %v915 = vrot.slane %v913, 1
    %v916 = vsel %vm840, %v911, %v915
    %v917 = vshrl.u32 %v821, 16
    %v919 = vor.u32 %v917, %v915
    %v921 = vshll.u32 %v822, 16
    %v923 = vrot.slane %v921, 1
    %v924 = vsel %vm840, %v919, %v923
    %v925 = vshrl.u32 %v822, 16
    %v927 = vor.u32 %v925, %v923
    %v929 = vshll.u32 %v823, 16
    %v931 = vrot.slane %v929, 1
    %v932 = vsel %vm840, %v927, %v931
    %v933 = vshrl.u32 %v823, 16
    %v935 = vor.u32 %v933, %v931
    %v937 = vshll.u32 %v824, 16
    %v939 = vrot.slane %v937, 1
    %v940 = vsel %vm840, %v935, %v939
    %v941 = vshrl.u32 %v824, 16
    %v943 = vor.u32 %v941, %v939
    %v945 = vshll.u32 %v825, 16
    %v947 = vrot.slane %v945, 1
    %v948 = vsel %vm840, %v943, %v947
    %v949 = vshrl.u32 %v825, 16
    %v951 = vor.u32 %v949, %v947
    %v953 = vshll.u32 %v826, 16
    %v955 = vrot.slane %v953, 1
    %v956 = vsel %vm840, %v951, %v955
    %v957 = vshrl.u32 %v826, 16
    %v959 = vor.u32 %v957, %v955
    %v961 = vshll.u32 %v827, 16
    %v963 = vrot.slane %v961, 1
    %v964 = vsel %vm840, %v959, %v963
    %v965 = vshrl.u32 %v827, 16
    %v967 = vor.u32 %v965, %v963
    %v969 = vshll.u32 %v828, 16
    %v971 = vrot.slane %v969, 1
    %v972 = vsel %vm840, %v967, %v971
    %v973 = vshrl.u32 %v828, 16
    %v975 = vor.u32 %v973, %v971
    %v977 = vshll.u32 %v829, 16
    %v979 = vrot.slane %v977, 1
    %v980 = vsel %vm840, %v975, %v979
    %v981 = vshrl.u32 %v829, 16
    %v983 = vor.u32 %v981, %v979
    %v985 = vshll.u32 %v830, 16
    %v987 = vrot.slane %v985, 1
    %v988 = vsel %vm840, %v983, %v987
    %v989 = vshrl.u32 %v830, 16
    %v991 = vor.u32 %v989, %v987
    %v993 = vshll.u32 %v831, 16
    %v995 = vrot.slane %v993, 1
    %v996 = vsel %vm840, %v991, %v995
    %v997 = vshrl.u32 %v831, 16
    %v999 = vor.u32 %v997, %v995
    %v1001 = vshll.u32 %v832, 16
    %v1003 = vrot.slane %v1001, 1
    %v1004 = vsel %vm840, %v999, %v1003
    %v1005 = vshrl.u32 %v832, 16
    %v1007 = vor.u32 %v1005, %v1003
    %v1009 = vshll.u32 %v833, 16
    %v1011 = vrot.slane %v1009, 1
    %v1012 = vsel %vm840, %v1007, %v1011
    %v1013 = vshrl.u32 %v833, 16
    %v1015 = vor.u32 %v1013, %v1011
    %v1017 = vshll.u32 %v834, 16
    %v1019 = vrot.slane %v1017, 1
    %v1020 = vsel %vm840, %v1015, %v1019
    %v1021 = vshrl.u32 %v834, 16
    %v1023 = vor.u32 %v1021, %v1019
    %v1025 = vshll.u32 %v835, 16
    %v1027 = vrot.slane %v1025, 1
    %v1028 = vsel %vm840, %v1023, %v1027
    %v1029 = vshrl.u32 %v835, 16
    %v1031 = vor.u32 %v1029, %v1027
    %v1033 = vshll.u32 %v836, 16
    %v1035 = vrot.slane %v1033, 1
    %v1036 = vsel %vm840, %v1031, %v1035
    %v1037 = vshrl.u32 %v836, 16
    %v1039 = vor.u32 %v1037, %v1035
    %v1041 = vshll.u32 %v837, 16
    %v1043 = vrot.slane %v1041, 1
    %v1044 = vsel %vm840, %v1039, %v1043
    %v1045 = vshrl.u32 %v837, 16
    %v1047 = vor.u32 %v1045, %v1043
    %v1049 = vshll.u32 %v838, 16
    %v1051 = vrot.slane %v1049, 1
    %v1052 = vsel %vm840, %v1047, %v1051
    %v1053 = vshrl.u32 %v838, 16
    %v1055 = vor.u32 %v1053, %v1051
    %v1057 = vshll.u32 %v839, 16
    %v1059 = vrot.slane %v1057, 1
    %v1060 = vsel %vm840, %v1055, %v1059
    %v1104 = vunpack.c.l.b16 %v686
    %v1105 = vunpack.c.l.b16 %v687
    %v1106 = vunpack.c.l.b16 %v688
    %v1107 = vunpack.c.l.b16 %v689
    %v1108 = vunpack.c.l.b16 %v690
    %v1109 = vunpack.c.l.b16 %v691
    %v1110 = vunpack.c.l.b16 %v692
    %v1111 = vunpack.c.l.b16 %v693
    %v1112 = vunpack.c.l.b16 %v694
    %v1113 = vunpack.c.l.b16 %v695
    %v1114 = vunpack.c.l.b16 %v696
    %v1115 = vunpack.c.l.b16 %v697
    %v1116 = vunpack.c.l.b16 %v698
    %v1117 = vunpack.c.l.b16 %v699
    %v1118 = vunpack.c.l.b16 %v700
    %v1119 = vunpack.c.l.b16 %v701
    %v1120 = vpack.c.b16 %v1105, %v1104
    %v1121 = vpack.c.b16 %v1107, %v1106
    %v1122 = vpack.c.b16 %v1109, %v1108
    %v1123 = vpack.c.b16 %v1111, %v1110
    %v1124 = vpack.c.b16 %v1113, %v1112
    %v1125 = vpack.c.b16 %v1115, %v1114
    %v1126 = vpack.c.b16 %v1117, %v1116
    %v1127 = vpack.c.b16 %v1119, %v1118
    %1136 = vmatprep.subr.bf16.mxu0 0
    %1137 = vmatpush1.bf16.msra.mxu0 %v1120
    %1138 = vmatprep.subr.bf16.mxu0 0
    %1139 = vmatpush1.bf16.msra.mxu0 %v1121
    %1140 = vmatprep.subr.bf16.mxu0 0
    %1141 = vmatpush1.bf16.msra.mxu0 %v1122
    %1142 = vmatprep.subr.bf16.mxu0 0
    %1143 = vmatpush1.bf16.msra.mxu0 %v1123
    %1144 = vmatprep.subr.bf16.mxu0 0
    %1145 = vmatpush1.bf16.msra.mxu0 %v1124
    %1146 = vmatprep.subr.bf16.mxu0 0
    %1147 = vmatpush1.bf16.msra.mxu0 %v1125
    %1148 = vmatprep.subr.bf16.mxu0 0
    %1149 = vmatpush1.bf16.msra.mxu0 %v1126
    %1150 = vmatprep.subr.bf16.mxu0 0
    %1151 = vmatpush1.bf16.msra.mxu0 %v1127
    %1152 = vmatprep.subr.bf16.mxu0 0
    %1153 = vmatpush1.bf16.msra.mxu0 0
    %1154 = vmatprep.subr.bf16.mxu0 0
    %1155 = vmatpush1.bf16.msra.mxu0 0
    %1156 = vmatprep.subr.bf16.mxu0 0
    %1157 = vmatpush1.bf16.msra.mxu0 0
    %1158 = vmatprep.subr.bf16.mxu0 0
    %1159 = vmatpush1.bf16.msra.mxu0 0
    %1160 = vmatprep.subr.bf16.mxu0 0
    %1161 = vmatpush1.bf16.msra.mxu0 0
    %1162 = vmatprep.subr.bf16.mxu0 0
    %1163 = vmatpush1.bf16.msra.mxu0 0
    %1164 = vmatprep.subr.bf16.mxu0 0
    %1165 = vmatpush1.bf16.msra.mxu0 0
    %1166 = vmatprep.subr.bf16.mxu0 0
    %1167 = vmatpush1.bf16.msra.mxu0 0
    %1168 = vmatprep.mubr.bf16.mxu0 0
    %1169 = vmatmul.mubr.bf16.gmra.mrb[0].mxu0 %v852
    %v1170 = vpop.f32.mrb[0].mxu0
    %v1171 = vadd.f32 0.0, %v1170
    %v1172 = vpop.f32.mrb[0].mxu0
    %v1173 = vpop.f32.mrb[0].mxu0
    %v1174 = vadd.f32 0.0, %v1173
    %v1175 = vpop.f32.mrb[0].mxu0
    %1176 = vmatprep.mubr.bf16.mxu0 0
    %1177 = vmatmul.mubr.bf16.gmra.mrb[0].mxu0 %v860
    %v1178 = vpop.f32.mrb[0].mxu0
    %v1179 = vadd.f32 0.0, %v1178
    %v1180 = vpop.f32.mrb[0].mxu0
    %v1181 = vpop.f32.mrb[0].mxu0
    %v1182 = vadd.f32 0.0, %v1181
    %v1183 = vpop.f32.mrb[0].mxu0
    %1184 = vmatprep.mubr.bf16.mxu0 0
    %1185 = vmatmul.mubr.bf16.gmra.mrb[0].mxu0 %v868
    %v1186 = vpop.f32.mrb[0].mxu0
    %v1187 = vadd.f32 0.0, %v1186
    %v1188 = vpop.f32.mrb[0].mxu0
    %v1189 = vpop.f32.mrb[0].mxu0
    %v1190 = vadd.f32 0.0, %v1189
    %v1191 = vpop.f32.mrb[0].mxu0
    %1192 = vmatprep.mubr.bf16.mxu0 0
    %1193 = vmatmul.mubr.bf16.gmra.mrb[0].mxu0 %v876
    %v1194 = vpop.f32.mrb[0].mxu0
    %v1195 = vadd.f32 0.0, %v1194
    %v1196 = vpop.f32.mrb[0].mxu0
    %v1197 = vpop.f32.mrb[0].mxu0
    %v1198 = vadd.f32 0.0, %v1197
    %v1199 = vpop.f32.mrb[0].mxu0
    %1200 = vmatprep.mubr.bf16.mxu0 0
    %1201 = vmatmul.mubr.bf16.gmra.mrb[0].mxu0 %v884
    %v1202 = vpop.f32.mrb[0].mxu0
    %v1203 = vadd.f32 0.0, %v1202
    %v1204 = vpop.f32.mrb[0].mxu0
    %v1205 = vpop.f32.mrb[0].mxu0
    %v1206 = vadd.f32 0.0, %v1205
    %v1207 = vpop.f32.mrb[0].mxu0
    %1208 = vmatprep.mubr.bf16.mxu0 0
    %1209 = vmatmul.mubr.bf16.gmra.mrb[0].mxu0 %v892
    %v1210 = vpop.f32.mrb[0].mxu0
    %v1211 = vadd.f32 0.0, %v1210
    %v1212 = vpop.f32.mrb[0].mxu0
    %v1213 = vpop.f32.mrb[0].mxu0
    %v1214 = vadd.f32 0.0, %v1213
    %v1215 = vpop.f32.mrb[0].mxu0
    %1216 = vmatprep.mubr.bf16.mxu0 0
    %1217 = vmatmul.mubr.bf16.gmra.mrb[0].mxu0 %v900
    %v1218 = vpop.f32.mrb[0].mxu0
    %v1219 = vadd.f32 0.0, %v1218
    %v1220 = vpop.f32.mrb[0].mxu0
    %v1221 = vpop.f32.mrb[0].mxu0
    %v1222 = vadd.f32 0.0, %v1221
    %v1223 = vpop.f32.mrb[0].mxu0
    %1224 = vmatprep.mubr.bf16.mxu0 0
    %1225 = vmatmul.mubr.bf16.gmra.mrb[0].mxu0 %v908
    %v1226 = vpop.f32.mrb[0].mxu0
    %v1227 = vadd.f32 0.0, %v1226
    %v1228 = vpop.f32.mrb[0].mxu0
    %v1229 = vpop.f32.mrb[0].mxu0
    %v1230 = vadd.f32 0.0, %v1229
    %v1231 = vpop.f32.mrb[0].mxu0
    %1232 = vmatprep.mubr.bf16.mxu0 0
    %1233 = vmatmul.mubr.bf16.gmra.mrb[0].mxu0 %v916
    %v1234 = vpop.f32.mrb[0].mxu0
    %v1235 = vadd.f32 0.0, %v1234
    %v1236 = vpop.f32.mrb[0].mxu0
    %v1237 = vpop.f32.mrb[0].mxu0
    %v1238 = vadd.f32 0.0, %v1237
    %v1239 = vpop.f32.mrb[0].mxu0
    %1240 = vmatprep.mubr.bf16.mxu0 0
    %1241 = vmatmul.mubr.bf16.gmra.mrb[0].mxu0 %v924
    %v1242 = vpop.f32.mrb[0].mxu0
    %v1243 = vadd.f32 0.0, %v1242
    %v1244 = vpop.f32.mrb[0].mxu0
    %v1245 = vpop.f32.mrb[0].mxu0
    %v1246 = vadd.f32 0.0, %v1245
    %v1247 = vpop.f32.mrb[0].mxu0
    %1248 = vmatprep.mubr.bf16.mxu0 0
    %1249 = vmatmul.mubr.bf16.gmra.mrb[0].mxu0 %v932
    %v1250 = vpop.f32.mrb[0].mxu0
    %v1251 = vadd.f32 0.0, %v1250
    %v1252 = vpop.f32.mrb[0].mxu0
    %v1253 = vpop.f32.mrb[0].mxu0
    %v1254 = vadd.f32 0.0, %v1253
    %v1255 = vpop.f32.mrb[0].mxu0
    %1256 = vmatprep.mubr.bf16.mxu0 0
    %1257 = vmatmul.mubr.bf16.gmra.mrb[0].mxu0 %v940
    %v1258 = vpop.f32.mrb[0].mxu0
    %v1259 = vadd.f32 0.0, %v1258
    %v1260 = vpop.f32.mrb[0].mxu0
    %v1261 = vpop.f32.mrb[0].mxu0
    %v1262 = vadd.f32 0.0, %v1261
    %v1263 = vpop.f32.mrb[0].mxu0
    %1264 = vmatprep.mubr.bf16.mxu0 0
    %1265 = vmatmul.mubr.bf16.gmra.mrb[0].mxu0 %v948
    %v1266 = vpop.f32.mrb[0].mxu0
    %v1267 = vadd.f32 0.0, %v1266
    %v1268 = vpop.f32.mrb[0].mxu0
    %v1269 = vpop.f32.mrb[0].mxu0
    %v1270 = vadd.f32 0.0, %v1269
    %v1271 = vpop.f32.mrb[0].mxu0
    %1272 = vmatprep.mubr.bf16.mxu0 0
    %1273 = vmatmul.mubr.bf16.gmra.mrb[0].mxu0 %v956
    %v1274 = vpop.f32.mrb[0].mxu0
    %v1275 = vadd.f32 0.0, %v1274
    %v1276 = vpop.f32.mrb[0].mxu0
    %v1277 = vpop.f32.mrb[0].mxu0
    %v1278 = vadd.f32 0.0, %v1277
    %v1279 = vpop.f32.mrb[0].mxu0
    %1280 = vmatprep.mubr.bf16.mxu0 0
    %1281 = vmatmul.mubr.bf16.gmra.mrb[0].mxu0 %v964
    %v1282 = vpop.f32.mrb[0].mxu0
    %v1283 = vadd.f32 0.0, %v1282
    %v1284 = vpop.f32.mrb[0].mxu0
    %v1285 = vpop.f32.mrb[0].mxu0
    %v1286 = vadd.f32 0.0, %v1285
    %v1287 = vpop.f32.mrb[0].mxu0
    %1288 = vmatprep.mubr.bf16.mxu0 0
    %1289 = vmatmul.mubr.bf16.gmra.mrb[0].mxu0 %v972
    %v1290 = vpop.f32.mrb[0].mxu0
    %v1291 = vadd.f32 0.0, %v1290
    %v1292 = vpop.f32.mrb[0].mxu0
    %v1293 = vpop.f32.mrb[0].mxu0
    %v1294 = vadd.f32 0.0, %v1293
    %v1295 = vpop.f32.mrb[0].mxu0
    %1296 = vmatprep.mubr.bf16.mxu0 0
    %1297 = vmatmul.mubr.bf16.gmra.mrb[0].mxu0 %v980
    %v1298 = vpop.f32.mrb[0].mxu0
    %v1299 = vadd.f32 0.0, %v1298
    %v1300 = vpop.f32.mrb[0].mxu0
    %v1301 = vpop.f32.mrb[0].mxu0
    %v1302 = vadd.f32 0.0, %v1301
    %v1303 = vpop.f32.mrb[0].mxu0
    %1304 = vmatprep.mubr.bf16.mxu0 0
    %1305 = vmatmul.mubr.bf16.gmra.mrb[0].mxu0 %v988
    %v1306 = vpop.f32.mrb[0].mxu0
    %v1307 = vadd.f32 0.0, %v1306
    %v1308 = vpop.f32.mrb[0].mxu0
    %v1309 = vpop.f32.mrb[0].mxu0
    %v1310 = vadd.f32 0.0, %v1309
    %v1311 = vpop.f32.mrb[0].mxu0
    %1312 = vmatprep.mubr.bf16.mxu0 0
    %1313 = vmatmul.mubr.bf16.gmra.mrb[0].mxu0 %v996
    %v1314 = vpop.f32.mrb[0].mxu0
    %v1315 = vadd.f32 0.0, %v1314
    %v1316 = vpop.f32.mrb[0].mxu0
    %v1317 = vpop.f32.mrb[0].mxu0
    %v1318 = vadd.f32 0.0, %v1317
    %v1319 = vpop.f32.mrb[0].mxu0
    %1320 = vmatprep.mubr.bf16.mxu0 0
    %1321 = vmatmul.mubr.bf16.gmra.mrb[0].mxu0 %v1004
    %v1322 = vpop.f32.mrb[0].mxu0
    %v1323 = vadd.f32 0.0, %v1322
    %v1324 = vpop.f32.mrb[0].mxu0
    %v1325 = vpop.f32.mrb[0].mxu0
    %v1326 = vadd.f32 0.0, %v1325
    %v1327 = vpop.f32.mrb[0].mxu0
    %1328 = vmatprep.mubr.bf16.mxu0 0
    %1329 = vmatmul.mubr.bf16.gmra.mrb[0].mxu0 %v1012
    %v1330 = vpop.f32.mrb[0].mxu0
    %v1331 = vadd.f32 0.0, %v1330
    %v1332 = vpop.f32.mrb[0].mxu0
    %v1333 = vpop.f32.mrb[0].mxu0
    %v1334 = vadd.f32 0.0, %v1333
    %v1335 = vpop.f32.mrb[0].mxu0
    %1336 = vmatprep.mubr.bf16.mxu0 0
    %1337 = vmatmul.mubr.bf16.gmra.mrb[0].mxu0 %v1020
    %v1338 = vpop.f32.mrb[0].mxu0
    %v1339 = vadd.f32 0.0, %v1338
    %v1340 = vpop.f32.mrb[0].mxu0
    %v1341 = vpop.f32.mrb[0].mxu0
    %v1342 = vadd.f32 0.0, %v1341
    %v1343 = vpop.f32.mrb[0].mxu0
    %1344 = vmatprep.mubr.bf16.mxu0 0
    %1345 = vmatmul.mubr.bf16.gmra.mrb[0].mxu0 %v1028
    %v1346 = vpop.f32.mrb[0].mxu0
    %v1347 = vadd.f32 0.0, %v1346
    %v1348 = vpop.f32.mrb[0].mxu0
    %v1349 = vpop.f32.mrb[0].mxu0
    %v1350 = vadd.f32 0.0, %v1349
    %v1351 = vpop.f32.mrb[0].mxu0
    %1352 = vmatprep.mubr.bf16.mxu0 0
    %1353 = vmatmul.mubr.bf16.gmra.mrb[0].mxu0 %v1036
    %v1354 = vpop.f32.mrb[0].mxu0
    %v1355 = vadd.f32 0.0, %v1354
    %v1356 = vpop.f32.mrb[0].mxu0
    %v1357 = vpop.f32.mrb[0].mxu0
    %v1358 = vadd.f32 0.0, %v1357
    %v1359 = vpop.f32.mrb[0].mxu0
    %1360 = vmatprep.mubr.bf16.mxu0 0
    %1361 = vmatmul.mubr.bf16.gmra.mrb[0].mxu0 %v1044
    %v1362 = vpop.f32.mrb[0].mxu0
    %v1363 = vadd.f32 0.0, %v1362
    %v1364 = vpop.f32.mrb[0].mxu0
    %v1365 = vpop.f32.mrb[0].mxu0
    %v1366 = vadd.f32 0.0, %v1365
    %v1367 = vpop.f32.mrb[0].mxu0
    %1368 = vmatprep.mubr.bf16.mxu0 0
    %1369 = vmatmul.mubr.bf16.gmra.mrb[0].mxu0 %v1052
    %v1370 = vpop.f32.mrb[0].mxu0
    %v1371 = vadd.f32 0.0, %v1370
    %v1372 = vpop.f32.mrb[0].mxu0
    %v1373 = vpop.f32.mrb[0].mxu0
    %v1374 = vadd.f32 0.0, %v1373
    %v1375 = vpop.f32.mrb[0].mxu0
    %1376 = vmatprep.mubr.bf16.mxu0 0
    %1377 = vmatmul.mubr.bf16.gmra.mrb[0].mxu0 %v1060
    %v1378 = vpop.f32.mrb[0].mxu0
    %v1379 = vadd.f32 0.0, %v1378
    %v1380 = vpop.f32.mrb[0].mxu0
    %v1381 = vpop.f32.mrb[0].mxu0
    %v1382 = vadd.f32 0.0, %v1381
    %v1383 = vpop.f32.mrb[0].mxu0
    %1384 = vdwg.mxu0
    %v1385 = vld [vmem:[#allocation2] sm:$0xff]
    %v1386 = vld [vmem:[#allocation2 + $0x8] sm:$0xff]
    %v1387 = vld [vmem:[#allocation2 + $0x10] sm:$0xff]
    %v1388 = vld [vmem:[#allocation2 + $0x18] sm:$0xff]
    %v1389 = vld [vmem:[#allocation2 + $0x20] sm:$0xff]
    %v1390 = vld [vmem:[#allocation2 + $0x28] sm:$0xff]
    %v1391 = vld [vmem:[#allocation2 + $0x30] sm:$0xff]
    %v1392 = vld [vmem:[#allocation2 + $0x38] sm:$0xff]
    %v1393 = vld [vmem:[#allocation2 + $0x40] sm:$0xff]
    %v1394 = vld [vmem:[#allocation2 + $0x48] sm:$0xff]
    %v1395 = vld [vmem:[#allocation2 + $0x50] sm:$0xff]
    %v1396 = vld [vmem:[#allocation2 + $0x58] sm:$0xff]
    %v1397 = vld [vmem:[#allocation2 + $0x60] sm:$0xff]
    %v1398 = vld [vmem:[#allocation2 + $0x68] sm:$0xff]
    %v1399 = vld [vmem:[#allocation2 + $0x70] sm:$0xff]
    %v1400 = vld [vmem:[#allocation2 + $0x78] sm:$0xff]
    %v1401 = vld [vmem:[#allocation2 + $0x80] sm:$0xff]
    %v1402 = vld [vmem:[#allocation2 + $0x88] sm:$0xff]
    %v1403 = vld [vmem:[#allocation2 + $0x90] sm:$0xff]
    %v1404 = vld [vmem:[#allocation2 + $0x98] sm:$0xff]
    %v1405 = vld [vmem:[#allocation2 + $0xa0] sm:$0xff]
    %v1406 = vld [vmem:[#allocation2 + $0xa8] sm:$0xff]
    %v1407 = vld [vmem:[#allocation2 + $0xb0] sm:$0xff]
    %v1408 = vld [vmem:[#allocation2 + $0xb8] sm:$0xff]
    %v1409 = vld [vmem:[#allocation2 + $0xc0] sm:$0xff]
    %v1410 = vld [vmem:[#allocation2 + $0xc8] sm:$0xff]
    %v1411 = vld [vmem:[#allocation2 + $0xd0] sm:$0xff]
    %v1412 = vld [vmem:[#allocation2 + $0xd8] sm:$0xff]
    %v1413 = vld [vmem:[#allocation2 + $0xe0] sm:$0xff]
    %v1414 = vld [vmem:[#allocation2 + $0xe8] sm:$0xff]
    %v1415 = vld [vmem:[#allocation2 + $0xf0] sm:$0xff]
    %v1416 = vld [vmem:[#allocation2 + $0xf8] sm:$0xff]
    %v1417 = vld [vmem:[#allocation2 + $0x100] sm:$0xff]
    %v1418 = vld [vmem:[#allocation2 + $0x108] sm:$0xff]
    %v1419 = vld [vmem:[#allocation2 + $0x110] sm:$0xff]
    %v1420 = vld [vmem:[#allocation2 + $0x118] sm:$0xff]
    %v1421 = vld [vmem:[#allocation2 + $0x120] sm:$0xff]
    %v1422 = vld [vmem:[#allocation2 + $0x128] sm:$0xff]
    %v1423 = vld [vmem:[#allocation2 + $0x130] sm:$0xff]
    %v1424 = vld [vmem:[#allocation2 + $0x138] sm:$0xff]
    %v1425 = vld [vmem:[#allocation2 + $0x140] sm:$0xff]
    %v1426 = vld [vmem:[#allocation2 + $0x148] sm:$0xff]
    %v1427 = vld [vmem:[#allocation2 + $0x150] sm:$0xff]
    %v1428 = vld [vmem:[#allocation2 + $0x158] sm:$0xff]
    %v1429 = vld [vmem:[#allocation2 + $0x160] sm:$0xff]
    %v1430 = vld [vmem:[#allocation2 + $0x168] sm:$0xff]
    %v1431 = vld [vmem:[#allocation2 + $0x170] sm:$0xff]
    %v1432 = vld [vmem:[#allocation2 + $0x178] sm:$0xff]
    %v1433 = vld [vmem:[#allocation2 + $0x180] sm:$0xff]
    %v1434 = vld [vmem:[#allocation2 + $0x188] sm:$0xff]
    %v1435 = vld [vmem:[#allocation2 + $0x190] sm:$0xff]
    %v1436 = vld [vmem:[#allocation2 + $0x198] sm:$0xff]
    %v1437 = vld [vmem:[#allocation2 + $0x1a0] sm:$0xff]
    %v1438 = vld [vmem:[#allocation2 + $0x1a8] sm:$0xff]
    %v1439 = vadd.f32 %v1385, %v1171
    %v1440 = vadd.f32 %v1386, %v1174
    %v1441 = vadd.f32 %v1387, %v1179
    %v1442 = vadd.f32 %v1388, %v1182
    %v1443 = vadd.f32 %v1389, %v1187
    %v1444 = vadd.f32 %v1390, %v1190
    %v1445 = vadd.f32 %v1391, %v1195
    %v1446 = vadd.f32 %v1392, %v1198
    %v1447 = vadd.f32 %v1393, %v1203
    %v1448 = vadd.f32 %v1394, %v1206
    %v1449 = vadd.f32 %v1395, %v1211
    %v1450 = vadd.f32 %v1396, %v1214
    %v1451 = vadd.f32 %v1397, %v1219
    %v1452 = vadd.f32 %v1398, %v1222
    %v1453 = vadd.f32 %v1399, %v1227
    %v1454 = vadd.f32 %v1400, %v1230
    %v1455 = vadd.f32 %v1401, %v1235
    %v1456 = vadd.f32 %v1402, %v1238
    %v1457 = vadd.f32 %v1403, %v1243
    %v1458 = vadd.f32 %v1404, %v1246
    %v1459 = vadd.f32 %v1405, %v1251
    %v1460 = vadd.f32 %v1406, %v1254
    %v1461 = vadd.f32 %v1407, %v1259
    %v1462 = vadd.f32 %v1408, %v1262
    %v1463 = vadd.f32 %v1409, %v1267
    %v1464 = vadd.f32 %v1410, %v1270
    %v1465 = vadd.f32 %v1411, %v1275
    %v1466 = vadd.f32 %v1412, %v1278
    %v1467 = vadd.f32 %v1413, %v1283
    %v1468 = vadd.f32 %v1414, %v1286
    %v1469 = vadd.f32 %v1415, %v1291
    %v1470 = vadd.f32 %v1416, %v1294
    %v1471 = vadd.f32 %v1417, %v1299
    %v1472 = vadd.f32 %v1418, %v1302
    %v1473 = vadd.f32 %v1419, %v1307
    %v1474 = vadd.f32 %v1420, %v1310
    %v1475 = vadd.f32 %v1421, %v1315
    %v1476 = vadd.f32 %v1422, %v1318
    %v1477 = vadd.f32 %v1423, %v1323
    %v1478 = vadd.f32 %v1424, %v1326
    %v1479 = vadd.f32 %v1425, %v1331
    %v1480 = vadd.f32 %v1426, %v1334
    %v1481 = vadd.f32 %v1427, %v1339
    %v1482 = vadd.f32 %v1428, %v1342
    %v1483 = vadd.f32 %v1429, %v1347
    %v1484 = vadd.f32 %v1430, %v1350
    %v1485 = vadd.f32 %v1431, %v1355
    %v1486 = vadd.f32 %v1432, %v1358
    %v1487 = vadd.f32 %v1433, %v1363
    %v1488 = vadd.f32 %v1434, %v1366
    %v1489 = vadd.f32 %v1435, %v1371
    %v1490 = vadd.f32 %v1436, %v1374
    %v1491 = vadd.f32 %v1437, %v1379
    %v1492 = vadd.f32 %v1438, %v1382
    %1493 = vst [vmem:[#allocation2] sm:$0xff] %v1439
    %1494 = vst [vmem:[#allocation2 + $0x8] sm:$0xff] %v1440
    %1495 = vst [vmem:[#allocation2 + $0x10] sm:$0xff] %v1441
    %1496 = vst [vmem:[#allocation2 + $0x18] sm:$0xff] %v1442
    %1497 = vst [vmem:[#allocation2 + $0x20] sm:$0xff] %v1443
    %1498 = vst [vmem:[#allocation2 + $0x28] sm:$0xff] %v1444
    %1499 = vst [vmem:[#allocation2 + $0x30] sm:$0xff] %v1445
    %1500 = vst [vmem:[#allocation2 + $0x38] sm:$0xff] %v1446
    %1501 = vst [vmem:[#allocation2 + $0x40] sm:$0xff] %v1447
    %1502 = vst [vmem:[#allocation2 + $0x48] sm:$0xff] %v1448
    %1503 = vst [vmem:[#allocation2 + $0x50] sm:$0xff] %v1449
    %1504 = vst [vmem:[#allocation2 + $0x58] sm:$0xff] %v1450
    %1505 = vst [vmem:[#allocation2 + $0x60] sm:$0xff] %v1451
    %1506 = vst [vmem:[#allocation2 + $0x68] sm:$0xff] %v1452
    %1507 = vst [vmem:[#allocation2 + $0x70] sm:$0xff] %v1453
    %1508 = vst [vmem:[#allocation2 + $0x78] sm:$0xff] %v1454
    %1509 = vst [vmem:[#allocation2 + $0x80] sm:$0xff] %v1455
    %1510 = vst [vmem:[#allocation2 + $0x88] sm:$0xff] %v1456
    %1511 = vst [vmem:[#allocation2 + $0x90] sm:$0xff] %v1457
    %1512 = vst [vmem:[#allocation2 + $0x98] sm:$0xff] %v1458
    %1513 = vst [vmem:[#allocation2 + $0xa0] sm:$0xff] %v1459
    %1514 = vst [vmem:[#allocation2 + $0xa8] sm:$0xff] %v1460
    %1515 = vst [vmem:[#allocation2 + $0xb0] sm:$0xff] %v1461
    %1516 = vst [vmem:[#allocation2 + $0xb8] sm:$0xff] %v1462
    %1517 = vst [vmem:[#allocation2 + $0xc0] sm:$0xff] %v1463
    %1518 = vst [vmem:[#allocation2 + $0xc8] sm:$0xff] %v1464
    %1519 = vst [vmem:[#allocation2 + $0xd0] sm:$0xff] %v1465
    %1520 = vst [vmem:[#allocation2 + $0xd8] sm:$0xff] %v1466
    %1521 = vst [vmem:[#allocation2 + $0xe0] sm:$0xff] %v1467
    %1522 = vst [vmem:[#allocation2 + $0xe8] sm:$0xff] %v1468
    %1523 = vst [vmem:[#allocation2 + $0xf0] sm:$0xff] %v1469
    %1524 = vst [vmem:[#allocation2 + $0xf8] sm:$0xff] %v1470
    %1525 = vst [vmem:[#allocation2 + $0x100] sm:$0xff] %v1471
    %1526 = vst [vmem:[#allocation2 + $0x108] sm:$0xff] %v1472
    %1527 = vst [vmem:[#allocation2 + $0x110] sm:$0xff] %v1473
    %1528 = vst [vmem:[#allocation2 + $0x118] sm:$0xff] %v1474
    %1529 = vst [vmem:[#allocation2 + $0x120] sm:$0xff] %v1475
    %1530 = vst [vmem:[#allocation2 + $0x128] sm:$0xff] %v1476
    %1531 = vst [vmem:[#allocation2 + $0x130] sm:$0xff] %v1477
    %1532 = vst [vmem:[#allocation2 + $0x138] sm:$0xff] %v1478
    %1533 = vst [vmem:[#allocation2 + $0x140] sm:$0xff] %v1479
    %1534 = vst [vmem:[#allocation2 + $0x148] sm:$0xff] %v1480
    %1535 = vst [vmem:[#allocation2 + $0x150] sm:$0xff] %v1481
    %1536 = vst [vmem:[#allocation2 + $0x158] sm:$0xff] %v1482
    %1537 = vst [vmem:[#allocation2 + $0x160] sm:$0xff] %v1483
    %1538 = vst [vmem:[#allocation2 + $0x168] sm:$0xff] %v1484
    %1539 = vst [vmem:[#allocation2 + $0x170] sm:$0xff] %v1485
    %1540 = vst [vmem:[#allocation2 + $0x178] sm:$0xff] %v1486
    %1541 = vst [vmem:[#allocation2 + $0x180] sm:$0xff] %v1487
    %1542 = vst [vmem:[#allocation2 + $0x188] sm:$0xff] %v1488
    %1543 = vst [vmem:[#allocation2 + $0x190] sm:$0xff] %v1489
    %1544 = vst [vmem:[#allocation2 + $0x198] sm:$0xff] %v1490
    %1545 = vst [vmem:[#allocation2 + $0x1a0] sm:$0xff] %v1491
    %1546 = vst [vmem:[#allocation2 + $0x1a8] sm:$0xff] %v1492
    %v1547 = vld [vmem:[#allocation3] sm:$0xe]
    %v1548 = vld [vmem:[#allocation3 + $0x4] sm:$0xf]
    %v1549 = vld [vmem:[#allocation3 + $0x8] sm:$0xf]
    %v1550 = vld [vmem:[#allocation3 + $0xc] sm:$0xf]
    %v1551 = vld [vmem:[#allocation3 + $0x10] sm:$0xf]
    %v1552 = vld [vmem:[#allocation3 + $0x14] sm:$0xf]
    %v1553 = vld [vmem:[#allocation3 + $0x18] sm:$0xf]
    %v1554 = vld [vmem:[#allocation3 + $0x1c] sm:$0xf]
    %v1555 = vld [vmem:[#allocation3 + $0x20] sm:$0xf]
    %v1556 = vld [vmem:[#allocation3 + $0x24] sm:$0xf]
    %v1557 = vld [vmem:[#allocation3 + $0x28] sm:$0xf]
    %v1558 = vld [vmem:[#allocation3 + $0x2c] sm:$0xf]
    %v1559 = vld [vmem:[#allocation3 + $0x30] sm:$0xf]
    %v1560 = vld [vmem:[#allocation3 + $0x34] sm:$0xf]
    %v1561 = vld [vmem:[#allocation3 + $0x38] sm:$0xf]
    %v1562 = vld [vmem:[#allocation3 + $0x3c] sm:$0xf]
    %v1563 = vld [vmem:[#allocation3 + $0x40] sm:$0xf]
    %v1564 = vld [vmem:[#allocation3 + $0x44] sm:$0xf]
    %v1565 = vld [vmem:[#allocation3 + $0x48] sm:$0xf]
    %v1566 = vld [vmem:[#allocation3 + $0x4c] sm:$0xf]
    %v1567 = vld [vmem:[#allocation3 + $0x50] sm:$0xf]
    %v1568 = vld [vmem:[#allocation3 + $0x54] sm:$0xf]
    %v1569 = vld [vmem:[#allocation3 + $0x58] sm:$0xf]
    %v1570 = vld [vmem:[#allocation3 + $0x5c] sm:$0xf]
    %v1571 = vld [vmem:[#allocation3 + $0x60] sm:$0xf]
    %v1572 = vld [vmem:[#allocation3 + $0x64] sm:$0xf]
    %v1573 = vld [vmem:[#allocation3 + $0x68] sm:$0xf]
    %v1574 = vld [vmem:[#allocation3 + $0x6c] sm:$0xf]
    %v1575 = vld [vmem:[#allocation3 + $0x70] sm:$0xf]
    %v1576 = vld [vmem:[#allocation3 + $0x74] sm:$0xf]
    %v1577 = vld [vmem:[#allocation3 + $0x78] sm:$0xf]
    %v1578 = vld [vmem:[#allocation3 + $0x7c] sm:$0xf]
    %v1579 = vld [vmem:[#allocation3 + $0x80] sm:$0xf]
    %v1580 = vld [vmem:[#allocation3 + $0x84] sm:$0xf]
    %v1581 = vld [vmem:[#allocation3 + $0x88] sm:$0xf]
    %v1582 = vld [vmem:[#allocation3 + $0x8c] sm:$0xf]
    %v1583 = vld [vmem:[#allocation3 + $0x90] sm:$0xf]
    %v1584 = vld [vmem:[#allocation3 + $0x94] sm:$0xf]
    %v1585 = vld [vmem:[#allocation3 + $0x98] sm:$0xf]
    %v1586 = vld [vmem:[#allocation3 + $0x9c] sm:$0xf]
    %v1587 = vld [vmem:[#allocation3 + $0xa0] sm:$0xf]
    %v1588 = vld [vmem:[#allocation3 + $0xa4] sm:$0xf]
    %v1589 = vld [vmem:[#allocation3 + $0xa8] sm:$0xf]
    %v1590 = vld [vmem:[#allocation3 + $0xac] sm:$0xf]
    %v1591 = vld [vmem:[#allocation3 + $0xb0] sm:$0xf]
    %v1592 = vld [vmem:[#allocation3 + $0xb4] sm:$0xf]
    %v1593 = vld [vmem:[#allocation3 + $0xb8] sm:$0xf]
    %v1594 = vld [vmem:[#allocation3 + $0xbc] sm:$0xf]
    %v1595 = vld [vmem:[#allocation3 + $0xc0] sm:$0xf]
    %v1596 = vld [vmem:[#allocation3 + $0xc4] sm:$0xf]
    %v1597 = vld [vmem:[#allocation3 + $0xc8] sm:$0xf]
    %v1598 = vld [vmem:[#allocation3 + $0xcc] sm:$0xf]
    %v1599 = vld [vmem:[#allocation3 + $0xd0] sm:$0xf]
    %v1600 = vld [vmem:[#allocation3 + $0xd4] sm:$0xf]
    %v1601 = vld [vmem:[#allocation3 + $0xd8] sm:$0x1]
    %s1602 = scalar_lea.vmem [#allocation6], 128
    %v1603 = vld [vmem:[%s1602] sm:$0xf]
    %v1604 = vld [vmem:[%s1602 + $0x4] sm:$0xf]
    %v1605 = vld [vmem:[%s1602 + $0x8] sm:$0xf]
    %v1606 = vld [vmem:[%s1602 + $0xc] sm:$0xf]
    %v1607 = vld [vmem:[%s1602 + $0x10] sm:$0xf]
    %v1608 = vld [vmem:[%s1602 + $0x14] sm:$0xf]
    %v1609 = vld [vmem:[%s1602 + $0x18] sm:$0xf]
    %v1610 = vld [vmem:[%s1602 + $0x1c] sm:$0xf]
    %v1611 = vld [vmem:[%s1602 + $0x20] sm:$0xf]
    %v1612 = vld [vmem:[%s1602 + $0x24] sm:$0xf]
    %v1613 = vld [vmem:[%s1602 + $0x28] sm:$0xf]
    %v1614 = vld [vmem:[%s1602 + $0x2c] sm:$0xf]
    %v1615 = vld [vmem:[%s1602 + $0x30] sm:$0xf]
    %v1616 = vld [vmem:[%s1602 + $0x34] sm:$0xf]
    %v1617 = vld [vmem:[%s1602 + $0x38] sm:$0xf]
    %v1618 = vld [vmem:[%s1602 + $0x3c] sm:$0xf]
    %v1674 = vunpack.c.l.b16 %v1547
    %v1675 = vunpack.c.l.b16 %v1548
    %v1676 = vunpack.c.l.b16 %v1549
    %v1677 = vunpack.c.l.b16 %v1550
    %v1678 = vunpack.c.l.b16 %v1551
    %v1679 = vunpack.c.l.b16 %v1552
    %v1680 = vunpack.c.l.b16 %v1553
    %v1681 = vunpack.c.l.b16 %v1554
    %v1682 = vunpack.c.l.b16 %v1555
    %v1683 = vunpack.c.l.b16 %v1556
    %v1684 = vunpack.c.l.b16 %v1557
    %v1685 = vunpack.c.l.b16 %v1558
    %v1686 = vunpack.c.l.b16 %v1559
    %v1687 = vunpack.c.l.b16 %v1560
    %v1688 = vunpack.c.l.b16 %v1561
    %v1689 = vunpack.c.l.b16 %v1562
    %v1690 = vunpack.c.l.b16 %v1563
    %v1691 = vunpack.c.l.b16 %v1564
    %v1692 = vunpack.c.l.b16 %v1565
    %v1693 = vunpack.c.l.b16 %v1566
    %v1694 = vunpack.c.l.b16 %v1567
    %v1695 = vunpack.c.l.b16 %v1568
    %v1696 = vunpack.c.l.b16 %v1569
    %v1697 = vunpack.c.l.b16 %v1570
    %v1698 = vunpack.c.l.b16 %v1571
    %v1699 = vunpack.c.l.b16 %v1572
    %v1700 = vunpack.c.l.b16 %v1573
    %v1701 = vunpack.c.l.b16 %v1574
    %v1702 = vunpack.c.l.b16 %v1575
    %v1703 = vunpack.c.l.b16 %v1576
    %v1704 = vunpack.c.l.b16 %v1577
    %v1705 = vunpack.c.l.b16 %v1578
    %v1706 = vunpack.c.l.b16 %v1579
    %v1707 = vunpack.c.l.b16 %v1580
    %v1708 = vunpack.c.l.b16 %v1581
    %v1709 = vunpack.c.l.b16 %v1582
    %v1710 = vunpack.c.l.b16 %v1583
    %v1711 = vunpack.c.l.b16 %v1584
    %v1712 = vunpack.c.l.b16 %v1585
    %v1713 = vunpack.c.l.b16 %v1586
    %v1714 = vunpack.c.l.b16 %v1587
    %v1715 = vunpack.c.l.b16 %v1588
    %v1716 = vunpack.c.l.b16 %v1589
    %v1717 = vunpack.c.l.b16 %v1590
    %v1718 = vunpack.c.l.b16 %v1591
    %v1719 = vunpack.c.l.b16 %v1592
    %v1720 = vunpack.c.l.b16 %v1593
    %v1721 = vunpack.c.l.b16 %v1594
    %v1722 = vunpack.c.l.b16 %v1595
    %v1723 = vunpack.c.l.b16 %v1596
    %v1724 = vunpack.c.l.b16 %v1597
    %v1725 = vunpack.c.l.b16 %v1598
    %v1726 = vunpack.c.l.b16 %v1599
    %v1727 = vunpack.c.l.b16 %v1600
    %v1728 = vunpack.c.l.b16 %v1601
    %v1729 = vpack.c.b16 %v1675, %v1674
    %v1730 = vpack.c.b16 %v1677, %v1676
    %v1731 = vpack.c.b16 %v1679, %v1678
    %v1732 = vpack.c.b16 %v1681, %v1680
    %v1733 = vpack.c.b16 %v1683, %v1682
    %v1734 = vpack.c.b16 %v1685, %v1684
    %v1735 = vpack.c.b16 %v1687, %v1686
    %v1736 = vpack.c.b16 %v1689, %v1688
    %v1737 = vpack.c.b16 %v1691, %v1690
    %v1738 = vpack.c.b16 %v1693, %v1692
    %v1739 = vpack.c.b16 %v1695, %v1694
    %v1740 = vpack.c.b16 %v1697, %v1696
    %v1741 = vpack.c.b16 %v1699, %v1698
    %v1742 = vpack.c.b16 %v1701, %v1700
    %v1743 = vpack.c.b16 %v1703, %v1702
    %v1744 = vpack.c.b16 %v1705, %v1704
    %v1745 = vpack.c.b16 %v1707, %v1706
    %v1746 = vpack.c.b16 %v1709, %v1708
    %v1747 = vpack.c.b16 %v1711, %v1710
    %v1748 = vpack.c.b16 %v1713, %v1712
    %v1749 = vpack.c.b16 %v1715, %v1714
    %v1750 = vpack.c.b16 %v1717, %v1716
    %v1751 = vpack.c.b16 %v1719, %v1718
    %v1752 = vpack.c.b16 %v1721, %v1720
    %v1753 = vpack.c.b16 %v1723, %v1722
    %v1754 = vpack.c.b16 %v1725, %v1724
    %v1755 = vpack.c.b16 %v1727, %v1726
    %v1756 = vpack.c.b16 %v1728, %v1728
    %vm1757 = vcmask 1046528
    %v1758 = vrot.slane %v1729, 1
    %v1759 = vrot.slane %v1730, 1
    %v1760 = vsel %vm1757, %v1758, %v1759
    %v1761 = vrot.slane %v1731, 1
    %v1762 = vsel %vm1757, %v1759, %v1761
    %v1763 = vrot.slane %v1732, 1
    %v1764 = vsel %vm1757, %v1761, %v1763
    %v1765 = vrot.slane %v1733, 1
    %v1766 = vsel %vm1757, %v1763, %v1765
    %v1767 = vrot.slane %v1734, 1
    %v1768 = vsel %vm1757, %v1765, %v1767
    %v1769 = vrot.slane %v1735, 1
    %v1770 = vsel %vm1757, %v1767, %v1769
    %v1771 = vrot.slane %v1736, 1
    %v1772 = vsel %vm1757, %v1769, %v1771
    %v1773 = vrot.slane %v1737, 1
    %v1774 = vsel %vm1757, %v1771, %v1773
    %v1775 = vrot.slane %v1738, 1
    %v1776 = vsel %vm1757, %v1773, %v1775
    %v1777 = vrot.slane %v1739, 1
    %v1778 = vsel %vm1757, %v1775, %v1777
    %v1779 = vrot.slane %v1740, 1
    %v1780 = vsel %vm1757, %v1777, %v1779
    %v1781 = vrot.slane %v1741, 1
    %v1782 = vsel %vm1757, %v1779, %v1781
    %v1783 = vrot.slane %v1742, 1
    %v1784 = vsel %vm1757, %v1781, %v1783
    %v1785 = vrot.slane %v1743, 1
    %v1786 = vsel %vm1757, %v1783, %v1785
    %v1787 = vrot.slane %v1744, 1
    %v1788 = vsel %vm1757, %v1785, %v1787
    %v1789 = vrot.slane %v1745, 1
    %v1790 = vsel %vm1757, %v1787, %v1789
    %v1791 = vrot.slane %v1746, 1
    %v1792 = vsel %vm1757, %v1789, %v1791
    %v1793 = vrot.slane %v1747, 1
    %v1794 = vsel %vm1757, %v1791, %v1793
    %v1795 = vrot.slane %v1748, 1
    %v1796 = vsel %vm1757, %v1793, %v1795
    %v1797 = vrot.slane %v1749, 1
    %v1798 = vsel %vm1757, %v1795, %v1797
    %v1799 = vrot.slane %v1750, 1
    %v1800 = vsel %vm1757, %v1797, %v1799
    %v1801 = vrot.slane %v1751, 1
    %v1802 = vsel %vm1757, %v1799, %v1801
    %v1803 = vrot.slane %v1752, 1
    %v1804 = vsel %vm1757, %v1801, %v1803
    %v1805 = vrot.slane %v1753, 1
    %v1806 = vsel %vm1757, %v1803, %v1805
    %v1807 = vrot.slane %v1754, 1
    %v1808 = vsel %vm1757, %v1805, %v1807
    %v1809 = vrot.slane %v1755, 1
    %v1810 = vsel %vm1757, %v1807, %v1809
    %v1811 = vrot.slane %v1756, 1
    %v1812 = vsel %vm1757, %v1809, %v1811
    %v1856 = vunpack.c.l.b16 %v1603
    %v1857 = vunpack.c.l.b16 %v1604
    %v1858 = vunpack.c.l.b16 %v1605
    %v1859 = vunpack.c.l.b16 %v1606
    %v1860 = vunpack.c.l.b16 %v1607
    %v1861 = vunpack.c.l.b16 %v1608
    %v1862 = vunpack.c.l.b16 %v1609
    %v1863 = vunpack.c.l.b16 %v1610
    %v1864 = vunpack.c.l.b16 %v1611
    %v1865 = vunpack.c.l.b16 %v1612
    %v1866 = vunpack.c.l.b16 %v1613
    %v1867 = vunpack.c.l.b16 %v1614
    %v1868 = vunpack.c.l.b16 %v1615
    %v1869 = vunpack.c.l.b16 %v1616
    %v1870 = vunpack.c.l.b16 %v1617
    %v1871 = vunpack.c.l.b16 %v1618
    %v1872 = vpack.c.b16 %v1857, %v1856
    %v1873 = vpack.c.b16 %v1859, %v1858
    %v1874 = vpack.c.b16 %v1861, %v1860
    %v1875 = vpack.c.b16 %v1863, %v1862
    %v1876 = vpack.c.b16 %v1865, %v1864
    %v1877 = vpack.c.b16 %v1867, %v1866
    %v1878 = vpack.c.b16 %v1869, %v1868
    %v1879 = vpack.c.b16 %v1871, %v1870
    %1888 = vmatprep.subr.bf16.mxu0 0
    %1889 = vmatpush1.bf16.msra.mxu0 %v1872
    %1890 = vmatprep.subr.bf16.mxu0 0
    %1891 = vmatpush1.bf16.msra.mxu0 %v1873
    %1892 = vmatprep.subr.bf16.mxu0 0
    %1893 = vmatpush1.bf16.msra.mxu0 %v1874
    %1894 = vmatprep.subr.bf16.mxu0 0
    %1895 = vmatpush1.bf16.msra.mxu0 %v1875
    %1896 = vmatprep.subr.bf16.mxu0 0
    %1897 = vmatpush1.bf16.msra.mxu0 %v1876
    %1898 = vmatprep.subr.bf16.mxu0 0
    %1899 = vmatpush1.bf16.msra.mxu0 %v1877
    %1900 = vmatprep.subr.bf16.mxu0 0
    %1901 = vmatpush1.bf16.msra.mxu0 %v1878
    %1902 = vmatprep.subr.bf16.mxu0 0
    %1903 = vmatpush1.bf16.msra.mxu0 %v1879
    %1904 = vmatprep.subr.bf16.mxu0 0
    %1905 = vmatpush1.bf16.msra.mxu0 0
    %1906 = vmatprep.subr.bf16.mxu0 0
    %1907 = vmatpush1.bf16.msra.mxu0 0
    %1908 = vmatprep.subr.bf16.mxu0 0
    %1909 = vmatpush1.bf16.msra.mxu0 0
    %1910 = vmatprep.subr.bf16.mxu0 0
    %1911 = vmatpush1.bf16.msra.mxu0 0
    %1912 = vmatprep.subr.bf16.mxu0 0
    %1913 = vmatpush1.bf16.msra.mxu0 0
    %1914 = vmatprep.subr.bf16.mxu0 0
    %1915 = vmatpush1.bf16.msra.mxu0 0
    %1916 = vmatprep.subr.bf16.mxu0 0
    %1917 = vmatpush1.bf16.msra.mxu0 0
    %1918 = vmatprep.subr.bf16.mxu0 0
    %1919 = vmatpush1.bf16.msra.mxu0 0
    %1920 = vmatprep.mubr.bf16.mxu0 0
    %1921 = vmatmul.mubr.bf16.gmra.mrb[0].mxu0 %v1760
    %v1922 = vpop.f32.mrb[0].mxu0
    %v1923 = vadd.f32 0.0, %v1922
    %v1924 = vpop.f32.mrb[0].mxu0
    %v1925 = vpop.f32.mrb[0].mxu0
    %v1926 = vadd.f32 0.0, %v1925
    %v1927 = vpop.f32.mrb[0].mxu0
    %1928 = vmatprep.mubr.bf16.mxu0 0
    %1929 = vmatmul.mubr.bf16.gmra.mrb[0].mxu0 %v1762
    %v1930 = vpop.f32.mrb[0].mxu0
    %v1931 = vadd.f32 0.0, %v1930
    %v1932 = vpop.f32.mrb[0].mxu0
    %v1933 = vpop.f32.mrb[0].mxu0
    %v1934 = vadd.f32 0.0, %v1933
    %v1935 = vpop.f32.mrb[0].mxu0
    %1936 = vmatprep.mubr.bf16.mxu0 0
    %1937 = vmatmul.mubr.bf16.gmra.mrb[0].mxu0 %v1764
    %v1938 = vpop.f32.mrb[0].mxu0
    %v1939 = vadd.f32 0.0, %v1938
    %v1940 = vpop.f32.mrb[0].mxu0
    %v1941 = vpop.f32.mrb[0].mxu0
    %v1942 = vadd.f32 0.0, %v1941
    %v1943 = vpop.f32.mrb[0].mxu0
    %1944 = vmatprep.mubr.bf16.mxu0 0
    %1945 = vmatmul.mubr.bf16.gmra.mrb[0].mxu0 %v1766
    %v1946 = vpop.f32.mrb[0].mxu0
    %v1947 = vadd.f32 0.0, %v1946
    %v1948 = vpop.f32.mrb[0].mxu0
    %v1949 = vpop.f32.mrb[0].mxu0
    %v1950 = vadd.f32 0.0, %v1949
    %v1951 = vpop.f32.mrb[0].mxu0
    %1952 = vmatprep.mubr.bf16.mxu0 0
    %1953 = vmatmul.mubr.bf16.gmra.mrb[0].mxu0 %v1768
    %v1954 = vpop.f32.mrb[0].mxu0
    %v1955 = vadd.f32 0.0, %v1954
    %v1956 = vpop.f32.mrb[0].mxu0
    %v1957 = vpop.f32.mrb[0].mxu0
    %v1958 = vadd.f32 0.0, %v1957
    %v1959 = vpop.f32.mrb[0].mxu0
    %1960 = vmatprep.mubr.bf16.mxu0 0
    %1961 = vmatmul.mubr.bf16.gmra.mrb[0].mxu0 %v1770
    %v1962 = vpop.f32.mrb[0].mxu0
    %v1963 = vadd.f32 0.0, %v1962
    %v1964 = vpop.f32.mrb[0].mxu0
    %v1965 = vpop.f32.mrb[0].mxu0
    %v1966 = vadd.f32 0.0, %v1965
    %v1967 = vpop.f32.mrb[0].mxu0
    %1968 = vmatprep.mubr.bf16.mxu0 0
    %1969 = vmatmul.mubr.bf16.gmra.mrb[0].mxu0 %v1772
    %v1970 = vpop.f32.mrb[0].mxu0
    %v1971 = vadd.f32 0.0, %v1970
    %v1972 = vpop.f32.mrb[0].mxu0
    %v1973 = vpop.f32.mrb[0].mxu0
    %v1974 = vadd.f32 0.0, %v1973
    %v1975 = vpop.f32.mrb[0].mxu0
    %1976 = vmatprep.mubr.bf16.mxu0 0
    %1977 = vmatmul.mubr.bf16.gmra.mrb[0].mxu0 %v1774
    %v1978 = vpop.f32.mrb[0].mxu0
    %v1979 = vadd.f32 0.0, %v1978
    %v1980 = vpop.f32.mrb[0].mxu0
    %v1981 = vpop.f32.mrb[0].mxu0
    %v1982 = vadd.f32 0.0, %v1981
    %v1983 = vpop.f32.mrb[0].mxu0
    %1984 = vmatprep.mubr.bf16.mxu0 0
    %1985 = vmatmul.mubr.bf16.gmra.mrb[0].mxu0 %v1776
    %v1986 = vpop.f32.mrb[0].mxu0
    %v1987 = vadd.f32 0.0, %v1986
    %v1988 = vpop.f32.mrb[0].mxu0
    %v1989 = vpop.f32.mrb[0].mxu0
    %v1990 = vadd.f32 0.0, %v1989
    %v1991 = vpop.f32.mrb[0].mxu0
    %1992 = vmatprep.mubr.bf16.mxu0 0
    %1993 = vmatmul.mubr.bf16.gmra.mrb[0].mxu0 %v1778
    %v1994 = vpop.f32.mrb[0].mxu0
    %v1995 = vadd.f32 0.0, %v1994
    %v1996 = vpop.f32.mrb[0].mxu0
    %v1997 = vpop.f32.mrb[0].mxu0
    %v1998 = vadd.f32 0.0, %v1997
    %v1999 = vpop.f32.mrb[0].mxu0
    %2000 = vmatprep.mubr.bf16.mxu0 0
    %2001 = vmatmul.mubr.bf16.gmra.mrb[0].mxu0 %v1780
    %v2002 = vpop.f32.mrb[0].mxu0
    %v2003 = vadd.f32 0.0, %v2002
    %v2004 = vpop.f32.mrb[0].mxu0
    %v2005 = vpop.f32.mrb[0].mxu0
    %v2006 = vadd.f32 0.0, %v2005
    %v2007 = vpop.f32.mrb[0].mxu0
    %2008 = vmatprep.mubr.bf16.mxu0 0
    %2009 = vmatmul.mubr.bf16.gmra.mrb[0].mxu0 %v1782
    %v2010 = vpop.f32.mrb[0].mxu0
    %v2011 = vadd.f32 0.0, %v2010
    %v2012 = vpop.f32.mrb[0].mxu0
    %v2013 = vpop.f32.mrb[0].mxu0
    %v2014 = vadd.f32 0.0, %v2013
    %v2015 = vpop.f32.mrb[0].mxu0
    %2016 = vmatprep.mubr.bf16.mxu0 0
    %2017 = vmatmul.mubr.bf16.gmra.mrb[0].mxu0 %v1784
    %v2018 = vpop.f32.mrb[0].mxu0
    %v2019 = vadd.f32 0.0, %v2018
    %v2020 = vpop.f32.mrb[0].mxu0
    %v2021 = vpop.f32.mrb[0].mxu0
    %v2022 = vadd.f32 0.0, %v2021
    %v2023 = vpop.f32.mrb[0].mxu0
    %2024 = vmatprep.mubr.bf16.mxu0 0
    %2025 = vmatmul.mubr.bf16.gmra.mrb[0].mxu0 %v1786
    %v2026 = vpop.f32.mrb[0].mxu0
    %v2027 = vadd.f32 0.0, %v2026
    %v2028 = vpop.f32.mrb[0].mxu0
    %v2029 = vpop.f32.mrb[0].mxu0
    %v2030 = vadd.f32 0.0, %v2029
    %v2031 = vpop.f32.mrb[0].mxu0
    %2032 = vmatprep.mubr.bf16.mxu0 0
    %2033 = vmatmul.mubr.bf16.gmra.mrb[0].mxu0 %v1788
    %v2034 = vpop.f32.mrb[0].mxu0
    %v2035 = vadd.f32 0.0, %v2034
    %v2036 = vpop.f32.mrb[0].mxu0
    %v2037 = vpop.f32.mrb[0].mxu0
    %v2038 = vadd.f32 0.0, %v2037
    %v2039 = vpop.f32.mrb[0].mxu0
    %2040 = vmatprep.mubr.bf16.mxu0 0
    %2041 = vmatmul.mubr.bf16.gmra.mrb[0].mxu0 %v1790
    %v2042 = vpop.f32.mrb[0].mxu0
    %v2043 = vadd.f32 0.0, %v2042
    %v2044 = vpop.f32.mrb[0].mxu0
    %v2045 = vpop.f32.mrb[0].mxu0
    %v2046 = vadd.f32 0.0, %v2045
    %v2047 = vpop.f32.mrb[0].mxu0
    %2048 = vmatprep.mubr.bf16.mxu0 0
    %2049 = vmatmul.mubr.bf16.gmra.mrb[0].mxu0 %v1792
    %v2050 = vpop.f32.mrb[0].mxu0
    %v2051 = vadd.f32 0.0, %v2050
    %v2052 = vpop.f32.mrb[0].mxu0
    %v2053 = vpop.f32.mrb[0].mxu0
    %v2054 = vadd.f32 0.0, %v2053
    %v2055 = vpop.f32.mrb[0].mxu0
    %2056 = vmatprep.mubr.bf16.mxu0 0
    %2057 = vmatmul.mubr.bf16.gmra.mrb[0].mxu0 %v1794
    %v2058 = vpop.f32.mrb[0].mxu0
    %v2059 = vadd.f32 0.0, %v2058
    %v2060 = vpop.f32.mrb[0].mxu0
    %v2061 = vpop.f32.mrb[0].mxu0
    %v2062 = vadd.f32 0.0, %v2061
    %v2063 = vpop.f32.mrb[0].mxu0
    %2064 = vmatprep.mubr.bf16.mxu0 0
    %2065 = vmatmul.mubr.bf16.gmra.mrb[0].mxu0 %v1796
    %v2066 = vpop.f32.mrb[0].mxu0
    %v2067 = vadd.f32 0.0, %v2066
    %v2068 = vpop.f32.mrb[0].mxu0
    %v2069 = vpop.f32.mrb[0].mxu0
    %v2070 = vadd.f32 0.0, %v2069
    %v2071 = vpop.f32.mrb[0].mxu0
    %2072 = vmatprep.mubr.bf16.mxu0 0
    %2073 = vmatmul.mubr.bf16.gmra.mrb[0].mxu0 %v1798
    %v2074 = vpop.f32.mrb[0].mxu0
    %v2075 = vadd.f32 0.0, %v2074
    %v2076 = vpop.f32.mrb[0].mxu0
    %v2077 = vpop.f32.mrb[0].mxu0
    %v2078 = vadd.f32 0.0, %v2077
    %v2079 = vpop.f32.mrb[0].mxu0
    %2080 = vmatprep.mubr.bf16.mxu0 0
    %2081 = vmatmul.mubr.bf16.gmra.mrb[0].mxu0 %v1800
    %v2082 = vpop.f32.mrb[0].mxu0
    %v2083 = vadd.f32 0.0, %v2082
    %v2084 = vpop.f32.mrb[0].mxu0
    %v2085 = vpop.f32.mrb[0].mxu0
    %v2086 = vadd.f32 0.0, %v2085
    %v2087 = vpop.f32.mrb[0].mxu0
    %2088 = vmatprep.mubr.bf16.mxu0 0
    %2089 = vmatmul.mubr.bf16.gmra.mrb[0].mxu0 %v1802
    %v2090 = vpop.f32.mrb[0].mxu0
    %v2091 = vadd.f32 0.0, %v2090
    %v2092 = vpop.f32.mrb[0].mxu0
    %v2093 = vpop.f32.mrb[0].mxu0
    %v2094 = vadd.f32 0.0, %v2093
    %v2095 = vpop.f32.mrb[0].mxu0
    %2096 = vmatprep.mubr.bf16.mxu0 0
    %2097 = vmatmul.mubr.bf16.gmra.mrb[0].mxu0 %v1804
    %v2098 = vpop.f32.mrb[0].mxu0
    %v2099 = vadd.f32 0.0, %v2098
    %v2100 = vpop.f32.mrb[0].mxu0
    %v2101 = vpop.f32.mrb[0].mxu0
    %v2102 = vadd.f32 0.0, %v2101
    %v2103 = vpop.f32.mrb[0].mxu0
    %2104 = vmatprep.mubr.bf16.mxu0 0
    %2105 = vmatmul.mubr.bf16.gmra.mrb[0].mxu0 %v1806
    %v2106 = vpop.f32.mrb[0].mxu0
    %v2107 = vadd.f32 0.0, %v2106
    %v2108 = vpop.f32.mrb[0].mxu0
    %v2109 = vpop.f32.mrb[0].mxu0
    %v2110 = vadd.f32 0.0, %v2109
    %v2111 = vpop.f32.mrb[0].mxu0
    %2112 = vmatprep.mubr.bf16.mxu0 0
    %2113 = vmatmul.mubr.bf16.gmra.mrb[0].mxu0 %v1808
    %v2114 = vpop.f32.mrb[0].mxu0
    %v2115 = vadd.f32 0.0, %v2114
    %v2116 = vpop.f32.mrb[0].mxu0
    %v2117 = vpop.f32.mrb[0].mxu0
    %v2118 = vadd.f32 0.0, %v2117
    %v2119 = vpop.f32.mrb[0].mxu0
    %2120 = vmatprep.mubr.bf16.mxu0 0
    %2121 = vmatmul.mubr.bf16.gmra.mrb[0].mxu0 %v1810
    %v2122 = vpop.f32.mrb[0].mxu0
    %v2123 = vadd.f32 0.0, %v2122
    %v2124 = vpop.f32.mrb[0].mxu0
    %v2125 = vpop.f32.mrb[0].mxu0
    %v2126 = vadd.f32 0.0, %v2125
    %v2127 = vpop.f32.mrb[0].mxu0
    %2128 = vmatprep.mubr.bf16.mxu0 0
    %2129 = vmatmul.mubr.bf16.gmra.mrb[0].mxu0 %v1812
    %v2130 = vpop.f32.mrb[0].mxu0
    %v2131 = vadd.f32 0.0, %v2130
    %v2132 = vpop.f32.mrb[0].mxu0
    %v2133 = vpop.f32.mrb[0].mxu0
    %v2134 = vadd.f32 0.0, %v2133
    %v2135 = vpop.f32.mrb[0].mxu0
    %2136 = vdwg.mxu0
    %v2137 = vld [vmem:[#allocation2] sm:$0xff]
    %v2138 = vld [vmem:[#allocation2 + $0x8] sm:$0xff]
    %v2139 = vld [vmem:[#allocation2 + $0x10] sm:$0xff]
    %v2140 = vld [vmem:[#allocation2 + $0x18] sm:$0xff]
    %v2141 = vld [vmem:[#allocation2 + $0x20] sm:$0xff]
    %v2142 = vld [vmem:[#allocation2 + $0x28] sm:$0xff]
    %v2143 = vld [vmem:[#allocation2 + $0x30] sm:$0xff]
    %v2144 = vld [vmem:[#allocation2 + $0x38] sm:$0xff]
    %v2145 = vld [vmem:[#allocation2 + $0x40] sm:$0xff]
    %v2146 = vld [vmem:[#allocation2 + $0x48] sm:$0xff]
    %v2147 = vld [vmem:[#allocation2 + $0x50] sm:$0xff]
    %v2148 = vld [vmem:[#allocation2 + $0x58] sm:$0xff]
    %v2149 = vld [vmem:[#allocation2 + $0x60] sm:$0xff]
    %v2150 = vld [vmem:[#allocation2 + $0x68] sm:$0xff]
    %v2151 = vld [vmem:[#allocation2 + $0x70] sm:$0xff]
    %v2152 = vld [vmem:[#allocation2 + $0x78] sm:$0xff]
    %v2153 = vld [vmem:[#allocation2 + $0x80] sm:$0xff]
    %v2154 = vld [vmem:[#allocation2 + $0x88] sm:$0xff]
    %v2155 = vld [vmem:[#allocation2 + $0x90] sm:$0xff]
    %v2156 = vld [vmem:[#allocation2 + $0x98] sm:$0xff]
    %v2157 = vld [vmem:[#allocation2 + $0xa0] sm:$0xff]
    %v2158 = vld [vmem:[#allocation2 + $0xa8] sm:$0xff]
    %v2159 = vld [vmem:[#allocation2 + $0xb0] sm:$0xff]
    %v2160 = vld [vmem:[#allocation2 + $0xb8] sm:$0xff]
    %v2161 = vld [vmem:[#allocation2 + $0xc0] sm:$0xff]
    %v2162 = vld [vmem:[#allocation2 + $0xc8] sm:$0xff]
    %v2163 = vld [vmem:[#allocation2 + $0xd0] sm:$0xff]
    %v2164 = vld [vmem:[#allocation2 + $0xd8] sm:$0xff]
    %v2165 = vld [vmem:[#allocation2 + $0xe0] sm:$0xff]
    %v2166 = vld [vmem:[#allocation2 + $0xe8] sm:$0xff]
    %v2167 = vld [vmem:[#allocation2 + $0xf0] sm:$0xff]
    %v2168 = vld [vmem:[#allocation2 + $0xf8] sm:$0xff]
    %v2169 = vld [vmem:[#allocation2 + $0x100] sm:$0xff]
    %v2170 = vld [vmem:[#allocation2 + $0x108] sm:$0xff]
    %v2171 = vld [vmem:[#allocation2 + $0x110] sm:$0xff]
    %v2172 = vld [vmem:[#allocation2 + $0x118] sm:$0xff]
    %v2173 = vld [vmem:[#allocation2 + $0x120] sm:$0xff]
    %v2174 = vld [vmem:[#allocation2 + $0x128] sm:$0xff]
    %v2175 = vld [vmem:[#allocation2 + $0x130] sm:$0xff]
    %v2176 = vld [vmem:[#allocation2 + $0x138] sm:$0xff]
    %v2177 = vld [vmem:[#allocation2 + $0x140] sm:$0xff]
    %v2178 = vld [vmem:[#allocation2 + $0x148] sm:$0xff]
    %v2179 = vld [vmem:[#allocation2 + $0x150] sm:$0xff]
    %v2180 = vld [vmem:[#allocation2 + $0x158] sm:$0xff]
    %v2181 = vld [vmem:[#allocation2 + $0x160] sm:$0xff]
    %v2182 = vld [vmem:[#allocation2 + $0x168] sm:$0xff]
    %v2183 = vld [vmem:[#allocation2 + $0x170] sm:$0xff]
    %v2184 = vld [vmem:[#allocation2 + $0x178] sm:$0xff]
    %v2185 = vld [vmem:[#allocation2 + $0x180] sm:$0xff]
    %v2186 = vld [vmem:[#allocation2 + $0x188] sm:$0xff]
    %v2187 = vld [vmem:[#allocation2 + $0x190] sm:$0xff]
    %v2188 = vld [vmem:[#allocation2 + $0x198] sm:$0xff]
    %v2189 = vld [vmem:[#allocation2 + $0x1a0] sm:$0xff]
    %v2190 = vld [vmem:[#allocation2 + $0x1a8] sm:$0xff]
    %v2191 = vadd.f32 %v2137, %v1923
    %v2192 = vadd.f32 %v2138, %v1926
    %v2193 = vadd.f32 %v2139, %v1931
    %v2194 = vadd.f32 %v2140, %v1934
    %v2195 = vadd.f32 %v2141, %v1939
    %v2196 = vadd.f32 %v2142, %v1942
    %v2197 = vadd.f32 %v2143, %v1947
    %v2198 = vadd.f32 %v2144, %v1950
    %v2199 = vadd.f32 %v2145, %v1955
    %v2200 = vadd.f32 %v2146, %v1958
    %v2201 = vadd.f32 %v2147, %v1963
    %v2202 = vadd.f32 %v2148, %v1966
    %v2203 = vadd.f32 %v2149, %v1971
    %v2204 = vadd.f32 %v2150, %v1974
    %v2205 = vadd.f32 %v2151, %v1979
    %v2206 = vadd.f32 %v2152, %v1982
    %v2207 = vadd.f32 %v2153, %v1987
    %v2208 = vadd.f32 %v2154, %v1990
    %v2209 = vadd.f32 %v2155, %v1995
    %v2210 = vadd.f32 %v2156, %v1998
    %v2211 = vadd.f32 %v2157, %v2003
    %v2212 = vadd.f32 %v2158, %v2006
    %v2213 = vadd.f32 %v2159, %v2011
    %v2214 = vadd.f32 %v2160, %v2014
    %v2215 = vadd.f32 %v2161, %v2019
    %v2216 = vadd.f32 %v2162, %v2022
    %v2217 = vadd.f32 %v2163, %v2027
    %v2218 = vadd.f32 %v2164, %v2030
    %v2219 = vadd.f32 %v2165, %v2035
    %v2220 = vadd.f32 %v2166, %v2038
    %v2221 = vadd.f32 %v2167, %v2043
    %v2222 = vadd.f32 %v2168, %v2046
    %v2223 = vadd.f32 %v2169, %v2051
    %v2224 = vadd.f32 %v2170, %v2054
    %v2225 = vadd.f32 %v2171, %v2059
    %v2226 = vadd.f32 %v2172, %v2062
    %v2227 = vadd.f32 %v2173, %v2067
    %v2228 = vadd.f32 %v2174, %v2070
    %v2229 = vadd.f32 %v2175, %v2075
    %v2230 = vadd.f32 %v2176, %v2078
    %v2231 = vadd.f32 %v2177, %v2083
    %v2232 = vadd.f32 %v2178, %v2086
    %v2233 = vadd.f32 %v2179, %v2091
    %v2234 = vadd.f32 %v2180, %v2094
    %v2235 = vadd.f32 %v2181, %v2099
    %v2236 = vadd.f32 %v2182, %v2102
    %v2237 = vadd.f32 %v2183, %v2107
    %v2238 = vadd.f32 %v2184, %v2110
    %v2239 = vadd.f32 %v2185, %v2115
    %v2240 = vadd.f32 %v2186, %v2118
    %v2241 = vadd.f32 %v2187, %v2123
    %v2242 = vadd.f32 %v2188, %v2126
    %v2243 = vadd.f32 %v2189, %v2131
    %v2244 = vadd.f32 %v2190, %v2134
    %2245 = vst [vmem:[#allocation2] sm:$0xff] %v2191
    %2246 = vst [vmem:[#allocation2 + $0x8] sm:$0xff] %v2192
    %2247 = vst [vmem:[#allocation2 + $0x10] sm:$0xff] %v2193
    %2248 = vst [vmem:[#allocation2 + $0x18] sm:$0xff] %v2194
    %2249 = vst [vmem:[#allocation2 + $0x20] sm:$0xff] %v2195
    %2250 = vst [vmem:[#allocation2 + $0x28] sm:$0xff] %v2196
    %2251 = vst [vmem:[#allocation2 + $0x30] sm:$0xff] %v2197
    %2252 = vst [vmem:[#allocation2 + $0x38] sm:$0xff] %v2198
    %2253 = vst [vmem:[#allocation2 + $0x40] sm:$0xff] %v2199
    %2254 = vst [vmem:[#allocation2 + $0x48] sm:$0xff] %v2200
    %2255 = vst [vmem:[#allocation2 + $0x50] sm:$0xff] %v2201
    %2256 = vst [vmem:[#allocation2 + $0x58] sm:$0xff] %v2202
    %2257 = vst [vmem:[#allocation2 + $0x60] sm:$0xff] %v2203
    %2258 = vst [vmem:[#allocation2 + $0x68] sm:$0xff] %v2204
    %2259 = vst [vmem:[#allocation2 + $0x70] sm:$0xff] %v2205
    %2260 = vst [vmem:[#allocation2 + $0x78] sm:$0xff] %v2206
    %2261 = vst [vmem:[#allocation2 + $0x80] sm:$0xff] %v2207
    %2262 = vst [vmem:[#allocation2 + $0x88] sm:$0xff] %v2208
    %2263 = vst [vmem:[#allocation2 + $0x90] sm:$0xff] %v2209
    %2264 = vst [vmem:[#allocation2 + $0x98] sm:$0xff] %v2210
    %2265 = vst [vmem:[#allocation2 + $0xa0] sm:$0xff] %v2211
    %2266 = vst [vmem:[#allocation2 + $0xa8] sm:$0xff] %v2212
    %2267 = vst [vmem:[#allocation2 + $0xb0] sm:$0xff] %v2213
    %2268 = vst [vmem:[#allocation2 + $0xb8] sm:$0xff] %v2214
    %2269 = vst [vmem:[#allocation2 + $0xc0] sm:$0xff] %v2215
    %2270 = vst [vmem:[#allocation2 + $0xc8] sm:$0xff] %v2216
    %2271 = vst [vmem:[#allocation2 + $0xd0] sm:$0xff] %v2217
    %2272 = vst [vmem:[#allocation2 + $0xd8] sm:$0xff] %v2218
    %2273 = vst [vmem:[#allocation2 + $0xe0] sm:$0xff] %v2219
    %2274 = vst [vmem:[#allocation2 + $0xe8] sm:$0xff] %v2220
    %2275 = vst [vmem:[#allocation2 + $0xf0] sm:$0xff] %v2221
    %2276 = vst [vmem:[#allocation2 + $0xf8] sm:$0xff] %v2222
    %2277 = vst [vmem:[#allocation2 + $0x100] sm:$0xff] %v2223
    %2278 = vst [vmem:[#allocation2 + $0x108] sm:$0xff] %v2224
    %2279 = vst [vmem:[#allocation2 + $0x110] sm:$0xff] %v2225
    %2280 = vst [vmem:[#allocation2 + $0x118] sm:$0xff] %v2226
    %2281 = vst [vmem:[#allocation2 + $0x120] sm:$0xff] %v2227
    %2282 = vst [vmem:[#allocation2 + $0x128] sm:$0xff] %v2228
    %2283 = vst [vmem:[#allocation2 + $0x130] sm:$0xff] %v2229
    %2284 = vst [vmem:[#allocation2 + $0x138] sm:$0xff] %v2230
    %2285 = vst [vmem:[#allocation2 + $0x140] sm:$0xff] %v2231
    %2286 = vst [vmem:[#allocation2 + $0x148] sm:$0xff] %v2232
    %2287 = vst [vmem:[#allocation2 + $0x150] sm:$0xff] %v2233
    %2288 = vst [vmem:[#allocation2 + $0x158] sm:$0xff] %v2234
    %2289 = vst [vmem:[#allocation2 + $0x160] sm:$0xff] %v2235
    %2290 = vst [vmem:[#allocation2 + $0x168] sm:$0xff] %v2236
    %2291 = vst [vmem:[#allocation2 + $0x170] sm:$0xff] %v2237
    %2292 = vst [vmem:[#allocation2 + $0x178] sm:$0xff] %v2238
    %2293 = vst [vmem:[#allocation2 + $0x180] sm:$0xff] %v2239
    %2294 = vst [vmem:[#allocation2 + $0x188] sm:$0xff] %v2240
    %2295 = vst [vmem:[#allocation2 + $0x190] sm:$0xff] %v2241
    %2296 = vst [vmem:[#allocation2 + $0x198] sm:$0xff] %v2242
    %2297 = vst [vmem:[#allocation2 + $0x1a0] sm:$0xff] %v2243
    %2298 = vst [vmem:[#allocation2 + $0x1a8] sm:$0xff] %v2244
    %v2299 = vld [vmem:[#allocation3 + $0xc] sm:$0xf]
    %v2300 = vld [vmem:[#allocation3 + $0x10] sm:$0xf]
    %v2301 = vld [vmem:[#allocation3 + $0x14] sm:$0xf]
    %v2302 = vld [vmem:[#allocation3 + $0x18] sm:$0xf]
    %v2303 = vld [vmem:[#allocation3 + $0x1c] sm:$0xf]
    %v2304 = vld [vmem:[#allocation3 + $0x20] sm:$0xf]
    %v2305 = vld [vmem:[#allocation3 + $0x24] sm:$0xf]
    %v2306 = vld [vmem:[#allocation3 + $0x28] sm:$0xf]
    %v2307 = vld [vmem:[#allocation3 + $0x2c] sm:$0xf]
    %v2308 = vld [vmem:[#allocation3 + $0x30] sm:$0xf]
    %v2309 = vld [vmem:[#allocation3 + $0x34] sm:$0xf]
    %v2310 = vld [vmem:[#allocation3 + $0x38] sm:$0xf]
    %v2311 = vld [vmem:[#allocation3 + $0x3c] sm:$0xf]
    %v2312 = vld [vmem:[#allocation3 + $0x40] sm:$0xf]
    %v2313 = vld [vmem:[#allocation3 + $0x44] sm:$0xf]
    %v2314 = vld [vmem:[#allocation3 + $0x48] sm:$0xf]
    %v2315 = vld [vmem:[#allocation3 + $0x4c] sm:$0xf]
    %v2316 = vld [vmem:[#allocation3 + $0x50] sm:$0xf]
    %v2317 = vld [vmem:[#allocation3 + $0x54] sm:$0xf]
    %v2318 = vld [vmem:[#allocation3 + $0x58] sm:$0xf]
    %v2319 = vld [vmem:[#allocation3 + $0x5c] sm:$0xf]
    %v2320 = vld [vmem:[#allocation3 + $0x60] sm:$0xf]
    %v2321 = vld [vmem:[#allocation3 + $0x64] sm:$0xf]
    %v2322 = vld [vmem:[#allocation3 + $0x68] sm:$0xf]
    %v2323 = vld [vmem:[#allocation3 + $0x6c] sm:$0xf]
    %v2324 = vld [vmem:[#allocation3 + $0x70] sm:$0xf]
    %v2325 = vld [vmem:[#allocation3 + $0x74] sm:$0xf]
    %v2326 = vld [vmem:[#allocation3 + $0x78] sm:$0xf]
    %v2327 = vld [vmem:[#allocation3 + $0x7c] sm:$0xf]
    %v2328 = vld [vmem:[#allocation3 + $0x80] sm:$0xf]
    %v2329 = vld [vmem:[#allocation3 + $0x84] sm:$0xf]
    %v2330 = vld [vmem:[#allocation3 + $0x88] sm:$0xf]
    %v2331 = vld [vmem:[#allocation3 + $0x8c] sm:$0xf]
    %v2332 = vld [vmem:[#allocation3 + $0x90] sm:$0xf]
    %v2333 = vld [vmem:[#allocation3 + $0x94] sm:$0xf]
    %v2334 = vld [vmem:[#allocation3 + $0x98] sm:$0xf]
    %v2335 = vld [vmem:[#allocation3 + $0x9c] sm:$0xf]
    %v2336 = vld [vmem:[#allocation3 + $0xa0] sm:$0xf]
    %v2337 = vld [vmem:[#allocation3 + $0xa4] sm:$0xf]
    %v2338 = vld [vmem:[#allocation3 + $0xa8] sm:$0xf]
    %v2339 = vld [vmem:[#allocation3 + $0xac] sm:$0xf]
    %v2340 = vld [vmem:[#allocation3 + $0xb0] sm:$0xf]
    %v2341 = vld [vmem:[#allocation3 + $0xb4] sm:$0xf]
    %v2342 = vld [vmem:[#allocation3 + $0xb8] sm:$0xf]
    %v2343 = vld [vmem:[#allocation3 + $0xbc] sm:$0xf]
    %v2344 = vld [vmem:[#allocation3 + $0xc0] sm:$0xf]
    %v2345 = vld [vmem:[#allocation3 + $0xc4] sm:$0xf]
    %v2346 = vld [vmem:[#allocation3 + $0xc8] sm:$0xf]
    %v2347 = vld [vmem:[#allocation3 + $0xcc] sm:$0xf]
    %v2348 = vld [vmem:[#allocation3 + $0xd0] sm:$0xf]
    %v2349 = vld [vmem:[#allocation3 + $0xd4] sm:$0xf]
    %v2350 = vld [vmem:[#allocation3 + $0xd8] sm:$0xf]
    %v2351 = vld [vmem:[#allocation3 + $0xdc] sm:$0xf]
    %v2352 = vld [vmem:[#allocation3 + $0xe0] sm:$0xf]
    %s2353 = scalar_lea.vmem [#allocation6], 192
    %v2354 = vld [vmem:[%s2353] sm:$0xf]
    %v2355 = vld [vmem:[%s2353 + $0x4] sm:$0xf]
    %v2356 = vld [vmem:[%s2353 + $0x8] sm:$0xf]
    %v2357 = vld [vmem:[%s2353 + $0xc] sm:$0xf]
    %v2358 = vld [vmem:[%s2353 + $0x10] sm:$0xf]
    %v2359 = vld [vmem:[%s2353 + $0x14] sm:$0xf]
    %v2360 = vld [vmem:[%s2353 + $0x18] sm:$0xf]
    %v2361 = vld [vmem:[%s2353 + $0x1c] sm:$0xf]
    %v2362 = vld [vmem:[%s2353 + $0x20] sm:$0xf]
    %v2363 = vld [vmem:[%s2353 + $0x24] sm:$0xf]
    %v2364 = vld [vmem:[%s2353 + $0x28] sm:$0xf]
    %v2365 = vld [vmem:[%s2353 + $0x2c] sm:$0xf]
    %v2366 = vld [vmem:[%s2353 + $0x30] sm:$0xf]
    %v2367 = vld [vmem:[%s2353 + $0x34] sm:$0xf]
    %v2368 = vld [vmem:[%s2353 + $0x38] sm:$0xf]
    %v2369 = vld [vmem:[%s2353 + $0x3c] sm:$0xf]
    %v2424 = vunpack.c.l.b16 %v2299
    %v2425 = vunpack.c.l.b16 %v2300
    %v2426 = vunpack.c.l.b16 %v2301
    %v2427 = vunpack.c.l.b16 %v2302
    %v2428 = vunpack.c.l.b16 %v2303
    %v2429 = vunpack.c.l.b16 %v2304
    %v2430 = vunpack.c.l.b16 %v2305
    %v2431 = vunpack.c.l.b16 %v2306
    %v2432 = vunpack.c.l.b16 %v2307
    %v2433 = vunpack.c.l.b16 %v2308
    %v2434 = vunpack.c.l.b16 %v2309
    %v2435 = vunpack.c.l.b16 %v2310
    %v2436 = vunpack.c.l.b16 %v2311
    %v2437 = vunpack.c.l.b16 %v2312
    %v2438 = vunpack.c.l.b16 %v2313
    %v2439 = vunpack.c.l.b16 %v2314
    %v2440 = vunpack.c.l.b16 %v2315
    %v2441 = vunpack.c.l.b16 %v2316
    %v2442 = vunpack.c.l.b16 %v2317
    %v2443 = vunpack.c.l.b16 %v2318
    %v2444 = vunpack.c.l.b16 %v2319
    %v2445 = vunpack.c.l.b16 %v2320
    %v2446 = vunpack.c.l.b16 %v2321
    %v2447 = vunpack.c.l.b16 %v2322
    %v2448 = vunpack.c.l.b16 %v2323
    %v2449 = vunpack.c.l.b16 %v2324
    %v2450 = vunpack.c.l.b16 %v2325
    %v2451 = vunpack.c.l.b16 %v2326
    %v2452 = vunpack.c.l.b16 %v2327
    %v2453 = vunpack.c.l.b16 %v2328
    %v2454 = vunpack.c.l.b16 %v2329
    %v2455 = vunpack.c.l.b16 %v2330
    %v2456 = vunpack.c.l.b16 %v2331
    %v2457 = vunpack.c.l.b16 %v2332
    %v2458 = vunpack.c.l.b16 %v2333
    %v2459 = vunpack.c.l.b16 %v2334
    %v2460 = vunpack.c.l.b16 %v2335
    %v2461 = vunpack.c.l.b16 %v2336
    %v2462 = vunpack.c.l.b16 %v2337
    %v2463 = vunpack.c.l.b16 %v2338
    %v2464 = vunpack.c.l.b16 %v2339
    %v2465 = vunpack.c.l.b16 %v2340
    %v2466 = vunpack.c.l.b16 %v2341
    %v2467 = vunpack.c.l.b16 %v2342
    %v2468 = vunpack.c.l.b16 %v2343
    %v2469 = vunpack.c.l.b16 %v2344
    %v2470 = vunpack.c.l.b16 %v2345
    %v2471 = vunpack.c.l.b16 %v2346
    %v2472 = vunpack.c.l.b16 %v2347
    %v2473 = vunpack.c.l.b16 %v2348
    %v2474 = vunpack.c.l.b16 %v2349
    %v2475 = vunpack.c.l.b16 %v2350
    %v2476 = vunpack.c.l.b16 %v2351
    %v2477 = vunpack.c.l.b16 %v2352
    %v2478 = vpack.c.b16 %v2425, %v2424
    %v2479 = vpack.c.b16 %v2427, %v2426
    %v2480 = vpack.c.b16 %v2429, %v2428
    %v2481 = vpack.c.b16 %v2431, %v2430
    %v2482 = vpack.c.b16 %v2433, %v2432
    %v2483 = vpack.c.b16 %v2435, %v2434
    %v2484 = vpack.c.b16 %v2437, %v2436
    %v2485 = vpack.c.b16 %v2439, %v2438
    %v2486 = vpack.c.b16 %v2441, %v2440
    %v2487 = vpack.c.b16 %v2443, %v2442
    %v2488 = vpack.c.b16 %v2445, %v2444
    %v2489 = vpack.c.b16 %v2447, %v2446
    %v2490 = vpack.c.b16 %v2449, %v2448
    %v2491 = vpack.c.b16 %v2451, %v2450
    %v2492 = vpack.c.b16 %v2453, %v2452
    %v2493 = vpack.c.b16 %v2455, %v2454
    %v2494 = vpack.c.b16 %v2457, %v2456
    %v2495 = vpack.c.b16 %v2459, %v2458
    %v2496 = vpack.c.b16 %v2461, %v2460
    %v2497 = vpack.c.b16 %v2463, %v2462
    %v2498 = vpack.c.b16 %v2465, %v2464
    %v2499 = vpack.c.b16 %v2467, %v2466
    %v2500 = vpack.c.b16 %v2469, %v2468
    %v2501 = vpack.c.b16 %v2471, %v2470
    %v2502 = vpack.c.b16 %v2473, %v2472
    %v2503 = vpack.c.b16 %v2475, %v2474
    %v2504 = vpack.c.b16 %v2477, %v2476
    %v2548 = vunpack.c.l.b16 %v2354
    %v2549 = vunpack.c.l.b16 %v2355
    %v2550 = vunpack.c.l.b16 %v2356
    %v2551 = vunpack.c.l.b16 %v2357
    %v2552 = vunpack.c.l.b16 %v2358
    %v2553 = vunpack.c.l.b16 %v2359
    %v2554 = vunpack.c.l.b16 %v2360
    %v2555 = vunpack.c.l.b16 %v2361
    %v2556 = vunpack.c.l.b16 %v2362
    %v2557 = vunpack.c.l.b16 %v2363
    %v2558 = vunpack.c.l.b16 %v2364
    %v2559 = vunpack.c.l.b16 %v2365
    %v2560 = vunpack.c.l.b16 %v2366
    %v2561 = vunpack.c.l.b16 %v2367
    %v2562 = vunpack.c.l.b16 %v2368
    %v2563 = vunpack.c.l.b16 %v2369
    %v2564 = vpack.c.b16 %v2549, %v2548
    %v2565 = vpack.c.b16 %v2551, %v2550
    %v2566 = vpack.c.b16 %v2553, %v2552
    %v2567 = vpack.c.b16 %v2555, %v2554
    %v2568 = vpack.c.b16 %v2557, %v2556
    %v2569 = vpack.c.b16 %v2559, %v2558
    %v2570 = vpack.c.b16 %v2561, %v2560
    %v2571 = vpack.c.b16 %v2563, %v2562
    %2580 = vmatprep.subr.bf16.mxu0 0
    %2581 = vmatpush1.bf16.msra.mxu0 %v2564
    %2582 = vmatprep.subr.bf16.mxu0 0
    %2583 = vmatpush1.bf16.msra.mxu0 %v2565
    %2584 = vmatprep.subr.bf16.mxu0 0
    %2585 = vmatpush1.bf16.msra.mxu0 %v2566
    %2586 = vmatprep.subr.bf16.mxu0 0
    %2587 = vmatpush1.bf16.msra.mxu0 %v2567
    %2588 = vmatprep.subr.bf16.mxu0 0
    %2589 = vmatpush1.bf16.msra.mxu0 %v2568
    %2590 = vmatprep.subr.bf16.mxu0 0
    %2591 = vmatpush1.bf16.msra.mxu0 %v2569
    %2592 = vmatprep.subr.bf16.mxu0 0
    %2593 = vmatpush1.bf16.msra.mxu0 %v2570
    %2594 = vmatprep.subr.bf16.mxu0 0
    %2595 = vmatpush1.bf16.msra.mxu0 %v2571
    %2596 = vmatprep.subr.bf16.mxu0 0
    %2597 = vmatpush1.bf16.msra.mxu0 0
    %2598 = vmatprep.subr.bf16.mxu0 0
    %2599 = vmatpush1.bf16.msra.mxu0 0
    %2600 = vmatprep.subr.bf16.mxu0 0
    %2601 = vmatpush1.bf16.msra.mxu0 0
    %2602 = vmatprep.subr.bf16.mxu0 0
    %2603 = vmatpush1.bf16.msra.mxu0 0
    %2604 = vmatprep.subr.bf16.mxu0 0
    %2605 = vmatpush1.bf16.msra.mxu0 0
    %2606 = vmatprep.subr.bf16.mxu0 0
    %2607 = vmatpush1.bf16.msra.mxu0 0
    %2608 = vmatprep.subr.bf16.mxu0 0
    %2609 = vmatpush1.bf16.msra.mxu0 0
    %2610 = vmatprep.subr.bf16.mxu0 0
    %2611 = vmatpush1.bf16.msra.mxu0 0
    %2612 = vmatprep.mubr.bf16.mxu0 0
    %2613 = vmatmul.mubr.bf16.gmra.mrb[0].mxu0 %v2478
    %v2614 = vpop.f32.mrb[0].mxu0
    %v2615 = vadd.f32 0.0, %v2614
    %v2616 = vpop.f32.mrb[0].mxu0
    %v2617 = vpop.f32.mrb[0].mxu0
    %v2618 = vadd.f32 0.0, %v2617
    %v2619 = vpop.f32.mrb[0].mxu0
    %2620 = vmatprep.mubr.bf16.mxu0 0
    %2621 = vmatmul.mubr.bf16.gmra.mrb[0].mxu0 %v2479
    %v2622 = vpop.f32.mrb[0].mxu0
    %v2623 = vadd.f32 0.0, %v2622
    %v2624 = vpop.f32.mrb[0].mxu0
    %v2625 = vpop.f32.mrb[0].mxu0
    %v2626 = vadd.f32 0.0, %v2625
    %v2627 = vpop.f32.mrb[0].mxu0
    %2628 = vmatprep.mubr.bf16.mxu0 0
    %2629 = vmatmul.mubr.bf16.gmra.mrb[0].mxu0 %v2480
    %v2630 = vpop.f32.mrb[0].mxu0
    %v2631 = vadd.f32 0.0, %v2630
    %v2632 = vpop.f32.mrb[0].mxu0
    %v2633 = vpop.f32.mrb[0].mxu0
    %v2634 = vadd.f32 0.0, %v2633
    %v2635 = vpop.f32.mrb[0].mxu0
    %2636 = vmatprep.mubr.bf16.mxu0 0
    %2637 = vmatmul.mubr.bf16.gmra.mrb[0].mxu0 %v2481
    %v2638 = vpop.f32.mrb[0].mxu0
    %v2639 = vadd.f32 0.0, %v2638
    %v2640 = vpop.f32.mrb[0].mxu0
    %v2641 = vpop.f32.mrb[0].mxu0
    %v2642 = vadd.f32 0.0, %v2641
    %v2643 = vpop.f32.mrb[0].mxu0
    %2644 = vmatprep.mubr.bf16.mxu0 0
    %2645 = vmatmul.mubr.bf16.gmra.mrb[0].mxu0 %v2482
    %v2646 = vpop.f32.mrb[0].mxu0
    %v2647 = vadd.f32 0.0, %v2646
    %v2648 = vpop.f32.mrb[0].mxu0
    %v2649 = vpop.f32.mrb[0].mxu0
    %v2650 = vadd.f32 0.0, %v2649
    %v2651 = vpop.f32.mrb[0].mxu0
    %2652 = vmatprep.mubr.bf16.mxu0 0
    %2653 = vmatmul.mubr.bf16.gmra.mrb[0].mxu0 %v2483
    %v2654 = vpop.f32.mrb[0].mxu0
    %v2655 = vadd.f32 0.0, %v2654
    %v2656 = vpop.f32.mrb[0].mxu0
    %v2657 = vpop.f32.mrb[0].mxu0
    %v2658 = vadd.f32 0.0, %v2657
    %v2659 = vpop.f32.mrb[0].mxu0
    %2660 = vmatprep.mubr.bf16.mxu0 0
    %2661 = vmatmul.mubr.bf16.gmra.mrb[0].mxu0 %v2484
    %v2662 = vpop.f32.mrb[0].mxu0
    %v2663 = vadd.f32 0.0, %v2662
    %v2664 = vpop.f32.mrb[0].mxu0
    %v2665 = vpop.f32.mrb[0].mxu0
    %v2666 = vadd.f32 0.0, %v2665
    %v2667 = vpop.f32.mrb[0].mxu0
    %2668 = vmatprep.mubr.bf16.mxu0 0
    %2669 = vmatmul.mubr.bf16.gmra.mrb[0].mxu0 %v2485
    %v2670 = vpop.f32.mrb[0].mxu0
    %v2671 = vadd.f32 0.0, %v2670
    %v2672 = vpop.f32.mrb[0].mxu0
    %v2673 = vpop.f32.mrb[0].mxu0
    %v2674 = vadd.f32 0.0, %v2673
    %v2675 = vpop.f32.mrb[0].mxu0
    %2676 = vmatprep.mubr.bf16.mxu0 0
    %2677 = vmatmul.mubr.bf16.gmra.mrb[0].mxu0 %v2486
    %v2678 = vpop.f32.mrb[0].mxu0
    %v2679 = vadd.f32 0.0, %v2678
    %v2680 = vpop.f32.mrb[0].mxu0
    %v2681 = vpop.f32.mrb[0].mxu0
    %v2682 = vadd.f32 0.0, %v2681
    %v2683 = vpop.f32.mrb[0].mxu0
    %2684 = vmatprep.mubr.bf16.mxu0 0
    %2685 = vmatmul.mubr.bf16.gmra.mrb[0].mxu0 %v2487
    %v2686 = vpop.f32.mrb[0].mxu0
    %v2687 = vadd.f32 0.0, %v2686
    %v2688 = vpop.f32.mrb[0].mxu0
    %v2689 = vpop.f32.mrb[0].mxu0
    %v2690 = vadd.f32 0.0, %v2689
    %v2691 = vpop.f32.mrb[0].mxu0
    %2692 = vmatprep.mubr.bf16.mxu0 0
    %2693 = vmatmul.mubr.bf16.gmra.mrb[0].mxu0 %v2488
    %v2694 = vpop.f32.mrb[0].mxu0
    %v2695 = vadd.f32 0.0, %v2694
    %v2696 = vpop.f32.mrb[0].mxu0
    %v2697 = vpop.f32.mrb[0].mxu0
    %v2698 = vadd.f32 0.0, %v2697
    %v2699 = vpop.f32.mrb[0].mxu0
    %2700 = vmatprep.mubr.bf16.mxu0 0
    %2701 = vmatmul.mubr.bf16.gmra.mrb[0].mxu0 %v2489
    %v2702 = vpop.f32.mrb[0].mxu0
    %v2703 = vadd.f32 0.0, %v2702
    %v2704 = vpop.f32.mrb[0].mxu0
    %v2705 = vpop.f32.mrb[0].mxu0
    %v2706 = vadd.f32 0.0, %v2705
    %v2707 = vpop.f32.mrb[0].mxu0
    %2708 = vmatprep.mubr.bf16.mxu0 0
    %2709 = vmatmul.mubr.bf16.gmra.mrb[0].mxu0 %v2490
    %v2710 = vpop.f32.mrb[0].mxu0
    %v2711 = vadd.f32 0.0, %v2710
    %v2712 = vpop.f32.mrb[0].mxu0
    %v2713 = vpop.f32.mrb[0].mxu0
    %v2714 = vadd.f32 0.0, %v2713
    %v2715 = vpop.f32.mrb[0].mxu0
    %2716 = vmatprep.mubr.bf16.mxu0 0
    %2717 = vmatmul.mubr.bf16.gmra.mrb[0].mxu0 %v2491
    %v2718 = vpop.f32.mrb[0].mxu0
    %v2719 = vadd.f32 0.0, %v2718
    %v2720 = vpop.f32.mrb[0].mxu0
    %v2721 = vpop.f32.mrb[0].mxu0
    %v2722 = vadd.f32 0.0, %v2721
    %v2723 = vpop.f32.mrb[0].mxu0
    %2724 = vmatprep.mubr.bf16.mxu0 0
    %2725 = vmatmul.mubr.bf16.gmra.mrb[0].mxu0 %v2492
    %v2726 = vpop.f32.mrb[0].mxu0
    %v2727 = vadd.f32 0.0, %v2726
    %v2728 = vpop.f32.mrb[0].mxu0
    %v2729 = vpop.f32.mrb[0].mxu0
    %v2730 = vadd.f32 0.0, %v2729
    %v2731 = vpop.f32.mrb[0].mxu0
    %2732 = vmatprep.mubr.bf16.mxu0 0
    %2733 = vmatmul.mubr.bf16.gmra.mrb[0].mxu0 %v2493
    %v2734 = vpop.f32.mrb[0].mxu0
    %v2735 = vadd.f32 0.0, %v2734
    %v2736 = vpop.f32.mrb[0].mxu0
    %v2737 = vpop.f32.mrb[0].mxu0
    %v2738 = vadd.f32 0.0, %v2737
    %v2739 = vpop.f32.mrb[0].mxu0
    %2740 = vmatprep.mubr.bf16.mxu0 0
    %2741 = vmatmul.mubr.bf16.gmra.mrb[0].mxu0 %v2494
    %v2742 = vpop.f32.mrb[0].mxu0
    %v2743 = vadd.f32 0.0, %v2742
    %v2744 = vpop.f32.mrb[0].mxu0
    %v2745 = vpop.f32.mrb[0].mxu0
    %v2746 = vadd.f32 0.0, %v2745
    %v2747 = vpop.f32.mrb[0].mxu0
    %2748 = vmatprep.mubr.bf16.mxu0 0
    %2749 = vmatmul.mubr.bf16.gmra.mrb[0].mxu0 %v2495
    %v2750 = vpop.f32.mrb[0].mxu0
    %v2751 = vadd.f32 0.0, %v2750
    %v2752 = vpop.f32.mrb[0].mxu0
    %v2753 = vpop.f32.mrb[0].mxu0
    %v2754 = vadd.f32 0.0, %v2753
    %v2755 = vpop.f32.mrb[0].mxu0
    %2756 = vmatprep.mubr.bf16.mxu0 0
    %2757 = vmatmul.mubr.bf16.gmra.mrb[0].mxu0 %v2496
    %v2758 = vpop.f32.mrb[0].mxu0
    %v2759 = vadd.f32 0.0, %v2758
    %v2760 = vpop.f32.mrb[0].mxu0
    %v2761 = vpop.f32.mrb[0].mxu0
    %v2762 = vadd.f32 0.0, %v2761
    %v2763 = vpop.f32.mrb[0].mxu0
    %2764 = vmatprep.mubr.bf16.mxu0 0
    %2765 = vmatmul.mubr.bf16.gmra.mrb[0].mxu0 %v2497
    %v2766 = vpop.f32.mrb[0].mxu0
    %v2767 = vadd.f32 0.0, %v2766
    %v2768 = vpop.f32.mrb[0].mxu0
    %v2769 = vpop.f32.mrb[0].mxu0
    %v2770 = vadd.f32 0.0, %v2769
    %v2771 = vpop.f32.mrb[0].mxu0
    %2772 = vmatprep.mubr.bf16.mxu0 0
    %2773 = vmatmul.mubr.bf16.gmra.mrb[0].mxu0 %v2498
    %v2774 = vpop.f32.mrb[0].mxu0
    %v2775 = vadd.f32 0.0, %v2774
    %v2776 = vpop.f32.mrb[0].mxu0
    %v2777 = vpop.f32.mrb[0].mxu0
    %v2778 = vadd.f32 0.0, %v2777
    %v2779 = vpop.f32.mrb[0].mxu0
    %2780 = vmatprep.mubr.bf16.mxu0 0
    %2781 = vmatmul.mubr.bf16.gmra.mrb[0].mxu0 %v2499
    %v2782 = vpop.f32.mrb[0].mxu0
    %v2783 = vadd.f32 0.0, %v2782
    %v2784 = vpop.f32.mrb[0].mxu0
    %v2785 = vpop.f32.mrb[0].mxu0
    %v2786 = vadd.f32 0.0, %v2785
    %v2787 = vpop.f32.mrb[0].mxu0
    %2788 = vmatprep.mubr.bf16.mxu0 0
    %2789 = vmatmul.mubr.bf16.gmra.mrb[0].mxu0 %v2500
    %v2790 = vpop.f32.mrb[0].mxu0
    %v2791 = vadd.f32 0.0, %v2790
    %v2792 = vpop.f32.mrb[0].mxu0
    %v2793 = vpop.f32.mrb[0].mxu0
    %v2794 = vadd.f32 0.0, %v2793
    %v2795 = vpop.f32.mrb[0].mxu0
    %2796 = vmatprep.mubr.bf16.mxu0 0
    %2797 = vmatmul.mubr.bf16.gmra.mrb[0].mxu0 %v2501
    %v2798 = vpop.f32.mrb[0].mxu0
    %v2799 = vadd.f32 0.0, %v2798
    %v2800 = vpop.f32.mrb[0].mxu0
    %v2801 = vpop.f32.mrb[0].mxu0
    %v2802 = vadd.f32 0.0, %v2801
    %v2803 = vpop.f32.mrb[0].mxu0
    %2804 = vmatprep.mubr.bf16.mxu0 0
    %2805 = vmatmul.mubr.bf16.gmra.mrb[0].mxu0 %v2502
    %v2806 = vpop.f32.mrb[0].mxu0
    %v2807 = vadd.f32 0.0, %v2806
    %v2808 = vpop.f32.mrb[0].mxu0
    %v2809 = vpop.f32.mrb[0].mxu0
    %v2810 = vadd.f32 0.0, %v2809
    %v2811 = vpop.f32.mrb[0].mxu0
    %2812 = vmatprep.mubr.bf16.mxu0 0
    %2813 = vmatmul.mubr.bf16.gmra.mrb[0].mxu0 %v2503
    %v2814 = vpop.f32.mrb[0].mxu0
    %v2815 = vadd.f32 0.0, %v2814
    %v2816 = vpop.f32.mrb[0].mxu0
    %v2817 = vpop.f32.mrb[0].mxu0
    %v2818 = vadd.f32 0.0, %v2817
    %v2819 = vpop.f32.mrb[0].mxu0
    %2820 = vmatprep.mubr.bf16.mxu0 0
    %2821 = vmatmul.mubr.bf16.gmra.mrb[0].mxu0 %v2504
    %v2822 = vpop.f32.mrb[0].mxu0
    %v2823 = vadd.f32 0.0, %v2822
    %v2824 = vpop.f32.mrb[0].mxu0
    %v2825 = vpop.f32.mrb[0].mxu0
    %v2826 = vadd.f32 0.0, %v2825
    %v2827 = vpop.f32.mrb[0].mxu0
    %2828 = vdwg.mxu0
    %v2829 = vld [vmem:[#allocation2] sm:$0xff]
    %v2830 = vld [vmem:[#allocation2 + $0x8] sm:$0xff]
    %v2831 = vld [vmem:[#allocation2 + $0x10] sm:$0xff]
    %v2832 = vld [vmem:[#allocation2 + $0x18] sm:$0xff]
    %v2833 = vld [vmem:[#allocation2 + $0x20] sm:$0xff]
    %v2834 = vld [vmem:[#allocation2 + $0x28] sm:$0xff]
    %v2835 = vld [vmem:[#allocation2 + $0x30] sm:$0xff]
    %v2836 = vld [vmem:[#allocation2 + $0x38] sm:$0xff]
    %v2837 = vld [vmem:[#allocation2 + $0x40] sm:$0xff]
    %v2838 = vld [vmem:[#allocation2 + $0x48] sm:$0xff]
    %v2839 = vld [vmem:[#allocation2 + $0x50] sm:$0xff]
    %v2840 = vld [vmem:[#allocation2 + $0x58] sm:$0xff]
    %v2841 = vld [vmem:[#allocation2 + $0x60] sm:$0xff]
    %v2842 = vld [vmem:[#allocation2 + $0x68] sm:$0xff]
    %v2843 = vld [vmem:[#allocation2 + $0x70] sm:$0xff]
    %v2844 = vld [vmem:[#allocation2 + $0x78] sm:$0xff]
    %v2845 = vld [vmem:[#allocation2 + $0x80] sm:$0xff]
    %v2846 = vld [vmem:[#allocation2 + $0x88] sm:$0xff]
    %v2847 = vld [vmem:[#allocation2 + $0x90] sm:$0xff]
    %v2848 = vld [vmem:[#allocation2 + $0x98] sm:$0xff]
    %v2849 = vld [vmem:[#allocation2 + $0xa0] sm:$0xff]
    %v2850 = vld [vmem:[#allocation2 + $0xa8] sm:$0xff]
    %v2851 = vld [vmem:[#allocation2 + $0xb0] sm:$0xff]
    %v2852 = vld [vmem:[#allocation2 + $0xb8] sm:$0xff]
    %v2853 = vld [vmem:[#allocation2 + $0xc0] sm:$0xff]
    %v2854 = vld [vmem:[#allocation2 + $0xc8] sm:$0xff]
    %v2855 = vld [vmem:[#allocation2 + $0xd0] sm:$0xff]
    %v2856 = vld [vmem:[#allocation2 + $0xd8] sm:$0xff]
    %v2857 = vld [vmem:[#allocation2 + $0xe0] sm:$0xff]
    %v2858 = vld [vmem:[#allocation2 + $0xe8] sm:$0xff]
    %v2859 = vld [vmem:[#allocation2 + $0xf0] sm:$0xff]
    %v2860 = vld [vmem:[#allocation2 + $0xf8] sm:$0xff]
    %v2861 = vld [vmem:[#allocation2 + $0x100] sm:$0xff]
    %v2862 = vld [vmem:[#allocation2 + $0x108] sm:$0xff]
    %v2863 = vld [vmem:[#allocation2 + $0x110] sm:$0xff]
    %v2864 = vld [vmem:[#allocation2 + $0x118] sm:$0xff]
    %v2865 = vld [vmem:[#allocation2 + $0x120] sm:$0xff]
    %v2866 = vld [vmem:[#allocation2 + $0x128] sm:$0xff]
    %v2867 = vld [vmem:[#allocation2 + $0x130] sm:$0xff]
    %v2868 = vld [vmem:[#allocation2 + $0x138] sm:$0xff]
    %v2869 = vld [vmem:[#allocation2 + $0x140] sm:$0xff]
    %v2870 = vld [vmem:[#allocation2 + $0x148] sm:$0xff]
    %v2871 = vld [vmem:[#allocation2 + $0x150] sm:$0xff]
    %v2872 = vld [vmem:[#allocation2 + $0x158] sm:$0xff]
    %v2873 = vld [vmem:[#allocation2 + $0x160] sm:$0xff]
    %v2874 = vld [vmem:[#allocation2 + $0x168] sm:$0xff]
    %v2875 = vld [vmem:[#allocation2 + $0x170] sm:$0xff]
    %v2876 = vld [vmem:[#allocation2 + $0x178] sm:$0xff]
    %v2877 = vld [vmem:[#allocation2 + $0x180] sm:$0xff]
    %v2878 = vld [vmem:[#allocation2 + $0x188] sm:$0xff]
    %v2879 = vld [vmem:[#allocation2 + $0x190] sm:$0xff]
    %v2880 = vld [vmem:[#allocation2 + $0x198] sm:$0xff]
    %v2881 = vld [vmem:[#allocation2 + $0x1a0] sm:$0xff]
    %v2882 = vld [vmem:[#allocation2 + $0x1a8] sm:$0xff]
    %v2883 = vadd.f32 %v2829, %v2615
    %v2884 = vadd.f32 %v2830, %v2618
    %v2885 = vadd.f32 %v2831, %v2623
    %v2886 = vadd.f32 %v2832, %v2626
    %v2887 = vadd.f32 %v2833, %v2631
    %v2888 = vadd.f32 %v2834, %v2634
    %v2889 = vadd.f32 %v2835, %v2639
    %v2890 = vadd.f32 %v2836, %v2642
    %v2891 = vadd.f32 %v2837, %v2647
    %v2892 = vadd.f32 %v2838, %v2650
    %v2893 = vadd.f32 %v2839, %v2655
    %v2894 = vadd.f32 %v2840, %v2658
    %v2895 = vadd.f32 %v2841, %v2663
    %v2896 = vadd.f32 %v2842, %v2666
    %v2897 = vadd.f32 %v2843, %v2671
    %v2898 = vadd.f32 %v2844, %v2674
    %v2899 = vadd.f32 %v2845, %v2679
    %v2900 = vadd.f32 %v2846, %v2682
    %v2901 = vadd.f32 %v2847, %v2687
    %v2902 = vadd.f32 %v2848, %v2690
    %v2903 = vadd.f32 %v2849, %v2695
    %v2904 = vadd.f32 %v2850, %v2698
    %v2905 = vadd.f32 %v2851, %v2703
    %v2906 = vadd.f32 %v2852, %v2706
    %v2907 = vadd.f32 %v2853, %v2711
    %v2908 = vadd.f32 %v2854, %v2714
    %v2909 = vadd.f32 %v2855, %v2719
    %v2910 = vadd.f32 %v2856, %v2722
    %v2911 = vadd.f32 %v2857, %v2727
    %v2912 = vadd.f32 %v2858, %v2730
    %v2913 = vadd.f32 %v2859, %v2735
    %v2914 = vadd.f32 %v2860, %v2738
    %v2915 = vadd.f32 %v2861, %v2743
    %v2916 = vadd.f32 %v2862, %v2746
    %v2917 = vadd.f32 %v2863, %v2751
    %v2918 = vadd.f32 %v2864, %v2754
    %v2919 = vadd.f32 %v2865, %v2759
    %v2920 = vadd.f32 %v2866, %v2762
    %v2921 = vadd.f32 %v2867, %v2767
    %v2922 = vadd.f32 %v2868, %v2770
    %v2923 = vadd.f32 %v2869, %v2775
    %v2924 = vadd.f32 %v2870, %v2778
    %v2925 = vadd.f32 %v2871, %v2783
    %v2926 = vadd.f32 %v2872, %v2786
    %v2927 = vadd.f32 %v2873, %v2791
    %v2928 = vadd.f32 %v2874, %v2794
    %v2929 = vadd.f32 %v2875, %v2799
    %v2930 = vadd.f32 %v2876, %v2802
    %v2931 = vadd.f32 %v2877, %v2807
    %v2932 = vadd.f32 %v2878, %v2810
    %v2933 = vadd.f32 %v2879, %v2815
    %v2934 = vadd.f32 %v2880, %v2818
    %v2935 = vadd.f32 %v2881, %v2823
    %v2936 = vadd.f32 %v2882, %v2826
    %2937 = vst [vmem:[#allocation2] sm:$0xff] %v2883
    %2938 = vst [vmem:[#allocation2 + $0x8] sm:$0xff] %v2884
    %2939 = vst [vmem:[#allocation2 + $0x10] sm:$0xff] %v2885
    %2940 = vst [vmem:[#allocation2 + $0x18] sm:$0xff] %v2886
    %2941 = vst [vmem:[#allocation2 + $0x20] sm:$0xff] %v2887
    %2942 = vst [vmem:[#allocation2 + $0x28] sm:$0xff] %v2888
    %2943 = vst [vmem:[#allocation2 + $0x30] sm:$0xff] %v2889
    %2944 = vst [vmem:[#allocation2 + $0x38] sm:$0xff] %v2890
    %2945 = vst [vmem:[#allocation2 + $0x40] sm:$0xff] %v2891
    %2946 = vst [vmem:[#allocation2 + $0x48] sm:$0xff] %v2892
    %2947 = vst [vmem:[#allocation2 + $0x50] sm:$0xff] %v2893
    %2948 = vst [vmem:[#allocation2 + $0x58] sm:$0xff] %v2894
    %2949 = vst [vmem:[#allocation2 + $0x60] sm:$0xff] %v2895
    %2950 = vst [vmem:[#allocation2 + $0x68] sm:$0xff] %v2896
    %2951 = vst [vmem:[#allocation2 + $0x70] sm:$0xff] %v2897
    %2952 = vst [vmem:[#allocation2 + $0x78] sm:$0xff] %v2898
    %2953 = vst [vmem:[#allocation2 + $0x80] sm:$0xff] %v2899
    %2954 = vst [vmem:[#allocation2 + $0x88] sm:$0xff] %v2900
    %2955 = vst [vmem:[#allocation2 + $0x90] sm:$0xff] %v2901
    %2956 = vst [vmem:[#allocation2 + $0x98] sm:$0xff] %v2902
    %2957 = vst [vmem:[#allocation2 + $0xa0] sm:$0xff] %v2903
    %2958 = vst [vmem:[#allocation2 + $0xa8] sm:$0xff] %v2904
    %2959 = vst [vmem:[#allocation2 + $0xb0] sm:$0xff] %v2905
    %2960 = vst [vmem:[#allocation2 + $0xb8] sm:$0xff] %v2906
    %2961 = vst [vmem:[#allocation2 + $0xc0] sm:$0xff] %v2907
    %2962 = vst [vmem:[#allocation2 + $0xc8] sm:$0xff] %v2908
    %2963 = vst [vmem:[#allocation2 + $0xd0] sm:$0xff] %v2909
    %2964 = vst [vmem:[#allocation2 + $0xd8] sm:$0xff] %v2910
    %2965 = vst [vmem:[#allocation2 + $0xe0] sm:$0xff] %v2911
    %2966 = vst [vmem:[#allocation2 + $0xe8] sm:$0xff] %v2912
    %2967 = vst [vmem:[#allocation2 + $0xf0] sm:$0xff] %v2913
    %2968 = vst [vmem:[#allocation2 + $0xf8] sm:$0xff] %v2914
    %2969 = vst [vmem:[#allocation2 + $0x100] sm:$0xff] %v2915
    %2970 = vst [vmem:[#allocation2 + $0x108] sm:$0xff] %v2916
    %2971 = vst [vmem:[#allocation2 + $0x110] sm:$0xff] %v2917
    %2972 = vst [vmem:[#allocation2 + $0x118] sm:$0xff] %v2918
    %2973 = vst [vmem:[#allocation2 + $0x120] sm:$0xff] %v2919
    %2974 = vst [vmem:[#allocation2 + $0x128] sm:$0xff] %v2920
    %2975 = vst [vmem:[#allocation2 + $0x130] sm:$0xff] %v2921
    %2976 = vst [vmem:[#allocation2 + $0x138] sm:$0xff] %v2922
    %2977 = vst [vmem:[#allocation2 + $0x140] sm:$0xff] %v2923
    %2978 = vst [vmem:[#allocation2 + $0x148] sm:$0xff] %v2924
    %2979 = vst [vmem:[#allocation2 + $0x150] sm:$0xff] %v2925
    %2980 = vst [vmem:[#allocation2 + $0x158] sm:$0xff] %v2926
    %2981 = vst [vmem:[#allocation2 + $0x160] sm:$0xff] %v2927
    %2982 = vst [vmem:[#allocation2 + $0x168] sm:$0xff] %v2928
    %2983 = vst [vmem:[#allocation2 + $0x170] sm:$0xff] %v2929
    %2984 = vst [vmem:[#allocation2 + $0x178] sm:$0xff] %v2930
    %2985 = vst [vmem:[#allocation2 + $0x180] sm:$0xff] %v2931
    %2986 = vst [vmem:[#allocation2 + $0x188] sm:$0xff] %v2932
    %2987 = vst [vmem:[#allocation2 + $0x190] sm:$0xff] %v2933
    %2988 = vst [vmem:[#allocation2 + $0x198] sm:$0xff] %v2934
    %2989 = vst [vmem:[#allocation2 + $0x1a0] sm:$0xff] %v2935
    %2990 = vst [vmem:[#allocation2 + $0x1a8] sm:$0xff] %v2936
    %v2991 = vld [vmem:[#allocation3 + $0xc] sm:$0xf]
    %v2992 = vld [vmem:[#allocation3 + $0x10] sm:$0xf]
    %v2993 = vld [vmem:[#allocation3 + $0x14] sm:$0xf]
    %v2994 = vld [vmem:[#allocation3 + $0x18] sm:$0xf]
    %v2995 = vld [vmem:[#allocation3 + $0x1c] sm:$0xf]
    %v2996 = vld [vmem:[#allocation3 + $0x20] sm:$0xf]
    %v2997 = vld [vmem:[#allocation3 + $0x24] sm:$0xf]
    %v2998 = vld [vmem:[#allocation3 + $0x28] sm:$0xf]
    %v2999 = vld [vmem:[#allocation3 + $0x2c] sm:$0xf]
    %v3000 = vld [vmem:[#allocation3 + $0x30] sm:$0xf]
    %v3001 = vld [vmem:[#allocation3 + $0x34] sm:$0xf]
    %v3002 = vld [vmem:[#allocation3 + $0x38] sm:$0xf]
    %v3003 = vld [vmem:[#allocation3 + $0x3c] sm:$0xf]
    %v3004 = vld [vmem:[#allocation3 + $0x40] sm:$0xf]
    %v3005 = vld [vmem:[#allocation3 + $0x44] sm:$0xf]
    %v3006 = vld [vmem:[#allocation3 + $0x48] sm:$0xf]
    %v3007 = vld [vmem:[#allocation3 + $0x4c] sm:$0xf]
    %v3008 = vld [vmem:[#allocation3 + $0x50] sm:$0xf]
    %v3009 = vld [vmem:[#allocation3 + $0x54] sm:$0xf]
    %v3010 = vld [vmem:[#allocation3 + $0x58] sm:$0xf]
    %v3011 = vld [vmem:[#allocation3 + $0x5c] sm:$0xf]
    %v3012 = vld [vmem:[#allocation3 + $0x60] sm:$0xf]
    %v3013 = vld [vmem:[#allocation3 + $0x64] sm:$0xf]
    %v3014 = vld [vmem:[#allocation3 + $0x68] sm:$0xf]
    %v3015 = vld [vmem:[#allocation3 + $0x6c] sm:$0xf]
    %v3016 = vld [vmem:[#allocation3 + $0x70] sm:$0xf]
    %v3017 = vld [vmem:[#allocation3 + $0x74] sm:$0xf]
    %v3018 = vld [vmem:[#allocation3 + $0x78] sm:$0xf]
    %v3019 = vld [vmem:[#allocation3 + $0x7c] sm:$0xf]
    %v3020 = vld [vmem:[#allocation3 + $0x80] sm:$0xf]
    %v3021 = vld [vmem:[#allocation3 + $0x84] sm:$0xf]
    %v3022 = vld [vmem:[#allocation3 + $0x88] sm:$0xf]
    %v3023 = vld [vmem:[#allocation3 + $0x8c] sm:$0xf]
    %v3024 = vld [vmem:[#allocation3 + $0x90] sm:$0xf]
    %v3025 = vld [vmem:[#allocation3 + $0x94] sm:$0xf]
    %v3026 = vld [vmem:[#allocation3 + $0x98] sm:$0xf]
    %v3027 = vld [vmem:[#allocation3 + $0x9c] sm:$0xf]
    %v3028 = vld [vmem:[#allocation3 + $0xa0] sm:$0xf]
    %v3029 = vld [vmem:[#allocation3 + $0xa4] sm:$0xf]
    %v3030 = vld [vmem:[#allocation3 + $0xa8] sm:$0xf]
    %v3031 = vld [vmem:[#allocation3 + $0xac] sm:$0xf]
    %v3032 = vld [vmem:[#allocation3 + $0xb0] sm:$0xf]
    %v3033 = vld [vmem:[#allocation3 + $0xb4] sm:$0xf]
    %v3034 = vld [vmem:[#allocation3 + $0xb8] sm:$0xf]
    %v3035 = vld [vmem:[#allocation3 + $0xbc] sm:$0xf]
    %v3036 = vld [vmem:[#allocation3 + $0xc0] sm:$0xf]
    %v3037 = vld [vmem:[#allocation3 + $0xc4] sm:$0xf]
    %v3038 = vld [vmem:[#allocation3 + $0xc8] sm:$0xf]
    %v3039 = vld [vmem:[#allocation3 + $0xcc] sm:$0xf]
    %v3040 = vld [vmem:[#allocation3 + $0xd0] sm:$0xf]
    %v3041 = vld [vmem:[#allocation3 + $0xd4] sm:$0xf]
    %v3042 = vld [vmem:[#allocation3 + $0xd8] sm:$0xf]
    %v3043 = vld [vmem:[#allocation3 + $0xdc] sm:$0xf]
    %v3044 = vld [vmem:[#allocation3 + $0xe0] sm:$0xf]
    %v3045 = vld [vmem:[#allocation3 + $0xe4] sm:$0x1]
    %s3046 = scalar_lea.vmem [#allocation6], 256
    %v3047 = vld [vmem:[%s3046] sm:$0xf]
    %v3048 = vld [vmem:[%s3046 + $0x4] sm:$0xf]
    %v3049 = vld [vmem:[%s3046 + $0x8] sm:$0xf]
    %v3050 = vld [vmem:[%s3046 + $0xc] sm:$0xf]
    %v3051 = vld [vmem:[%s3046 + $0x10] sm:$0xf]
    %v3052 = vld [vmem:[%s3046 + $0x14] sm:$0xf]
    %v3053 = vld [vmem:[%s3046 + $0x18] sm:$0xf]
    %v3054 = vld [vmem:[%s3046 + $0x1c] sm:$0xf]
    %v3055 = vld [vmem:[%s3046 + $0x20] sm:$0xf]
    %v3056 = vld [vmem:[%s3046 + $0x24] sm:$0xf]
    %v3057 = vld [vmem:[%s3046 + $0x28] sm:$0xf]
    %v3058 = vld [vmem:[%s3046 + $0x2c] sm:$0xf]
    %v3059 = vld [vmem:[%s3046 + $0x30] sm:$0xf]
    %v3060 = vld [vmem:[%s3046 + $0x34] sm:$0xf]
    %v3061 = vld [vmem:[%s3046 + $0x38] sm:$0xf]
    %v3062 = vld [vmem:[%s3046 + $0x3c] sm:$0xf]
    %v3118 = vunpack.c.l.b16 %v2991
    %v3119 = vunpack.c.l.b16 %v2992
    %v3120 = vunpack.c.l.b16 %v2993
    %v3121 = vunpack.c.l.b16 %v2994
    %v3122 = vunpack.c.l.b16 %v2995
    %v3123 = vunpack.c.l.b16 %v2996
    %v3124 = vunpack.c.l.b16 %v2997
    %v3125 = vunpack.c.l.b16 %v2998
    %v3126 = vunpack.c.l.b16 %v2999
    %v3127 = vunpack.c.l.b16 %v3000
    %v3128 = vunpack.c.l.b16 %v3001
    %v3129 = vunpack.c.l.b16 %v3002
    %v3130 = vunpack.c.l.b16 %v3003
    %v3131 = vunpack.c.l.b16 %v3004
    %v3132 = vunpack.c.l.b16 %v3005
    %v3133 = vunpack.c.l.b16 %v3006
    %v3134 = vunpack.c.l.b16 %v3007
    %v3135 = vunpack.c.l.b16 %v3008
    %v3136 = vunpack.c.l.b16 %v3009
    %v3137 = vunpack.c.l.b16 %v3010
    %v3138 = vunpack.c.l.b16 %v3011
    %v3139 = vunpack.c.l.b16 %v3012
    %v3140 = vunpack.c.l.b16 %v3013
    %v3141 = vunpack.c.l.b16 %v3014
    %v3142 = vunpack.c.l.b16 %v3015
    %v3143 = vunpack.c.l.b16 %v3016
    %v3144 = vunpack.c.l.b16 %v3017
    %v3145 = vunpack.c.l.b16 %v3018
    %v3146 = vunpack.c.l.b16 %v3019
    %v3147 = vunpack.c.l.b16 %v3020
    %v3148 = vunpack.c.l.b16 %v3021
    %v3149 = vunpack.c.l.b16 %v3022
    %v3150 = vunpack.c.l.b16 %v3023
    %v3151 = vunpack.c.l.b16 %v3024
    %v3152 = vunpack.c.l.b16 %v3025
    %v3153 = vunpack.c.l.b16 %v3026
    %v3154 = vunpack.c.l.b16 %v3027
    %v3155 = vunpack.c.l.b16 %v3028
    %v3156 = vunpack.c.l.b16 %v3029
    %v3157 = vunpack.c.l.b16 %v3030
    %v3158 = vunpack.c.l.b16 %v3031
    %v3159 = vunpack.c.l.b16 %v3032
    %v3160 = vunpack.c.l.b16 %v3033
    %v3161 = vunpack.c.l.b16 %v3034
    %v3162 = vunpack.c.l.b16 %v3035
    %v3163 = vunpack.c.l.b16 %v3036
    %v3164 = vunpack.c.l.b16 %v3037
    %v3165 = vunpack.c.l.b16 %v3038
    %v3166 = vunpack.c.l.b16 %v3039
    %v3167 = vunpack.c.l.b16 %v3040
    %v3168 = vunpack.c.l.b16 %v3041
    %v3169 = vunpack.c.l.b16 %v3042
    %v3170 = vunpack.c.l.b16 %v3043
    %v3171 = vunpack.c.l.b16 %v3044
    %v3172 = vunpack.c.l.b16 %v3045
    %v3173 = vpack.c.b16 %v3119, %v3118
    %v3174 = vpack.c.b16 %v3121, %v3120
    %v3175 = vpack.c.b16 %v3123, %v3122
    %v3176 = vpack.c.b16 %v3125, %v3124
    %v3177 = vpack.c.b16 %v3127, %v3126
    %v3178 = vpack.c.b16 %v3129, %v3128
    %v3179 = vpack.c.b16 %v3131, %v3130
    %v3180 = vpack.c.b16 %v3133, %v3132
    %v3181 = vpack.c.b16 %v3135, %v3134
    %v3182 = vpack.c.b16 %v3137, %v3136
    %v3183 = vpack.c.b16 %v3139, %v3138
    %v3184 = vpack.c.b16 %v3141, %v3140
    %v3185 = vpack.c.b16 %v3143, %v3142
    %v3186 = vpack.c.b16 %v3145, %v3144
    %v3187 = vpack.c.b16 %v3147, %v3146
    %v3188 = vpack.c.b16 %v3149, %v3148
    %v3189 = vpack.c.b16 %v3151, %v3150
    %v3190 = vpack.c.b16 %v3153, %v3152
    %v3191 = vpack.c.b16 %v3155, %v3154
    %v3192 = vpack.c.b16 %v3157, %v3156
    %v3193 = vpack.c.b16 %v3159, %v3158
    %v3194 = vpack.c.b16 %v3161, %v3160
    %v3195 = vpack.c.b16 %v3163, %v3162
    %v3196 = vpack.c.b16 %v3165, %v3164
    %v3197 = vpack.c.b16 %v3167, %v3166
    %v3198 = vpack.c.b16 %v3169, %v3168
    %v3199 = vpack.c.b16 %v3171, %v3170
    %v3200 = vpack.c.b16 %v3172, %v3172
    %v3202 = vshrl.u32 %v3173, 16
    %v3204 = vshll.u32 %v3173, 16
    %v3206 = vrot.slane %v3204, 1
    %v3207 = vor.u32 %v3202, %v3206
    %v3209 = vshll.u32 %v3174, 16
    %v3211 = vrot.slane %v3209, 1
    %v3212 = vsel %vm840, %v3207, %v3211
    %v3213 = vshrl.u32 %v3174, 16
    %v3215 = vor.u32 %v3213, %v3211
    %v3217 = vshll.u32 %v3175, 16
    %v3219 = vrot.slane %v3217, 1
    %v3220 = vsel %vm840, %v3215, %v3219
    %v3221 = vshrl.u32 %v3175, 16
    %v3223 = vor.u32 %v3221, %v3219
    %v3225 = vshll.u32 %v3176, 16
    %v3227 = vrot.slane %v3225, 1
    %v3228 = vsel %vm840, %v3223, %v3227
    %v3229 = vshrl.u32 %v3176, 16
    %v3231 = vor.u32 %v3229, %v3227
    %v3233 = vshll.u32 %v3177, 16
    %v3235 = vrot.slane %v3233, 1
    %v3236 = vsel %vm840, %v3231, %v3235
    %v3237 = vshrl.u32 %v3177, 16
    %v3239 = vor.u32 %v3237, %v3235
    %v3241 = vshll.u32 %v3178, 16
    %v3243 = vrot.slane %v3241, 1
    %v3244 = vsel %vm840, %v3239, %v3243
    %v3245 = vshrl.u32 %v3178, 16
    %v3247 = vor.u32 %v3245, %v3243
    %v3249 = vshll.u32 %v3179, 16
    %v3251 = vrot.slane %v3249, 1
    %v3252 = vsel %vm840, %v3247, %v3251
    %v3253 = vshrl.u32 %v3179, 16
    %v3255 = vor.u32 %v3253, %v3251
    %v3257 = vshll.u32 %v3180, 16
    %v3259 = vrot.slane %v3257, 1
    %v3260 = vsel %vm840, %v3255, %v3259
    %v3261 = vshrl.u32 %v3180, 16
    %v3263 = vor.u32 %v3261, %v3259
    %v3265 = vshll.u32 %v3181, 16
    %v3267 = vrot.slane %v3265, 1
    %v3268 = vsel %vm840, %v3263, %v3267
    %v3269 = vshrl.u32 %v3181, 16
    %v3271 = vor.u32 %v3269, %v3267
    %v3273 = vshll.u32 %v3182, 16
    %v3275 = vrot.slane %v3273, 1
    %v3276 = vsel %vm840, %v3271, %v3275
    %v3277 = vshrl.u32 %v3182, 16
    %v3279 = vor.u32 %v3277, %v3275
    %v3281 = vshll.u32 %v3183, 16
    %v3283 = vrot.slane %v3281, 1
    %v3284 = vsel %vm840, %v3279, %v3283
    %v3285 = vshrl.u32 %v3183, 16
    %v3287 = vor.u32 %v3285, %v3283
    %v3289 = vshll.u32 %v3184, 16
    %v3291 = vrot.slane %v3289, 1
    %v3292 = vsel %vm840, %v3287, %v3291
    %v3293 = vshrl.u32 %v3184, 16
    %v3295 = vor.u32 %v3293, %v3291
    %v3297 = vshll.u32 %v3185, 16
    %v3299 = vrot.slane %v3297, 1
    %v3300 = vsel %vm840, %v3295, %v3299
    %v3301 = vshrl.u32 %v3185, 16
    %v3303 = vor.u32 %v3301, %v3299
    %v3305 = vshll.u32 %v3186, 16
    %v3307 = vrot.slane %v3305, 1
    %v3308 = vsel %vm840, %v3303, %v3307
    %v3309 = vshrl.u32 %v3186, 16
    %v3311 = vor.u32 %v3309, %v3307
    %v3313 = vshll.u32 %v3187, 16
    %v3315 = vrot.slane %v3313, 1
    %v3316 = vsel %vm840, %v3311, %v3315
    %v3317 = vshrl.u32 %v3187, 16
    %v3319 = vor.u32 %v3317, %v3315
    %v3321 = vshll.u32 %v3188, 16
    %v3323 = vrot.slane %v3321, 1
    %v3324 = vsel %vm840, %v3319, %v3323
    %v3325 = vshrl.u32 %v3188, 16
    %v3327 = vor.u32 %v3325, %v3323
    %v3329 = vshll.u32 %v3189, 16
    %v3331 = vrot.slane %v3329, 1
    %v3332 = vsel %vm840, %v3327, %v3331
    %v3333 = vshrl.u32 %v3189, 16
    %v3335 = vor.u32 %v3333, %v3331
    %v3337 = vshll.u32 %v3190, 16
    %v3339 = vrot.slane %v3337, 1
    %v3340 = vsel %vm840, %v3335, %v3339
    %v3341 = vshrl.u32 %v3190, 16
    %v3343 = vor.u32 %v3341, %v3339
    %v3345 = vshll.u32 %v3191, 16
    %v3347 = vrot.slane %v3345, 1
    %v3348 = vsel %vm840, %v3343, %v3347
    %v3349 = vshrl.u32 %v3191, 16
    %v3351 = vor.u32 %v3349, %v3347
    %v3353 = vshll.u32 %v3192, 16
    %v3355 = vrot.slane %v3353, 1
    %v3356 = vsel %vm840, %v3351, %v3355
    %v3357 = vshrl.u32 %v3192, 16
    %v3359 = vor.u32 %v3357, %v3355
    %v3361 = vshll.u32 %v3193, 16
    %v3363 = vrot.slane %v3361, 1
    %v3364 = vsel %vm840, %v3359, %v3363
    %v3365 = vshrl.u32 %v3193, 16
    %v3367 = vor.u32 %v3365, %v3363
    %v3369 = vshll.u32 %v3194, 16
    %v3371 = vrot.slane %v3369, 1
    %v3372 = vsel %vm840, %v3367, %v3371
    %v3373 = vshrl.u32 %v3194, 16
    %v3375 = vor.u32 %v3373, %v3371
    %v3377 = vshll.u32 %v3195, 16
    %v3379 = vrot.slane %v3377, 1
    %v3380 = vsel %vm840, %v3375, %v3379
    %v3381 = vshrl.u32 %v3195, 16
    %v3383 = vor.u32 %v3381, %v3379
    %v3385 = vshll.u32 %v3196, 16
    %v3387 = vrot.slane %v3385, 1
    %v3388 = vsel %vm840, %v3383, %v3387
    %v3389 = vshrl.u32 %v3196, 16
    %v3391 = vor.u32 %v3389, %v3387
    %v3393 = vshll.u32 %v3197, 16
    %v3395 = vrot.slane %v3393, 1
    %v3396 = vsel %vm840, %v3391, %v3395
    %v3397 = vshrl.u32 %v3197, 16
    %v3399 = vor.u32 %v3397, %v3395
    %v3401 = vshll.u32 %v3198, 16
    %v3403 = vrot.slane %v3401, 1
    %v3404 = vsel %vm840, %v3399, %v3403
    %v3405 = vshrl.u32 %v3198, 16
    %v3407 = vor.u32 %v3405, %v3403
    %v3409 = vshll.u32 %v3199, 16
    %v3411 = vrot.slane %v3409, 1
    %v3412 = vsel %vm840, %v3407, %v3411
    %v3413 = vshrl.u32 %v3199, 16
    %v3415 = vor.u32 %v3413, %v3411
    %v3417 = vshll.u32 %v3200, 16
    %v3419 = vrot.slane %v3417, 1
    %v3420 = vsel %vm840, %v3415, %v3419
    %v3464 = vunpack.c.l.b16 %v3047
    %v3465 = vunpack.c.l.b16 %v3048
    %v3466 = vunpack.c.l.b16 %v3049
    %v3467 = vunpack.c.l.b16 %v3050
    %v3468 = vunpack.c.l.b16 %v3051
    %v3469 = vunpack.c.l.b16 %v3052
    %v3470 = vunpack.c.l.b16 %v3053
    %v3471 = vunpack.c.l.b16 %v3054
    %v3472 = vunpack.c.l.b16 %v3055
    %v3473 = vunpack.c.l.b16 %v3056
    %v3474 = vunpack.c.l.b16 %v3057
    %v3475 = vunpack.c.l.b16 %v3058
    %v3476 = vunpack.c.l.b16 %v3059
    %v3477 = vunpack.c.l.b16 %v3060
    %v3478 = vunpack.c.l.b16 %v3061
    %v3479 = vunpack.c.l.b16 %v3062
    %v3480 = vpack.c.b16 %v3465, %v3464
    %v3481 = vpack.c.b16 %v3467, %v3466
    %v3482 = vpack.c.b16 %v3469, %v3468
    %v3483 = vpack.c.b16 %v3471, %v3470
    %v3484 = vpack.c.b16 %v3473, %v3472
    %v3485 = vpack.c.b16 %v3475, %v3474
    %v3486 = vpack.c.b16 %v3477, %v3476
    %v3487 = vpack.c.b16 %v3479, %v3478
    %3496 = vmatprep.subr.bf16.mxu0 0
    %3497 = vmatpush1.bf16.msra.mxu0 %v3480
    %3498 = vmatprep.subr.bf16.mxu0 0
    %3499 = vmatpush1.bf16.msra.mxu0 %v3481
    %3500 = vmatprep.subr.bf16.mxu0 0
    %3501 = vmatpush1.bf16.msra.mxu0 %v3482
    %3502 = vmatprep.subr.bf16.mxu0 0
    %3503 = vmatpush1.bf16.msra.mxu0 %v3483
    %3504 = vmatprep.subr.bf16.mxu0 0
    %3505 = vmatpush1.bf16.msra.mxu0 %v3484
    %3506 = vmatprep.subr.bf16.mxu0 0
    %3507 = vmatpush1.bf16.msra.mxu0 %v3485
    %3508 = vmatprep.subr.bf16.mxu0 0
    %3509 = vmatpush1.bf16.msra.mxu0 %v3486
    %3510 = vmatprep.subr.bf16.mxu0 0
    %3511 = vmatpush1.bf16.msra.mxu0 %v3487
    %3512 = vmatprep.subr.bf16.mxu0 0
    %3513 = vmatpush1.bf16.msra.mxu0 0
    %3514 = vmatprep.subr.bf16.mxu0 0
    %3515 = vmatpush1.bf16.msra.mxu0 0
    %3516 = vmatprep.subr.bf16.mxu0 0
    %3517 = vmatpush1.bf16.msra.mxu0 0
    %3518 = vmatprep.subr.bf16.mxu0 0
    %3519 = vmatpush1.bf16.msra.mxu0 0
    %3520 = vmatprep.subr.bf16.mxu0 0
    %3521 = vmatpush1.bf16.msra.mxu0 0
    %3522 = vmatprep.subr.bf16.mxu0 0
    %3523 = vmatpush1.bf16.msra.mxu0 0
    %3524 = vmatprep.subr.bf16.mxu0 0
    %3525 = vmatpush1.bf16.msra.mxu0 0
    %3526 = vmatprep.subr.bf16.mxu0 0
    %3527 = vmatpush1.bf16.msra.mxu0 0
    %3528 = vmatprep.mubr.bf16.mxu0 0
    %3529 = vmatmul.mubr.bf16.gmra.mrb[0].mxu0 %v3212
    %v3530 = vpop.f32.mrb[0].mxu0
    %v3531 = vadd.f32 0.0, %v3530
    %v3532 = vpop.f32.mrb[0].mxu0
    %v3533 = vpop.f32.mrb[0].mxu0
    %v3534 = vadd.f32 0.0, %v3533
    %v3535 = vpop.f32.mrb[0].mxu0
    %3536 = vmatprep.mubr.bf16.mxu0 0
    %3537 = vmatmul.mubr.bf16.gmra.mrb[0].mxu0 %v3220
    %v3538 = vpop.f32.mrb[0].mxu0
    %v3539 = vadd.f32 0.0, %v3538
    %v3540 = vpop.f32.mrb[0].mxu0
    %v3541 = vpop.f32.mrb[0].mxu0
    %v3542 = vadd.f32 0.0, %v3541
    %v3543 = vpop.f32.mrb[0].mxu0
    %3544 = vmatprep.mubr.bf16.mxu0 0
    %3545 = vmatmul.mubr.bf16.gmra.mrb[0].mxu0 %v3228
    %v3546 = vpop.f32.mrb[0].mxu0
    %v3547 = vadd.f32 0.0, %v3546
    %v3548 = vpop.f32.mrb[0].mxu0
    %v3549 = vpop.f32.mrb[0].mxu0
    %v3550 = vadd.f32 0.0, %v3549
    %v3551 = vpop.f32.mrb[0].mxu0
    %3552 = vmatprep.mubr.bf16.mxu0 0
    %3553 = vmatmul.mubr.bf16.gmra.mrb[0].mxu0 %v3236
    %v3554 = vpop.f32.mrb[0].mxu0
    %v3555 = vadd.f32 0.0, %v3554
    %v3556 = vpop.f32.mrb[0].mxu0
    %v3557 = vpop.f32.mrb[0].mxu0
    %v3558 = vadd.f32 0.0, %v3557
    %v3559 = vpop.f32.mrb[0].mxu0
    %3560 = vmatprep.mubr.bf16.mxu0 0
    %3561 = vmatmul.mubr.bf16.gmra.mrb[0].mxu0 %v3244
    %v3562 = vpop.f32.mrb[0].mxu0
    %v3563 = vadd.f32 0.0, %v3562
    %v3564 = vpop.f32.mrb[0].mxu0
    %v3565 = vpop.f32.mrb[0].mxu0
    %v3566 = vadd.f32 0.0, %v3565
    %v3567 = vpop.f32.mrb[0].mxu0
    %3568 = vmatprep.mubr.bf16.mxu0 0
    %3569 = vmatmul.mubr.bf16.gmra.mrb[0].mxu0 %v3252
    %v3570 = vpop.f32.mrb[0].mxu0
    %v3571 = vadd.f32 0.0, %v3570
    %v3572 = vpop.f32.mrb[0].mxu0
    %v3573 = vpop.f32.mrb[0].mxu0
    %v3574 = vadd.f32 0.0, %v3573
    %v3575 = vpop.f32.mrb[0].mxu0
    %3576 = vmatprep.mubr.bf16.mxu0 0
    %3577 = vmatmul.mubr.bf16.gmra.mrb[0].mxu0 %v3260
    %v3578 = vpop.f32.mrb[0].mxu0
    %v3579 = vadd.f32 0.0, %v3578
    %v3580 = vpop.f32.mrb[0].mxu0
    %v3581 = vpop.f32.mrb[0].mxu0
    %v3582 = vadd.f32 0.0, %v3581
    %v3583 = vpop.f32.mrb[0].mxu0
    %3584 = vmatprep.mubr.bf16.mxu0 0
    %3585 = vmatmul.mubr.bf16.gmra.mrb[0].mxu0 %v3268
    %v3586 = vpop.f32.mrb[0].mxu0
    %v3587 = vadd.f32 0.0, %v3586
    %v3588 = vpop.f32.mrb[0].mxu0
    %v3589 = vpop.f32.mrb[0].mxu0
    %v3590 = vadd.f32 0.0, %v3589
    %v3591 = vpop.f32.mrb[0].mxu0
    %3592 = vmatprep.mubr.bf16.mxu0 0
    %3593 = vmatmul.mubr.bf16.gmra.mrb[0].mxu0 %v3276
    %v3594 = vpop.f32.mrb[0].mxu0
    %v3595 = vadd.f32 0.0, %v3594
    %v3596 = vpop.f32.mrb[0].mxu0
    %v3597 = vpop.f32.mrb[0].mxu0
    %v3598 = vadd.f32 0.0, %v3597
    %v3599 = vpop.f32.mrb[0].mxu0
    %3600 = vmatprep.mubr.bf16.mxu0 0
    %3601 = vmatmul.mubr.bf16.gmra.mrb[0].mxu0 %v3284
    %v3602 = vpop.f32.mrb[0].mxu0
    %v3603 = vadd.f32 0.0, %v3602
    %v3604 = vpop.f32.mrb[0].mxu0
    %v3605 = vpop.f32.mrb[0].mxu0
    %v3606 = vadd.f32 0.0, %v3605
    %v3607 = vpop.f32.mrb[0].mxu0
    %3608 = vmatprep.mubr.bf16.mxu0 0
    %3609 = vmatmul.mubr.bf16.gmra.mrb[0].mxu0 %v3292
    %v3610 = vpop.f32.mrb[0].mxu0
    %v3611 = vadd.f32 0.0, %v3610
    %v3612 = vpop.f32.mrb[0].mxu0
    %v3613 = vpop.f32.mrb[0].mxu0
    %v3614 = vadd.f32 0.0, %v3613
    %v3615 = vpop.f32.mrb[0].mxu0
    %3616 = vmatprep.mubr.bf16.mxu0 0
    %3617 = vmatmul.mubr.bf16.gmra.mrb[0].mxu0 %v3300
    %v3618 = vpop.f32.mrb[0].mxu0
    %v3619 = vadd.f32 0.0, %v3618
    %v3620 = vpop.f32.mrb[0].mxu0
    %v3621 = vpop.f32.mrb[0].mxu0
    %v3622 = vadd.f32 0.0, %v3621
    %v3623 = vpop.f32.mrb[0].mxu0
    %3624 = vmatprep.mubr.bf16.mxu0 0
    %3625 = vmatmul.mubr.bf16.gmra.mrb[0].mxu0 %v3308
    %v3626 = vpop.f32.mrb[0].mxu0
    %v3627 = vadd.f32 0.0, %v3626
    %v3628 = vpop.f32.mrb[0].mxu0
    %v3629 = vpop.f32.mrb[0].mxu0
    %v3630 = vadd.f32 0.0, %v3629
    %v3631 = vpop.f32.mrb[0].mxu0
    %3632 = vmatprep.mubr.bf16.mxu0 0
    %3633 = vmatmul.mubr.bf16.gmra.mrb[0].mxu0 %v3316
    %v3634 = vpop.f32.mrb[0].mxu0
    %v3635 = vadd.f32 0.0, %v3634
    %v3636 = vpop.f32.mrb[0].mxu0
    %v3637 = vpop.f32.mrb[0].mxu0
    %v3638 = vadd.f32 0.0, %v3637
    %v3639 = vpop.f32.mrb[0].mxu0
    %3640 = vmatprep.mubr.bf16.mxu0 0
    %3641 = vmatmul.mubr.bf16.gmra.mrb[0].mxu0 %v3324
    %v3642 = vpop.f32.mrb[0].mxu0
    %v3643 = vadd.f32 0.0, %v3642
    %v3644 = vpop.f32.mrb[0].mxu0
    %v3645 = vpop.f32.mrb[0].mxu0
    %v3646 = vadd.f32 0.0, %v3645
    %v3647 = vpop.f32.mrb[0].mxu0
    %3648 = vmatprep.mubr.bf16.mxu0 0
    %3649 = vmatmul.mubr.bf16.gmra.mrb[0].mxu0 %v3332
    %v3650 = vpop.f32.mrb[0].mxu0
    %v3651 = vadd.f32 0.0, %v3650
    %v3652 = vpop.f32.mrb[0].mxu0
    %v3653 = vpop.f32.mrb[0].mxu0
    %v3654 = vadd.f32 0.0, %v3653
    %v3655 = vpop.f32.mrb[0].mxu0
    %3656 = vmatprep.mubr.bf16.mxu0 0
    %3657 = vmatmul.mubr.bf16.gmra.mrb[0].mxu0 %v3340
    %v3658 = vpop.f32.mrb[0].mxu0
    %v3659 = vadd.f32 0.0, %v3658
    %v3660 = vpop.f32.mrb[0].mxu0
    %v3661 = vpop.f32.mrb[0].mxu0
    %v3662 = vadd.f32 0.0, %v3661
    %v3663 = vpop.f32.mrb[0].mxu0
    %3664 = vmatprep.mubr.bf16.mxu0 0
    %3665 = vmatmul.mubr.bf16.gmra.mrb[0].mxu0 %v3348
    %v3666 = vpop.f32.mrb[0].mxu0
    %v3667 = vadd.f32 0.0, %v3666
    %v3668 = vpop.f32.mrb[0].mxu0
    %v3669 = vpop.f32.mrb[0].mxu0
    %v3670 = vadd.f32 0.0, %v3669
    %v3671 = vpop.f32.mrb[0].mxu0
    %3672 = vmatprep.mubr.bf16.mxu0 0
    %3673 = vmatmul.mubr.bf16.gmra.mrb[0].mxu0 %v3356
    %v3674 = vpop.f32.mrb[0].mxu0
    %v3675 = vadd.f32 0.0, %v3674
    %v3676 = vpop.f32.mrb[0].mxu0
    %v3677 = vpop.f32.mrb[0].mxu0
    %v3678 = vadd.f32 0.0, %v3677
    %v3679 = vpop.f32.mrb[0].mxu0
    %3680 = vmatprep.mubr.bf16.mxu0 0
    %3681 = vmatmul.mubr.bf16.gmra.mrb[0].mxu0 %v3364
    %v3682 = vpop.f32.mrb[0].mxu0
    %v3683 = vadd.f32 0.0, %v3682
    %v3684 = vpop.f32.mrb[0].mxu0
    %v3685 = vpop.f32.mrb[0].mxu0
    %v3686 = vadd.f32 0.0, %v3685
    %v3687 = vpop.f32.mrb[0].mxu0
    %3688 = vmatprep.mubr.bf16.mxu0 0
    %3689 = vmatmul.mubr.bf16.gmra.mrb[0].mxu0 %v3372
    %v3690 = vpop.f32.mrb[0].mxu0
    %v3691 = vadd.f32 0.0, %v3690
    %v3692 = vpop.f32.mrb[0].mxu0
    %v3693 = vpop.f32.mrb[0].mxu0
    %v3694 = vadd.f32 0.0, %v3693
    %v3695 = vpop.f32.mrb[0].mxu0
    %3696 = vmatprep.mubr.bf16.mxu0 0
    %3697 = vmatmul.mubr.bf16.gmra.mrb[0].mxu0 %v3380
    %v3698 = vpop.f32.mrb[0].mxu0
    %v3699 = vadd.f32 0.0, %v3698
    %v3700 = vpop.f32.mrb[0].mxu0
    %v3701 = vpop.f32.mrb[0].mxu0
    %v3702 = vadd.f32 0.0, %v3701
    %v3703 = vpop.f32.mrb[0].mxu0
    %3704 = vmatprep.mubr.bf16.mxu0 0
    %3705 = vmatmul.mubr.bf16.gmra.mrb[0].mxu0 %v3388
    %v3706 = vpop.f32.mrb[0].mxu0
    %v3707 = vadd.f32 0.0, %v3706
    %v3708 = vpop.f32.mrb[0].mxu0
    %v3709 = vpop.f32.mrb[0].mxu0
    %v3710 = vadd.f32 0.0, %v3709
    %v3711 = vpop.f32.mrb[0].mxu0
    %3712 = vmatprep.mubr.bf16.mxu0 0
    %3713 = vmatmul.mubr.bf16.gmra.mrb[0].mxu0 %v3396
    %v3714 = vpop.f32.mrb[0].mxu0
    %v3715 = vadd.f32 0.0, %v3714
    %v3716 = vpop.f32.mrb[0].mxu0
    %v3717 = vpop.f32.mrb[0].mxu0
    %v3718 = vadd.f32 0.0, %v3717
    %v3719 = vpop.f32.mrb[0].mxu0
    %3720 = vmatprep.mubr.bf16.mxu0 0
    %3721 = vmatmul.mubr.bf16.gmra.mrb[0].mxu0 %v3404
    %v3722 = vpop.f32.mrb[0].mxu0
    %v3723 = vadd.f32 0.0, %v3722
    %v3724 = vpop.f32.mrb[0].mxu0
    %v3725 = vpop.f32.mrb[0].mxu0
    %v3726 = vadd.f32 0.0, %v3725
    %v3727 = vpop.f32.mrb[0].mxu0
    %3728 = vmatprep.mubr.bf16.mxu0 0
    %3729 = vmatmul.mubr.bf16.gmra.mrb[0].mxu0 %v3412
    %v3730 = vpop.f32.mrb[0].mxu0
    %v3731 = vadd.f32 0.0, %v3730
    %v3732 = vpop.f32.mrb[0].mxu0
    %v3733 = vpop.f32.mrb[0].mxu0
    %v3734 = vadd.f32 0.0, %v3733
    %v3735 = vpop.f32.mrb[0].mxu0
    %3736 = vmatprep.mubr.bf16.mxu0 0
    %3737 = vmatmul.mubr.bf16.gmra.mrb[0].mxu0 %v3420
    %v3738 = vpop.f32.mrb[0].mxu0
    %v3739 = vadd.f32 0.0, %v3738
    %v3740 = vpop.f32.mrb[0].mxu0
    %v3741 = vpop.f32.mrb[0].mxu0
    %v3742 = vadd.f32 0.0, %v3741
    %v3743 = vpop.f32.mrb[0].mxu0
    %3744 = vdwg.mxu0
    %v3745 = vld [vmem:[#allocation2] sm:$0xff]
    %v3746 = vld [vmem:[#allocation2 + $0x8] sm:$0xff]
    %v3747 = vld [vmem:[#allocation2 + $0x10] sm:$0xff]
    %v3748 = vld [vmem:[#allocation2 + $0x18] sm:$0xff]
    %v3749 = vld [vmem:[#allocation2 + $0x20] sm:$0xff]
    %v3750 = vld [vmem:[#allocation2 + $0x28] sm:$0xff]
    %v3751 = vld [vmem:[#allocation2 + $0x30] sm:$0xff]
    %v3752 = vld [vmem:[#allocation2 + $0x38] sm:$0xff]
    %v3753 = vld [vmem:[#allocation2 + $0x40] sm:$0xff]
    %v3754 = vld [vmem:[#allocation2 + $0x48] sm:$0xff]
    %v3755 = vld [vmem:[#allocation2 + $0x50] sm:$0xff]
    %v3756 = vld [vmem:[#allocation2 + $0x58] sm:$0xff]
    %v3757 = vld [vmem:[#allocation2 + $0x60] sm:$0xff]
    %v3758 = vld [vmem:[#allocation2 + $0x68] sm:$0xff]
    %v3759 = vld [vmem:[#allocation2 + $0x70] sm:$0xff]
    %v3760 = vld [vmem:[#allocation2 + $0x78] sm:$0xff]
    %v3761 = vld [vmem:[#allocation2 + $0x80] sm:$0xff]
    %v3762 = vld [vmem:[#allocation2 + $0x88] sm:$0xff]
    %v3763 = vld [vmem:[#allocation2 + $0x90] sm:$0xff]
    %v3764 = vld [vmem:[#allocation2 + $0x98] sm:$0xff]
    %v3765 = vld [vmem:[#allocation2 + $0xa0] sm:$0xff]
    %v3766 = vld [vmem:[#allocation2 + $0xa8] sm:$0xff]
    %v3767 = vld [vmem:[#allocation2 + $0xb0] sm:$0xff]
    %v3768 = vld [vmem:[#allocation2 + $0xb8] sm:$0xff]
    %v3769 = vld [vmem:[#allocation2 + $0xc0] sm:$0xff]
    %v3770 = vld [vmem:[#allocation2 + $0xc8] sm:$0xff]
    %v3771 = vld [vmem:[#allocation2 + $0xd0] sm:$0xff]
    %v3772 = vld [vmem:[#allocation2 + $0xd8] sm:$0xff]
    %v3773 = vld [vmem:[#allocation2 + $0xe0] sm:$0xff]
    %v3774 = vld [vmem:[#allocation2 + $0xe8] sm:$0xff]
    %v3775 = vld [vmem:[#allocation2 + $0xf0] sm:$0xff]
    %v3776 = vld [vmem:[#allocation2 + $0xf8] sm:$0xff]
    %v3777 = vld [vmem:[#allocation2 + $0x100] sm:$0xff]
    %v3778 = vld [vmem:[#allocation2 + $0x108] sm:$0xff]
    %v3779 = vld [vmem:[#allocation2 + $0x110] sm:$0xff]
    %v3780 = vld [vmem:[#allocation2 + $0x118] sm:$0xff]
    %v3781 = vld [vmem:[#allocation2 + $0x120] sm:$0xff]
    %v3782 = vld [vmem:[#allocation2 + $0x128] sm:$0xff]
    %v3783 = vld [vmem:[#allocation2 + $0x130] sm:$0xff]
    %v3784 = vld [vmem:[#allocation2 + $0x138] sm:$0xff]
    %v3785 = vld [vmem:[#allocation2 + $0x140] sm:$0xff]
    %v3786 = vld [vmem:[#allocation2 + $0x148] sm:$0xff]
    %v3787 = vld [vmem:[#allocation2 + $0x150] sm:$0xff]
    %v3788 = vld [vmem:[#allocation2 + $0x158] sm:$0xff]
    %v3789 = vld [vmem:[#allocation2 + $0x160] sm:$0xff]
    %v3790 = vld [vmem:[#allocation2 + $0x168] sm:$0xff]
    %v3791 = vld [vmem:[#allocation2 + $0x170] sm:$0xff]
    %v3792 = vld [vmem:[#allocation2 + $0x178] sm:$0xff]
    %v3793 = vld [vmem:[#allocation2 + $0x180] sm:$0xff]
    %v3794 = vld [vmem:[#allocation2 + $0x188] sm:$0xff]
    %v3795 = vld [vmem:[#allocation2 + $0x190] sm:$0xff]
    %v3796 = vld [vmem:[#allocation2 + $0x198] sm:$0xff]
    %v3797 = vld [vmem:[#allocation2 + $0x1a0] sm:$0xff]
    %v3798 = vld [vmem:[#allocation2 + $0x1a8] sm:$0xff]
    %v3799 = vadd.f32 %v3745, %v3531
    %v3800 = vadd.f32 %v3746, %v3534
    %v3801 = vadd.f32 %v3747, %v3539
    %v3802 = vadd.f32 %v3748, %v3542
    %v3803 = vadd.f32 %v3749, %v3547
    %v3804 = vadd.f32 %v3750, %v3550
    %v3805 = vadd.f32 %v3751, %v3555
    %v3806 = vadd.f32 %v3752, %v3558
    %v3807 = vadd.f32 %v3753, %v3563
    %v3808 = vadd.f32 %v3754, %v3566
    %v3809 = vadd.f32 %v3755, %v3571
    %v3810 = vadd.f32 %v3756, %v3574
    %v3811 = vadd.f32 %v3757, %v3579
    %v3812 = vadd.f32 %v3758, %v3582
    %v3813 = vadd.f32 %v3759, %v3587
    %v3814 = vadd.f32 %v3760, %v3590
    %v3815 = vadd.f32 %v3761, %v3595
    %v3816 = vadd.f32 %v3762, %v3598
    %v3817 = vadd.f32 %v3763, %v3603
    %v3818 = vadd.f32 %v3764, %v3606
    %v3819 = vadd.f32 %v3765, %v3611
    %v3820 = vadd.f32 %v3766, %v3614
    %v3821 = vadd.f32 %v3767, %v3619
    %v3822 = vadd.f32 %v3768, %v3622
    %v3823 = vadd.f32 %v3769, %v3627
    %v3824 = vadd.f32 %v3770, %v3630
    %v3825 = vadd.f32 %v3771, %v3635
    %v3826 = vadd.f32 %v3772, %v3638
    %v3827 = vadd.f32 %v3773, %v3643
    %v3828 = vadd.f32 %v3774, %v3646
    %v3829 = vadd.f32 %v3775, %v3651
    %v3830 = vadd.f32 %v3776, %v3654
    %v3831 = vadd.f32 %v3777, %v3659
    %v3832 = vadd.f32 %v3778, %v3662
    %v3833 = vadd.f32 %v3779, %v3667
    %v3834 = vadd.f32 %v3780, %v3670
    %v3835 = vadd.f32 %v3781, %v3675
    %v3836 = vadd.f32 %v3782, %v3678
    %v3837 = vadd.f32 %v3783, %v3683
    %v3838 = vadd.f32 %v3784, %v3686
    %v3839 = vadd.f32 %v3785, %v3691
    %v3840 = vadd.f32 %v3786, %v3694
    %v3841 = vadd.f32 %v3787, %v3699
    %v3842 = vadd.f32 %v3788, %v3702
    %v3843 = vadd.f32 %v3789, %v3707
    %v3844 = vadd.f32 %v3790, %v3710
    %v3845 = vadd.f32 %v3791, %v3715
    %v3846 = vadd.f32 %v3792, %v3718
    %v3847 = vadd.f32 %v3793, %v3723
    %v3848 = vadd.f32 %v3794, %v3726
    %v3849 = vadd.f32 %v3795, %v3731
    %v3850 = vadd.f32 %v3796, %v3734
    %v3851 = vadd.f32 %v3797, %v3739
    %v3852 = vadd.f32 %v3798, %v3742
    %3853 = vst [vmem:[#allocation2] sm:$0xff] %v3799
    %3854 = vst [vmem:[#allocation2 + $0x8] sm:$0xff] %v3800
    %3855 = vst [vmem:[#allocation2 + $0x10] sm:$0xff] %v3801
    %3856 = vst [vmem:[#allocation2 + $0x18] sm:$0xff] %v3802
    %3857 = vst [vmem:[#allocation2 + $0x20] sm:$0xff] %v3803
    %3858 = vst [vmem:[#allocation2 + $0x28] sm:$0xff] %v3804
    %3859 = vst [vmem:[#allocation2 + $0x30] sm:$0xff] %v3805
    %3860 = vst [vmem:[#allocation2 + $0x38] sm:$0xff] %v3806
    %3861 = vst [vmem:[#allocation2 + $0x40] sm:$0xff] %v3807
    %3862 = vst [vmem:[#allocation2 + $0x48] sm:$0xff] %v3808
    %3863 = vst [vmem:[#allocation2 + $0x50] sm:$0xff] %v3809
    %3864 = vst [vmem:[#allocation2 + $0x58] sm:$0xff] %v3810
    %3865 = vst [vmem:[#allocation2 + $0x60] sm:$0xff] %v3811
    %3866 = vst [vmem:[#allocation2 + $0x68] sm:$0xff] %v3812
    %3867 = vst [vmem:[#allocation2 + $0x70] sm:$0xff] %v3813
    %3868 = vst [vmem:[#allocation2 + $0x78] sm:$0xff] %v3814
    %3869 = vst [vmem:[#allocation2 + $0x80] sm:$0xff] %v3815
    %3870 = vst [vmem:[#allocation2 + $0x88] sm:$0xff] %v3816
    %3871 = vst [vmem:[#allocation2 + $0x90] sm:$0xff] %v3817
    %3872 = vst [vmem:[#allocation2 + $0x98] sm:$0xff] %v3818
    %3873 = vst [vmem:[#allocation2 + $0xa0] sm:$0xff] %v3819
    %3874 = vst [vmem:[#allocation2 + $0xa8] sm:$0xff] %v3820
    %3875 = vst [vmem:[#allocation2 + $0xb0] sm:$0xff] %v3821
    %3876 = vst [vmem:[#allocation2 + $0xb8] sm:$0xff] %v3822
    %3877 = vst [vmem:[#allocation2 + $0xc0] sm:$0xff] %v3823
    %3878 = vst [vmem:[#allocation2 + $0xc8] sm:$0xff] %v3824
    %3879 = vst [vmem:[#allocation2 + $0xd0] sm:$0xff] %v3825
    %3880 = vst [vmem:[#allocation2 + $0xd8] sm:$0xff] %v3826
    %3881 = vst [vmem:[#allocation2 + $0xe0] sm:$0xff] %v3827
    %3882 = vst [vmem:[#allocation2 + $0xe8] sm:$0xff] %v3828
    %3883 = vst [vmem:[#allocation2 + $0xf0] sm:$0xff] %v3829
    %3884 = vst [vmem:[#allocation2 + $0xf8] sm:$0xff] %v3830
    %3885 = vst [vmem:[#allocation2 + $0x100] sm:$0xff] %v3831
    %3886 = vst [vmem:[#allocation2 + $0x108] sm:$0xff] %v3832
    %3887 = vst [vmem:[#allocation2 + $0x110] sm:$0xff] %v3833
    %3888 = vst [vmem:[#allocation2 + $0x118] sm:$0xff] %v3834
    %3889 = vst [vmem:[#allocation2 + $0x120] sm:$0xff] %v3835
    %3890 = vst [vmem:[#allocation2 + $0x128] sm:$0xff] %v3836
    %3891 = vst [vmem:[#allocation2 + $0x130] sm:$0xff] %v3837
    %3892 = vst [vmem:[#allocation2 + $0x138] sm:$0xff] %v3838
    %3893 = vst [vmem:[#allocation2 + $0x140] sm:$0xff] %v3839
    %3894 = vst [vmem:[#allocation2 + $0x148] sm:$0xff] %v3840
    %3895 = vst [vmem:[#allocation2 + $0x150] sm:$0xff] %v3841
    %3896 = vst [vmem:[#allocation2 + $0x158] sm:$0xff] %v3842
    %3897 = vst [vmem:[#allocation2 + $0x160] sm:$0xff] %v3843
    %3898 = vst [vmem:[#allocation2 + $0x168] sm:$0xff] %v3844
    %3899 = vst [vmem:[#allocation2 + $0x170] sm:$0xff] %v3845
    %3900 = vst [vmem:[#allocation2 + $0x178] sm:$0xff] %v3846
    %3901 = vst [vmem:[#allocation2 + $0x180] sm:$0xff] %v3847
    %3902 = vst [vmem:[#allocation2 + $0x188] sm:$0xff] %v3848
    %3903 = vst [vmem:[#allocation2 + $0x190] sm:$0xff] %v3849
    %3904 = vst [vmem:[#allocation2 + $0x198] sm:$0xff] %v3850
    %3905 = vst [vmem:[#allocation2 + $0x1a0] sm:$0xff] %v3851
    %3906 = vst [vmem:[#allocation2 + $0x1a8] sm:$0xff] %v3852
    %v3907 = vld [vmem:[#allocation3 + $0xc] sm:$0xe]
    %v3908 = vld [vmem:[#allocation3 + $0x10] sm:$0xf]
    %v3909 = vld [vmem:[#allocation3 + $0x14] sm:$0xf]
    %v3910 = vld [vmem:[#allocation3 + $0x18] sm:$0xf]
    %v3911 = vld [vmem:[#allocation3 + $0x1c] sm:$0xf]
    %v3912 = vld [vmem:[#allocation3 + $0x20] sm:$0xf]
    %v3913 = vld [vmem:[#allocation3 + $0x24] sm:$0xf]
    %v3914 = vld [vmem:[#allocation3 + $0x28] sm:$0xf]
    %v3915 = vld [vmem:[#allocation3 + $0x2c] sm:$0xf]
    %v3916 = vld [vmem:[#allocation3 + $0x30] sm:$0xf]
    %v3917 = vld [vmem:[#allocation3 + $0x34] sm:$0xf]
    %v3918 = vld [vmem:[#allocation3 + $0x38] sm:$0xf]
    %v3919 = vld [vmem:[#allocation3 + $0x3c] sm:$0xf]
    %v3920 = vld [vmem:[#allocation3 + $0x40] sm:$0xf]
    %v3921 = vld [vmem:[#allocation3 + $0x44] sm:$0xf]
    %v3922 = vld [vmem:[#allocation3 + $0x48] sm:$0xf]
    %v3923 = vld [vmem:[#allocation3 + $0x4c] sm:$0xf]
    %v3924 = vld [vmem:[#allocation3 + $0x50] sm:$0xf]
    %v3925 = vld [vmem:[#allocation3 + $0x54] sm:$0xf]
    %v3926 = vld [vmem:[#allocation3 + $0x58] sm:$0xf]
    %v3927 = vld [vmem:[#allocation3 + $0x5c] sm:$0xf]
    %v3928 = vld [vmem:[#allocation3 + $0x60] sm:$0xf]
    %v3929 = vld [vmem:[#allocation3 + $0x64] sm:$0xf]
    %v3930 = vld [vmem:[#allocation3 + $0x68] sm:$0xf]
    %v3931 = vld [vmem:[#allocation3 + $0x6c] sm:$0xf]
    %v3932 = vld [vmem:[#allocation3 + $0x70] sm:$0xf]
    %v3933 = vld [vmem:[#allocation3 + $0x74] sm:$0xf]
    %v3934 = vld [vmem:[#allocation3 + $0x78] sm:$0xf]
    %v3935 = vld [vmem:[#allocation3 + $0x7c] sm:$0xf]
    %v3936 = vld [vmem:[#allocation3 + $0x80] sm:$0xf]
    %v3937 = vld [vmem:[#allocation3 + $0x84] sm:$0xf]
    %v3938 = vld [vmem:[#allocation3 + $0x88] sm:$0xf]
    %v3939 = vld [vmem:[#allocation3 + $0x8c] sm:$0xf]
    %v3940 = vld [vmem:[#allocation3 + $0x90] sm:$0xf]
    %v3941 = vld [vmem:[#allocation3 + $0x94] sm:$0xf]
    %v3942 = vld [vmem:[#allocation3 + $0x98] sm:$0xf]
    %v3943 = vld [vmem:[#allocation3 + $0x9c] sm:$0xf]
    %v3944 = vld [vmem:[#allocation3 + $0xa0] sm:$0xf]
    %v3945 = vld [vmem:[#allocation3 + $0xa4] sm:$0xf]
    %v3946 = vld [vmem:[#allocation3 + $0xa8] sm:$0xf]
    %v3947 = vld [vmem:[#allocation3 + $0xac] sm:$0xf]
    %v3948 = vld [vmem:[#allocation3 + $0xb0] sm:$0xf]
    %v3949 = vld [vmem:[#allocation3 + $0xb4] sm:$0xf]
    %v3950 = vld [vmem:[#allocation3 + $0xb8] sm:$0xf]
    %v3951 = vld [vmem:[#allocation3 + $0xbc] sm:$0xf]
    %v3952 = vld [vmem:[#allocation3 + $0xc0] sm:$0xf]
    %v3953 = vld [vmem:[#allocation3 + $0xc4] sm:$0xf]
    %v3954 = vld [vmem:[#allocation3 + $0xc8] sm:$0xf]
    %v3955 = vld [vmem:[#allocation3 + $0xcc] sm:$0xf]
    %v3956 = vld [vmem:[#allocation3 + $0xd0] sm:$0xf]
    %v3957 = vld [vmem:[#allocation3 + $0xd4] sm:$0xf]
    %v3958 = vld [vmem:[#allocation3 + $0xd8] sm:$0xf]
    %v3959 = vld [vmem:[#allocation3 + $0xdc] sm:$0xf]
    %v3960 = vld [vmem:[#allocation3 + $0xe0] sm:$0xf]
    %v3961 = vld [vmem:[#allocation3 + $0xe4] sm:$0x1]
    %s3962 = scalar_lea.vmem [#allocation6], 320
    %v3963 = vld [vmem:[%s3962] sm:$0xf]
    %v3964 = vld [vmem:[%s3962 + $0x4] sm:$0xf]
    %v3965 = vld [vmem:[%s3962 + $0x8] sm:$0xf]
    %v3966 = vld [vmem:[%s3962 + $0xc] sm:$0xf]
    %v3967 = vld [vmem:[%s3962 + $0x10] sm:$0xf]
    %v3968 = vld [vmem:[%s3962 + $0x14] sm:$0xf]
    %v3969 = vld [vmem:[%s3962 + $0x18] sm:$0xf]
    %v3970 = vld [vmem:[%s3962 + $0x1c] sm:$0xf]
    %v3971 = vld [vmem:[%s3962 + $0x20] sm:$0xf]
    %v3972 = vld [vmem:[%s3962 + $0x24] sm:$0xf]
    %v3973 = vld [vmem:[%s3962 + $0x28] sm:$0xf]
    %v3974 = vld [vmem:[%s3962 + $0x2c] sm:$0xf]
    %v3975 = vld [vmem:[%s3962 + $0x30] sm:$0xf]
    %v3976 = vld [vmem:[%s3962 + $0x34] sm:$0xf]
    %v3977 = vld [vmem:[%s3962 + $0x38] sm:$0xf]
    %v3978 = vld [vmem:[%s3962 + $0x3c] sm:$0xf]
    %v4034 = vunpack.c.l.b16 %v3907
    %v4035 = vunpack.c.l.b16 %v3908
    %v4036 = vunpack.c.l.b16 %v3909
    %v4037 = vunpack.c.l.b16 %v3910
    %v4038 = vunpack.c.l.b16 %v3911
    %v4039 = vunpack.c.l.b16 %v3912
    %v4040 = vunpack.c.l.b16 %v3913
    %v4041 = vunpack.c.l.b16 %v3914
    %v4042 = vunpack.c.l.b16 %v3915
    %v4043 = vunpack.c.l.b16 %v3916
    %v4044 = vunpack.c.l.b16 %v3917
    %v4045 = vunpack.c.l.b16 %v3918
    %v4046 = vunpack.c.l.b16 %v3919
    %v4047 = vunpack.c.l.b16 %v3920
    %v4048 = vunpack.c.l.b16 %v3921
    %v4049 = vunpack.c.l.b16 %v3922
    %v4050 = vunpack.c.l.b16 %v3923
    %v4051 = vunpack.c.l.b16 %v3924
    %v4052 = vunpack.c.l.b16 %v3925
    %v4053 = vunpack.c.l.b16 %v3926
    %v4054 = vunpack.c.l.b16 %v3927
    %v4055 = vunpack.c.l.b16 %v3928
    %v4056 = vunpack.c.l.b16 %v3929
    %v4057 = vunpack.c.l.b16 %v3930
    %v4058 = vunpack.c.l.b16 %v3931
    %v4059 = vunpack.c.l.b16 %v3932
    %v4060 = vunpack.c.l.b16 %v3933
    %v4061 = vunpack.c.l.b16 %v3934
    %v4062 = vunpack.c.l.b16 %v3935
    %v4063 = vunpack.c.l.b16 %v3936
    %v4064 = vunpack.c.l.b16 %v3937
    %v4065 = vunpack.c.l.b16 %v3938
    %v4066 = vunpack.c.l.b16 %v3939
    %v4067 = vunpack.c.l.b16 %v3940
    %v4068 = vunpack.c.l.b16 %v3941
    %v4069 = vunpack.c.l.b16 %v3942
    %v4070 = vunpack.c.l.b16 %v3943
    %v4071 = vunpack.c.l.b16 %v3944
    %v4072 = vunpack.c.l.b16 %v3945
    %v4073 = vunpack.c.l.b16 %v3946
    %v4074 = vunpack.c.l.b16 %v3947
    %v4075 = vunpack.c.l.b16 %v3948
    %v4076 = vunpack.c.l.b16 %v3949
    %v4077 = vunpack.c.l.b16 %v3950
    %v4078 = vunpack.c.l.b16 %v3951
    %v4079 = vunpack.c.l.b16 %v3952
    %v4080 = vunpack.c.l.b16 %v3953
    %v4081 = vunpack.c.l.b16 %v3954
    %v4082 = vunpack.c.l.b16 %v3955
    %v4083 = vunpack.c.l.b16 %v3956
    %v4084 = vunpack.c.l.b16 %v3957
    %v4085 = vunpack.c.l.b16 %v3958
    %v4086 = vunpack.c.l.b16 %v3959
    %v4087 = vunpack.c.l.b16 %v3960
    %v4088 = vunpack.c.l.b16 %v3961
    %v4089 = vpack.c.b16 %v4035, %v4034
    %v4090 = vpack.c.b16 %v4037, %v4036
    %v4091 = vpack.c.b16 %v4039, %v4038
    %v4092 = vpack.c.b16 %v4041, %v4040
    %v4093 = vpack.c.b16 %v4043, %v4042
    %v4094 = vpack.c.b16 %v4045, %v4044
    %v4095 = vpack.c.b16 %v4047, %v4046
    %v4096 = vpack.c.b16 %v4049, %v4048
    %v4097 = vpack.c.b16 %v4051, %v4050
    %v4098 = vpack.c.b16 %v4053, %v4052
    %v4099 = vpack.c.b16 %v4055, %v4054
    %v4100 = vpack.c.b16 %v4057, %v4056
    %v4101 = vpack.c.b16 %v4059, %v4058
    %v4102 = vpack.c.b16 %v4061, %v4060
    %v4103 = vpack.c.b16 %v4063, %v4062
    %v4104 = vpack.c.b16 %v4065, %v4064
    %v4105 = vpack.c.b16 %v4067, %v4066
    %v4106 = vpack.c.b16 %v4069, %v4068
    %v4107 = vpack.c.b16 %v4071, %v4070
    %v4108 = vpack.c.b16 %v4073, %v4072
    %v4109 = vpack.c.b16 %v4075, %v4074
    %v4110 = vpack.c.b16 %v4077, %v4076
    %v4111 = vpack.c.b16 %v4079, %v4078
    %v4112 = vpack.c.b16 %v4081, %v4080
    %v4113 = vpack.c.b16 %v4083, %v4082
    %v4114 = vpack.c.b16 %v4085, %v4084
    %v4115 = vpack.c.b16 %v4087, %v4086
    %v4116 = vpack.c.b16 %v4088, %v4088
    %v4117 = vrot.slane %v4089, 1
    %v4118 = vrot.slane %v4090, 1
    %v4119 = vsel %vm1757, %v4117, %v4118
    %v4120 = vrot.slane %v4091, 1
    %v4121 = vsel %vm1757, %v4118, %v4120
    %v4122 = vrot.slane %v4092, 1
    %v4123 = vsel %vm1757, %v4120, %v4122
    %v4124 = vrot.slane %v4093, 1
    %v4125 = vsel %vm1757, %v4122, %v4124
    %v4126 = vrot.slane %v4094, 1
    %v4127 = vsel %vm1757, %v4124, %v4126
    %v4128 = vrot.slane %v4095, 1
    %v4129 = vsel %vm1757, %v4126, %v4128
    %v4130 = vrot.slane %v4096, 1
    %v4131 = vsel %vm1757, %v4128, %v4130
    %v4132 = vrot.slane %v4097, 1
    %v4133 = vsel %vm1757, %v4130, %v4132
    %v4134 = vrot.slane %v4098, 1
    %v4135 = vsel %vm1757, %v4132, %v4134
    %v4136 = vrot.slane %v4099, 1
    %v4137 = vsel %vm1757, %v4134, %v4136
    %v4138 = vrot.slane %v4100, 1
    %v4139 = vsel %vm1757, %v4136, %v4138
    %v4140 = vrot.slane %v4101, 1
    %v4141 = vsel %vm1757, %v4138, %v4140
    %v4142 = vrot.slane %v4102, 1
    %v4143 = vsel %vm1757, %v4140, %v4142
    %v4144 = vrot.slane %v4103, 1
    %v4145 = vsel %vm1757, %v4142, %v4144
    %v4146 = vrot.slane %v4104, 1
    %v4147 = vsel %vm1757, %v4144, %v4146
    %v4148 = vrot.slane %v4105, 1
    %v4149 = vsel %vm1757, %v4146, %v4148
    %v4150 = vrot.slane %v4106, 1
    %v4151 = vsel %vm1757, %v4148, %v4150
    %v4152 = vrot.slane %v4107, 1
    %v4153 = vsel %vm1757, %v4150, %v4152
    %v4154 = vrot.slane %v4108, 1
    %v4155 = vsel %vm1757, %v4152, %v4154
    %v4156 = vrot.slane %v4109, 1
    %v4157 = vsel %vm1757, %v4154, %v4156
    %v4158 = vrot.slane %v4110, 1
    %v4159 = vsel %vm1757, %v4156, %v4158
    %v4160 = vrot.slane %v4111, 1
    %v4161 = vsel %vm1757, %v4158, %v4160
    %v4162 = vrot.slane %v4112, 1
    %v4163 = vsel %vm1757, %v4160, %v4162
    %v4164 = vrot.slane %v4113, 1
    %v4165 = vsel %vm1757, %v4162, %v4164
    %v4166 = vrot.slane %v4114, 1
    %v4167 = vsel %vm1757, %v4164, %v4166
    %v4168 = vrot.slane %v4115, 1
    %v4169 = vsel %vm1757, %v4166, %v4168
    %v4170 = vrot.slane %v4116, 1
    %v4171 = vsel %vm1757, %v4168, %v4170
    %v4215 = vunpack.c.l.b16 %v3963
    %v4216 = vunpack.c.l.b16 %v3964
    %v4217 = vunpack.c.l.b16 %v3965
    %v4218 = vunpack.c.l.b16 %v3966
    %v4219 = vunpack.c.l.b16 %v3967
    %v4220 = vunpack.c.l.b16 %v3968
    %v4221 = vunpack.c.l.b16 %v3969
    %v4222 = vunpack.c.l.b16 %v3970
    %v4223 = vunpack.c.l.b16 %v3971
    %v4224 = vunpack.c.l.b16 %v3972
    %v4225 = vunpack.c.l.b16 %v3973
    %v4226 = vunpack.c.l.b16 %v3974
    %v4227 = vunpack.c.l.b16 %v3975
    %v4228 = vunpack.c.l.b16 %v3976
    %v4229 = vunpack.c.l.b16 %v3977
    %v4230 = vunpack.c.l.b16 %v3978
    %v4231 = vpack.c.b16 %v4216, %v4215
    %v4232 = vpack.c.b16 %v4218, %v4217
    %v4233 = vpack.c.b16 %v4220, %v4219
    %v4234 = vpack.c.b16 %v4222, %v4221
    %v4235 = vpack.c.b16 %v4224, %v4223
    %v4236 = vpack.c.b16 %v4226, %v4225
    %v4237 = vpack.c.b16 %v4228, %v4227
    %v4238 = vpack.c.b16 %v4230, %v4229
    %4247 = vmatprep.subr.bf16.mxu0 0
    %4248 = vmatpush1.bf16.msra.mxu0 %v4231
    %4249 = vmatprep.subr.bf16.mxu0 0
    %4250 = vmatpush1.bf16.msra.mxu0 %v4232
    %4251 = vmatprep.subr.bf16.mxu0 0
    %4252 = vmatpush1.bf16.msra.mxu0 %v4233
    %4253 = vmatprep.subr.bf16.mxu0 0
    %4254 = vmatpush1.bf16.msra.mxu0 %v4234
    %4255 = vmatprep.subr.bf16.mxu0 0
    %4256 = vmatpush1.bf16.msra.mxu0 %v4235
    %4257 = vmatprep.subr.bf16.mxu0 0
    %4258 = vmatpush1.bf16.msra.mxu0 %v4236
    %4259 = vmatprep.subr.bf16.mxu0 0
    %4260 = vmatpush1.bf16.msra.mxu0 %v4237
    %4261 = vmatprep.subr.bf16.mxu0 0
    %4262 = vmatpush1.bf16.msra.mxu0 %v4238
    %4263 = vmatprep.subr.bf16.mxu0 0
    %4264 = vmatpush1.bf16.msra.mxu0 0
    %4265 = vmatprep.subr.bf16.mxu0 0
    %4266 = vmatpush1.bf16.msra.mxu0 0
    %4267 = vmatprep.subr.bf16.mxu0 0
    %4268 = vmatpush1.bf16.msra.mxu0 0
    %4269 = vmatprep.subr.bf16.mxu0 0
    %4270 = vmatpush1.bf16.msra.mxu0 0
    %4271 = vmatprep.subr.bf16.mxu0 0
    %4272 = vmatpush1.bf16.msra.mxu0 0
    %4273 = vmatprep.subr.bf16.mxu0 0
    %4274 = vmatpush1.bf16.msra.mxu0 0
    %4275 = vmatprep.subr.bf16.mxu0 0
    %4276 = vmatpush1.bf16.msra.mxu0 0
    %4277 = vmatprep.subr.bf16.mxu0 0
    %4278 = vmatpush1.bf16.msra.mxu0 0
    %4279 = vmatprep.mubr.bf16.mxu0 0
    %4280 = vmatmul.mubr.bf16.gmra.mrb[0].mxu0 %v4119
    %v4281 = vpop.f32.mrb[0].mxu0
    %v4282 = vadd.f32 0.0, %v4281
    %v4283 = vpop.f32.mrb[0].mxu0
    %v4284 = vpop.f32.mrb[0].mxu0
    %v4285 = vadd.f32 0.0, %v4284
    %v4286 = vpop.f32.mrb[0].mxu0
    %4287 = vmatprep.mubr.bf16.mxu0 0
    %4288 = vmatmul.mubr.bf16.gmra.mrb[0].mxu0 %v4121
    %v4289 = vpop.f32.mrb[0].mxu0
    %v4290 = vadd.f32 0.0, %v4289
    %v4291 = vpop.f32.mrb[0].mxu0
    %v4292 = vpop.f32.mrb[0].mxu0
    %v4293 = vadd.f32 0.0, %v4292
    %v4294 = vpop.f32.mrb[0].mxu0
    %4295 = vmatprep.mubr.bf16.mxu0 0
    %4296 = vmatmul.mubr.bf16.gmra.mrb[0].mxu0 %v4123
    %v4297 = vpop.f32.mrb[0].mxu0
    %v4298 = vadd.f32 0.0, %v4297
    %v4299 = vpop.f32.mrb[0].mxu0
    %v4300 = vpop.f32.mrb[0].mxu0
    %v4301 = vadd.f32 0.0, %v4300
    %v4302 = vpop.f32.mrb[0].mxu0
    %4303 = vmatprep.mubr.bf16.mxu0 0
    %4304 = vmatmul.mubr.bf16.gmra.mrb[0].mxu0 %v4125
    %v4305 = vpop.f32.mrb[0].mxu0
    %v4306 = vadd.f32 0.0, %v4305
    %v4307 = vpop.f32.mrb[0].mxu0
    %v4308 = vpop.f32.mrb[0].mxu0
    %v4309 = vadd.f32 0.0, %v4308
    %v4310 = vpop.f32.mrb[0].mxu0
    %4311 = vmatprep.mubr.bf16.mxu0 0
    %4312 = vmatmul.mubr.bf16.gmra.mrb[0].mxu0 %v4127
    %v4313 = vpop.f32.mrb[0].mxu0
    %v4314 = vadd.f32 0.0, %v4313
    %v4315 = vpop.f32.mrb[0].mxu0
    %v4316 = vpop.f32.mrb[0].mxu0
    %v4317 = vadd.f32 0.0, %v4316
    %v4318 = vpop.f32.mrb[0].mxu0
    %4319 = vmatprep.mubr.bf16.mxu0 0
    %4320 = vmatmul.mubr.bf16.gmra.mrb[0].mxu0 %v4129
    %v4321 = vpop.f32.mrb[0].mxu0
    %v4322 = vadd.f32 0.0, %v4321
    %v4323 = vpop.f32.mrb[0].mxu0
    %v4324 = vpop.f32.mrb[0].mxu0
    %v4325 = vadd.f32 0.0, %v4324
    %v4326 = vpop.f32.mrb[0].mxu0
    %4327 = vmatprep.mubr.bf16.mxu0 0
    %4328 = vmatmul.mubr.bf16.gmra.mrb[0].mxu0 %v4131
    %v4329 = vpop.f32.mrb[0].mxu0
    %v4330 = vadd.f32 0.0, %v4329
    %v4331 = vpop.f32.mrb[0].mxu0
    %v4332 = vpop.f32.mrb[0].mxu0
    %v4333 = vadd.f32 0.0, %v4332
    %v4334 = vpop.f32.mrb[0].mxu0
    %4335 = vmatprep.mubr.bf16.mxu0 0
    %4336 = vmatmul.mubr.bf16.gmra.mrb[0].mxu0 %v4133
    %v4337 = vpop.f32.mrb[0].mxu0
    %v4338 = vadd.f32 0.0, %v4337
    %v4339 = vpop.f32.mrb[0].mxu0
    %v4340 = vpop.f32.mrb[0].mxu0
    %v4341 = vadd.f32 0.0, %v4340
    %v4342 = vpop.f32.mrb[0].mxu0
    %4343 = vmatprep.mubr.bf16.mxu0 0
    %4344 = vmatmul.mubr.bf16.gmra.mrb[0].mxu0 %v4135
    %v4345 = vpop.f32.mrb[0].mxu0
    %v4346 = vadd.f32 0.0, %v4345
    %v4347 = vpop.f32.mrb[0].mxu0
    %v4348 = vpop.f32.mrb[0].mxu0
    %v4349 = vadd.f32 0.0, %v4348
    %v4350 = vpop.f32.mrb[0].mxu0
    %4351 = vmatprep.mubr.bf16.mxu0 0
    %4352 = vmatmul.mubr.bf16.gmra.mrb[0].mxu0 %v4137
    %v4353 = vpop.f32.mrb[0].mxu0
    %v4354 = vadd.f32 0.0, %v4353
    %v4355 = vpop.f32.mrb[0].mxu0
    %v4356 = vpop.f32.mrb[0].mxu0
    %v4357 = vadd.f32 0.0, %v4356
    %v4358 = vpop.f32.mrb[0].mxu0
    %4359 = vmatprep.mubr.bf16.mxu0 0
    %4360 = vmatmul.mubr.bf16.gmra.mrb[0].mxu0 %v4139
    %v4361 = vpop.f32.mrb[0].mxu0
    %v4362 = vadd.f32 0.0, %v4361
    %v4363 = vpop.f32.mrb[0].mxu0
    %v4364 = vpop.f32.mrb[0].mxu0
    %v4365 = vadd.f32 0.0, %v4364
    %v4366 = vpop.f32.mrb[0].mxu0
    %4367 = vmatprep.mubr.bf16.mxu0 0
    %4368 = vmatmul.mubr.bf16.gmra.mrb[0].mxu0 %v4141
    %v4369 = vpop.f32.mrb[0].mxu0
    %v4370 = vadd.f32 0.0, %v4369
    %v4371 = vpop.f32.mrb[0].mxu0
    %v4372 = vpop.f32.mrb[0].mxu0
    %v4373 = vadd.f32 0.0, %v4372
    %v4374 = vpop.f32.mrb[0].mxu0
    %4375 = vmatprep.mubr.bf16.mxu0 0
    %4376 = vmatmul.mubr.bf16.gmra.mrb[0].mxu0 %v4143
    %v4377 = vpop.f32.mrb[0].mxu0
    %v4378 = vadd.f32 0.0, %v4377
    %v4379 = vpop.f32.mrb[0].mxu0
    %v4380 = vpop.f32.mrb[0].mxu0
    %v4381 = vadd.f32 0.0, %v4380
    %v4382 = vpop.f32.mrb[0].mxu0
    %4383 = vmatprep.mubr.bf16.mxu0 0
    %4384 = vmatmul.mubr.bf16.gmra.mrb[0].mxu0 %v4145
    %v4385 = vpop.f32.mrb[0].mxu0
    %v4386 = vadd.f32 0.0, %v4385
    %v4387 = vpop.f32.mrb[0].mxu0
    %v4388 = vpop.f32.mrb[0].mxu0
    %v4389 = vadd.f32 0.0, %v4388
    %v4390 = vpop.f32.mrb[0].mxu0
    %4391 = vmatprep.mubr.bf16.mxu0 0
    %4392 = vmatmul.mubr.bf16.gmra.mrb[0].mxu0 %v4147
    %v4393 = vpop.f32.mrb[0].mxu0
    %v4394 = vadd.f32 0.0, %v4393
    %v4395 = vpop.f32.mrb[0].mxu0
    %v4396 = vpop.f32.mrb[0].mxu0
    %v4397 = vadd.f32 0.0, %v4396
    %v4398 = vpop.f32.mrb[0].mxu0
    %4399 = vmatprep.mubr.bf16.mxu0 0
    %4400 = vmatmul.mubr.bf16.gmra.mrb[0].mxu0 %v4149
    %v4401 = vpop.f32.mrb[0].mxu0
    %v4402 = vadd.f32 0.0, %v4401
    %v4403 = vpop.f32.mrb[0].mxu0
    %v4404 = vpop.f32.mrb[0].mxu0
    %v4405 = vadd.f32 0.0, %v4404
    %v4406 = vpop.f32.mrb[0].mxu0
    %4407 = vmatprep.mubr.bf16.mxu0 0
    %4408 = vmatmul.mubr.bf16.gmra.mrb[0].mxu0 %v4151
    %v4409 = vpop.f32.mrb[0].mxu0
    %v4410 = vadd.f32 0.0, %v4409
    %v4411 = vpop.f32.mrb[0].mxu0
    %v4412 = vpop.f32.mrb[0].mxu0
    %v4413 = vadd.f32 0.0, %v4412
    %v4414 = vpop.f32.mrb[0].mxu0
    %4415 = vmatprep.mubr.bf16.mxu0 0
    %4416 = vmatmul.mubr.bf16.gmra.mrb[0].mxu0 %v4153
    %v4417 = vpop.f32.mrb[0].mxu0
    %v4418 = vadd.f32 0.0, %v4417
    %v4419 = vpop.f32.mrb[0].mxu0
    %v4420 = vpop.f32.mrb[0].mxu0
    %v4421 = vadd.f32 0.0, %v4420
    %v4422 = vpop.f32.mrb[0].mxu0
    %4423 = vmatprep.mubr.bf16.mxu0 0
    %4424 = vmatmul.mubr.bf16.gmra.mrb[0].mxu0 %v4155
    %v4425 = vpop.f32.mrb[0].mxu0
    %v4426 = vadd.f32 0.0, %v4425
    %v4427 = vpop.f32.mrb[0].mxu0
    %v4428 = vpop.f32.mrb[0].mxu0
    %v4429 = vadd.f32 0.0, %v4428
    %v4430 = vpop.f32.mrb[0].mxu0
    %4431 = vmatprep.mubr.bf16.mxu0 0
    %4432 = vmatmul.mubr.bf16.gmra.mrb[0].mxu0 %v4157
    %v4433 = vpop.f32.mrb[0].mxu0
    %v4434 = vadd.f32 0.0, %v4433
    %v4435 = vpop.f32.mrb[0].mxu0
    %v4436 = vpop.f32.mrb[0].mxu0
    %v4437 = vadd.f32 0.0, %v4436
    %v4438 = vpop.f32.mrb[0].mxu0
    %4439 = vmatprep.mubr.bf16.mxu0 0
    %4440 = vmatmul.mubr.bf16.gmra.mrb[0].mxu0 %v4159
    %v4441 = vpop.f32.mrb[0].mxu0
    %v4442 = vadd.f32 0.0, %v4441
    %v4443 = vpop.f32.mrb[0].mxu0
    %v4444 = vpop.f32.mrb[0].mxu0
    %v4445 = vadd.f32 0.0, %v4444
    %v4446 = vpop.f32.mrb[0].mxu0
    %4447 = vmatprep.mubr.bf16.mxu0 0
    %4448 = vmatmul.mubr.bf16.gmra.mrb[0].mxu0 %v4161
    %v4449 = vpop.f32.mrb[0].mxu0
    %v4450 = vadd.f32 0.0, %v4449
    %v4451 = vpop.f32.mrb[0].mxu0
    %v4452 = vpop.f32.mrb[0].mxu0
    %v4453 = vadd.f32 0.0, %v4452
    %v4454 = vpop.f32.mrb[0].mxu0
    %4455 = vmatprep.mubr.bf16.mxu0 0
    %4456 = vmatmul.mubr.bf16.gmra.mrb[0].mxu0 %v4163
    %v4457 = vpop.f32.mrb[0].mxu0
    %v4458 = vadd.f32 0.0, %v4457
    %v4459 = vpop.f32.mrb[0].mxu0
    %v4460 = vpop.f32.mrb[0].mxu0
    %v4461 = vadd.f32 0.0, %v4460
    %v4462 = vpop.f32.mrb[0].mxu0
    %4463 = vmatprep.mubr.bf16.mxu0 0
    %4464 = vmatmul.mubr.bf16.gmra.mrb[0].mxu0 %v4165
    %v4465 = vpop.f32.mrb[0].mxu0
    %v4466 = vadd.f32 0.0, %v4465
    %v4467 = vpop.f32.mrb[0].mxu0
    %v4468 = vpop.f32.mrb[0].mxu0
    %v4469 = vadd.f32 0.0, %v4468
    %v4470 = vpop.f32.mrb[0].mxu0
    %4471 = vmatprep.mubr.bf16.mxu0 0
    %4472 = vmatmul.mubr.bf16.gmra.mrb[0].mxu0 %v4167
    %v4473 = vpop.f32.mrb[0].mxu0
    %v4474 = vadd.f32 0.0, %v4473
    %v4475 = vpop.f32.mrb[0].mxu0
    %v4476 = vpop.f32.mrb[0].mxu0
    %v4477 = vadd.f32 0.0, %v4476
    %v4478 = vpop.f32.mrb[0].mxu0
    %4479 = vmatprep.mubr.bf16.mxu0 0
    %4480 = vmatmul.mubr.bf16.gmra.mrb[0].mxu0 %v4169
    %v4481 = vpop.f32.mrb[0].mxu0
    %v4482 = vadd.f32 0.0, %v4481
    %v4483 = vpop.f32.mrb[0].mxu0
    %v4484 = vpop.f32.mrb[0].mxu0
    %v4485 = vadd.f32 0.0, %v4484
    %v4486 = vpop.f32.mrb[0].mxu0
    %4487 = vmatprep.mubr.bf16.mxu0 0
    %4488 = vmatmul.mubr.bf16.gmra.mrb[0].mxu0 %v4171
    %v4489 = vpop.f32.mrb[0].mxu0
    %v4490 = vadd.f32 0.0, %v4489
    %v4491 = vpop.f32.mrb[0].mxu0
    %v4492 = vpop.f32.mrb[0].mxu0
    %v4493 = vadd.f32 0.0, %v4492
    %v4494 = vpop.f32.mrb[0].mxu0
    %4495 = vdwg.mxu0
    %v4496 = vld [vmem:[#allocation2] sm:$0xff]
    %v4497 = vld [vmem:[#allocation2 + $0x8] sm:$0xff]
    %v4498 = vld [vmem:[#allocation2 + $0x10] sm:$0xff]
    %v4499 = vld [vmem:[#allocation2 + $0x18] sm:$0xff]
    %v4500 = vld [vmem:[#allocation2 + $0x20] sm:$0xff]
    %v4501 = vld [vmem:[#allocation2 + $0x28] sm:$0xff]
    %v4502 = vld [vmem:[#allocation2 + $0x30] sm:$0xff]
    %v4503 = vld [vmem:[#allocation2 + $0x38] sm:$0xff]
    %v4504 = vld [vmem:[#allocation2 + $0x40] sm:$0xff]
    %v4505 = vld [vmem:[#allocation2 + $0x48] sm:$0xff]
    %v4506 = vld [vmem:[#allocation2 + $0x50] sm:$0xff]
    %v4507 = vld [vmem:[#allocation2 + $0x58] sm:$0xff]
    %v4508 = vld [vmem:[#allocation2 + $0x60] sm:$0xff]
    %v4509 = vld [vmem:[#allocation2 + $0x68] sm:$0xff]
    %v4510 = vld [vmem:[#allocation2 + $0x70] sm:$0xff]
    %v4511 = vld [vmem:[#allocation2 + $0x78] sm:$0xff]
    %v4512 = vld [vmem:[#allocation2 + $0x80] sm:$0xff]
    %v4513 = vld [vmem:[#allocation2 + $0x88] sm:$0xff]
    %v4514 = vld [vmem:[#allocation2 + $0x90] sm:$0xff]
    %v4515 = vld [vmem:[#allocation2 + $0x98] sm:$0xff]
    %v4516 = vld [vmem:[#allocation2 + $0xa0] sm:$0xff]
    %v4517 = vld [vmem:[#allocation2 + $0xa8] sm:$0xff]
    %v4518 = vld [vmem:[#allocation2 + $0xb0] sm:$0xff]
    %v4519 = vld [vmem:[#allocation2 + $0xb8] sm:$0xff]
    %v4520 = vld [vmem:[#allocation2 + $0xc0] sm:$0xff]
    %v4521 = vld [vmem:[#allocation2 + $0xc8] sm:$0xff]
    %v4522 = vld [vmem:[#allocation2 + $0xd0] sm:$0xff]
    %v4523 = vld [vmem:[#allocation2 + $0xd8] sm:$0xff]
    %v4524 = vld [vmem:[#allocation2 + $0xe0] sm:$0xff]
    %v4525 = vld [vmem:[#allocation2 + $0xe8] sm:$0xff]
    %v4526 = vld [vmem:[#allocation2 + $0xf0] sm:$0xff]
    %v4527 = vld [vmem:[#allocation2 + $0xf8] sm:$0xff]
    %v4528 = vld [vmem:[#allocation2 + $0x100] sm:$0xff]
    %v4529 = vld [vmem:[#allocation2 + $0x108] sm:$0xff]
    %v4530 = vld [vmem:[#allocation2 + $0x110] sm:$0xff]
    %v4531 = vld [vmem:[#allocation2 + $0x118] sm:$0xff]
    %v4532 = vld [vmem:[#allocation2 + $0x120] sm:$0xff]
    %v4533 = vld [vmem:[#allocation2 + $0x128] sm:$0xff]
    %v4534 = vld [vmem:[#allocation2 + $0x130] sm:$0xff]
    %v4535 = vld [vmem:[#allocation2 + $0x138] sm:$0xff]
    %v4536 = vld [vmem:[#allocation2 + $0x140] sm:$0xff]
    %v4537 = vld [vmem:[#allocation2 + $0x148] sm:$0xff]
    %v4538 = vld [vmem:[#allocation2 + $0x150] sm:$0xff]
    %v4539 = vld [vmem:[#allocation2 + $0x158] sm:$0xff]
    %v4540 = vld [vmem:[#allocation2 + $0x160] sm:$0xff]
    %v4541 = vld [vmem:[#allocation2 + $0x168] sm:$0xff]
    %v4542 = vld [vmem:[#allocation2 + $0x170] sm:$0xff]
    %v4543 = vld [vmem:[#allocation2 + $0x178] sm:$0xff]
    %v4544 = vld [vmem:[#allocation2 + $0x180] sm:$0xff]
    %v4545 = vld [vmem:[#allocation2 + $0x188] sm:$0xff]
    %v4546 = vld [vmem:[#allocation2 + $0x190] sm:$0xff]
    %v4547 = vld [vmem:[#allocation2 + $0x198] sm:$0xff]
    %v4548 = vld [vmem:[#allocation2 + $0x1a0] sm:$0xff]
    %v4549 = vld [vmem:[#allocation2 + $0x1a8] sm:$0xff]
    %v4550 = vadd.f32 %v4496, %v4282
    %v4551 = vadd.f32 %v4497, %v4285
    %v4552 = vadd.f32 %v4498, %v4290
    %v4553 = vadd.f32 %v4499, %v4293
    %v4554 = vadd.f32 %v4500, %v4298
    %v4555 = vadd.f32 %v4501, %v4301
    %v4556 = vadd.f32 %v4502, %v4306
    %v4557 = vadd.f32 %v4503, %v4309
    %v4558 = vadd.f32 %v4504, %v4314
    %v4559 = vadd.f32 %v4505, %v4317
    %v4560 = vadd.f32 %v4506, %v4322
    %v4561 = vadd.f32 %v4507, %v4325
    %v4562 = vadd.f32 %v4508, %v4330
    %v4563 = vadd.f32 %v4509, %v4333
    %v4564 = vadd.f32 %v4510, %v4338
    %v4565 = vadd.f32 %v4511, %v4341
    %v4566 = vadd.f32 %v4512, %v4346
    %v4567 = vadd.f32 %v4513, %v4349
    %v4568 = vadd.f32 %v4514, %v4354
    %v4569 = vadd.f32 %v4515, %v4357
    %v4570 = vadd.f32 %v4516, %v4362
    %v4571 = vadd.f32 %v4517, %v4365
    %v4572 = vadd.f32 %v4518, %v4370
    %v4573 = vadd.f32 %v4519, %v4373
    %v4574 = vadd.f32 %v4520, %v4378
    %v4575 = vadd.f32 %v4521, %v4381
    %v4576 = vadd.f32 %v4522, %v4386
    %v4577 = vadd.f32 %v4523, %v4389
    %v4578 = vadd.f32 %v4524, %v4394
    %v4579 = vadd.f32 %v4525, %v4397
    %v4580 = vadd.f32 %v4526, %v4402
    %v4581 = vadd.f32 %v4527, %v4405
    %v4582 = vadd.f32 %v4528, %v4410
    %v4583 = vadd.f32 %v4529, %v4413
    %v4584 = vadd.f32 %v4530, %v4418
    %v4585 = vadd.f32 %v4531, %v4421
    %v4586 = vadd.f32 %v4532, %v4426
    %v4587 = vadd.f32 %v4533, %v4429
    %v4588 = vadd.f32 %v4534, %v4434
    %v4589 = vadd.f32 %v4535, %v4437
    %v4590 = vadd.f32 %v4536, %v4442
    %v4591 = vadd.f32 %v4537, %v4445
    %v4592 = vadd.f32 %v4538, %v4450
    %v4593 = vadd.f32 %v4539, %v4453
    %v4594 = vadd.f32 %v4540, %v4458
    %v4595 = vadd.f32 %v4541, %v4461
    %v4596 = vadd.f32 %v4542, %v4466
    %v4597 = vadd.f32 %v4543, %v4469
    %v4598 = vadd.f32 %v4544, %v4474
    %v4599 = vadd.f32 %v4545, %v4477
    %v4600 = vadd.f32 %v4546, %v4482
    %v4601 = vadd.f32 %v4547, %v4485
    %v4602 = vadd.f32 %v4548, %v4490
    %v4603 = vadd.f32 %v4549, %v4493
    %4604 = vst [vmem:[#allocation2] sm:$0xff] %v4550
    %4605 = vst [vmem:[#allocation2 + $0x8] sm:$0xff] %v4551
    %4606 = vst [vmem:[#allocation2 + $0x10] sm:$0xff] %v4552
    %4607 = vst [vmem:[#allocation2 + $0x18] sm:$0xff] %v4553
    %4608 = vst [vmem:[#allocation2 + $0x20] sm:$0xff] %v4554
    %4609 = vst [vmem:[#allocation2 + $0x28] sm:$0xff] %v4555
    %4610 = vst [vmem:[#allocation2 + $0x30] sm:$0xff] %v4556
    %4611 = vst [vmem:[#allocation2 + $0x38] sm:$0xff] %v4557
    %4612 = vst [vmem:[#allocation2 + $0x40] sm:$0xff] %v4558
    %4613 = vst [vmem:[#allocation2 + $0x48] sm:$0xff] %v4559
    %4614 = vst [vmem:[#allocation2 + $0x50] sm:$0xff] %v4560
    %4615 = vst [vmem:[#allocation2 + $0x58] sm:$0xff] %v4561
    %4616 = vst [vmem:[#allocation2 + $0x60] sm:$0xff] %v4562
    %4617 = vst [vmem:[#allocation2 + $0x68] sm:$0xff] %v4563
    %4618 = vst [vmem:[#allocation2 + $0x70] sm:$0xff] %v4564
    %4619 = vst [vmem:[#allocation2 + $0x78] sm:$0xff] %v4565
    %4620 = vst [vmem:[#allocation2 + $0x80] sm:$0xff] %v4566
    %4621 = vst [vmem:[#allocation2 + $0x88] sm:$0xff] %v4567
    %4622 = vst [vmem:[#allocation2 + $0x90] sm:$0xff] %v4568
    %4623 = vst [vmem:[#allocation2 + $0x98] sm:$0xff] %v4569
    %4624 = vst [vmem:[#allocation2 + $0xa0] sm:$0xff] %v4570
    %4625 = vst [vmem:[#allocation2 + $0xa8] sm:$0xff] %v4571
    %4626 = vst [vmem:[#allocation2 + $0xb0] sm:$0xff] %v4572
    %4627 = vst [vmem:[#allocation2 + $0xb8] sm:$0xff] %v4573
    %4628 = vst [vmem:[#allocation2 + $0xc0] sm:$0xff] %v4574
    %4629 = vst [vmem:[#allocation2 + $0xc8] sm:$0xff] %v4575
    %4630 = vst [vmem:[#allocation2 + $0xd0] sm:$0xff] %v4576
    %4631 = vst [vmem:[#allocation2 + $0xd8] sm:$0xff] %v4577
    %4632 = vst [vmem:[#allocation2 + $0xe0] sm:$0xff] %v4578
    %4633 = vst [vmem:[#allocation2 + $0xe8] sm:$0xff] %v4579
    %4634 = vst [vmem:[#allocation2 + $0xf0] sm:$0xff] %v4580
    %4635 = vst [vmem:[#allocation2 + $0xf8] sm:$0xff] %v4581
    %4636 = vst [vmem:[#allocation2 + $0x100] sm:$0xff] %v4582
    %4637 = vst [vmem:[#allocation2 + $0x108] sm:$0xff] %v4583
    %4638 = vst [vmem:[#allocation2 + $0x110] sm:$0xff] %v4584
    %4639 = vst [vmem:[#allocation2 + $0x118] sm:$0xff] %v4585
    %4640 = vst [vmem:[#allocation2 + $0x120] sm:$0xff] %v4586
    %4641 = vst [vmem:[#allocation2 + $0x128] sm:$0xff] %v4587
    %4642 = vst [vmem:[#allocation2 + $0x130] sm:$0xff] %v4588
    %4643 = vst [vmem:[#allocation2 + $0x138] sm:$0xff] %v4589
    %4644 = vst [vmem:[#allocation2 + $0x140] sm:$0xff] %v4590
    %4645 = vst [vmem:[#allocation2 + $0x148] sm:$0xff] %v4591
    %4646 = vst [vmem:[#allocation2 + $0x150] sm:$0xff] %v4592
    %4647 = vst [vmem:[#allocation2 + $0x158] sm:$0xff] %v4593
    %4648 = vst [vmem:[#allocation2 + $0x160] sm:$0xff] %v4594
    %4649 = vst [vmem:[#allocation2 + $0x168] sm:$0xff] %v4595
    %4650 = vst [vmem:[#allocation2 + $0x170] sm:$0xff] %v4596
    %4651 = vst [vmem:[#allocation2 + $0x178] sm:$0xff] %v4597
    %4652 = vst [vmem:[#allocation2 + $0x180] sm:$0xff] %v4598
    %4653 = vst [vmem:[#allocation2 + $0x188] sm:$0xff] %v4599
    %4654 = vst [vmem:[#allocation2 + $0x190] sm:$0xff] %v4600
    %4655 = vst [vmem:[#allocation2 + $0x198] sm:$0xff] %v4601
    %4656 = vst [vmem:[#allocation2 + $0x1a0] sm:$0xff] %v4602
    %4657 = vst [vmem:[#allocation2 + $0x1a8] sm:$0xff] %v4603
    %v4658 = vld [vmem:[#allocation3 + $0x18] sm:$0xf]
    %v4659 = vld [vmem:[#allocation3 + $0x1c] sm:$0xf]
    %v4660 = vld [vmem:[#allocation3 + $0x20] sm:$0xf]
    %v4661 = vld [vmem:[#allocation3 + $0x24] sm:$0xf]
    %v4662 = vld [vmem:[#allocation3 + $0x28] sm:$0xf]
    %v4663 = vld [vmem:[#allocation3 + $0x2c] sm:$0xf]
    %v4664 = vld [vmem:[#allocation3 + $0x30] sm:$0xf]
    %v4665 = vld [vmem:[#allocation3 + $0x34] sm:$0xf]
    %v4666 = vld [vmem:[#allocation3 + $0x38] sm:$0xf]
    %v4667 = vld [vmem:[#allocation3 + $0x3c] sm:$0xf]
    %v4668 = vld [vmem:[#allocation3 + $0x40] sm:$0xf]
    %v4669 = vld [vmem:[#allocation3 + $0x44] sm:$0xf]
    %v4670 = vld [vmem:[#allocation3 + $0x48] sm:$0xf]
    %v4671 = vld [vmem:[#allocation3 + $0x4c] sm:$0xf]
    %v4672 = vld [vmem:[#allocation3 + $0x50] sm:$0xf]
    %v4673 = vld [vmem:[#allocation3 + $0x54] sm:$0xf]
    %v4674 = vld [vmem:[#allocation3 + $0x58] sm:$0xf]
    %v4675 = vld [vmem:[#allocation3 + $0x5c] sm:$0xf]
    %v4676 = vld [vmem:[#allocation3 + $0x60] sm:$0xf]
    %v4677 = vld [vmem:[#allocation3 + $0x64] sm:$0xf]
    %v4678 = vld [vmem:[#allocation3 + $0x68] sm:$0xf]
    %v4679 = vld [vmem:[#allocation3 + $0x6c] sm:$0xf]
    %v4680 = vld [vmem:[#allocation3 + $0x70] sm:$0xf]
    %v4681 = vld [vmem:[#allocation3 + $0x74] sm:$0xf]
    %v4682 = vld [vmem:[#allocation3 + $0x78] sm:$0xf]
    %v4683 = vld [vmem:[#allocation3 + $0x7c] sm:$0xf]
    %v4684 = vld [vmem:[#allocation3 + $0x80] sm:$0xf]
    %v4685 = vld [vmem:[#allocation3 + $0x84] sm:$0xf]
    %v4686 = vld [vmem:[#allocation3 + $0x88] sm:$0xf]
    %v4687 = vld [vmem:[#allocation3 + $0x8c] sm:$0xf]
    %v4688 = vld [vmem:[#allocation3 + $0x90] sm:$0xf]
    %v4689 = vld [vmem:[#allocation3 + $0x94] sm:$0xf]
    %v4690 = vld [vmem:[#allocation3 + $0x98] sm:$0xf]
    %v4691 = vld [vmem:[#allocation3 + $0x9c] sm:$0xf]
    %v4692 = vld [vmem:[#allocation3 + $0xa0] sm:$0xf]
    %v4693 = vld [vmem:[#allocation3 + $0xa4] sm:$0xf]
    %v4694 = vld [vmem:[#allocation3 + $0xa8] sm:$0xf]
    %v4695 = vld [vmem:[#allocation3 + $0xac] sm:$0xf]
    %v4696 = vld [vmem:[#allocation3 + $0xb0] sm:$0xf]
    %v4697 = vld [vmem:[#allocation3 + $0xb4] sm:$0xf]
    %v4698 = vld [vmem:[#allocation3 + $0xb8] sm:$0xf]
    %v4699 = vld [vmem:[#allocation3 + $0xbc] sm:$0xf]
    %v4700 = vld [vmem:[#allocation3 + $0xc0] sm:$0xf]
    %v4701 = vld [vmem:[#allocation3 + $0xc4] sm:$0xf]
    %v4702 = vld [vmem:[#allocation3 + $0xc8] sm:$0xf]
    %v4703 = vld [vmem:[#allocation3 + $0xcc] sm:$0xf]
    %v4704 = vld [vmem:[#allocation3 + $0xd0] sm:$0xf]
    %v4705 = vld [vmem:[#allocation3 + $0xd4] sm:$0xf]
    %v4706 = vld [vmem:[#allocation3 + $0xd8] sm:$0xf]
    %v4707 = vld [vmem:[#allocation3 + $0xdc] sm:$0xf]
    %v4708 = vld [vmem:[#allocation3 + $0xe0] sm:$0xf]
    %v4709 = vld [vmem:[#allocation3 + $0xe4] sm:$0xf]
    %v4710 = vld [vmem:[#allocation3 + $0xe8] sm:$0xf]
    %v4711 = vld [vmem:[#allocation3 + $0xec] sm:$0xf]
    %s4712 = scalar_lea.vmem [#allocation6], 384
    %v4713 = vld [vmem:[%s4712] sm:$0xf]
    %v4714 = vld [vmem:[%s4712 + $0x4] sm:$0xf]
    %v4715 = vld [vmem:[%s4712 + $0x8] sm:$0xf]
    %v4716 = vld [vmem:[%s4712 + $0xc] sm:$0xf]
    %v4717 = vld [vmem:[%s4712 + $0x10] sm:$0xf]
    %v4718 = vld [vmem:[%s4712 + $0x14] sm:$0xf]
    %v4719 = vld [vmem:[%s4712 + $0x18] sm:$0xf]
    %v4720 = vld [vmem:[%s4712 + $0x1c] sm:$0xf]
    %v4721 = vld [vmem:[%s4712 + $0x20] sm:$0xf]
    %v4722 = vld [vmem:[%s4712 + $0x24] sm:$0xf]
    %v4723 = vld [vmem:[%s4712 + $0x28] sm:$0xf]
    %v4724 = vld [vmem:[%s4712 + $0x2c] sm:$0xf]
    %v4725 = vld [vmem:[%s4712 + $0x30] sm:$0xf]
    %v4726 = vld [vmem:[%s4712 + $0x34] sm:$0xf]
    %v4727 = vld [vmem:[%s4712 + $0x38] sm:$0xf]
    %v4728 = vld [vmem:[%s4712 + $0x3c] sm:$0xf]
    %v4783 = vunpack.c.l.b16 %v4658
    %v4784 = vunpack.c.l.b16 %v4659
    %v4785 = vunpack.c.l.b16 %v4660
    %v4786 = vunpack.c.l.b16 %v4661
    %v4787 = vunpack.c.l.b16 %v4662
    %v4788 = vunpack.c.l.b16 %v4663
    %v4789 = vunpack.c.l.b16 %v4664
    %v4790 = vunpack.c.l.b16 %v4665
    %v4791 = vunpack.c.l.b16 %v4666
    %v4792 = vunpack.c.l.b16 %v4667
    %v4793 = vunpack.c.l.b16 %v4668
    %v4794 = vunpack.c.l.b16 %v4669
    %v4795 = vunpack.c.l.b16 %v4670
    %v4796 = vunpack.c.l.b16 %v4671
    %v4797 = vunpack.c.l.b16 %v4672
    %v4798 = vunpack.c.l.b16 %v4673
    %v4799 = vunpack.c.l.b16 %v4674
    %v4800 = vunpack.c.l.b16 %v4675
    %v4801 = vunpack.c.l.b16 %v4676
    %v4802 = vunpack.c.l.b16 %v4677
    %v4803 = vunpack.c.l.b16 %v4678
    %v4804 = vunpack.c.l.b16 %v4679
    %v4805 = vunpack.c.l.b16 %v4680
    %v4806 = vunpack.c.l.b16 %v4681
    %v4807 = vunpack.c.l.b16 %v4682
    %v4808 = vunpack.c.l.b16 %v4683
    %v4809 = vunpack.c.l.b16 %v4684
    %v4810 = vunpack.c.l.b16 %v4685
    %v4811 = vunpack.c.l.b16 %v4686
    %v4812 = vunpack.c.l.b16 %v4687
    %v4813 = vunpack.c.l.b16 %v4688
    %v4814 = vunpack.c.l.b16 %v4689
    %v4815 = vunpack.c.l.b16 %v4690
    %v4816 = vunpack.c.l.b16 %v4691
    %v4817 = vunpack.c.l.b16 %v4692
    %v4818 = vunpack.c.l.b16 %v4693
    %v4819 = vunpack.c.l.b16 %v4694
    %v4820 = vunpack.c.l.b16 %v4695
    %v4821 = vunpack.c.l.b16 %v4696
    %v4822 = vunpack.c.l.b16 %v4697
    %v4823 = vunpack.c.l.b16 %v4698
    %v4824 = vunpack.c.l.b16 %v4699
    %v4825 = vunpack.c.l.b16 %v4700
    %v4826 = vunpack.c.l.b16 %v4701
    %v4827 = vunpack.c.l.b16 %v4702
    %v4828 = vunpack.c.l.b16 %v4703
    %v4829 = vunpack.c.l.b16 %v4704
    %v4830 = vunpack.c.l.b16 %v4705
    %v4831 = vunpack.c.l.b16 %v4706
    %v4832 = vunpack.c.l.b16 %v4707
    %v4833 = vunpack.c.l.b16 %v4708
    %v4834 = vunpack.c.l.b16 %v4709
    %v4835 = vunpack.c.l.b16 %v4710
    %v4836 = vunpack.c.l.b16 %v4711
    %v4837 = vpack.c.b16 %v4784, %v4783
    %v4838 = vpack.c.b16 %v4786, %v4785
    %v4839 = vpack.c.b16 %v4788, %v4787
    %v4840 = vpack.c.b16 %v4790, %v4789
    %v4841 = vpack.c.b16 %v4792, %v4791
    %v4842 = vpack.c.b16 %v4794, %v4793
    %v4843 = vpack.c.b16 %v4796, %v4795
    %v4844 = vpack.c.b16 %v4798, %v4797
    %v4845 = vpack.c.b16 %v4800, %v4799
    %v4846 = vpack.c.b16 %v4802, %v4801
    %v4847 = vpack.c.b16 %v4804, %v4803
    %v4848 = vpack.c.b16 %v4806, %v4805
    %v4849 = vpack.c.b16 %v4808, %v4807
    %v4850 = vpack.c.b16 %v4810, %v4809
    %v4851 = vpack.c.b16 %v4812, %v4811
    %v4852 = vpack.c.b16 %v4814, %v4813
    %v4853 = vpack.c.b16 %v4816, %v4815
    %v4854 = vpack.c.b16 %v4818, %v4817
    %v4855 = vpack.c.b16 %v4820, %v4819
    %v4856 = vpack.c.b16 %v4822, %v4821
    %v4857 = vpack.c.b16 %v4824, %v4823
    %v4858 = vpack.c.b16 %v4826, %v4825
    %v4859 = vpack.c.b16 %v4828, %v4827
    %v4860 = vpack.c.b16 %v4830, %v4829
    %v4861 = vpack.c.b16 %v4832, %v4831
    %v4862 = vpack.c.b16 %v4834, %v4833
    %v4863 = vpack.c.b16 %v4836, %v4835
    %v4907 = vunpack.c.l.b16 %v4713
    %v4908 = vunpack.c.l.b16 %v4714
    %v4909 = vunpack.c.l.b16 %v4715
    %v4910 = vunpack.c.l.b16 %v4716
    %v4911 = vunpack.c.l.b16 %v4717
    %v4912 = vunpack.c.l.b16 %v4718
    %v4913 = vunpack.c.l.b16 %v4719
    %v4914 = vunpack.c.l.b16 %v4720
    %v4915 = vunpack.c.l.b16 %v4721
    %v4916 = vunpack.c.l.b16 %v4722
    %v4917 = vunpack.c.l.b16 %v4723
    %v4918 = vunpack.c.l.b16 %v4724
    %v4919 = vunpack.c.l.b16 %v4725
    %v4920 = vunpack.c.l.b16 %v4726
    %v4921 = vunpack.c.l.b16 %v4727
    %v4922 = vunpack.c.l.b16 %v4728
    %v4923 = vpack.c.b16 %v4908, %v4907
    %v4924 = vpack.c.b16 %v4910, %v4909
    %v4925 = vpack.c.b16 %v4912, %v4911
    %v4926 = vpack.c.b16 %v4914, %v4913
    %v4927 = vpack.c.b16 %v4916, %v4915
    %v4928 = vpack.c.b16 %v4918, %v4917
    %v4929 = vpack.c.b16 %v4920, %v4919
    %v4930 = vpack.c.b16 %v4922, %v4921
    %4939 = vmatprep.subr.bf16.mxu0 0
    %4940 = vmatpush1.bf16.msra.mxu0 %v4923
    %4941 = vmatprep.subr.bf16.mxu0 0
    %4942 = vmatpush1.bf16.msra.mxu0 %v4924
    %4943 = vmatprep.subr.bf16.mxu0 0
    %4944 = vmatpush1.bf16.msra.mxu0 %v4925
    %4945 = vmatprep.subr.bf16.mxu0 0
    %4946 = vmatpush1.bf16.msra.mxu0 %v4926
    %4947 = vmatprep.subr.bf16.mxu0 0
    %4948 = vmatpush1.bf16.msra.mxu0 %v4927
    %4949 = vmatprep.subr.bf16.mxu0 0
    %4950 = vmatpush1.bf16.msra.mxu0 %v4928
    %4951 = vmatprep.subr.bf16.mxu0 0
    %4952 = vmatpush1.bf16.msra.mxu0 %v4929
    %4953 = vmatprep.subr.bf16.mxu0 0
    %4954 = vmatpush1.bf16.msra.mxu0 %v4930
    %4955 = vmatprep.subr.bf16.mxu0 0
    %4956 = vmatpush1.bf16.msra.mxu0 0
    %4957 = vmatprep.subr.bf16.mxu0 0
    %4958 = vmatpush1.bf16.msra.mxu0 0
    %4959 = vmatprep.subr.bf16.mxu0 0
    %4960 = vmatpush1.bf16.msra.mxu0 0
    %4961 = vmatprep.subr.bf16.mxu0 0
    %4962 = vmatpush1.bf16.msra.mxu0 0
    %4963 = vmatprep.subr.bf16.mxu0 0
    %4964 = vmatpush1.bf16.msra.mxu0 0
    %4965 = vmatprep.subr.bf16.mxu0 0
    %4966 = vmatpush1.bf16.msra.mxu0 0
    %4967 = vmatprep.subr.bf16.mxu0 0
    %4968 = vmatpush1.bf16.msra.mxu0 0
    %4969 = vmatprep.subr.bf16.mxu0 0
    %4970 = vmatpush1.bf16.msra.mxu0 0
    %4971 = vmatprep.mubr.bf16.mxu0 0
    %4972 = vmatmul.mubr.bf16.gmra.mrb[0].mxu0 %v4837
    %v4973 = vpop.f32.mrb[0].mxu0
    %v4974 = vadd.f32 0.0, %v4973
    %v4975 = vpop.f32.mrb[0].mxu0
    %v4976 = vpop.f32.mrb[0].mxu0
    %v4977 = vadd.f32 0.0, %v4976
    %v4978 = vpop.f32.mrb[0].mxu0
    %4979 = vmatprep.mubr.bf16.mxu0 0
    %4980 = vmatmul.mubr.bf16.gmra.mrb[0].mxu0 %v4838
    %v4981 = vpop.f32.mrb[0].mxu0
    %v4982 = vadd.f32 0.0, %v4981
    %v4983 = vpop.f32.mrb[0].mxu0
    %v4984 = vpop.f32.mrb[0].mxu0
    %v4985 = vadd.f32 0.0, %v4984
    %v4986 = vpop.f32.mrb[0].mxu0
    %4987 = vmatprep.mubr.bf16.mxu0 0
    %4988 = vmatmul.mubr.bf16.gmra.mrb[0].mxu0 %v4839
    %v4989 = vpop.f32.mrb[0].mxu0
    %v4990 = vadd.f32 0.0, %v4989
    %v4991 = vpop.f32.mrb[0].mxu0
    %v4992 = vpop.f32.mrb[0].mxu0
    %v4993 = vadd.f32 0.0, %v4992
    %v4994 = vpop.f32.mrb[0].mxu0
    %4995 = vmatprep.mubr.bf16.mxu0 0
    %4996 = vmatmul.mubr.bf16.gmra.mrb[0].mxu0 %v4840
    %v4997 = vpop.f32.mrb[0].mxu0
    %v4998 = vadd.f32 0.0, %v4997
    %v4999 = vpop.f32.mrb[0].mxu0
    %v5000 = vpop.f32.mrb[0].mxu0
    %v5001 = vadd.f32 0.0, %v5000
    %v5002 = vpop.f32.mrb[0].mxu0
    %5003 = vmatprep.mubr.bf16.mxu0 0
    %5004 = vmatmul.mubr.bf16.gmra.mrb[0].mxu0 %v4841
    %v5005 = vpop.f32.mrb[0].mxu0
    %v5006 = vadd.f32 0.0, %v5005
    %v5007 = vpop.f32.mrb[0].mxu0
    %v5008 = vpop.f32.mrb[0].mxu0
    %v5009 = vadd.f32 0.0, %v5008
    %v5010 = vpop.f32.mrb[0].mxu0
    %5011 = vmatprep.mubr.bf16.mxu0 0
    %5012 = vmatmul.mubr.bf16.gmra.mrb[0].mxu0 %v4842
    %v5013 = vpop.f32.mrb[0].mxu0
    %v5014 = vadd.f32 0.0, %v5013
    %v5015 = vpop.f32.mrb[0].mxu0
    %v5016 = vpop.f32.mrb[0].mxu0
    %v5017 = vadd.f32 0.0, %v5016
    %v5018 = vpop.f32.mrb[0].mxu0
    %5019 = vmatprep.mubr.bf16.mxu0 0
    %5020 = vmatmul.mubr.bf16.gmra.mrb[0].mxu0 %v4843
    %v5021 = vpop.f32.mrb[0].mxu0
    %v5022 = vadd.f32 0.0, %v5021
    %v5023 = vpop.f32.mrb[0].mxu0
    %v5024 = vpop.f32.mrb[0].mxu0
    %v5025 = vadd.f32 0.0, %v5024
    %v5026 = vpop.f32.mrb[0].mxu0
    %5027 = vmatprep.mubr.bf16.mxu0 0
    %5028 = vmatmul.mubr.bf16.gmra.mrb[0].mxu0 %v4844
    %v5029 = vpop.f32.mrb[0].mxu0
    %v5030 = vadd.f32 0.0, %v5029
    %v5031 = vpop.f32.mrb[0].mxu0
    %v5032 = vpop.f32.mrb[0].mxu0
    %v5033 = vadd.f32 0.0, %v5032
    %v5034 = vpop.f32.mrb[0].mxu0
    %5035 = vmatprep.mubr.bf16.mxu0 0
    %5036 = vmatmul.mubr.bf16.gmra.mrb[0].mxu0 %v4845
    %v5037 = vpop.f32.mrb[0].mxu0
    %v5038 = vadd.f32 0.0, %v5037
    %v5039 = vpop.f32.mrb[0].mxu0
    %v5040 = vpop.f32.mrb[0].mxu0
    %v5041 = vadd.f32 0.0, %v5040
    %v5042 = vpop.f32.mrb[0].mxu0
    %5043 = vmatprep.mubr.bf16.mxu0 0
    %5044 = vmatmul.mubr.bf16.gmra.mrb[0].mxu0 %v4846
    %v5045 = vpop.f32.mrb[0].mxu0
    %v5046 = vadd.f32 0.0, %v5045
    %v5047 = vpop.f32.mrb[0].mxu0
    %v5048 = vpop.f32.mrb[0].mxu0
    %v5049 = vadd.f32 0.0, %v5048
    %v5050 = vpop.f32.mrb[0].mxu0
    %5051 = vmatprep.mubr.bf16.mxu0 0
    %5052 = vmatmul.mubr.bf16.gmra.mrb[0].mxu0 %v4847
    %v5053 = vpop.f32.mrb[0].mxu0
    %v5054 = vadd.f32 0.0, %v5053
    %v5055 = vpop.f32.mrb[0].mxu0
    %v5056 = vpop.f32.mrb[0].mxu0
    %v5057 = vadd.f32 0.0, %v5056
    %v5058 = vpop.f32.mrb[0].mxu0
    %5059 = vmatprep.mubr.bf16.mxu0 0
    %5060 = vmatmul.mubr.bf16.gmra.mrb[0].mxu0 %v4848
    %v5061 = vpop.f32.mrb[0].mxu0
    %v5062 = vadd.f32 0.0, %v5061
    %v5063 = vpop.f32.mrb[0].mxu0
    %v5064 = vpop.f32.mrb[0].mxu0
    %v5065 = vadd.f32 0.0, %v5064
    %v5066 = vpop.f32.mrb[0].mxu0
    %5067 = vmatprep.mubr.bf16.mxu0 0
    %5068 = vmatmul.mubr.bf16.gmra.mrb[0].mxu0 %v4849
    %v5069 = vpop.f32.mrb[0].mxu0
    %v5070 = vadd.f32 0.0, %v5069
    %v5071 = vpop.f32.mrb[0].mxu0
    %v5072 = vpop.f32.mrb[0].mxu0
    %v5073 = vadd.f32 0.0, %v5072
    %v5074 = vpop.f32.mrb[0].mxu0
    %5075 = vmatprep.mubr.bf16.mxu0 0
    %5076 = vmatmul.mubr.bf16.gmra.mrb[0].mxu0 %v4850
    %v5077 = vpop.f32.mrb[0].mxu0
    %v5078 = vadd.f32 0.0, %v5077
    %v5079 = vpop.f32.mrb[0].mxu0
    %v5080 = vpop.f32.mrb[0].mxu0
    %v5081 = vadd.f32 0.0, %v5080
    %v5082 = vpop.f32.mrb[0].mxu0
    %5083 = vmatprep.mubr.bf16.mxu0 0
    %5084 = vmatmul.mubr.bf16.gmra.mrb[0].mxu0 %v4851
    %v5085 = vpop.f32.mrb[0].mxu0
    %v5086 = vadd.f32 0.0, %v5085
    %v5087 = vpop.f32.mrb[0].mxu0
    %v5088 = vpop.f32.mrb[0].mxu0
    %v5089 = vadd.f32 0.0, %v5088
    %v5090 = vpop.f32.mrb[0].mxu0
    %5091 = vmatprep.mubr.bf16.mxu0 0
    %5092 = vmatmul.mubr.bf16.gmra.mrb[0].mxu0 %v4852
    %v5093 = vpop.f32.mrb[0].mxu0
    %v5094 = vadd.f32 0.0, %v5093
    %v5095 = vpop.f32.mrb[0].mxu0
    %v5096 = vpop.f32.mrb[0].mxu0
    %v5097 = vadd.f32 0.0, %v5096
    %v5098 = vpop.f32.mrb[0].mxu0
    %5099 = vmatprep.mubr.bf16.mxu0 0
    %5100 = vmatmul.mubr.bf16.gmra.mrb[0].mxu0 %v4853
    %v5101 = vpop.f32.mrb[0].mxu0
    %v5102 = vadd.f32 0.0, %v5101
    %v5103 = vpop.f32.mrb[0].mxu0
    %v5104 = vpop.f32.mrb[0].mxu0
    %v5105 = vadd.f32 0.0, %v5104
    %v5106 = vpop.f32.mrb[0].mxu0
    %5107 = vmatprep.mubr.bf16.mxu0 0
    %5108 = vmatmul.mubr.bf16.gmra.mrb[0].mxu0 %v4854
    %v5109 = vpop.f32.mrb[0].mxu0
    %v5110 = vadd.f32 0.0, %v5109
    %v5111 = vpop.f32.mrb[0].mxu0
    %v5112 = vpop.f32.mrb[0].mxu0
    %v5113 = vadd.f32 0.0, %v5112
    %v5114 = vpop.f32.mrb[0].mxu0
    %5115 = vmatprep.mubr.bf16.mxu0 0
    %5116 = vmatmul.mubr.bf16.gmra.mrb[0].mxu0 %v4855
    %v5117 = vpop.f32.mrb[0].mxu0
    %v5118 = vadd.f32 0.0, %v5117
    %v5119 = vpop.f32.mrb[0].mxu0
    %v5120 = vpop.f32.mrb[0].mxu0
    %v5121 = vadd.f32 0.0, %v5120
    %v5122 = vpop.f32.mrb[0].mxu0
    %5123 = vmatprep.mubr.bf16.mxu0 0
    %5124 = vmatmul.mubr.bf16.gmra.mrb[0].mxu0 %v4856
    %v5125 = vpop.f32.mrb[0].mxu0
    %v5126 = vadd.f32 0.0, %v5125
    %v5127 = vpop.f32.mrb[0].mxu0
    %v5128 = vpop.f32.mrb[0].mxu0
    %v5129 = vadd.f32 0.0, %v5128
    %v5130 = vpop.f32.mrb[0].mxu0
    %5131 = vmatprep.mubr.bf16.mxu0 0
    %5132 = vmatmul.mubr.bf16.gmra.mrb[0].mxu0 %v4857
    %v5133 = vpop.f32.mrb[0].mxu0
    %v5134 = vadd.f32 0.0, %v5133
    %v5135 = vpop.f32.mrb[0].mxu0
    %v5136 = vpop.f32.mrb[0].mxu0
    %v5137 = vadd.f32 0.0, %v5136
    %v5138 = vpop.f32.mrb[0].mxu0
    %5139 = vmatprep.mubr.bf16.mxu0 0
    %5140 = vmatmul.mubr.bf16.gmra.mrb[0].mxu0 %v4858
    %v5141 = vpop.f32.mrb[0].mxu0
    %v5142 = vadd.f32 0.0, %v5141
    %v5143 = vpop.f32.mrb[0].mxu0
    %v5144 = vpop.f32.mrb[0].mxu0
    %v5145 = vadd.f32 0.0, %v5144
    %v5146 = vpop.f32.mrb[0].mxu0
    %5147 = vmatprep.mubr.bf16.mxu0 0
    %5148 = vmatmul.mubr.bf16.gmra.mrb[0].mxu0 %v4859
    %v5149 = vpop.f32.mrb[0].mxu0
    %v5150 = vadd.f32 0.0, %v5149
    %v5151 = vpop.f32.mrb[0].mxu0
    %v5152 = vpop.f32.mrb[0].mxu0
    %v5153 = vadd.f32 0.0, %v5152
    %v5154 = vpop.f32.mrb[0].mxu0
    %5155 = vmatprep.mubr.bf16.mxu0 0
    %5156 = vmatmul.mubr.bf16.gmra.mrb[0].mxu0 %v4860
    %v5157 = vpop.f32.mrb[0].mxu0
    %v5158 = vadd.f32 0.0, %v5157
    %v5159 = vpop.f32.mrb[0].mxu0
    %v5160 = vpop.f32.mrb[0].mxu0
    %v5161 = vadd.f32 0.0, %v5160
    %v5162 = vpop.f32.mrb[0].mxu0
    %5163 = vmatprep.mubr.bf16.mxu0 0
    %5164 = vmatmul.mubr.bf16.gmra.mrb[0].mxu0 %v4861
    %v5165 = vpop.f32.mrb[0].mxu0
    %v5166 = vadd.f32 0.0, %v5165
    %v5167 = vpop.f32.mrb[0].mxu0
    %v5168 = vpop.f32.mrb[0].mxu0
    %v5169 = vadd.f32 0.0, %v5168
    %v5170 = vpop.f32.mrb[0].mxu0
    %5171 = vmatprep.mubr.bf16.mxu0 0
    %5172 = vmatmul.mubr.bf16.gmra.mrb[0].mxu0 %v4862
    %v5173 = vpop.f32.mrb[0].mxu0
    %v5174 = vadd.f32 0.0, %v5173
    %v5175 = vpop.f32.mrb[0].mxu0
    %v5176 = vpop.f32.mrb[0].mxu0
    %v5177 = vadd.f32 0.0, %v5176
    %v5178 = vpop.f32.mrb[0].mxu0
    %5179 = vmatprep.mubr.bf16.mxu0 0
    %5180 = vmatmul.mubr.bf16.gmra.mrb[0].mxu0 %v4863
    %v5181 = vpop.f32.mrb[0].mxu0
    %v5182 = vadd.f32 0.0, %v5181
    %v5183 = vpop.f32.mrb[0].mxu0
    %v5184 = vpop.f32.mrb[0].mxu0
    %v5185 = vadd.f32 0.0, %v5184
    %v5186 = vpop.f32.mrb[0].mxu0
    %5187 = vdwg.mxu0
    %v5188 = vld [vmem:[#allocation2] sm:$0xff]
    %v5189 = vld [vmem:[#allocation2 + $0x8] sm:$0xff]
    %v5190 = vld [vmem:[#allocation2 + $0x10] sm:$0xff]
    %v5191 = vld [vmem:[#allocation2 + $0x18] sm:$0xff]
    %v5192 = vld [vmem:[#allocation2 + $0x20] sm:$0xff]
    %v5193 = vld [vmem:[#allocation2 + $0x28] sm:$0xff]
    %v5194 = vld [vmem:[#allocation2 + $0x30] sm:$0xff]
    %v5195 = vld [vmem:[#allocation2 + $0x38] sm:$0xff]
    %v5196 = vld [vmem:[#allocation2 + $0x40] sm:$0xff]
    %v5197 = vld [vmem:[#allocation2 + $0x48] sm:$0xff]
    %v5198 = vld [vmem:[#allocation2 + $0x50] sm:$0xff]
    %v5199 = vld [vmem:[#allocation2 + $0x58] sm:$0xff]
    %v5200 = vld [vmem:[#allocation2 + $0x60] sm:$0xff]
    %v5201 = vld [vmem:[#allocation2 + $0x68] sm:$0xff]
    %v5202 = vld [vmem:[#allocation2 + $0x70] sm:$0xff]
    %v5203 = vld [vmem:[#allocation2 + $0x78] sm:$0xff]
    %v5204 = vld [vmem:[#allocation2 + $0x80] sm:$0xff]
    %v5205 = vld [vmem:[#allocation2 + $0x88] sm:$0xff]
    %v5206 = vld [vmem:[#allocation2 + $0x90] sm:$0xff]
    %v5207 = vld [vmem:[#allocation2 + $0x98] sm:$0xff]
    %v5208 = vld [vmem:[#allocation2 + $0xa0] sm:$0xff]
    %v5209 = vld [vmem:[#allocation2 + $0xa8] sm:$0xff]
    %v5210 = vld [vmem:[#allocation2 + $0xb0] sm:$0xff]
    %v5211 = vld [vmem:[#allocation2 + $0xb8] sm:$0xff]
    %v5212 = vld [vmem:[#allocation2 + $0xc0] sm:$0xff]
    %v5213 = vld [vmem:[#allocation2 + $0xc8] sm:$0xff]
    %v5214 = vld [vmem:[#allocation2 + $0xd0] sm:$0xff]
    %v5215 = vld [vmem:[#allocation2 + $0xd8] sm:$0xff]
    %v5216 = vld [vmem:[#allocation2 + $0xe0] sm:$0xff]
    %v5217 = vld [vmem:[#allocation2 + $0xe8] sm:$0xff]
    %v5218 = vld [vmem:[#allocation2 + $0xf0] sm:$0xff]
    %v5219 = vld [vmem:[#allocation2 + $0xf8] sm:$0xff]
    %v5220 = vld [vmem:[#allocation2 + $0x100] sm:$0xff]
    %v5221 = vld [vmem:[#allocation2 + $0x108] sm:$0xff]
    %v5222 = vld [vmem:[#allocation2 + $0x110] sm:$0xff]
    %v5223 = vld [vmem:[#allocation2 + $0x118] sm:$0xff]
    %v5224 = vld [vmem:[#allocation2 + $0x120] sm:$0xff]
    %v5225 = vld [vmem:[#allocation2 + $0x128] sm:$0xff]
    %v5226 = vld [vmem:[#allocation2 + $0x130] sm:$0xff]
    %v5227 = vld [vmem:[#allocation2 + $0x138] sm:$0xff]
    %v5228 = vld [vmem:[#allocation2 + $0x140] sm:$0xff]
    %v5229 = vld [vmem:[#allocation2 + $0x148] sm:$0xff]
    %v5230 = vld [vmem:[#allocation2 + $0x150] sm:$0xff]
    %v5231 = vld [vmem:[#allocation2 + $0x158] sm:$0xff]
    %v5232 = vld [vmem:[#allocation2 + $0x160] sm:$0xff]
    %v5233 = vld [vmem:[#allocation2 + $0x168] sm:$0xff]
    %v5234 = vld [vmem:[#allocation2 + $0x170] sm:$0xff]
    %v5235 = vld [vmem:[#allocation2 + $0x178] sm:$0xff]
    %v5236 = vld [vmem:[#allocation2 + $0x180] sm:$0xff]
    %v5237 = vld [vmem:[#allocation2 + $0x188] sm:$0xff]
    %v5238 = vld [vmem:[#allocation2 + $0x190] sm:$0xff]
    %v5239 = vld [vmem:[#allocation2 + $0x198] sm:$0xff]
    %v5240 = vld [vmem:[#allocation2 + $0x1a0] sm:$0xff]
    %v5241 = vld [vmem:[#allocation2 + $0x1a8] sm:$0xff]
    %v5242 = vadd.f32 %v5188, %v4974
    %v5243 = vadd.f32 %v5189, %v4977
    %v5244 = vadd.f32 %v5190, %v4982
    %v5245 = vadd.f32 %v5191, %v4985
    %v5246 = vadd.f32 %v5192, %v4990
    %v5247 = vadd.f32 %v5193, %v4993
    %v5248 = vadd.f32 %v5194, %v4998
    %v5249 = vadd.f32 %v5195, %v5001
    %v5250 = vadd.f32 %v5196, %v5006
    %v5251 = vadd.f32 %v5197, %v5009
    %v5252 = vadd.f32 %v5198, %v5014
    %v5253 = vadd.f32 %v5199, %v5017
    %v5254 = vadd.f32 %v5200, %v5022
    %v5255 = vadd.f32 %v5201, %v5025
    %v5256 = vadd.f32 %v5202, %v5030
    %v5257 = vadd.f32 %v5203, %v5033
    %v5258 = vadd.f32 %v5204, %v5038
    %v5259 = vadd.f32 %v5205, %v5041
    %v5260 = vadd.f32 %v5206, %v5046
    %v5261 = vadd.f32 %v5207, %v5049
    %v5262 = vadd.f32 %v5208, %v5054
    %v5263 = vadd.f32 %v5209, %v5057
    %v5264 = vadd.f32 %v5210, %v5062
    %v5265 = vadd.f32 %v5211, %v5065
    %v5266 = vadd.f32 %v5212, %v5070
    %v5267 = vadd.f32 %v5213, %v5073
    %v5268 = vadd.f32 %v5214, %v5078
    %v5269 = vadd.f32 %v5215, %v5081
    %v5270 = vadd.f32 %v5216, %v5086
    %v5271 = vadd.f32 %v5217, %v5089
    %v5272 = vadd.f32 %v5218, %v5094
    %v5273 = vadd.f32 %v5219, %v5097
    %v5274 = vadd.f32 %v5220, %v5102
    %v5275 = vadd.f32 %v5221, %v5105
    %v5276 = vadd.f32 %v5222, %v5110
    %v5277 = vadd.f32 %v5223, %v5113
    %v5278 = vadd.f32 %v5224, %v5118
    %v5279 = vadd.f32 %v5225, %v5121
    %v5280 = vadd.f32 %v5226, %v5126
    %v5281 = vadd.f32 %v5227, %v5129
    %v5282 = vadd.f32 %v5228, %v5134
    %v5283 = vadd.f32 %v5229, %v5137
    %v5284 = vadd.f32 %v5230, %v5142
    %v5285 = vadd.f32 %v5231, %v5145
    %v5286 = vadd.f32 %v5232, %v5150
    %v5287 = vadd.f32 %v5233, %v5153
    %v5288 = vadd.f32 %v5234, %v5158
    %v5289 = vadd.f32 %v5235, %v5161
    %v5290 = vadd.f32 %v5236, %v5166
    %v5291 = vadd.f32 %v5237, %v5169
    %v5292 = vadd.f32 %v5238, %v5174
    %v5293 = vadd.f32 %v5239, %v5177
    %v5294 = vadd.f32 %v5240, %v5182
    %v5295 = vadd.f32 %v5241, %v5185
    %5296 = vst [vmem:[#allocation2] sm:$0xff] %v5242
    %5297 = vst [vmem:[#allocation2 + $0x8] sm:$0xff] %v5243
    %5298 = vst [vmem:[#allocation2 + $0x10] sm:$0xff] %v5244
    %5299 = vst [vmem:[#allocation2 + $0x18] sm:$0xff] %v5245
    %5300 = vst [vmem:[#allocation2 + $0x20] sm:$0xff] %v5246
    %5301 = vst [vmem:[#allocation2 + $0x28] sm:$0xff] %v5247
    %5302 = vst [vmem:[#allocation2 + $0x30] sm:$0xff] %v5248
    %5303 = vst [vmem:[#allocation2 + $0x38] sm:$0xff] %v5249
    %5304 = vst [vmem:[#allocation2 + $0x40] sm:$0xff] %v5250
    %5305 = vst [vmem:[#allocation2 + $0x48] sm:$0xff] %v5251
    %5306 = vst [vmem:[#allocation2 + $0x50] sm:$0xff] %v5252
    %5307 = vst [vmem:[#allocation2 + $0x58] sm:$0xff] %v5253
    %5308 = vst [vmem:[#allocation2 + $0x60] sm:$0xff] %v5254
    %5309 = vst [vmem:[#allocation2 + $0x68] sm:$0xff] %v5255
    %5310 = vst [vmem:[#allocation2 + $0x70] sm:$0xff] %v5256
    %5311 = vst [vmem:[#allocation2 + $0x78] sm:$0xff] %v5257
    %5312 = vst [vmem:[#allocation2 + $0x80] sm:$0xff] %v5258
    %5313 = vst [vmem:[#allocation2 + $0x88] sm:$0xff] %v5259
    %5314 = vst [vmem:[#allocation2 + $0x90] sm:$0xff] %v5260
    %5315 = vst [vmem:[#allocation2 + $0x98] sm:$0xff] %v5261
    %5316 = vst [vmem:[#allocation2 + $0xa0] sm:$0xff] %v5262
    %5317 = vst [vmem:[#allocation2 + $0xa8] sm:$0xff] %v5263
    %5318 = vst [vmem:[#allocation2 + $0xb0] sm:$0xff] %v5264
    %5319 = vst [vmem:[#allocation2 + $0xb8] sm:$0xff] %v5265
    %5320 = vst [vmem:[#allocation2 + $0xc0] sm:$0xff] %v5266
    %5321 = vst [vmem:[#allocation2 + $0xc8] sm:$0xff] %v5267
    %5322 = vst [vmem:[#allocation2 + $0xd0] sm:$0xff] %v5268
    %5323 = vst [vmem:[#allocation2 + $0xd8] sm:$0xff] %v5269
    %5324 = vst [vmem:[#allocation2 + $0xe0] sm:$0xff] %v5270
    %5325 = vst [vmem:[#allocation2 + $0xe8] sm:$0xff] %v5271
    %5326 = vst [vmem:[#allocation2 + $0xf0] sm:$0xff] %v5272
    %5327 = vst [vmem:[#allocation2 + $0xf8] sm:$0xff] %v5273
    %5328 = vst [vmem:[#allocation2 + $0x100] sm:$0xff] %v5274
    %5329 = vst [vmem:[#allocation2 + $0x108] sm:$0xff] %v5275
    %5330 = vst [vmem:[#allocation2 + $0x110] sm:$0xff] %v5276
    %5331 = vst [vmem:[#allocation2 + $0x118] sm:$0xff] %v5277
    %5332 = vst [vmem:[#allocation2 + $0x120] sm:$0xff] %v5278
    %5333 = vst [vmem:[#allocation2 + $0x128] sm:$0xff] %v5279
    %5334 = vst [vmem:[#allocation2 + $0x130] sm:$0xff] %v5280
    %5335 = vst [vmem:[#allocation2 + $0x138] sm:$0xff] %v5281
    %5336 = vst [vmem:[#allocation2 + $0x140] sm:$0xff] %v5282
    %5337 = vst [vmem:[#allocation2 + $0x148] sm:$0xff] %v5283
    %5338 = vst [vmem:[#allocation2 + $0x150] sm:$0xff] %v5284
    %5339 = vst [vmem:[#allocation2 + $0x158] sm:$0xff] %v5285
    %5340 = vst [vmem:[#allocation2 + $0x160] sm:$0xff] %v5286
    %5341 = vst [vmem:[#allocation2 + $0x168] sm:$0xff] %v5287
    %5342 = vst [vmem:[#allocation2 + $0x170] sm:$0xff] %v5288
    %5343 = vst [vmem:[#allocation2 + $0x178] sm:$0xff] %v5289
    %5344 = vst [vmem:[#allocation2 + $0x180] sm:$0xff] %v5290
    %5345 = vst [vmem:[#allocation2 + $0x188] sm:$0xff] %v5291
    %5346 = vst [vmem:[#allocation2 + $0x190] sm:$0xff] %v5292
    %5347 = vst [vmem:[#allocation2 + $0x198] sm:$0xff] %v5293
    %5348 = vst [vmem:[#allocation2 + $0x1a0] sm:$0xff] %v5294
    %5349 = vst [vmem:[#allocation2 + $0x1a8] sm:$0xff] %v5295
    %v5350 = vld [vmem:[#allocation3 + $0x18] sm:$0xf]
    %v5351 = vld [vmem:[#allocation3 + $0x1c] sm:$0xf]
    %v5352 = vld [vmem:[#allocation3 + $0x20] sm:$0xf]
    %v5353 = vld [vmem:[#allocation3 + $0x24] sm:$0xf]
    %v5354 = vld [vmem:[#allocation3 + $0x28] sm:$0xf]
    %v5355 = vld [vmem:[#allocation3 + $0x2c] sm:$0xf]
    %v5356 = vld [vmem:[#allocation3 + $0x30] sm:$0xf]
    %v5357 = vld [vmem:[#allocation3 + $0x34] sm:$0xf]
    %v5358 = vld [vmem:[#allocation3 + $0x38] sm:$0xf]
    %v5359 = vld [vmem:[#allocation3 + $0x3c] sm:$0xf]
    %v5360 = vld [vmem:[#allocation3 + $0x40] sm:$0xf]
    %v5361 = vld [vmem:[#allocation3 + $0x44] sm:$0xf]
    %v5362 = vld [vmem:[#allocation3 + $0x48] sm:$0xf]
    %v5363 = vld [vmem:[#allocation3 + $0x4c] sm:$0xf]
    %v5364 = vld [vmem:[#allocation3 + $0x50] sm:$0xf]
    %v5365 = vld [vmem:[#allocation3 + $0x54] sm:$0xf]
    %v5366 = vld [vmem:[#allocation3 + $0x58] sm:$0xf]
    %v5367 = vld [vmem:[#allocation3 + $0x5c] sm:$0xf]
    %v5368 = vld [vmem:[#allocation3 + $0x60] sm:$0xf]
    %v5369 = vld [vmem:[#allocation3 + $0x64] sm:$0xf]
    %v5370 = vld [vmem:[#allocation3 + $0x68] sm:$0xf]
    %v5371 = vld [vmem:[#allocation3 + $0x6c] sm:$0xf]
    %v5372 = vld [vmem:[#allocation3 + $0x70] sm:$0xf]
    %v5373 = vld [vmem:[#allocation3 + $0x74] sm:$0xf]
    %v5374 = vld [vmem:[#allocation3 + $0x78] sm:$0xf]
    %v5375 = vld [vmem:[#allocation3 + $0x7c] sm:$0xf]
    %v5376 = vld [vmem:[#allocation3 + $0x80] sm:$0xf]
    %v5377 = vld [vmem:[#allocation3 + $0x84] sm:$0xf]
    %v5378 = vld [vmem:[#allocation3 + $0x88] sm:$0xf]
    %v5379 = vld [vmem:[#allocation3 + $0x8c] sm:$0xf]
    %v5380 = vld [vmem:[#allocation3 + $0x90] sm:$0xf]
    %v5381 = vld [vmem:[#allocation3 + $0x94] sm:$0xf]
    %v5382 = vld [vmem:[#allocation3 + $0x98] sm:$0xf]
    %v5383 = vld [vmem:[#allocation3 + $0x9c] sm:$0xf]
    %v5384 = vld [vmem:[#allocation3 + $0xa0] sm:$0xf]
    %v5385 = vld [vmem:[#allocation3 + $0xa4] sm:$0xf]
    %v5386 = vld [vmem:[#allocation3 + $0xa8] sm:$0xf]
    %v5387 = vld [vmem:[#allocation3 + $0xac] sm:$0xf]
    %v5388 = vld [vmem:[#allocation3 + $0xb0] sm:$0xf]
    %v5389 = vld [vmem:[#allocation3 + $0xb4] sm:$0xf]
    %v5390 = vld [vmem:[#allocation3 + $0xb8] sm:$0xf]
    %v5391 = vld [vmem:[#allocation3 + $0xbc] sm:$0xf]
    %v5392 = vld [vmem:[#allocation3 + $0xc0] sm:$0xf]
    %v5393 = vld [vmem:[#allocation3 + $0xc4] sm:$0xf]
    %v5394 = vld [vmem:[#allocation3 + $0xc8] sm:$0xf]
    %v5395 = vld [vmem:[#allocation3 + $0xcc] sm:$0xf]
    %v5396 = vld [vmem:[#allocation3 + $0xd0] sm:$0xf]
    %v5397 = vld [vmem:[#allocation3 + $0xd4] sm:$0xf]
    %v5398 = vld [vmem:[#allocation3 + $0xd8] sm:$0xf]
    %v5399 = vld [vmem:[#allocation3 + $0xdc] sm:$0xf]
    %v5400 = vld [vmem:[#allocation3 + $0xe0] sm:$0xf]
    %v5401 = vld [vmem:[#allocation3 + $0xe4] sm:$0xf]
    %v5402 = vld [vmem:[#allocation3 + $0xe8] sm:$0xf]
    %v5403 = vld [vmem:[#allocation3 + $0xec] sm:$0xf]
    %v5404 = vld [vmem:[#allocation3 + $0xf0] sm:$0x1]
    %s5405 = scalar_lea.vmem [#allocation6], 448
    %v5406 = vld [vmem:[%s5405] sm:$0xf]
    %v5407 = vld [vmem:[%s5405 + $0x4] sm:$0xf]
    %v5408 = vld [vmem:[%s5405 + $0x8] sm:$0xf]
    %v5409 = vld [vmem:[%s5405 + $0xc] sm:$0xf]
    %v5410 = vld [vmem:[%s5405 + $0x10] sm:$0xf]
    %v5411 = vld [vmem:[%s5405 + $0x14] sm:$0xf]
    %v5412 = vld [vmem:[%s5405 + $0x18] sm:$0xf]
    %v5413 = vld [vmem:[%s5405 + $0x1c] sm:$0xf]
    %v5414 = vld [vmem:[%s5405 + $0x20] sm:$0xf]
    %v5415 = vld [vmem:[%s5405 + $0x24] sm:$0xf]
    %v5416 = vld [vmem:[%s5405 + $0x28] sm:$0xf]
    %v5417 = vld [vmem:[%s5405 + $0x2c] sm:$0xf]
    %v5418 = vld [vmem:[%s5405 + $0x30] sm:$0xf]
    %v5419 = vld [vmem:[%s5405 + $0x34] sm:$0xf]
    %v5420 = vld [vmem:[%s5405 + $0x38] sm:$0xf]
    %v5421 = vld [vmem:[%s5405 + $0x3c] sm:$0xf]
    %v5477 = vunpack.c.l.b16 %v5350
    %v5478 = vunpack.c.l.b16 %v5351
    %v5479 = vunpack.c.l.b16 %v5352
    %v5480 = vunpack.c.l.b16 %v5353
    %v5481 = vunpack.c.l.b16 %v5354
    %v5482 = vunpack.c.l.b16 %v5355
    %v5483 = vunpack.c.l.b16 %v5356
    %v5484 = vunpack.c.l.b16 %v5357
    %v5485 = vunpack.c.l.b16 %v5358
    %v5486 = vunpack.c.l.b16 %v5359
    %v5487 = vunpack.c.l.b16 %v5360
    %v5488 = vunpack.c.l.b16 %v5361
    %v5489 = vunpack.c.l.b16 %v5362
    %v5490 = vunpack.c.l.b16 %v5363
    %v5491 = vunpack.c.l.b16 %v5364
    %v5492 = vunpack.c.l.b16 %v5365
    %v5493 = vunpack.c.l.b16 %v5366
    %v5494 = vunpack.c.l.b16 %v5367
    %v5495 = vunpack.c.l.b16 %v5368
    %v5496 = vunpack.c.l.b16 %v5369
    %v5497 = vunpack.c.l.b16 %v5370
    %v5498 = vunpack.c.l.b16 %v5371
    %v5499 = vunpack.c.l.b16 %v5372
    %v5500 = vunpack.c.l.b16 %v5373
    %v5501 = vunpack.c.l.b16 %v5374
    %v5502 = vunpack.c.l.b16 %v5375
    %v5503 = vunpack.c.l.b16 %v5376
    %v5504 = vunpack.c.l.b16 %v5377
    %v5505 = vunpack.c.l.b16 %v5378
    %v5506 = vunpack.c.l.b16 %v5379
    %v5507 = vunpack.c.l.b16 %v5380
    %v5508 = vunpack.c.l.b16 %v5381
    %v5509 = vunpack.c.l.b16 %v5382
    %v5510 = vunpack.c.l.b16 %v5383
    %v5511 = vunpack.c.l.b16 %v5384
    %v5512 = vunpack.c.l.b16 %v5385
    %v5513 = vunpack.c.l.b16 %v5386
    %v5514 = vunpack.c.l.b16 %v5387
    %v5515 = vunpack.c.l.b16 %v5388
    %v5516 = vunpack.c.l.b16 %v5389
    %v5517 = vunpack.c.l.b16 %v5390
    %v5518 = vunpack.c.l.b16 %v5391
    %v5519 = vunpack.c.l.b16 %v5392
    %v5520 = vunpack.c.l.b16 %v5393
    %v5521 = vunpack.c.l.b16 %v5394
    %v5522 = vunpack.c.l.b16 %v5395
    %v5523 = vunpack.c.l.b16 %v5396
    %v5524 = vunpack.c.l.b16 %v5397
    %v5525 = vunpack.c.l.b16 %v5398
    %v5526 = vunpack.c.l.b16 %v5399
    %v5527 = vunpack.c.l.b16 %v5400
    %v5528 = vunpack.c.l.b16 %v5401
    %v5529 = vunpack.c.l.b16 %v5402
    %v5530 = vunpack.c.l.b16 %v5403
    %v5531 = vunpack.c.l.b16 %v5404
    %v5532 = vpack.c.b16 %v5478, %v5477
    %v5533 = vpack.c.b16 %v5480, %v5479
    %v5534 = vpack.c.b16 %v5482, %v5481
    %v5535 = vpack.c.b16 %v5484, %v5483
    %v5536 = vpack.c.b16 %v5486, %v5485
    %v5537 = vpack.c.b16 %v5488, %v5487
    %v5538 = vpack.c.b16 %v5490, %v5489
    %v5539 = vpack.c.b16 %v5492, %v5491
    %v5540 = vpack.c.b16 %v5494, %v5493
    %v5541 = vpack.c.b16 %v5496, %v5495
    %v5542 = vpack.c.b16 %v5498, %v5497
    %v5543 = vpack.c.b16 %v5500, %v5499
    %v5544 = vpack.c.b16 %v5502, %v5501
    %v5545 = vpack.c.b16 %v5504, %v5503
    %v5546 = vpack.c.b16 %v5506, %v5505
    %v5547 = vpack.c.b16 %v5508, %v5507
    %v5548 = vpack.c.b16 %v5510, %v5509
    %v5549 = vpack.c.b16 %v5512, %v5511
    %v5550 = vpack.c.b16 %v5514, %v5513
    %v5551 = vpack.c.b16 %v5516, %v5515
    %v5552 = vpack.c.b16 %v5518, %v5517
    %v5553 = vpack.c.b16 %v5520, %v5519
    %v5554 = vpack.c.b16 %v5522, %v5521
    %v5555 = vpack.c.b16 %v5524, %v5523
    %v5556 = vpack.c.b16 %v5526, %v5525
    %v5557 = vpack.c.b16 %v5528, %v5527
    %v5558 = vpack.c.b16 %v5530, %v5529
    %v5559 = vpack.c.b16 %v5531, %v5531
    %v5561 = vshrl.u32 %v5532, 16
    %v5563 = vshll.u32 %v5532, 16
    %v5565 = vrot.slane %v5563, 1
    %v5566 = vor.u32 %v5561, %v5565
    %v5568 = vshll.u32 %v5533, 16
    %v5570 = vrot.slane %v5568, 1
    %v5571 = vsel %vm840, %v5566, %v5570
    %v5572 = vshrl.u32 %v5533, 16
    %v5574 = vor.u32 %v5572, %v5570
    %v5576 = vshll.u32 %v5534, 16
    %v5578 = vrot.slane %v5576, 1
    %v5579 = vsel %vm840, %v5574, %v5578
    %v5580 = vshrl.u32 %v5534, 16
    %v5582 = vor.u32 %v5580, %v5578
    %v5584 = vshll.u32 %v5535, 16
    %v5586 = vrot.slane %v5584, 1
    %v5587 = vsel %vm840, %v5582, %v5586
    %v5588 = vshrl.u32 %v5535, 16
    %v5590 = vor.u32 %v5588, %v5586
    %v5592 = vshll.u32 %v5536, 16
    %v5594 = vrot.slane %v5592, 1
    %v5595 = vsel %vm840, %v5590, %v5594
    %v5596 = vshrl.u32 %v5536, 16
    %v5598 = vor.u32 %v5596, %v5594
    %v5600 = vshll.u32 %v5537, 16
    %v5602 = vrot.slane %v5600, 1
    %v5603 = vsel %vm840, %v5598, %v5602
    %v5604 = vshrl.u32 %v5537, 16
    %v5606 = vor.u32 %v5604, %v5602
    %v5608 = vshll.u32 %v5538, 16
    %v5610 = vrot.slane %v5608, 1
    %v5611 = vsel %vm840, %v5606, %v5610
    %v5612 = vshrl.u32 %v5538, 16
    %v5614 = vor.u32 %v5612, %v5610
    %v5616 = vshll.u32 %v5539, 16
    %v5618 = vrot.slane %v5616, 1
    %v5619 = vsel %vm840, %v5614, %v5618
    %v5620 = vshrl.u32 %v5539, 16
    %v5622 = vor.u32 %v5620, %v5618
    %v5624 = vshll.u32 %v5540, 16
    %v5626 = vrot.slane %v5624, 1
    %v5627 = vsel %vm840, %v5622, %v5626
    %v5628 = vshrl.u32 %v5540, 16
    %v5630 = vor.u32 %v5628, %v5626
    %v5632 = vshll.u32 %v5541, 16
    %v5634 = vrot.slane %v5632, 1
    %v5635 = vsel %vm840, %v5630, %v5634
    %v5636 = vshrl.u32 %v5541, 16
    %v5638 = vor.u32 %v5636, %v5634
    %v5640 = vshll.u32 %v5542, 16
    %v5642 = vrot.slane %v5640, 1
    %v5643 = vsel %vm840, %v5638, %v5642
    %v5644 = vshrl.u32 %v5542, 16
    %v5646 = vor.u32 %v5644, %v5642
    %v5648 = vshll.u32 %v5543, 16
    %v5650 = vrot.slane %v5648, 1
    %v5651 = vsel %vm840, %v5646, %v5650
    %v5652 = vshrl.u32 %v5543, 16
    %v5654 = vor.u32 %v5652, %v5650
    %v5656 = vshll.u32 %v5544, 16
    %v5658 = vrot.slane %v5656, 1
    %v5659 = vsel %vm840, %v5654, %v5658
    %v5660 = vshrl.u32 %v5544, 16
    %v5662 = vor.u32 %v5660, %v5658
    %v5664 = vshll.u32 %v5545, 16
    %v5666 = vrot.slane %v5664, 1
    %v5667 = vsel %vm840, %v5662, %v5666
    %v5668 = vshrl.u32 %v5545, 16
    %v5670 = vor.u32 %v5668, %v5666
    %v5672 = vshll.u32 %v5546, 16
    %v5674 = vrot.slane %v5672, 1
    %v5675 = vsel %vm840, %v5670, %v5674
    %v5676 = vshrl.u32 %v5546, 16
    %v5678 = vor.u32 %v5676, %v5674
    %v5680 = vshll.u32 %v5547, 16
    %v5682 = vrot.slane %v5680, 1
    %v5683 = vsel %vm840, %v5678, %v5682
    %v5684 = vshrl.u32 %v5547, 16
    %v5686 = vor.u32 %v5684, %v5682
    %v5688 = vshll.u32 %v5548, 16
    %v5690 = vrot.slane %v5688, 1
    %v5691 = vsel %vm840, %v5686, %v5690
    %v5692 = vshrl.u32 %v5548, 16
    %v5694 = vor.u32 %v5692, %v5690
    %v5696 = vshll.u32 %v5549, 16
    %v5698 = vrot.slane %v5696, 1
    %v5699 = vsel %vm840, %v5694, %v5698
    %v5700 = vshrl.u32 %v5549, 16
    %v5702 = vor.u32 %v5700, %v5698
    %v5704 = vshll.u32 %v5550, 16
    %v5706 = vrot.slane %v5704, 1
    %v5707 = vsel %vm840, %v5702, %v5706
    %v5708 = vshrl.u32 %v5550, 16
    %v5710 = vor.u32 %v5708, %v5706
    %v5712 = vshll.u32 %v5551, 16
    %v5714 = vrot.slane %v5712, 1
    %v5715 = vsel %vm840, %v5710, %v5714
    %v5716 = vshrl.u32 %v5551, 16
    %v5718 = vor.u32 %v5716, %v5714
    %v5720 = vshll.u32 %v5552, 16
    %v5722 = vrot.slane %v5720, 1
    %v5723 = vsel %vm840, %v5718, %v5722
    %v5724 = vshrl.u32 %v5552, 16
    %v5726 = vor.u32 %v5724, %v5722
    %v5728 = vshll.u32 %v5553, 16
    %v5730 = vrot.slane %v5728, 1
    %v5731 = vsel %vm840, %v5726, %v5730
    %v5732 = vshrl.u32 %v5553, 16
    %v5734 = vor.u32 %v5732, %v5730
    %v5736 = vshll.u32 %v5554, 16
    %v5738 = vrot.slane %v5736, 1
    %v5739 = vsel %vm840, %v5734, %v5738
    %v5740 = vshrl.u32 %v5554, 16
    %v5742 = vor.u32 %v5740, %v5738
    %v5744 = vshll.u32 %v5555, 16
    %v5746 = vrot.slane %v5744, 1
    %v5747 = vsel %vm840, %v5742, %v5746
    %v5748 = vshrl.u32 %v5555, 16
    %v5750 = vor.u32 %v5748, %v5746
    %v5752 = vshll.u32 %v5556, 16
    %v5754 = vrot.slane %v5752, 1
    %v5755 = vsel %vm840, %v5750, %v5754
    %v5756 = vshrl.u32 %v5556, 16
    %v5758 = vor.u32 %v5756, %v5754
    %v5760 = vshll.u32 %v5557, 16
    %v5762 = vrot.slane %v5760, 1
    %v5763 = vsel %vm840, %v5758, %v5762
    %v5764 = vshrl.u32 %v5557, 16
    %v5766 = vor.u32 %v5764, %v5762
    %v5768 = vshll.u32 %v5558, 16
    %v5770 = vrot.slane %v5768, 1
    %v5771 = vsel %vm840, %v5766, %v5770
    %v5772 = vshrl.u32 %v5558, 16
    %v5774 = vor.u32 %v5772, %v5770
    %v5776 = vshll.u32 %v5559, 16
    %v5778 = vrot.slane %v5776, 1
    %v5779 = vsel %vm840, %v5774, %v5778
    %v5823 = vunpack.c.l.b16 %v5406
    %v5824 = vunpack.c.l.b16 %v5407
    %v5825 = vunpack.c.l.b16 %v5408
    %v5826 = vunpack.c.l.b16 %v5409
    %v5827 = vunpack.c.l.b16 %v5410
    %v5828 = vunpack.c.l.b16 %v5411
    %v5829 = vunpack.c.l.b16 %v5412
    %v5830 = vunpack.c.l.b16 %v5413
    %v5831 = vunpack.c.l.b16 %v5414
    %v5832 = vunpack.c.l.b16 %v5415
    %v5833 = vunpack.c.l.b16 %v5416
    %v5834 = vunpack.c.l.b16 %v5417
    %v5835 = vunpack.c.l.b16 %v5418
    %v5836 = vunpack.c.l.b16 %v5419
    %v5837 = vunpack.c.l.b16 %v5420
    %v5838 = vunpack.c.l.b16 %v5421
    %v5839 = vpack.c.b16 %v5824, %v5823
    %v5840 = vpack.c.b16 %v5826, %v5825
    %v5841 = vpack.c.b16 %v5828, %v5827
    %v5842 = vpack.c.b16 %v5830, %v5829
    %v5843 = vpack.c.b16 %v5832, %v5831
    %v5844 = vpack.c.b16 %v5834, %v5833
    %v5845 = vpack.c.b16 %v5836, %v5835
    %v5846 = vpack.c.b16 %v5838, %v5837
    %5855 = vmatprep.subr.bf16.mxu0 0
    %5856 = vmatpush1.bf16.msra.mxu0 %v5839
    %5857 = vmatprep.subr.bf16.mxu0 0
    %5858 = vmatpush1.bf16.msra.mxu0 %v5840
    %5859 = vmatprep.subr.bf16.mxu0 0
    %5860 = vmatpush1.bf16.msra.mxu0 %v5841
    %5861 = vmatprep.subr.bf16.mxu0 0
    %5862 = vmatpush1.bf16.msra.mxu0 %v5842
    %5863 = vmatprep.subr.bf16.mxu0 0
    %5864 = vmatpush1.bf16.msra.mxu0 %v5843
    %5865 = vmatprep.subr.bf16.mxu0 0
    %5866 = vmatpush1.bf16.msra.mxu0 %v5844
    %5867 = vmatprep.subr.bf16.mxu0 0
    %5868 = vmatpush1.bf16.msra.mxu0 %v5845
    %5869 = vmatprep.subr.bf16.mxu0 0
    %5870 = vmatpush1.bf16.msra.mxu0 %v5846
    %5871 = vmatprep.subr.bf16.mxu0 0
    %5872 = vmatpush1.bf16.msra.mxu0 0
    %5873 = vmatprep.subr.bf16.mxu0 0
    %5874 = vmatpush1.bf16.msra.mxu0 0
    %5875 = vmatprep.subr.bf16.mxu0 0
    %5876 = vmatpush1.bf16.msra.mxu0 0
    %5877 = vmatprep.subr.bf16.mxu0 0
    %5878 = vmatpush1.bf16.msra.mxu0 0
    %5879 = vmatprep.subr.bf16.mxu0 0
    %5880 = vmatpush1.bf16.msra.mxu0 0
    %5881 = vmatprep.subr.bf16.mxu0 0
    %5882 = vmatpush1.bf16.msra.mxu0 0
    %5883 = vmatprep.subr.bf16.mxu0 0
    %5884 = vmatpush1.bf16.msra.mxu0 0
    %5885 = vmatprep.subr.bf16.mxu0 0
    %5886 = vmatpush1.bf16.msra.mxu0 0
    %5887 = vmatprep.mubr.bf16.mxu0 0
    %5888 = vmatmul.mubr.bf16.gmra.mrb[0].mxu0 %v5571
    %v5889 = vpop.f32.mrb[0].mxu0
    %v5890 = vadd.f32 0.0, %v5889
    %v5891 = vpop.f32.mrb[0].mxu0
    %v5892 = vpop.f32.mrb[0].mxu0
    %v5893 = vadd.f32 0.0, %v5892
    %v5894 = vpop.f32.mrb[0].mxu0
    %5895 = vmatprep.mubr.bf16.mxu0 0
    %5896 = vmatmul.mubr.bf16.gmra.mrb[0].mxu0 %v5579
    %v5897 = vpop.f32.mrb[0].mxu0
    %v5898 = vadd.f32 0.0, %v5897
    %v5899 = vpop.f32.mrb[0].mxu0
    %v5900 = vpop.f32.mrb[0].mxu0
    %v5901 = vadd.f32 0.0, %v5900
    %v5902 = vpop.f32.mrb[0].mxu0
    %5903 = vmatprep.mubr.bf16.mxu0 0
    %5904 = vmatmul.mubr.bf16.gmra.mrb[0].mxu0 %v5587
    %v5905 = vpop.f32.mrb[0].mxu0
    %v5906 = vadd.f32 0.0, %v5905
    %v5907 = vpop.f32.mrb[0].mxu0
    %v5908 = vpop.f32.mrb[0].mxu0
    %v5909 = vadd.f32 0.0, %v5908
    %v5910 = vpop.f32.mrb[0].mxu0
    %5911 = vmatprep.mubr.bf16.mxu0 0
    %5912 = vmatmul.mubr.bf16.gmra.mrb[0].mxu0 %v5595
    %v5913 = vpop.f32.mrb[0].mxu0
    %v5914 = vadd.f32 0.0, %v5913
    %v5915 = vpop.f32.mrb[0].mxu0
    %v5916 = vpop.f32.mrb[0].mxu0
    %v5917 = vadd.f32 0.0, %v5916
    %v5918 = vpop.f32.mrb[0].mxu0
    %5919 = vmatprep.mubr.bf16.mxu0 0
    %5920 = vmatmul.mubr.bf16.gmra.mrb[0].mxu0 %v5603
    %v5921 = vpop.f32.mrb[0].mxu0
    %v5922 = vadd.f32 0.0, %v5921
    %v5923 = vpop.f32.mrb[0].mxu0
    %v5924 = vpop.f32.mrb[0].mxu0
    %v5925 = vadd.f32 0.0, %v5924
    %v5926 = vpop.f32.mrb[0].mxu0
    %5927 = vmatprep.mubr.bf16.mxu0 0
    %5928 = vmatmul.mubr.bf16.gmra.mrb[0].mxu0 %v5611
    %v5929 = vpop.f32.mrb[0].mxu0
    %v5930 = vadd.f32 0.0, %v5929
    %v5931 = vpop.f32.mrb[0].mxu0
    %v5932 = vpop.f32.mrb[0].mxu0
    %v5933 = vadd.f32 0.0, %v5932
    %v5934 = vpop.f32.mrb[0].mxu0
    %5935 = vmatprep.mubr.bf16.mxu0 0
    %5936 = vmatmul.mubr.bf16.gmra.mrb[0].mxu0 %v5619
    %v5937 = vpop.f32.mrb[0].mxu0
    %v5938 = vadd.f32 0.0, %v5937
    %v5939 = vpop.f32.mrb[0].mxu0
    %v5940 = vpop.f32.mrb[0].mxu0
    %v5941 = vadd.f32 0.0, %v5940
    %v5942 = vpop.f32.mrb[0].mxu0
    %5943 = vmatprep.mubr.bf16.mxu0 0
    %5944 = vmatmul.mubr.bf16.gmra.mrb[0].mxu0 %v5627
    %v5945 = vpop.f32.mrb[0].mxu0
    %v5946 = vadd.f32 0.0, %v5945
    %v5947 = vpop.f32.mrb[0].mxu0
    %v5948 = vpop.f32.mrb[0].mxu0
    %v5949 = vadd.f32 0.0, %v5948
    %v5950 = vpop.f32.mrb[0].mxu0
    %5951 = vmatprep.mubr.bf16.mxu0 0
    %5952 = vmatmul.mubr.bf16.gmra.mrb[0].mxu0 %v5635
    %v5953 = vpop.f32.mrb[0].mxu0
    %v5954 = vadd.f32 0.0, %v5953
    %v5955 = vpop.f32.mrb[0].mxu0
    %v5956 = vpop.f32.mrb[0].mxu0
    %v5957 = vadd.f32 0.0, %v5956
    %v5958 = vpop.f32.mrb[0].mxu0
    %5959 = vmatprep.mubr.bf16.mxu0 0
    %5960 = vmatmul.mubr.bf16.gmra.mrb[0].mxu0 %v5643
    %v5961 = vpop.f32.mrb[0].mxu0
    %v5962 = vadd.f32 0.0, %v5961
    %v5963 = vpop.f32.mrb[0].mxu0
    %v5964 = vpop.f32.mrb[0].mxu0
    %v5965 = vadd.f32 0.0, %v5964
    %v5966 = vpop.f32.mrb[0].mxu0
    %5967 = vmatprep.mubr.bf16.mxu0 0
    %5968 = vmatmul.mubr.bf16.gmra.mrb[0].mxu0 %v5651
    %v5969 = vpop.f32.mrb[0].mxu0
    %v5970 = vadd.f32 0.0, %v5969
    %v5971 = vpop.f32.mrb[0].mxu0
    %v5972 = vpop.f32.mrb[0].mxu0
    %v5973 = vadd.f32 0.0, %v5972
    %v5974 = vpop.f32.mrb[0].mxu0
    %5975 = vmatprep.mubr.bf16.mxu0 0
    %5976 = vmatmul.mubr.bf16.gmra.mrb[0].mxu0 %v5659
    %v5977 = vpop.f32.mrb[0].mxu0
    %v5978 = vadd.f32 0.0, %v5977
    %v5979 = vpop.f32.mrb[0].mxu0
    %v5980 = vpop.f32.mrb[0].mxu0
    %v5981 = vadd.f32 0.0, %v5980
    %v5982 = vpop.f32.mrb[0].mxu0
    %5983 = vmatprep.mubr.bf16.mxu0 0
    %5984 = vmatmul.mubr.bf16.gmra.mrb[0].mxu0 %v5667
    %v5985 = vpop.f32.mrb[0].mxu0
    %v5986 = vadd.f32 0.0, %v5985
    %v5987 = vpop.f32.mrb[0].mxu0
    %v5988 = vpop.f32.mrb[0].mxu0
    %v5989 = vadd.f32 0.0, %v5988
    %v5990 = vpop.f32.mrb[0].mxu0
    %5991 = vmatprep.mubr.bf16.mxu0 0
    %5992 = vmatmul.mubr.bf16.gmra.mrb[0].mxu0 %v5675
    %v5993 = vpop.f32.mrb[0].mxu0
    %v5994 = vadd.f32 0.0, %v5993
    %v5995 = vpop.f32.mrb[0].mxu0
    %v5996 = vpop.f32.mrb[0].mxu0
    %v5997 = vadd.f32 0.0, %v5996
    %v5998 = vpop.f32.mrb[0].mxu0
    %5999 = vmatprep.mubr.bf16.mxu0 0
    %6000 = vmatmul.mubr.bf16.gmra.mrb[0].mxu0 %v5683
    %v6001 = vpop.f32.mrb[0].mxu0
    %v6002 = vadd.f32 0.0, %v6001
    %v6003 = vpop.f32.mrb[0].mxu0
    %v6004 = vpop.f32.mrb[0].mxu0
    %v6005 = vadd.f32 0.0, %v6004
    %v6006 = vpop.f32.mrb[0].mxu0
    %6007 = vmatprep.mubr.bf16.mxu0 0
    %6008 = vmatmul.mubr.bf16.gmra.mrb[0].mxu0 %v5691
    %v6009 = vpop.f32.mrb[0].mxu0
    %v6010 = vadd.f32 0.0, %v6009
    %v6011 = vpop.f32.mrb[0].mxu0
    %v6012 = vpop.f32.mrb[0].mxu0
    %v6013 = vadd.f32 0.0, %v6012
    %v6014 = vpop.f32.mrb[0].mxu0
    %6015 = vmatprep.mubr.bf16.mxu0 0
    %6016 = vmatmul.mubr.bf16.gmra.mrb[0].mxu0 %v5699
    %v6017 = vpop.f32.mrb[0].mxu0
    %v6018 = vadd.f32 0.0, %v6017
    %v6019 = vpop.f32.mrb[0].mxu0
    %v6020 = vpop.f32.mrb[0].mxu0
    %v6021 = vadd.f32 0.0, %v6020
    %v6022 = vpop.f32.mrb[0].mxu0
    %6023 = vmatprep.mubr.bf16.mxu0 0
    %6024 = vmatmul.mubr.bf16.gmra.mrb[0].mxu0 %v5707
    %v6025 = vpop.f32.mrb[0].mxu0
    %v6026 = vadd.f32 0.0, %v6025
    %v6027 = vpop.f32.mrb[0].mxu0
    %v6028 = vpop.f32.mrb[0].mxu0
    %v6029 = vadd.f32 0.0, %v6028
    %v6030 = vpop.f32.mrb[0].mxu0
    %6031 = vmatprep.mubr.bf16.mxu0 0
    %6032 = vmatmul.mubr.bf16.gmra.mrb[0].mxu0 %v5715
    %v6033 = vpop.f32.mrb[0].mxu0
    %v6034 = vadd.f32 0.0, %v6033
    %v6035 = vpop.f32.mrb[0].mxu0
    %v6036 = vpop.f32.mrb[0].mxu0
    %v6037 = vadd.f32 0.0, %v6036
    %v6038 = vpop.f32.mrb[0].mxu0
    %6039 = vmatprep.mubr.bf16.mxu0 0
    %6040 = vmatmul.mubr.bf16.gmra.mrb[0].mxu0 %v5723
    %v6041 = vpop.f32.mrb[0].mxu0
    %v6042 = vadd.f32 0.0, %v6041
    %v6043 = vpop.f32.mrb[0].mxu0
    %v6044 = vpop.f32.mrb[0].mxu0
    %v6045 = vadd.f32 0.0, %v6044
    %v6046 = vpop.f32.mrb[0].mxu0
    %6047 = vmatprep.mubr.bf16.mxu0 0
    %6048 = vmatmul.mubr.bf16.gmra.mrb[0].mxu0 %v5731
    %v6049 = vpop.f32.mrb[0].mxu0
    %v6050 = vadd.f32 0.0, %v6049
    %v6051 = vpop.f32.mrb[0].mxu0
    %v6052 = vpop.f32.mrb[0].mxu0
    %v6053 = vadd.f32 0.0, %v6052
    %v6054 = vpop.f32.mrb[0].mxu0
    %6055 = vmatprep.mubr.bf16.mxu0 0
    %6056 = vmatmul.mubr.bf16.gmra.mrb[0].mxu0 %v5739
    %v6057 = vpop.f32.mrb[0].mxu0
    %v6058 = vadd.f32 0.0, %v6057
    %v6059 = vpop.f32.mrb[0].mxu0
    %v6060 = vpop.f32.mrb[0].mxu0
    %v6061 = vadd.f32 0.0, %v6060
    %v6062 = vpop.f32.mrb[0].mxu0
    %6063 = vmatprep.mubr.bf16.mxu0 0
    %6064 = vmatmul.mubr.bf16.gmra.mrb[0].mxu0 %v5747
    %v6065 = vpop.f32.mrb[0].mxu0
    %v6066 = vadd.f32 0.0, %v6065
    %v6067 = vpop.f32.mrb[0].mxu0
    %v6068 = vpop.f32.mrb[0].mxu0
    %v6069 = vadd.f32 0.0, %v6068
    %v6070 = vpop.f32.mrb[0].mxu0
    %6071 = vmatprep.mubr.bf16.mxu0 0
    %6072 = vmatmul.mubr.bf16.gmra.mrb[0].mxu0 %v5755
    %v6073 = vpop.f32.mrb[0].mxu0
    %v6074 = vadd.f32 0.0, %v6073
    %v6075 = vpop.f32.mrb[0].mxu0
    %v6076 = vpop.f32.mrb[0].mxu0
    %v6077 = vadd.f32 0.0, %v6076
    %v6078 = vpop.f32.mrb[0].mxu0
    %6079 = vmatprep.mubr.bf16.mxu0 0
    %6080 = vmatmul.mubr.bf16.gmra.mrb[0].mxu0 %v5763
    %v6081 = vpop.f32.mrb[0].mxu0
    %v6082 = vadd.f32 0.0, %v6081
    %v6083 = vpop.f32.mrb[0].mxu0
    %v6084 = vpop.f32.mrb[0].mxu0
    %v6085 = vadd.f32 0.0, %v6084
    %v6086 = vpop.f32.mrb[0].mxu0
    %6087 = vmatprep.mubr.bf16.mxu0 0
    %6088 = vmatmul.mubr.bf16.gmra.mrb[0].mxu0 %v5771
    %v6089 = vpop.f32.mrb[0].mxu0
    %v6090 = vadd.f32 0.0, %v6089
    %v6091 = vpop.f32.mrb[0].mxu0
    %v6092 = vpop.f32.mrb[0].mxu0
    %v6093 = vadd.f32 0.0, %v6092
    %v6094 = vpop.f32.mrb[0].mxu0
    %6095 = vmatprep.mubr.bf16.mxu0 0
    %6096 = vmatmul.mubr.bf16.gmra.mrb[0].mxu0 %v5779
    %v6097 = vpop.f32.mrb[0].mxu0
    %v6098 = vadd.f32 0.0, %v6097
    %v6099 = vpop.f32.mrb[0].mxu0
    %v6100 = vpop.f32.mrb[0].mxu0
    %v6101 = vadd.f32 0.0, %v6100
    %v6102 = vpop.f32.mrb[0].mxu0
    %6103 = vdwg.mxu0
    %v6104 = vld [vmem:[#allocation2] sm:$0xff]
    %v6105 = vld [vmem:[#allocation2 + $0x8] sm:$0xff]
    %v6106 = vld [vmem:[#allocation2 + $0x10] sm:$0xff]
    %v6107 = vld [vmem:[#allocation2 + $0x18] sm:$0xff]
    %v6108 = vld [vmem:[#allocation2 + $0x20] sm:$0xff]
    %v6109 = vld [vmem:[#allocation2 + $0x28] sm:$0xff]
    %v6110 = vld [vmem:[#allocation2 + $0x30] sm:$0xff]
    %v6111 = vld [vmem:[#allocation2 + $0x38] sm:$0xff]
    %v6112 = vld [vmem:[#allocation2 + $0x40] sm:$0xff]
    %v6113 = vld [vmem:[#allocation2 + $0x48] sm:$0xff]
    %v6114 = vld [vmem:[#allocation2 + $0x50] sm:$0xff]
    %v6115 = vld [vmem:[#allocation2 + $0x58] sm:$0xff]
    %v6116 = vld [vmem:[#allocation2 + $0x60] sm:$0xff]
    %v6117 = vld [vmem:[#allocation2 + $0x68] sm:$0xff]
    %v6118 = vld [vmem:[#allocation2 + $0x70] sm:$0xff]
    %v6119 = vld [vmem:[#allocation2 + $0x78] sm:$0xff]
    %v6120 = vld [vmem:[#allocation2 + $0x80] sm:$0xff]
    %v6121 = vld [vmem:[#allocation2 + $0x88] sm:$0xff]
    %v6122 = vld [vmem:[#allocation2 + $0x90] sm:$0xff]
    %v6123 = vld [vmem:[#allocation2 + $0x98] sm:$0xff]
    %v6124 = vld [vmem:[#allocation2 + $0xa0] sm:$0xff]
    %v6125 = vld [vmem:[#allocation2 + $0xa8] sm:$0xff]
    %v6126 = vld [vmem:[#allocation2 + $0xb0] sm:$0xff]
    %v6127 = vld [vmem:[#allocation2 + $0xb8] sm:$0xff]
    %v6128 = vld [vmem:[#allocation2 + $0xc0] sm:$0xff]
    %v6129 = vld [vmem:[#allocation2 + $0xc8] sm:$0xff]
    %v6130 = vld [vmem:[#allocation2 + $0xd0] sm:$0xff]
    %v6131 = vld [vmem:[#allocation2 + $0xd8] sm:$0xff]
    %v6132 = vld [vmem:[#allocation2 + $0xe0] sm:$0xff]
    %v6133 = vld [vmem:[#allocation2 + $0xe8] sm:$0xff]
    %v6134 = vld [vmem:[#allocation2 + $0xf0] sm:$0xff]
    %v6135 = vld [vmem:[#allocation2 + $0xf8] sm:$0xff]
    %v6136 = vld [vmem:[#allocation2 + $0x100] sm:$0xff]
    %v6137 = vld [vmem:[#allocation2 + $0x108] sm:$0xff]
    %v6138 = vld [vmem:[#allocation2 + $0x110] sm:$0xff]
    %v6139 = vld [vmem:[#allocation2 + $0x118] sm:$0xff]
    %v6140 = vld [vmem:[#allocation2 + $0x120] sm:$0xff]
    %v6141 = vld [vmem:[#allocation2 + $0x128] sm:$0xff]
    %v6142 = vld [vmem:[#allocation2 + $0x130] sm:$0xff]
    %v6143 = vld [vmem:[#allocation2 + $0x138] sm:$0xff]
    %v6144 = vld [vmem:[#allocation2 + $0x140] sm:$0xff]
    %v6145 = vld [vmem:[#allocation2 + $0x148] sm:$0xff]
    %v6146 = vld [vmem:[#allocation2 + $0x150] sm:$0xff]
    %v6147 = vld [vmem:[#allocation2 + $0x158] sm:$0xff]
    %v6148 = vld [vmem:[#allocation2 + $0x160] sm:$0xff]
    %v6149 = vld [vmem:[#allocation2 + $0x168] sm:$0xff]
    %v6150 = vld [vmem:[#allocation2 + $0x170] sm:$0xff]
    %v6151 = vld [vmem:[#allocation2 + $0x178] sm:$0xff]
    %v6152 = vld [vmem:[#allocation2 + $0x180] sm:$0xff]
    %v6153 = vld [vmem:[#allocation2 + $0x188] sm:$0xff]
    %v6154 = vld [vmem:[#allocation2 + $0x190] sm:$0xff]
    %v6155 = vld [vmem:[#allocation2 + $0x198] sm:$0xff]
    %v6156 = vld [vmem:[#allocation2 + $0x1a0] sm:$0xff]
    %v6157 = vld [vmem:[#allocation2 + $0x1a8] sm:$0xff]
    %v6158 = vadd.f32 %v6104, %v5890
    %v6159 = vadd.f32 %v6105, %v5893
    %v6160 = vadd.f32 %v6106, %v5898
    %v6161 = vadd.f32 %v6107, %v5901
    %v6162 = vadd.f32 %v6108, %v5906
    %v6163 = vadd.f32 %v6109, %v5909
    %v6164 = vadd.f32 %v6110, %v5914
    %v6165 = vadd.f32 %v6111, %v5917
    %v6166 = vadd.f32 %v6112, %v5922
    %v6167 = vadd.f32 %v6113, %v5925
    %v6168 = vadd.f32 %v6114, %v5930
    %v6169 = vadd.f32 %v6115, %v5933
    %v6170 = vadd.f32 %v6116, %v5938
    %v6171 = vadd.f32 %v6117, %v5941
    %v6172 = vadd.f32 %v6118, %v5946
    %v6173 = vadd.f32 %v6119, %v5949
    %v6174 = vadd.f32 %v6120, %v5954
    %v6175 = vadd.f32 %v6121, %v5957
    %v6176 = vadd.f32 %v6122, %v5962
    %v6177 = vadd.f32 %v6123, %v5965
    %v6178 = vadd.f32 %v6124, %v5970
    %v6179 = vadd.f32 %v6125, %v5973
    %v6180 = vadd.f32 %v6126, %v5978
    %v6181 = vadd.f32 %v6127, %v5981
    %v6182 = vadd.f32 %v6128, %v5986
    %v6183 = vadd.f32 %v6129, %v5989
    %v6184 = vadd.f32 %v6130, %v5994
    %v6185 = vadd.f32 %v6131, %v5997
    %v6186 = vadd.f32 %v6132, %v6002
    %v6187 = vadd.f32 %v6133, %v6005
    %v6188 = vadd.f32 %v6134, %v6010
    %v6189 = vadd.f32 %v6135, %v6013
    %v6190 = vadd.f32 %v6136, %v6018
    %v6191 = vadd.f32 %v6137, %v6021
    %v6192 = vadd.f32 %v6138, %v6026
    %v6193 = vadd.f32 %v6139, %v6029
    %v6194 = vadd.f32 %v6140, %v6034
    %v6195 = vadd.f32 %v6141, %v6037
    %v6196 = vadd.f32 %v6142, %v6042
    %v6197 = vadd.f32 %v6143, %v6045
    %v6198 = vadd.f32 %v6144, %v6050
    %v6199 = vadd.f32 %v6145, %v6053
    %v6200 = vadd.f32 %v6146, %v6058
    %v6201 = vadd.f32 %v6147, %v6061
    %v6202 = vadd.f32 %v6148, %v6066
    %v6203 = vadd.f32 %v6149, %v6069
    %v6204 = vadd.f32 %v6150, %v6074
    %v6205 = vadd.f32 %v6151, %v6077
    %v6206 = vadd.f32 %v6152, %v6082
    %v6207 = vadd.f32 %v6153, %v6085
    %v6208 = vadd.f32 %v6154, %v6090
    %v6209 = vadd.f32 %v6155, %v6093
    %v6210 = vadd.f32 %v6156, %v6098
    %v6211 = vadd.f32 %v6157, %v6101
    %6212 = vst [vmem:[#allocation2] sm:$0xff] %v6158
    %6213 = vst [vmem:[#allocation2 + $0x8] sm:$0xff] %v6159
    %6214 = vst [vmem:[#allocation2 + $0x10] sm:$0xff] %v6160
    %6215 = vst [vmem:[#allocation2 + $0x18] sm:$0xff] %v6161
    %6216 = vst [vmem:[#allocation2 + $0x20] sm:$0xff] %v6162
    %6217 = vst [vmem:[#allocation2 + $0x28] sm:$0xff] %v6163
    %6218 = vst [vmem:[#allocation2 + $0x30] sm:$0xff] %v6164
    %6219 = vst [vmem:[#allocation2 + $0x38] sm:$0xff] %v6165
    %6220 = vst [vmem:[#allocation2 + $0x40] sm:$0xff] %v6166
    %6221 = vst [vmem:[#allocation2 + $0x48] sm:$0xff] %v6167
    %6222 = vst [vmem:[#allocation2 + $0x50] sm:$0xff] %v6168
    %6223 = vst [vmem:[#allocation2 + $0x58] sm:$0xff] %v6169
    %6224 = vst [vmem:[#allocation2 + $0x60] sm:$0xff] %v6170
    %6225 = vst [vmem:[#allocation2 + $0x68] sm:$0xff] %v6171
    %6226 = vst [vmem:[#allocation2 + $0x70] sm:$0xff] %v6172
    %6227 = vst [vmem:[#allocation2 + $0x78] sm:$0xff] %v6173
    %6228 = vst [vmem:[#allocation2 + $0x80] sm:$0xff] %v6174
    %6229 = vst [vmem:[#allocation2 + $0x88] sm:$0xff] %v6175
    %6230 = vst [vmem:[#allocation2 + $0x90] sm:$0xff] %v6176
    %6231 = vst [vmem:[#allocation2 + $0x98] sm:$0xff] %v6177
    %6232 = vst [vmem:[#allocation2 + $0xa0] sm:$0xff] %v6178
    %6233 = vst [vmem:[#allocation2 + $0xa8] sm:$0xff] %v6179
    %6234 = vst [vmem:[#allocation2 + $0xb0] sm:$0xff] %v6180
    %6235 = vst [vmem:[#allocation2 + $0xb8] sm:$0xff] %v6181
    %6236 = vst [vmem:[#allocation2 + $0xc0] sm:$0xff] %v6182
    %6237 = vst [vmem:[#allocation2 + $0xc8] sm:$0xff] %v6183
    %6238 = vst [vmem:[#allocation2 + $0xd0] sm:$0xff] %v6184
    %6239 = vst [vmem:[#allocation2 + $0xd8] sm:$0xff] %v6185
    %6240 = vst [vmem:[#allocation2 + $0xe0] sm:$0xff] %v6186
    %6241 = vst [vmem:[#allocation2 + $0xe8] sm:$0xff] %v6187
    %6242 = vst [vmem:[#allocation2 + $0xf0] sm:$0xff] %v6188
    %6243 = vst [vmem:[#allocation2 + $0xf8] sm:$0xff] %v6189
    %6244 = vst [vmem:[#allocation2 + $0x100] sm:$0xff] %v6190
    %6245 = vst [vmem:[#allocation2 + $0x108] sm:$0xff] %v6191
    %6246 = vst [vmem:[#allocation2 + $0x110] sm:$0xff] %v6192
    %6247 = vst [vmem:[#allocation2 + $0x118] sm:$0xff] %v6193
    %6248 = vst [vmem:[#allocation2 + $0x120] sm:$0xff] %v6194
    %6249 = vst [vmem:[#allocation2 + $0x128] sm:$0xff] %v6195
    %6250 = vst [vmem:[#allocation2 + $0x130] sm:$0xff] %v6196
    %6251 = vst [vmem:[#allocation2 + $0x138] sm:$0xff] %v6197
    %6252 = vst [vmem:[#allocation2 + $0x140] sm:$0xff] %v6198
    %6253 = vst [vmem:[#allocation2 + $0x148] sm:$0xff] %v6199
    %6254 = vst [vmem:[#allocation2 + $0x150] sm:$0xff] %v6200
    %6255 = vst [vmem:[#allocation2 + $0x158] sm:$0xff] %v6201
    %6256 = vst [vmem:[#allocation2 + $0x160] sm:$0xff] %v6202
    %6257 = vst [vmem:[#allocation2 + $0x168] sm:$0xff] %v6203
    %6258 = vst [vmem:[#allocation2 + $0x170] sm:$0xff] %v6204
    %6259 = vst [vmem:[#allocation2 + $0x178] sm:$0xff] %v6205
    %6260 = vst [vmem:[#allocation2 + $0x180] sm:$0xff] %v6206
    %6261 = vst [vmem:[#allocation2 + $0x188] sm:$0xff] %v6207
    %6262 = vst [vmem:[#allocation2 + $0x190] sm:$0xff] %v6208
    %6263 = vst [vmem:[#allocation2 + $0x198] sm:$0xff] %v6209
    %6264 = vst [vmem:[#allocation2 + $0x1a0] sm:$0xff] %v6210
    %6265 = vst [vmem:[#allocation2 + $0x1a8] sm:$0xff] %v6211
    %v6266 = vld [vmem:[#allocation3 + $0x18] sm:$0xe]
    %v6267 = vld [vmem:[#allocation3 + $0x1c] sm:$0xf]
    %v6268 = vld [vmem:[#allocation3 + $0x20] sm:$0xf]
    %v6269 = vld [vmem:[#allocation3 + $0x24] sm:$0xf]
    %v6270 = vld [vmem:[#allocation3 + $0x28] sm:$0xf]
    %v6271 = vld [vmem:[#allocation3 + $0x2c] sm:$0xf]
    %v6272 = vld [vmem:[#allocation3 + $0x30] sm:$0xf]
    %v6273 = vld [vmem:[#allocation3 + $0x34] sm:$0xf]
    %v6274 = vld [vmem:[#allocation3 + $0x38] sm:$0xf]
    %v6275 = vld [vmem:[#allocation3 + $0x3c] sm:$0xf]
    %v6276 = vld [vmem:[#allocation3 + $0x40] sm:$0xf]
    %v6277 = vld [vmem:[#allocation3 + $0x44] sm:$0xf]
    %v6278 = vld [vmem:[#allocation3 + $0x48] sm:$0xf]
    %v6279 = vld [vmem:[#allocation3 + $0x4c] sm:$0xf]
    %v6280 = vld [vmem:[#allocation3 + $0x50] sm:$0xf]
    %v6281 = vld [vmem:[#allocation3 + $0x54] sm:$0xf]
    %v6282 = vld [vmem:[#allocation3 + $0x58] sm:$0xf]
    %v6283 = vld [vmem:[#allocation3 + $0x5c] sm:$0xf]
    %v6284 = vld [vmem:[#allocation3 + $0x60] sm:$0xf]
    %v6285 = vld [vmem:[#allocation3 + $0x64] sm:$0xf]
    %v6286 = vld [vmem:[#allocation3 + $0x68] sm:$0xf]
    %v6287 = vld [vmem:[#allocation3 + $0x6c] sm:$0xf]
    %v6288 = vld [vmem:[#allocation3 + $0x70] sm:$0xf]
    %v6289 = vld [vmem:[#allocation3 + $0x74] sm:$0xf]
    %v6290 = vld [vmem:[#allocation3 + $0x78] sm:$0xf]
    %v6291 = vld [vmem:[#allocation3 + $0x7c] sm:$0xf]
    %v6292 = vld [vmem:[#allocation3 + $0x80] sm:$0xf]
    %v6293 = vld [vmem:[#allocation3 + $0x84] sm:$0xf]
    %v6294 = vld [vmem:[#allocation3 + $0x88] sm:$0xf]
    %v6295 = vld [vmem:[#allocation3 + $0x8c] sm:$0xf]
    %v6296 = vld [vmem:[#allocation3 + $0x90] sm:$0xf]
    %v6297 = vld [vmem:[#allocation3 + $0x94] sm:$0xf]
    %v6298 = vld [vmem:[#allocation3 + $0x98] sm:$0xf]
    %v6299 = vld [vmem:[#allocation3 + $0x9c] sm:$0xf]
    %v6300 = vld [vmem:[#allocation3 + $0xa0] sm:$0xf]
    %v6301 = vld [vmem:[#allocation3 + $0xa4] sm:$0xf]
    %v6302 = vld [vmem:[#allocation3 + $0xa8] sm:$0xf]
    %v6303 = vld [vmem:[#allocation3 + $0xac] sm:$0xf]
    %v6304 = vld [vmem:[#allocation3 + $0xb0] sm:$0xf]
    %v6305 = vld [vmem:[#allocation3 + $0xb4] sm:$0xf]
    %v6306 = vld [vmem:[#allocation3 + $0xb8] sm:$0xf]
    %v6307 = vld [vmem:[#allocation3 + $0xbc] sm:$0xf]
    %v6308 = vld [vmem:[#allocation3 + $0xc0] sm:$0xf]
    %v6309 = vld [vmem:[#allocation3 + $0xc4] sm:$0xf]
    %v6310 = vld [vmem:[#allocation3 + $0xc8] sm:$0xf]
    %v6311 = vld [vmem:[#allocation3 + $0xcc] sm:$0xf]
    %v6312 = vld [vmem:[#allocation3 + $0xd0] sm:$0xf]
    %v6313 = vld [vmem:[#allocation3 + $0xd4] sm:$0xf]
    %v6314 = vld [vmem:[#allocation3 + $0xd8] sm:$0xf]
    %v6315 = vld [vmem:[#allocation3 + $0xdc] sm:$0xf]
    %v6316 = vld [vmem:[#allocation3 + $0xe0] sm:$0xf]
    %v6317 = vld [vmem:[#allocation3 + $0xe4] sm:$0xf]
    %v6318 = vld [vmem:[#allocation3 + $0xe8] sm:$0xf]
    %v6319 = vld [vmem:[#allocation3 + $0xec] sm:$0xf]
    %v6320 = vld [vmem:[#allocation3 + $0xf0] sm:$0x1]
    %s6321 = scalar_lea.vmem [#allocation6], 512
    %v6322 = vld [vmem:[%s6321] sm:$0xf]
    %v6323 = vld [vmem:[%s6321 + $0x4] sm:$0xf]
    %v6324 = vld [vmem:[%s6321 + $0x8] sm:$0xf]
    %v6325 = vld [vmem:[%s6321 + $0xc] sm:$0xf]
    %v6326 = vld [vmem:[%s6321 + $0x10] sm:$0xf]
    %v6327 = vld [vmem:[%s6321 + $0x14] sm:$0xf]
    %v6328 = vld [vmem:[%s6321 + $0x18] sm:$0xf]
    %v6329 = vld [vmem:[%s6321 + $0x1c] sm:$0xf]
    %v6330 = vld [vmem:[%s6321 + $0x20] sm:$0xf]
    %v6331 = vld [vmem:[%s6321 + $0x24] sm:$0xf]
    %v6332 = vld [vmem:[%s6321 + $0x28] sm:$0xf]
    %v6333 = vld [vmem:[%s6321 + $0x2c] sm:$0xf]
    %v6334 = vld [vmem:[%s6321 + $0x30] sm:$0xf]
    %v6335 = vld [vmem:[%s6321 + $0x34] sm:$0xf]
    %v6336 = vld [vmem:[%s6321 + $0x38] sm:$0xf]
    %v6337 = vld [vmem:[%s6321 + $0x3c] sm:$0xf]
    %v6393 = vunpack.c.l.b16 %v6266
    %v6394 = vunpack.c.l.b16 %v6267
    %v6395 = vunpack.c.l.b16 %v6268
    %v6396 = vunpack.c.l.b16 %v6269
    %v6397 = vunpack.c.l.b16 %v6270
    %v6398 = vunpack.c.l.b16 %v6271
    %v6399 = vunpack.c.l.b16 %v6272
    %v6400 = vunpack.c.l.b16 %v6273
    %v6401 = vunpack.c.l.b16 %v6274
    %v6402 = vunpack.c.l.b16 %v6275
    %v6403 = vunpack.c.l.b16 %v6276
    %v6404 = vunpack.c.l.b16 %v6277
    %v6405 = vunpack.c.l.b16 %v6278
    %v6406 = vunpack.c.l.b16 %v6279
    %v6407 = vunpack.c.l.b16 %v6280
    %v6408 = vunpack.c.l.b16 %v6281
    %v6409 = vunpack.c.l.b16 %v6282
    %v6410 = vunpack.c.l.b16 %v6283
    %v6411 = vunpack.c.l.b16 %v6284
    %v6412 = vunpack.c.l.b16 %v6285
    %v6413 = vunpack.c.l.b16 %v6286
    %v6414 = vunpack.c.l.b16 %v6287
    %v6415 = vunpack.c.l.b16 %v6288
    %v6416 = vunpack.c.l.b16 %v6289
    %v6417 = vunpack.c.l.b16 %v6290
    %v6418 = vunpack.c.l.b16 %v6291
    %v6419 = vunpack.c.l.b16 %v6292
    %v6420 = vunpack.c.l.b16 %v6293
    %v6421 = vunpack.c.l.b16 %v6294
    %v6422 = vunpack.c.l.b16 %v6295
    %v6423 = vunpack.c.l.b16 %v6296
    %v6424 = vunpack.c.l.b16 %v6297
    %v6425 = vunpack.c.l.b16 %v6298
    %v6426 = vunpack.c.l.b16 %v6299
    %v6427 = vunpack.c.l.b16 %v6300
    %v6428 = vunpack.c.l.b16 %v6301
    %v6429 = vunpack.c.l.b16 %v6302
    %v6430 = vunpack.c.l.b16 %v6303
    %v6431 = vunpack.c.l.b16 %v6304
    %v6432 = vunpack.c.l.b16 %v6305
    %v6433 = vunpack.c.l.b16 %v6306
    %v6434 = vunpack.c.l.b16 %v6307
    %v6435 = vunpack.c.l.b16 %v6308
    %v6436 = vunpack.c.l.b16 %v6309
    %v6437 = vunpack.c.l.b16 %v6310
    %v6438 = vunpack.c.l.b16 %v6311
    %v6439 = vunpack.c.l.b16 %v6312
    %v6440 = vunpack.c.l.b16 %v6313
    %v6441 = vunpack.c.l.b16 %v6314
    %v6442 = vunpack.c.l.b16 %v6315
    %v6443 = vunpack.c.l.b16 %v6316
    %v6444 = vunpack.c.l.b16 %v6317
    %v6445 = vunpack.c.l.b16 %v6318
    %v6446 = vunpack.c.l.b16 %v6319
    %v6447 = vunpack.c.l.b16 %v6320
    %v6448 = vpack.c.b16 %v6394, %v6393
    %v6449 = vpack.c.b16 %v6396, %v6395
    %v6450 = vpack.c.b16 %v6398, %v6397
    %v6451 = vpack.c.b16 %v6400, %v6399
    %v6452 = vpack.c.b16 %v6402, %v6401
    %v6453 = vpack.c.b16 %v6404, %v6403
    %v6454 = vpack.c.b16 %v6406, %v6405
    %v6455 = vpack.c.b16 %v6408, %v6407
    %v6456 = vpack.c.b16 %v6410, %v6409
    %v6457 = vpack.c.b16 %v6412, %v6411
    %v6458 = vpack.c.b16 %v6414, %v6413
    %v6459 = vpack.c.b16 %v6416, %v6415
    %v6460 = vpack.c.b16 %v6418, %v6417
    %v6461 = vpack.c.b16 %v6420, %v6419
    %v6462 = vpack.c.b16 %v6422, %v6421
    %v6463 = vpack.c.b16 %v6424, %v6423
    %v6464 = vpack.c.b16 %v6426, %v6425
    %v6465 = vpack.c.b16 %v6428, %v6427
    %v6466 = vpack.c.b16 %v6430, %v6429
    %v6467 = vpack.c.b16 %v6432, %v6431
    %v6468 = vpack.c.b16 %v6434, %v6433
    %v6469 = vpack.c.b16 %v6436, %v6435
    %v6470 = vpack.c.b16 %v6438, %v6437
    %v6471 = vpack.c.b16 %v6440, %v6439
    %v6472 = vpack.c.b16 %v6442, %v6441
    %v6473 = vpack.c.b16 %v6444, %v6443
    %v6474 = vpack.c.b16 %v6446, %v6445
    %v6475 = vpack.c.b16 %v6447, %v6447
    %v6476 = vrot.slane %v6448, 1
    %v6477 = vrot.slane %v6449, 1
    %v6478 = vsel %vm1757, %v6476, %v6477
    %v6479 = vrot.slane %v6450, 1
    %v6480 = vsel %vm1757, %v6477, %v6479
    %v6481 = vrot.slane %v6451, 1
    %v6482 = vsel %vm1757, %v6479, %v6481
    %v6483 = vrot.slane %v6452, 1
    %v6484 = vsel %vm1757, %v6481, %v6483
    %v6485 = vrot.slane %v6453, 1
    %v6486 = vsel %vm1757, %v6483, %v6485
    %v6487 = vrot.slane %v6454, 1
    %v6488 = vsel %vm1757, %v6485, %v6487
    %v6489 = vrot.slane %v6455, 1
    %v6490 = vsel %vm1757, %v6487, %v6489
    %v6491 = vrot.slane %v6456, 1
    %v6492 = vsel %vm1757, %v6489, %v6491
    %v6493 = vrot.slane %v6457, 1
    %v6494 = vsel %vm1757, %v6491, %v6493
    %v6495 = vrot.slane %v6458, 1
    %v6496 = vsel %vm1757, %v6493, %v6495
    %v6497 = vrot.slane %v6459, 1
    %v6498 = vsel %vm1757, %v6495, %v6497
    %v6499 = vrot.slane %v6460, 1
    %v6500 = vsel %vm1757, %v6497, %v6499
    %v6501 = vrot.slane %v6461, 1
    %v6502 = vsel %vm1757, %v6499, %v6501
    %v6503 = vrot.slane %v6462, 1
    %v6504 = vsel %vm1757, %v6501, %v6503
    %v6505 = vrot.slane %v6463, 1
    %v6506 = vsel %vm1757, %v6503, %v6505
    %v6507 = vrot.slane %v6464, 1
    %v6508 = vsel %vm1757, %v6505, %v6507
    %v6509 = vrot.slane %v6465, 1
    %v6510 = vsel %vm1757, %v6507, %v6509
    %v6511 = vrot.slane %v6466, 1
    %v6512 = vsel %vm1757, %v6509, %v6511
    %v6513 = vrot.slane %v6467, 1
    %v6514 = vsel %vm1757, %v6511, %v6513
    %v6515 = vrot.slane %v6468, 1
    %v6516 = vsel %vm1757, %v6513, %v6515
    %v6517 = vrot.slane %v6469, 1
    %v6518 = vsel %vm1757, %v6515, %v6517
    %v6519 = vrot.slane %v6470, 1
    %v6520 = vsel %vm1757, %v6517, %v6519
    %v6521 = vrot.slane %v6471, 1
    %v6522 = vsel %vm1757, %v6519, %v6521
    %v6523 = vrot.slane %v6472, 1
    %v6524 = vsel %vm1757, %v6521, %v6523
    %v6525 = vrot.slane %v6473, 1
    %v6526 = vsel %vm1757, %v6523, %v6525
    %v6527 = vrot.slane %v6474, 1
    %v6528 = vsel %vm1757, %v6525, %v6527
    %v6529 = vrot.slane %v6475, 1
    %v6530 = vsel %vm1757, %v6527, %v6529
    %v6574 = vunpack.c.l.b16 %v6322
    %v6575 = vunpack.c.l.b16 %v6323
    %v6576 = vunpack.c.l.b16 %v6324
    %v6577 = vunpack.c.l.b16 %v6325
    %v6578 = vunpack.c.l.b16 %v6326
    %v6579 = vunpack.c.l.b16 %v6327
    %v6580 = vunpack.c.l.b16 %v6328
    %v6581 = vunpack.c.l.b16 %v6329
    %v6582 = vunpack.c.l.b16 %v6330
    %v6583 = vunpack.c.l.b16 %v6331
    %v6584 = vunpack.c.l.b16 %v6332
    %v6585 = vunpack.c.l.b16 %v6333
    %v6586 = vunpack.c.l.b16 %v6334
    %v6587 = vunpack.c.l.b16 %v6335
    %v6588 = vunpack.c.l.b16 %v6336
    %v6589 = vunpack.c.l.b16 %v6337
    %v6590 = vpack.c.b16 %v6575, %v6574
    %v6591 = vpack.c.b16 %v6577, %v6576
    %v6592 = vpack.c.b16 %v6579, %v6578
    %v6593 = vpack.c.b16 %v6581, %v6580
    %v6594 = vpack.c.b16 %v6583, %v6582
    %v6595 = vpack.c.b16 %v6585, %v6584
    %v6596 = vpack.c.b16 %v6587, %v6586
    %v6597 = vpack.c.b16 %v6589, %v6588
    %6606 = vmatprep.subr.bf16.mxu0 0
    %6607 = vmatpush1.bf16.msra.mxu0 %v6590
    %6608 = vmatprep.subr.bf16.mxu0 0
    %6609 = vmatpush1.bf16.msra.mxu0 %v6591
    %6610 = vmatprep.subr.bf16.mxu0 0
    %6611 = vmatpush1.bf16.msra.mxu0 %v6592
    %6612 = vmatprep.subr.bf16.mxu0 0
    %6613 = vmatpush1.bf16.msra.mxu0 %v6593
    %6614 = vmatprep.subr.bf16.mxu0 0
    %6615 = vmatpush1.bf16.msra.mxu0 %v6594
    %6616 = vmatprep.subr.bf16.mxu0 0
    %6617 = vmatpush1.bf16.msra.mxu0 %v6595
    %6618 = vmatprep.subr.bf16.mxu0 0
    %6619 = vmatpush1.bf16.msra.mxu0 %v6596
    %6620 = vmatprep.subr.bf16.mxu0 0
    %6621 = vmatpush1.bf16.msra.mxu0 %v6597
    %6622 = vmatprep.subr.bf16.mxu0 0
    %6623 = vmatpush1.bf16.msra.mxu0 0
    %6624 = vmatprep.subr.bf16.mxu0 0
    %6625 = vmatpush1.bf16.msra.mxu0 0
    %6626 = vmatprep.subr.bf16.mxu0 0
    %6627 = vmatpush1.bf16.msra.mxu0 0
    %6628 = vmatprep.subr.bf16.mxu0 0
    %6629 = vmatpush1.bf16.msra.mxu0 0
    %6630 = vmatprep.subr.bf16.mxu0 0
    %6631 = vmatpush1.bf16.msra.mxu0 0
    %6632 = vmatprep.subr.bf16.mxu0 0
    %6633 = vmatpush1.bf16.msra.mxu0 0
    %6634 = vmatprep.subr.bf16.mxu0 0
    %6635 = vmatpush1.bf16.msra.mxu0 0
    %6636 = vmatprep.subr.bf16.mxu0 0
    %6637 = vmatpush1.bf16.msra.mxu0 0
    %6638 = vmatprep.mubr.bf16.mxu0 0
    %6639 = vmatmul.mubr.bf16.gmra.mrb[0].mxu0 %v6478
    %v6640 = vpop.f32.mrb[0].mxu0
    %v6641 = vadd.f32 0.0, %v6640
    %v6642 = vpop.f32.mrb[0].mxu0
    %v6643 = vpop.f32.mrb[0].mxu0
    %v6644 = vadd.f32 0.0, %v6643
    %v6645 = vpop.f32.mrb[0].mxu0
    %6646 = vmatprep.mubr.bf16.mxu0 0
    %6647 = vmatmul.mubr.bf16.gmra.mrb[0].mxu0 %v6480
    %v6648 = vpop.f32.mrb[0].mxu0
    %v6649 = vadd.f32 0.0, %v6648
    %v6650 = vpop.f32.mrb[0].mxu0
    %v6651 = vpop.f32.mrb[0].mxu0
    %v6652 = vadd.f32 0.0, %v6651
    %v6653 = vpop.f32.mrb[0].mxu0
    %6654 = vmatprep.mubr.bf16.mxu0 0
    %6655 = vmatmul.mubr.bf16.gmra.mrb[0].mxu0 %v6482
    %v6656 = vpop.f32.mrb[0].mxu0
    %v6657 = vadd.f32 0.0, %v6656
    %v6658 = vpop.f32.mrb[0].mxu0
    %v6659 = vpop.f32.mrb[0].mxu0
    %v6660 = vadd.f32 0.0, %v6659
    %v6661 = vpop.f32.mrb[0].mxu0
    %6662 = vmatprep.mubr.bf16.mxu0 0
    %6663 = vmatmul.mubr.bf16.gmra.mrb[0].mxu0 %v6484
    %v6664 = vpop.f32.mrb[0].mxu0
    %v6665 = vadd.f32 0.0, %v6664
    %v6666 = vpop.f32.mrb[0].mxu0
    %v6667 = vpop.f32.mrb[0].mxu0
    %v6668 = vadd.f32 0.0, %v6667
    %v6669 = vpop.f32.mrb[0].mxu0
    %6670 = vmatprep.mubr.bf16.mxu0 0
    %6671 = vmatmul.mubr.bf16.gmra.mrb[0].mxu0 %v6486
    %v6672 = vpop.f32.mrb[0].mxu0
    %v6673 = vadd.f32 0.0, %v6672
    %v6674 = vpop.f32.mrb[0].mxu0
    %v6675 = vpop.f32.mrb[0].mxu0
    %v6676 = vadd.f32 0.0, %v6675
    %v6677 = vpop.f32.mrb[0].mxu0
    %6678 = vmatprep.mubr.bf16.mxu0 0
    %6679 = vmatmul.mubr.bf16.gmra.mrb[0].mxu0 %v6488
    %v6680 = vpop.f32.mrb[0].mxu0
    %v6681 = vadd.f32 0.0, %v6680
    %v6682 = vpop.f32.mrb[0].mxu0
    %v6683 = vpop.f32.mrb[0].mxu0
    %v6684 = vadd.f32 0.0, %v6683
    %v6685 = vpop.f32.mrb[0].mxu0
    %6686 = vmatprep.mubr.bf16.mxu0 0
    %6687 = vmatmul.mubr.bf16.gmra.mrb[0].mxu0 %v6490
    %v6688 = vpop.f32.mrb[0].mxu0
    %v6689 = vadd.f32 0.0, %v6688
    %v6690 = vpop.f32.mrb[0].mxu0
    %v6691 = vpop.f32.mrb[0].mxu0
    %v6692 = vadd.f32 0.0, %v6691
    %v6693 = vpop.f32.mrb[0].mxu0
    %6694 = vmatprep.mubr.bf16.mxu0 0
    %6695 = vmatmul.mubr.bf16.gmra.mrb[0].mxu0 %v6492
    %v6696 = vpop.f32.mrb[0].mxu0
    %v6697 = vadd.f32 0.0, %v6696
    %v6698 = vpop.f32.mrb[0].mxu0
    %v6699 = vpop.f32.mrb[0].mxu0
    %v6700 = vadd.f32 0.0, %v6699
    %v6701 = vpop.f32.mrb[0].mxu0
    %6702 = vmatprep.mubr.bf16.mxu0 0
    %6703 = vmatmul.mubr.bf16.gmra.mrb[0].mxu0 %v6494
    %v6704 = vpop.f32.mrb[0].mxu0
    %v6705 = vadd.f32 0.0, %v6704
    %v6706 = vpop.f32.mrb[0].mxu0
    %v6707 = vpop.f32.mrb[0].mxu0
    %v6708 = vadd.f32 0.0, %v6707
    %v6709 = vpop.f32.mrb[0].mxu0
    %6710 = vmatprep.mubr.bf16.mxu0 0
    %6711 = vmatmul.mubr.bf16.gmra.mrb[0].mxu0 %v6496
    %v6712 = vpop.f32.mrb[0].mxu0
    %v6713 = vadd.f32 0.0, %v6712
    %v6714 = vpop.f32.mrb[0].mxu0
    %v6715 = vpop.f32.mrb[0].mxu0
    %v6716 = vadd.f32 0.0, %v6715
    %v6717 = vpop.f32.mrb[0].mxu0
    %6718 = vmatprep.mubr.bf16.mxu0 0
    %6719 = vmatmul.mubr.bf16.gmra.mrb[0].mxu0 %v6498
    %v6720 = vpop.f32.mrb[0].mxu0
    %v6721 = vadd.f32 0.0, %v6720
    %v6722 = vpop.f32.mrb[0].mxu0
    %v6723 = vpop.f32.mrb[0].mxu0
    %v6724 = vadd.f32 0.0, %v6723
    %v6725 = vpop.f32.mrb[0].mxu0
    %6726 = vmatprep.mubr.bf16.mxu0 0
    %6727 = vmatmul.mubr.bf16.gmra.mrb[0].mxu0 %v6500
    %v6728 = vpop.f32.mrb[0].mxu0
    %v6729 = vadd.f32 0.0, %v6728
    %v6730 = vpop.f32.mrb[0].mxu0
    %v6731 = vpop.f32.mrb[0].mxu0
    %v6732 = vadd.f32 0.0, %v6731
    %v6733 = vpop.f32.mrb[0].mxu0
    %6734 = vmatprep.mubr.bf16.mxu0 0
    %6735 = vmatmul.mubr.bf16.gmra.mrb[0].mxu0 %v6502
    %v6736 = vpop.f32.mrb[0].mxu0
    %v6737 = vadd.f32 0.0, %v6736
    %v6738 = vpop.f32.mrb[0].mxu0
    %v6739 = vpop.f32.mrb[0].mxu0
    %v6740 = vadd.f32 0.0, %v6739
    %v6741 = vpop.f32.mrb[0].mxu0
    %6742 = vmatprep.mubr.bf16.mxu0 0
    %6743 = vmatmul.mubr.bf16.gmra.mrb[0].mxu0 %v6504
    %v6744 = vpop.f32.mrb[0].mxu0
    %v6745 = vadd.f32 0.0, %v6744
    %v6746 = vpop.f32.mrb[0].mxu0
    %v6747 = vpop.f32.mrb[0].mxu0
    %v6748 = vadd.f32 0.0, %v6747
    %v6749 = vpop.f32.mrb[0].mxu0
    %6750 = vmatprep.mubr.bf16.mxu0 0
    %6751 = vmatmul.mubr.bf16.gmra.mrb[0].mxu0 %v6506
    %v6752 = vpop.f32.mrb[0].mxu0
    %v6753 = vadd.f32 0.0, %v6752
    %v6754 = vpop.f32.mrb[0].mxu0
    %v6755 = vpop.f32.mrb[0].mxu0
    %v6756 = vadd.f32 0.0, %v6755
    %v6757 = vpop.f32.mrb[0].mxu0
    %6758 = vmatprep.mubr.bf16.mxu0 0
    %6759 = vmatmul.mubr.bf16.gmra.mrb[0].mxu0 %v6508
    %v6760 = vpop.f32.mrb[0].mxu0
    %v6761 = vadd.f32 0.0, %v6760
    %v6762 = vpop.f32.mrb[0].mxu0
    %v6763 = vpop.f32.mrb[0].mxu0
    %v6764 = vadd.f32 0.0, %v6763
    %v6765 = vpop.f32.mrb[0].mxu0
    %6766 = vmatprep.mubr.bf16.mxu0 0
    %6767 = vmatmul.mubr.bf16.gmra.mrb[0].mxu0 %v6510
    %v6768 = vpop.f32.mrb[0].mxu0
    %v6769 = vadd.f32 0.0, %v6768
    %v6770 = vpop.f32.mrb[0].mxu0
    %v6771 = vpop.f32.mrb[0].mxu0
    %v6772 = vadd.f32 0.0, %v6771
    %v6773 = vpop.f32.mrb[0].mxu0
    %6774 = vmatprep.mubr.bf16.mxu0 0
    %6775 = vmatmul.mubr.bf16.gmra.mrb[0].mxu0 %v6512
    %v6776 = vpop.f32.mrb[0].mxu0
    %v6777 = vadd.f32 0.0, %v6776
    %v6778 = vpop.f32.mrb[0].mxu0
    %v6779 = vpop.f32.mrb[0].mxu0
    %v6780 = vadd.f32 0.0, %v6779
    %v6781 = vpop.f32.mrb[0].mxu0
    %6782 = vmatprep.mubr.bf16.mxu0 0
    %6783 = vmatmul.mubr.bf16.gmra.mrb[0].mxu0 %v6514
    %v6784 = vpop.f32.mrb[0].mxu0
    %v6785 = vadd.f32 0.0, %v6784
    %v6786 = vpop.f32.mrb[0].mxu0
    %v6787 = vpop.f32.mrb[0].mxu0
    %v6788 = vadd.f32 0.0, %v6787
    %v6789 = vpop.f32.mrb[0].mxu0
    %6790 = vmatprep.mubr.bf16.mxu0 0
    %6791 = vmatmul.mubr.bf16.gmra.mrb[0].mxu0 %v6516
    %v6792 = vpop.f32.mrb[0].mxu0
    %v6793 = vadd.f32 0.0, %v6792
    %v6794 = vpop.f32.mrb[0].mxu0
    %v6795 = vpop.f32.mrb[0].mxu0
    %v6796 = vadd.f32 0.0, %v6795
    %v6797 = vpop.f32.mrb[0].mxu0
    %6798 = vmatprep.mubr.bf16.mxu0 0
    %6799 = vmatmul.mubr.bf16.gmra.mrb[0].mxu0 %v6518
    %v6800 = vpop.f32.mrb[0].mxu0
    %v6801 = vadd.f32 0.0, %v6800
    %v6802 = vpop.f32.mrb[0].mxu0
    %v6803 = vpop.f32.mrb[0].mxu0
    %v6804 = vadd.f32 0.0, %v6803
    %v6805 = vpop.f32.mrb[0].mxu0
    %6806 = vmatprep.mubr.bf16.mxu0 0
    %6807 = vmatmul.mubr.bf16.gmra.mrb[0].mxu0 %v6520
    %v6808 = vpop.f32.mrb[0].mxu0
    %v6809 = vadd.f32 0.0, %v6808
    %v6810 = vpop.f32.mrb[0].mxu0
    %v6811 = vpop.f32.mrb[0].mxu0
    %v6812 = vadd.f32 0.0, %v6811
    %v6813 = vpop.f32.mrb[0].mxu0
    %6814 = vmatprep.mubr.bf16.mxu0 0
    %6815 = vmatmul.mubr.bf16.gmra.mrb[0].mxu0 %v6522
    %v6816 = vpop.f32.mrb[0].mxu0
    %v6817 = vadd.f32 0.0, %v6816
    %v6818 = vpop.f32.mrb[0].mxu0
    %v6819 = vpop.f32.mrb[0].mxu0
    %v6820 = vadd.f32 0.0, %v6819
    %v6821 = vpop.f32.mrb[0].mxu0
    %6822 = vmatprep.mubr.bf16.mxu0 0
    %6823 = vmatmul.mubr.bf16.gmra.mrb[0].mxu0 %v6524
    %v6824 = vpop.f32.mrb[0].mxu0
    %v6825 = vadd.f32 0.0, %v6824
    %v6826 = vpop.f32.mrb[0].mxu0
    %v6827 = vpop.f32.mrb[0].mxu0
    %v6828 = vadd.f32 0.0, %v6827
    %v6829 = vpop.f32.mrb[0].mxu0
    %6830 = vmatprep.mubr.bf16.mxu0 0
    %6831 = vmatmul.mubr.bf16.gmra.mrb[0].mxu0 %v6526
    %v6832 = vpop.f32.mrb[0].mxu0
    %v6833 = vadd.f32 0.0, %v6832
    %v6834 = vpop.f32.mrb[0].mxu0
    %v6835 = vpop.f32.mrb[0].mxu0
    %v6836 = vadd.f32 0.0, %v6835
    %v6837 = vpop.f32.mrb[0].mxu0
    %6838 = vmatprep.mubr.bf16.mxu0 0
    %6839 = vmatmul.mubr.bf16.gmra.mrb[0].mxu0 %v6528
    %v6840 = vpop.f32.mrb[0].mxu0
    %v6841 = vadd.f32 0.0, %v6840
    %v6842 = vpop.f32.mrb[0].mxu0
    %v6843 = vpop.f32.mrb[0].mxu0
    %v6844 = vadd.f32 0.0, %v6843
    %v6845 = vpop.f32.mrb[0].mxu0
    %6846 = vmatprep.mubr.bf16.mxu0 0
    %6847 = vmatmul.mubr.bf16.gmra.mrb[0].mxu0 %v6530
    %v6848 = vpop.f32.mrb[0].mxu0
    %v6849 = vadd.f32 0.0, %v6848
    %v6850 = vpop.f32.mrb[0].mxu0
    %v6851 = vpop.f32.mrb[0].mxu0
    %v6852 = vadd.f32 0.0, %v6851
    %v6853 = vpop.f32.mrb[0].mxu0
    %6854 = vdwg.mxu0
    %v6855 = vld [vmem:[#allocation2] sm:$0xff]
    %v6856 = vld [vmem:[#allocation2 + $0x8] sm:$0xff]
    %v6857 = vld [vmem:[#allocation2 + $0x10] sm:$0xff]
    %v6858 = vld [vmem:[#allocation2 + $0x18] sm:$0xff]
    %v6859 = vld [vmem:[#allocation2 + $0x20] sm:$0xff]
    %v6860 = vld [vmem:[#allocation2 + $0x28] sm:$0xff]
    %v6861 = vld [vmem:[#allocation2 + $0x30] sm:$0xff]
    %v6862 = vld [vmem:[#allocation2 + $0x38] sm:$0xff]
    %v6863 = vld [vmem:[#allocation2 + $0x40] sm:$0xff]
    %v6864 = vld [vmem:[#allocation2 + $0x48] sm:$0xff]
    %v6865 = vld [vmem:[#allocation2 + $0x50] sm:$0xff]
    %v6866 = vld [vmem:[#allocation2 + $0x58] sm:$0xff]
    %v6867 = vld [vmem:[#allocation2 + $0x60] sm:$0xff]
    %v6868 = vld [vmem:[#allocation2 + $0x68] sm:$0xff]
    %v6869 = vld [vmem:[#allocation2 + $0x70] sm:$0xff]
    %v6870 = vld [vmem:[#allocation2 + $0x78] sm:$0xff]
    %v6871 = vld [vmem:[#allocation2 + $0x80] sm:$0xff]
    %v6872 = vld [vmem:[#allocation2 + $0x88] sm:$0xff]
    %v6873 = vld [vmem:[#allocation2 + $0x90] sm:$0xff]
    %v6874 = vld [vmem:[#allocation2 + $0x98] sm:$0xff]
    %v6875 = vld [vmem:[#allocation2 + $0xa0] sm:$0xff]
    %v6876 = vld [vmem:[#allocation2 + $0xa8] sm:$0xff]
    %v6877 = vld [vmem:[#allocation2 + $0xb0] sm:$0xff]
    %v6878 = vld [vmem:[#allocation2 + $0xb8] sm:$0xff]
    %v6879 = vld [vmem:[#allocation2 + $0xc0] sm:$0xff]
    %v6880 = vld [vmem:[#allocation2 + $0xc8] sm:$0xff]
    %v6881 = vld [vmem:[#allocation2 + $0xd0] sm:$0xff]
    %v6882 = vld [vmem:[#allocation2 + $0xd8] sm:$0xff]
    %v6883 = vld [vmem:[#allocation2 + $0xe0] sm:$0xff]
    %v6884 = vld [vmem:[#allocation2 + $0xe8] sm:$0xff]
    %v6885 = vld [vmem:[#allocation2 + $0xf0] sm:$0xff]
    %v6886 = vld [vmem:[#allocation2 + $0xf8] sm:$0xff]
    %v6887 = vld [vmem:[#allocation2 + $0x100] sm:$0xff]
    %v6888 = vld [vmem:[#allocation2 + $0x108] sm:$0xff]
    %v6889 = vld [vmem:[#allocation2 + $0x110] sm:$0xff]
    %v6890 = vld [vmem:[#allocation2 + $0x118] sm:$0xff]
    %v6891 = vld [vmem:[#allocation2 + $0x120] sm:$0xff]
    %v6892 = vld [vmem:[#allocation2 + $0x128] sm:$0xff]
    %v6893 = vld [vmem:[#allocation2 + $0x130] sm:$0xff]
    %v6894 = vld [vmem:[#allocation2 + $0x138] sm:$0xff]
    %v6895 = vld [vmem:[#allocation2 + $0x140] sm:$0xff]
    %v6896 = vld [vmem:[#allocation2 + $0x148] sm:$0xff]
    %v6897 = vld [vmem:[#allocation2 + $0x150] sm:$0xff]
    %v6898 = vld [vmem:[#allocation2 + $0x158] sm:$0xff]
    %v6899 = vld [vmem:[#allocation2 + $0x160] sm:$0xff]
    %v6900 = vld [vmem:[#allocation2 + $0x168] sm:$0xff]
    %v6901 = vld [vmem:[#allocation2 + $0x170] sm:$0xff]
    %v6902 = vld [vmem:[#allocation2 + $0x178] sm:$0xff]
    %v6903 = vld [vmem:[#allocation2 + $0x180] sm:$0xff]
    %v6904 = vld [vmem:[#allocation2 + $0x188] sm:$0xff]
    %v6905 = vld [vmem:[#allocation2 + $0x190] sm:$0xff]
    %v6906 = vld [vmem:[#allocation2 + $0x198] sm:$0xff]
    %v6907 = vld [vmem:[#allocation2 + $0x1a0] sm:$0xff]
    %v6908 = vld [vmem:[#allocation2 + $0x1a8] sm:$0xff]
    %v6909 = vadd.f32 %v6855, %v6641
    %v6910 = vadd.f32 %v6856, %v6644
    %v6911 = vadd.f32 %v6857, %v6649
    %v6912 = vadd.f32 %v6858, %v6652
    %v6913 = vadd.f32 %v6859, %v6657
    %v6914 = vadd.f32 %v6860, %v6660
    %v6915 = vadd.f32 %v6861, %v6665
    %v6916 = vadd.f32 %v6862, %v6668
    %v6917 = vadd.f32 %v6863, %v6673
    %v6918 = vadd.f32 %v6864, %v6676
    %v6919 = vadd.f32 %v6865, %v6681
    %v6920 = vadd.f32 %v6866, %v6684
    %v6921 = vadd.f32 %v6867, %v6689
    %v6922 = vadd.f32 %v6868, %v6692
    %v6923 = vadd.f32 %v6869, %v6697
    %v6924 = vadd.f32 %v6870, %v6700
    %v6925 = vadd.f32 %v6871, %v6705
    %v6926 = vadd.f32 %v6872, %v6708
    %v6927 = vadd.f32 %v6873, %v6713
    %v6928 = vadd.f32 %v6874, %v6716
    %v6929 = vadd.f32 %v6875, %v6721
    %v6930 = vadd.f32 %v6876, %v6724
    %v6931 = vadd.f32 %v6877, %v6729
    %v6932 = vadd.f32 %v6878, %v6732
    %v6933 = vadd.f32 %v6879, %v6737
    %v6934 = vadd.f32 %v6880, %v6740
    %v6935 = vadd.f32 %v6881, %v6745
    %v6936 = vadd.f32 %v6882, %v6748
    %v6937 = vadd.f32 %v6883, %v6753
    %v6938 = vadd.f32 %v6884, %v6756
    %v6939 = vadd.f32 %v6885, %v6761
    %v6940 = vadd.f32 %v6886, %v6764
    %v6941 = vadd.f32 %v6887, %v6769
    %v6942 = vadd.f32 %v6888, %v6772
    %v6943 = vadd.f32 %v6889, %v6777
    %v6944 = vadd.f32 %v6890, %v6780
    %v6945 = vadd.f32 %v6891, %v6785
    %v6946 = vadd.f32 %v6892, %v6788
    %v6947 = vadd.f32 %v6893, %v6793
    %v6948 = vadd.f32 %v6894, %v6796
    %v6949 = vadd.f32 %v6895, %v6801
    %v6950 = vadd.f32 %v6896, %v6804
    %v6951 = vadd.f32 %v6897, %v6809
    %v6952 = vadd.f32 %v6898, %v6812
    %v6953 = vadd.f32 %v6899, %v6817
    %v6954 = vadd.f32 %v6900, %v6820
    %v6955 = vadd.f32 %v6901, %v6825
    %v6956 = vadd.f32 %v6902, %v6828
    %v6957 = vadd.f32 %v6903, %v6833
    %v6958 = vadd.f32 %v6904, %v6836
    %v6959 = vadd.f32 %v6905, %v6841
    %v6960 = vadd.f32 %v6906, %v6844
    %v6961 = vadd.f32 %v6907, %v6849
    %v6962 = vadd.f32 %v6908, %v6852
    %6963 = vst [vmem:[#allocation2] sm:$0xff] %v6909
    %6964 = vst [vmem:[#allocation2 + $0x8] sm:$0xff] %v6910
    %6965 = vst [vmem:[#allocation2 + $0x10] sm:$0xff] %v6911
    %6966 = vst [vmem:[#allocation2 + $0x18] sm:$0xff] %v6912
    %6967 = vst [vmem:[#allocation2 + $0x20] sm:$0xff] %v6913
    %6968 = vst [vmem:[#allocation2 + $0x28] sm:$0xff] %v6914
    %6969 = vst [vmem:[#allocation2 + $0x30] sm:$0xff] %v6915
    %6970 = vst [vmem:[#allocation2 + $0x38] sm:$0xff] %v6916
    %6971 = vst [vmem:[#allocation2 + $0x40] sm:$0xff] %v6917
    %6972 = vst [vmem:[#allocation2 + $0x48] sm:$0xff] %v6918
    %6973 = vst [vmem:[#allocation2 + $0x50] sm:$0xff] %v6919
    %6974 = vst [vmem:[#allocation2 + $0x58] sm:$0xff] %v6920
    %6975 = vst [vmem:[#allocation2 + $0x60] sm:$0xff] %v6921
    %6976 = vst [vmem:[#allocation2 + $0x68] sm:$0xff] %v6922
    %6977 = vst [vmem:[#allocation2 + $0x70] sm:$0xff] %v6923
    %6978 = vst [vmem:[#allocation2 + $0x78] sm:$0xff] %v6924
    %6979 = vst [vmem:[#allocation2 + $0x80] sm:$0xff] %v6925
    %6980 = vst [vmem:[#allocation2 + $0x88] sm:$0xff] %v6926
    %6981 = vst [vmem:[#allocation2 + $0x90] sm:$0xff] %v6927
    %6982 = vst [vmem:[#allocation2 + $0x98] sm:$0xff] %v6928
    %6983 = vst [vmem:[#allocation2 + $0xa0] sm:$0xff] %v6929
    %6984 = vst [vmem:[#allocation2 + $0xa8] sm:$0xff] %v6930
    %6985 = vst [vmem:[#allocation2 + $0xb0] sm:$0xff] %v6931
    %6986 = vst [vmem:[#allocation2 + $0xb8] sm:$0xff] %v6932
    %6987 = vst [vmem:[#allocation2 + $0xc0] sm:$0xff] %v6933
    %6988 = vst [vmem:[#allocation2 + $0xc8] sm:$0xff] %v6934
    %6989 = vst [vmem:[#allocation2 + $0xd0] sm:$0xff] %v6935
    %6990 = vst [vmem:[#allocation2 + $0xd8] sm:$0xff] %v6936
    %6991 = vst [vmem:[#allocation2 + $0xe0] sm:$0xff] %v6937
    %6992 = vst [vmem:[#allocation2 + $0xe8] sm:$0xff] %v6938
    %6993 = vst [vmem:[#allocation2 + $0xf0] sm:$0xff] %v6939
    %6994 = vst [vmem:[#allocation2 + $0xf8] sm:$0xff] %v6940
    %6995 = vst [vmem:[#allocation2 + $0x100] sm:$0xff] %v6941
    %6996 = vst [vmem:[#allocation2 + $0x108] sm:$0xff] %v6942
    %6997 = vst [vmem:[#allocation2 + $0x110] sm:$0xff] %v6943
    %6998 = vst [vmem:[#allocation2 + $0x118] sm:$0xff] %v6944
    %6999 = vst [vmem:[#allocation2 + $0x120] sm:$0xff] %v6945
    %7000 = vst [vmem:[#allocation2 + $0x128] sm:$0xff] %v6946
    %7001 = vst [vmem:[#allocation2 + $0x130] sm:$0xff] %v6947
    %7002 = vst [vmem:[#allocation2 + $0x138] sm:$0xff] %v6948
    %7003 = vst [vmem:[#allocation2 + $0x140] sm:$0xff] %v6949
    %7004 = vst [vmem:[#allocation2 + $0x148] sm:$0xff] %v6950
    %7005 = vst [vmem:[#allocation2 + $0x150] sm:$0xff] %v6951
    %7006 = vst [vmem:[#allocation2 + $0x158] sm:$0xff] %v6952
    %7007 = vst [vmem:[#allocation2 + $0x160] sm:$0xff] %v6953
    %7008 = vst [vmem:[#allocation2 + $0x168] sm:$0xff] %v6954
    %7009 = vst [vmem:[#allocation2 + $0x170] sm:$0xff] %v6955
    %7010 = vst [vmem:[#allocation2 + $0x178] sm:$0xff] %v6956
    %7011 = vst [vmem:[#allocation2 + $0x180] sm:$0xff] %v6957
    %7012 = vst [vmem:[#allocation2 + $0x188] sm:$0xff] %v6958
    %7013 = vst [vmem:[#allocation2 + $0x190] sm:$0xff] %v6959
    %7014 = vst [vmem:[#allocation2 + $0x198] sm:$0xff] %v6960
    %7015 = vst [vmem:[#allocation2 + $0x1a0] sm:$0xff] %v6961
    %7016 = vst [vmem:[#allocation2 + $0x1a8] sm:$0xff] %v6962
    %v7017 = vld [vmem:[#allocation2] sm:$0xff]
    %v7018 = vld [vmem:[#allocation2 + $0x8] sm:$0xff]
    %v7019 = vld [vmem:[#allocation2 + $0x10] sm:$0xff]
    %v7020 = vld [vmem:[#allocation2 + $0x18] sm:$0xff]
    %v7021 = vld [vmem:[#allocation2 + $0x20] sm:$0xff]
    %v7022 = vld [vmem:[#allocation2 + $0x28] sm:$0xff]
    %v7023 = vld [vmem:[#allocation2 + $0x30] sm:$0xff]
    %v7024 = vld [vmem:[#allocation2 + $0x38] sm:$0xff]
    %v7025 = vld [vmem:[#allocation2 + $0x40] sm:$0xff]
    %v7026 = vld [vmem:[#allocation2 + $0x48] sm:$0xff]
    %v7027 = vld [vmem:[#allocation2 + $0x50] sm:$0xff]
    %v7028 = vld [vmem:[#allocation2 + $0x58] sm:$0xff]
    %v7029 = vld [vmem:[#allocation2 + $0x60] sm:$0xff]
    %v7030 = vld [vmem:[#allocation2 + $0x68] sm:$0xff]
    %v7031 = vld [vmem:[#allocation2 + $0x70] sm:$0xff]
    %v7032 = vld [vmem:[#allocation2 + $0x78] sm:$0xff]
    %v7033 = vld [vmem:[#allocation2 + $0x80] sm:$0xff]
    %v7034 = vld [vmem:[#allocation2 + $0x88] sm:$0xff]
    %v7035 = vld [vmem:[#allocation2 + $0x90] sm:$0xff]
    %v7036 = vld [vmem:[#allocation2 + $0x98] sm:$0xff]
    %v7037 = vld [vmem:[#allocation2 + $0xa0] sm:$0xff]
    %v7038 = vld [vmem:[#allocation2 + $0xa8] sm:$0xff]
    %v7039 = vld [vmem:[#allocation2 + $0xb0] sm:$0xff]
    %v7040 = vld [vmem:[#allocation2 + $0xb8] sm:$0xff]
    %v7041 = vld [vmem:[#allocation2 + $0xc0] sm:$0xff]
    %v7042 = vld [vmem:[#allocation2 + $0xc8] sm:$0xff]
    %v7043 = vld [vmem:[#allocation2 + $0xd0] sm:$0xff]
    %v7044 = vld [vmem:[#allocation2 + $0xd8] sm:$0xff]
    %v7045 = vld [vmem:[#allocation2 + $0xe0] sm:$0xff]
    %v7046 = vld [vmem:[#allocation2 + $0xe8] sm:$0xff]
    %v7047 = vld [vmem:[#allocation2 + $0xf0] sm:$0xff]
    %v7048 = vld [vmem:[#allocation2 + $0xf8] sm:$0xff]
    %v7049 = vld [vmem:[#allocation2 + $0x100] sm:$0xff]
    %v7050 = vld [vmem:[#allocation2 + $0x108] sm:$0xff]
    %v7051 = vld [vmem:[#allocation2 + $0x110] sm:$0xff]
    %v7052 = vld [vmem:[#allocation2 + $0x118] sm:$0xff]
    %v7053 = vld [vmem:[#allocation2 + $0x120] sm:$0xff]
    %v7054 = vld [vmem:[#allocation2 + $0x128] sm:$0xff]
    %v7055 = vld [vmem:[#allocation2 + $0x130] sm:$0xff]
    %v7056 = vld [vmem:[#allocation2 + $0x138] sm:$0xff]
    %v7057 = vld [vmem:[#allocation2 + $0x140] sm:$0xff]
    %v7058 = vld [vmem:[#allocation2 + $0x148] sm:$0xff]
    %v7059 = vld [vmem:[#allocation2 + $0x150] sm:$0xff]
    %v7060 = vld [vmem:[#allocation2 + $0x158] sm:$0xff]
    %v7061 = vld [vmem:[#allocation2 + $0x160] sm:$0xff]
    %v7062 = vld [vmem:[#allocation2 + $0x168] sm:$0xff]
    %v7063 = vld [vmem:[#allocation2 + $0x170] sm:$0xff]
    %v7064 = vld [vmem:[#allocation2 + $0x178] sm:$0xff]
    %v7065 = vld [vmem:[#allocation2 + $0x180] sm:$0xff]
    %v7066 = vld [vmem:[#allocation2 + $0x188] sm:$0xff]
    %v7067 = vld [vmem:[#allocation2 + $0x190] sm:$0xff]
    %v7068 = vld [vmem:[#allocation2 + $0x198] sm:$0xff]
    %v7069 = vld [vmem:[#allocation2 + $0x1a0] sm:$0xff]
    %v7070 = vld [vmem:[#allocation2 + $0x1a8] sm:$0xff]
    %v7071 = vld [vmem:[%s2] sm:$0x1]
    %v7073 = vlaneseq
    %v7074 = vshrl.u32 %v7073, 7
    %v7075 = vsub.s32 0, %v7074
    %v7076 = vrot.slane %v7071, %v7075
    %v7078 = vmul.f32 %v7017, %v7076
    %v7079 = vmul.f32 %v7018, %v7076
    %v7080 = vmul.f32 %v7019, %v7076
    %v7081 = vmul.f32 %v7020, %v7076
    %v7082 = vmul.f32 %v7021, %v7076
    %v7083 = vmul.f32 %v7022, %v7076
    %v7084 = vmul.f32 %v7023, %v7076
    %v7085 = vmul.f32 %v7024, %v7076
    %v7086 = vmul.f32 %v7025, %v7076
    %v7087 = vmul.f32 %v7026, %v7076
    %v7088 = vmul.f32 %v7027, %v7076
    %v7089 = vmul.f32 %v7028, %v7076
    %v7090 = vmul.f32 %v7029, %v7076
    %v7091 = vmul.f32 %v7030, %v7076
    %v7092 = vmul.f32 %v7031, %v7076
    %v7093 = vmul.f32 %v7032, %v7076
    %v7094 = vmul.f32 %v7033, %v7076
    %v7095 = vmul.f32 %v7034, %v7076
    %v7096 = vmul.f32 %v7035, %v7076
    %v7097 = vmul.f32 %v7036, %v7076
    %v7098 = vmul.f32 %v7037, %v7076
    %v7099 = vmul.f32 %v7038, %v7076
    %v7100 = vmul.f32 %v7039, %v7076
    %v7101 = vmul.f32 %v7040, %v7076
    %v7102 = vmul.f32 %v7041, %v7076
    %v7103 = vmul.f32 %v7042, %v7076
    %v7104 = vmul.f32 %v7043, %v7076
    %v7105 = vmul.f32 %v7044, %v7076
    %v7106 = vmul.f32 %v7045, %v7076
    %v7107 = vmul.f32 %v7046, %v7076
    %v7108 = vmul.f32 %v7047, %v7076
    %v7109 = vmul.f32 %v7048, %v7076
    %v7110 = vmul.f32 %v7049, %v7076
    %v7111 = vmul.f32 %v7050, %v7076
    %v7112 = vmul.f32 %v7051, %v7076
    %v7113 = vmul.f32 %v7052, %v7076
    %v7114 = vmul.f32 %v7053, %v7076
    %v7115 = vmul.f32 %v7054, %v7076
    %v7116 = vmul.f32 %v7055, %v7076
    %v7117 = vmul.f32 %v7056, %v7076
    %v7118 = vmul.f32 %v7057, %v7076
    %v7119 = vmul.f32 %v7058, %v7076
    %v7120 = vmul.f32 %v7059, %v7076
    %v7121 = vmul.f32 %v7060, %v7076
    %v7122 = vmul.f32 %v7061, %v7076
    %v7123 = vmul.f32 %v7062, %v7076
    %v7124 = vmul.f32 %v7063, %v7076
    %v7125 = vmul.f32 %v7064, %v7076
    %v7126 = vmul.f32 %v7065, %v7076
    %v7127 = vmul.f32 %v7066, %v7076
    %v7128 = vmul.f32 %v7067, %v7076
    %v7129 = vmul.f32 %v7068, %v7076
    %v7130 = vmul.f32 %v7069, %v7076
    %v7131 = vmul.f32 %v7070, %v7076
    %v7132 = vld [vmem:[%s3] sm:$0x1]
    %v7134 = vlaneseq
    %v7135 = vshrl.u32 %v7134, 7
    %v7136 = vsub.s32 0, %v7135
    %v7137 = vrot.slane %v7132, %v7136
    %v7139 = vadd.f32 %v7078, %v7137
    %v7140 = vadd.f32 %v7079, %v7137
    %v7141 = vadd.f32 %v7080, %v7137
    %v7142 = vadd.f32 %v7081, %v7137
    %v7143 = vadd.f32 %v7082, %v7137
    %v7144 = vadd.f32 %v7083, %v7137
    %v7145 = vadd.f32 %v7084, %v7137
    %v7146 = vadd.f32 %v7085, %v7137
    %v7147 = vadd.f32 %v7086, %v7137
    %v7148 = vadd.f32 %v7087, %v7137
    %v7149 = vadd.f32 %v7088, %v7137
    %v7150 = vadd.f32 %v7089, %v7137
    %v7151 = vadd.f32 %v7090, %v7137
    %v7152 = vadd.f32 %v7091, %v7137
    %v7153 = vadd.f32 %v7092, %v7137
    %v7154 = vadd.f32 %v7093, %v7137
    %v7155 = vadd.f32 %v7094, %v7137
    %v7156 = vadd.f32 %v7095, %v7137
    %v7157 = vadd.f32 %v7096, %v7137
    %v7158 = vadd.f32 %v7097, %v7137
    %v7159 = vadd.f32 %v7098, %v7137
    %v7160 = vadd.f32 %v7099, %v7137
    %v7161 = vadd.f32 %v7100, %v7137
    %v7162 = vadd.f32 %v7101, %v7137
    %v7163 = vadd.f32 %v7102, %v7137
    %v7164 = vadd.f32 %v7103, %v7137
    %v7165 = vadd.f32 %v7104, %v7137
    %v7166 = vadd.f32 %v7105, %v7137
    %v7167 = vadd.f32 %v7106, %v7137
    %v7168 = vadd.f32 %v7107, %v7137
    %v7169 = vadd.f32 %v7108, %v7137
    %v7170 = vadd.f32 %v7109, %v7137
    %v7171 = vadd.f32 %v7110, %v7137
    %v7172 = vadd.f32 %v7111, %v7137
    %v7173 = vadd.f32 %v7112, %v7137
    %v7174 = vadd.f32 %v7113, %v7137
    %v7175 = vadd.f32 %v7114, %v7137
    %v7176 = vadd.f32 %v7115, %v7137
    %v7177 = vadd.f32 %v7116, %v7137
    %v7178 = vadd.f32 %v7117, %v7137
    %v7179 = vadd.f32 %v7118, %v7137
    %v7180 = vadd.f32 %v7119, %v7137
    %v7181 = vadd.f32 %v7120, %v7137
    %v7182 = vadd.f32 %v7121, %v7137
    %v7183 = vadd.f32 %v7122, %v7137
    %v7184 = vadd.f32 %v7123, %v7137
    %v7185 = vadd.f32 %v7124, %v7137
    %v7186 = vadd.f32 %v7125, %v7137
    %v7187 = vadd.f32 %v7126, %v7137
    %v7188 = vadd.f32 %v7127, %v7137
    %v7189 = vadd.f32 %v7128, %v7137
    %v7190 = vadd.f32 %v7129, %v7137
    %v7191 = vadd.f32 %v7130, %v7137
    %v7192 = vadd.f32 %v7131, %v7137
    %vm7193 = vcmp.ge.f32.partialorder %v7139, 0.0
    %vm7194 = vcmp.ge.f32.partialorder %v7140, 0.0
    %vm7195 = vcmp.ge.f32.partialorder %v7141, 0.0
    %vm7196 = vcmp.ge.f32.partialorder %v7142, 0.0
    %vm7197 = vcmp.ge.f32.partialorder %v7143, 0.0
    %vm7198 = vcmp.ge.f32.partialorder %v7144, 0.0
    %vm7199 = vcmp.ge.f32.partialorder %v7145, 0.0
    %vm7200 = vcmp.ge.f32.partialorder %v7146, 0.0
    %vm7201 = vcmp.ge.f32.partialorder %v7147, 0.0
    %vm7202 = vcmp.ge.f32.partialorder %v7148, 0.0
    %vm7203 = vcmp.ge.f32.partialorder %v7149, 0.0
    %vm7204 = vcmp.ge.f32.partialorder %v7150, 0.0
    %vm7205 = vcmp.ge.f32.partialorder %v7151, 0.0
    %vm7206 = vcmp.ge.f32.partialorder %v7152, 0.0
    %vm7207 = vcmp.ge.f32.partialorder %v7153, 0.0
    %vm7208 = vcmp.ge.f32.partialorder %v7154, 0.0
    %vm7209 = vcmp.ge.f32.partialorder %v7155, 0.0
    %vm7210 = vcmp.ge.f32.partialorder %v7156, 0.0
    %vm7211 = vcmp.ge.f32.partialorder %v7157, 0.0
    %vm7212 = vcmp.ge.f32.partialorder %v7158, 0.0
    %vm7213 = vcmp.ge.f32.partialorder %v7159, 0.0
    %vm7214 = vcmp.ge.f32.partialorder %v7160, 0.0
    %vm7215 = vcmp.ge.f32.partialorder %v7161, 0.0
    %vm7216 = vcmp.ge.f32.partialorder %v7162, 0.0
    %vm7217 = vcmp.ge.f32.partialorder %v7163, 0.0
    %vm7218 = vcmp.ge.f32.partialorder %v7164, 0.0
    %vm7219 = vcmp.ge.f32.partialorder %v7165, 0.0
    %vm7220 = vcmp.ge.f32.partialorder %v7166, 0.0
    %vm7221 = vcmp.ge.f32.partialorder %v7167, 0.0
    %vm7222 = vcmp.ge.f32.partialorder %v7168, 0.0
    %vm7223 = vcmp.ge.f32.partialorder %v7169, 0.0
    %vm7224 = vcmp.ge.f32.partialorder %v7170, 0.0
    %vm7225 = vcmp.ge.f32.partialorder %v7171, 0.0
    %vm7226 = vcmp.ge.f32.partialorder %v7172, 0.0
    %vm7227 = vcmp.ge.f32.partialorder %v7173, 0.0
    %vm7228 = vcmp.ge.f32.partialorder %v7174, 0.0
    %vm7229 = vcmp.ge.f32.partialorder %v7175, 0.0
    %vm7230 = vcmp.ge.f32.partialorder %v7176, 0.0
    %vm7231 = vcmp.ge.f32.partialorder %v7177, 0.0
    %vm7232 = vcmp.ge.f32.partialorder %v7178, 0.0
    %vm7233 = vcmp.ge.f32.partialorder %v7179, 0.0
    %vm7234 = vcmp.ge.f32.partialorder %v7180, 0.0
    %vm7235 = vcmp.ge.f32.partialorder %v7181, 0.0
    %vm7236 = vcmp.ge.f32.partialorder %v7182, 0.0
    %vm7237 = vcmp.ge.f32.partialorder %v7183, 0.0
    %vm7238 = vcmp.ge.f32.partialorder %v7184, 0.0
    %vm7239 = vcmp.ge.f32.partialorder %v7185, 0.0
    %vm7240 = vcmp.ge.f32.partialorder %v7186, 0.0
    %vm7241 = vcmp.ge.f32.partialorder %v7187, 0.0
    %vm7242 = vcmp.ge.f32.partialorder %v7188, 0.0
    %vm7243 = vcmp.ge.f32.partialorder %v7189, 0.0
    %vm7244 = vcmp.ge.f32.partialorder %v7190, 0.0
    %vm7245 = vcmp.ge.f32.partialorder %v7191, 0.0
    %vm7246 = vcmp.ge.f32.partialorder %v7192, 0.0
    %v7247 = vmul.f32 %v7139, 0.01
    %v7248 = vmul.f32 %v7140, 0.01
    %v7249 = vmul.f32 %v7141, 0.01
    %v7250 = vmul.f32 %v7142, 0.01
    %v7251 = vmul.f32 %v7143, 0.01
    %v7252 = vmul.f32 %v7144, 0.01
    %v7253 = vmul.f32 %v7145, 0.01
    %v7254 = vmul.f32 %v7146, 0.01
    %v7255 = vmul.f32 %v7147, 0.01
    %v7256 = vmul.f32 %v7148, 0.01
    %v7257 = vmul.f32 %v7149, 0.01
    %v7258 = vmul.f32 %v7150, 0.01
    %v7259 = vmul.f32 %v7151, 0.01
    %v7260 = vmul.f32 %v7152, 0.01
    %v7261 = vmul.f32 %v7153, 0.01
    %v7262 = vmul.f32 %v7154, 0.01
    %v7263 = vmul.f32 %v7155, 0.01
    %v7264 = vmul.f32 %v7156, 0.01
    %v7265 = vmul.f32 %v7157, 0.01
    %v7266 = vmul.f32 %v7158, 0.01
    %v7267 = vmul.f32 %v7159, 0.01
    %v7268 = vmul.f32 %v7160, 0.01
    %v7269 = vmul.f32 %v7161, 0.01
    %v7270 = vmul.f32 %v7162, 0.01
    %v7271 = vmul.f32 %v7163, 0.01
    %v7272 = vmul.f32 %v7164, 0.01
    %v7273 = vmul.f32 %v7165, 0.01
    %v7274 = vmul.f32 %v7166, 0.01
    %v7275 = vmul.f32 %v7167, 0.01
    %v7276 = vmul.f32 %v7168, 0.01
    %v7277 = vmul.f32 %v7169, 0.01
    %v7278 = vmul.f32 %v7170, 0.01
    %v7279 = vmul.f32 %v7171, 0.01
    %v7280 = vmul.f32 %v7172, 0.01
    %v7281 = vmul.f32 %v7173, 0.01
    %v7282 = vmul.f32 %v7174, 0.01
    %v7283 = vmul.f32 %v7175, 0.01
    %v7284 = vmul.f32 %v7176, 0.01
    %v7285 = vmul.f32 %v7177, 0.01
    %v7286 = vmul.f32 %v7178, 0.01
    %v7287 = vmul.f32 %v7179, 0.01
    %v7288 = vmul.f32 %v7180, 0.01
    %v7289 = vmul.f32 %v7181, 0.01
    %v7290 = vmul.f32 %v7182, 0.01
    %v7291 = vmul.f32 %v7183, 0.01
    %v7292 = vmul.f32 %v7184, 0.01
    %v7293 = vmul.f32 %v7185, 0.01
    %v7294 = vmul.f32 %v7186, 0.01
    %v7295 = vmul.f32 %v7187, 0.01
    %v7296 = vmul.f32 %v7188, 0.01
    %v7297 = vmul.f32 %v7189, 0.01
    %v7298 = vmul.f32 %v7190, 0.01
    %v7299 = vmul.f32 %v7191, 0.01
    %v7300 = vmul.f32 %v7192, 0.01
    %v7301 = vsel %vm7193, %v7139, %v7247
    %v7302 = vsel %vm7194, %v7140, %v7248
    %v7303 = vsel %vm7195, %v7141, %v7249
    %v7304 = vsel %vm7196, %v7142, %v7250
    %v7305 = vsel %vm7197, %v7143, %v7251
    %v7306 = vsel %vm7198, %v7144, %v7252
    %v7307 = vsel %vm7199, %v7145, %v7253
    %v7308 = vsel %vm7200, %v7146, %v7254
    %v7309 = vsel %vm7201, %v7147, %v7255
    %v7310 = vsel %vm7202, %v7148, %v7256
    %v7311 = vsel %vm7203, %v7149, %v7257
    %v7312 = vsel %vm7204, %v7150, %v7258
    %v7313 = vsel %vm7205, %v7151, %v7259
    %v7314 = vsel %vm7206, %v7152, %v7260
    %v7315 = vsel %vm7207, %v7153, %v7261
    %v7316 = vsel %vm7208, %v7154, %v7262
    %v7317 = vsel %vm7209, %v7155, %v7263
    %v7318 = vsel %vm7210, %v7156, %v7264
    %v7319 = vsel %vm7211, %v7157, %v7265
    %v7320 = vsel %vm7212, %v7158, %v7266
    %v7321 = vsel %vm7213, %v7159, %v7267
    %v7322 = vsel %vm7214, %v7160, %v7268
    %v7323 = vsel %vm7215, %v7161, %v7269
    %v7324 = vsel %vm7216, %v7162, %v7270
    %v7325 = vsel %vm7217, %v7163, %v7271
    %v7326 = vsel %vm7218, %v7164, %v7272
    %v7327 = vsel %vm7219, %v7165, %v7273
    %v7328 = vsel %vm7220, %v7166, %v7274
    %v7329 = vsel %vm7221, %v7167, %v7275
    %v7330 = vsel %vm7222, %v7168, %v7276
    %v7331 = vsel %vm7223, %v7169, %v7277
    %v7332 = vsel %vm7224, %v7170, %v7278
    %v7333 = vsel %vm7225, %v7171, %v7279
    %v7334 = vsel %vm7226, %v7172, %v7280
    %v7335 = vsel %vm7227, %v7173, %v7281
    %v7336 = vsel %vm7228, %v7174, %v7282
    %v7337 = vsel %vm7229, %v7175, %v7283
    %v7338 = vsel %vm7230, %v7176, %v7284
    %v7339 = vsel %vm7231, %v7177, %v7285
    %v7340 = vsel %vm7232, %v7178, %v7286
    %v7341 = vsel %vm7233, %v7179, %v7287
    %v7342 = vsel %vm7234, %v7180, %v7288
    %v7343 = vsel %vm7235, %v7181, %v7289
    %v7344 = vsel %vm7236, %v7182, %v7290
    %v7345 = vsel %vm7237, %v7183, %v7291
    %v7346 = vsel %vm7238, %v7184, %v7292
    %v7347 = vsel %vm7239, %v7185, %v7293
    %v7348 = vsel %vm7240, %v7186, %v7294
    %v7349 = vsel %vm7241, %v7187, %v7295
    %v7350 = vsel %vm7242, %v7188, %v7296
    %v7351 = vsel %vm7243, %v7189, %v7297
    %v7352 = vsel %vm7244, %v7190, %v7298
    %v7353 = vsel %vm7245, %v7191, %v7299
    %v7354 = vsel %vm7246, %v7192, %v7300
    %7355 = vst [vmem:[#allocation8] sm:$0xff] %v7301
    %7356 = vst [vmem:[#allocation8 + $0x8] sm:$0xff] %v7302
    %7357 = vst [vmem:[#allocation8 + $0x10] sm:$0xff] %v7303
    %7358 = vst [vmem:[#allocation8 + $0x18] sm:$0xff] %v7304
    %7359 = vst [vmem:[#allocation8 + $0x20] sm:$0xff] %v7305
    %7360 = vst [vmem:[#allocation8 + $0x28] sm:$0xff] %v7306
    %7361 = vst [vmem:[#allocation8 + $0x30] sm:$0xff] %v7307
    %7362 = vst [vmem:[#allocation8 + $0x38] sm:$0xff] %v7308
    %7363 = vst [vmem:[#allocation8 + $0x40] sm:$0xff] %v7309
    %7364 = vst [vmem:[#allocation8 + $0x48] sm:$0xff] %v7310
    %7365 = vst [vmem:[#allocation8 + $0x50] sm:$0xff] %v7311
    %7366 = vst [vmem:[#allocation8 + $0x58] sm:$0xff] %v7312
    %7367 = vst [vmem:[#allocation8 + $0x60] sm:$0xff] %v7313
    %7368 = vst [vmem:[#allocation8 + $0x68] sm:$0xff] %v7314
    %7369 = vst [vmem:[#allocation8 + $0x70] sm:$0xff] %v7315
    %7370 = vst [vmem:[#allocation8 + $0x78] sm:$0xff] %v7316
    %7371 = vst [vmem:[#allocation8 + $0x80] sm:$0xff] %v7317
    %7372 = vst [vmem:[#allocation8 + $0x88] sm:$0xff] %v7318
    %7373 = vst [vmem:[#allocation8 + $0x90] sm:$0xff] %v7319
    %7374 = vst [vmem:[#allocation8 + $0x98] sm:$0xff] %v7320
    %7375 = vst [vmem:[#allocation8 + $0xa0] sm:$0xff] %v7321
    %7376 = vst [vmem:[#allocation8 + $0xa8] sm:$0xff] %v7322
    %7377 = vst [vmem:[#allocation8 + $0xb0] sm:$0xff] %v7323
    %7378 = vst [vmem:[#allocation8 + $0xb8] sm:$0xff] %v7324
    %7379 = vst [vmem:[#allocation8 + $0xc0] sm:$0xff] %v7325
    %7380 = vst [vmem:[#allocation8 + $0xc8] sm:$0xff] %v7326
    %7381 = vst [vmem:[#allocation8 + $0xd0] sm:$0xff] %v7327
    %7382 = vst [vmem:[#allocation8 + $0xd8] sm:$0xff] %v7328
    %7383 = vst [vmem:[#allocation8 + $0xe0] sm:$0xff] %v7329
    %7384 = vst [vmem:[#allocation8 + $0xe8] sm:$0xff] %v7330
    %7385 = vst [vmem:[#allocation8 + $0xf0] sm:$0xff] %v7331
    %7386 = vst [vmem:[#allocation8 + $0xf8] sm:$0xff] %v7332
    %7387 = vst [vmem:[#allocation8 + $0x100] sm:$0xff] %v7333
    %7388 = vst [vmem:[#allocation8 + $0x108] sm:$0xff] %v7334
    %7389 = vst [vmem:[#allocation8 + $0x110] sm:$0xff] %v7335
    %7390 = vst [vmem:[#allocation8 + $0x118] sm:$0xff] %v7336
    %7391 = vst [vmem:[#allocation8 + $0x120] sm:$0xff] %v7337
    %7392 = vst [vmem:[#allocation8 + $0x128] sm:$0xff] %v7338
    %7393 = vst [vmem:[#allocation8 + $0x130] sm:$0xff] %v7339
    %7394 = vst [vmem:[#allocation8 + $0x138] sm:$0xff] %v7340
    %7395 = vst [vmem:[#allocation8 + $0x140] sm:$0xff] %v7341
    %7396 = vst [vmem:[#allocation8 + $0x148] sm:$0xff] %v7342
    %7397 = vst [vmem:[#allocation8 + $0x150] sm:$0xff] %v7343
    %7398 = vst [vmem:[#allocation8 + $0x158] sm:$0xff] %v7344
    %7399 = vst [vmem:[#allocation8 + $0x160] sm:$0xff] %v7345
    %7400 = vst [vmem:[#allocation8 + $0x168] sm:$0xff] %v7346
    %7401 = vst [vmem:[#allocation8 + $0x170] sm:$0xff] %v7347
    %7402 = vst [vmem:[#allocation8 + $0x178] sm:$0xff] %v7348
    %7403 = vst [vmem:[#allocation8 + $0x180] sm:$0xff] %v7349
    %7404 = vst [vmem:[#allocation8 + $0x188] sm:$0xff] %v7350
    %7405 = vst [vmem:[#allocation8 + $0x190] sm:$0xff] %v7351
    %7406 = vst [vmem:[#allocation8 + $0x198] sm:$0xff] %v7352
    %7407 = vst [vmem:[#allocation8 + $0x1a0] sm:$0xff] %v7353
    %7408 = vst [vmem:[#allocation8 + $0x1a8] sm:$0xff] %v7354
    // Predicated region
    $region26: #{tpu_custom_call.1} parent=1 // pred_check
      _
    $region27: #{tpu_custom_call.1} parent=1 // pred_check_branch
      %7410 = sbr.rel (0) target = $region29
    $region28: #{tpu_custom_call.1} parent=1 // pred_region
      %s7412 = ssub.s32 6912, 6912
      %7413 = vsyncadd [#allocation5], %s7412
      %s7414 = sshll.u32 [#allocation8], 4
      %s7415 = int_to_ptr.vmem [resolvable:$true] %s7414
      %7420 = dma.vmem_to_hbm [thread:$0]  %s7415, 6912, %s4, [#allocation5], 128, 128, 8
    $region29: #{tpu_custom_call.1} parent=1 // pred_fallthru
      _
    // Predicated region
    $region30: #{tpu_custom_call.1} parent=1 // pred_check
      _
    $region31: #{tpu_custom_call.1} parent=1 // pred_check_branch
      %7422 = sbr.rel (0) target = $region33
    $region32: #{tpu_custom_call.1} parent=1 // pred_region
      %7423 = dma.done [#allocation5], 6912
    $region33: #{tpu_custom_call.1} parent=1 // pred_fallthru
      _
    %7424 = vsyncpa [#allocation4], 1
    %7425 = vsyncpa [#allocation7], 1
    %7426 = vsyncpa [#allocation5], 1

</llo_original>
